<compile_context>
chip_gen: v6e
topology: v6e:2x2x1
jax: 0.10.0
libtpu: 0.0.40
codegen_flags: <defaults>
</compile_context>

<pallas_src>
import functools

import jax
import jax.numpy as jnp
from jax import lax
from jax.experimental import pallas as pl
from jax.experimental.pallas import tpu as pltpu

EPS = 1e-5  # nn.LayerNorm default eps


def _layernorm(x, gamma, beta):
    mu = jnp.mean(x, axis=-1, keepdims=True)
    var = jnp.mean((x - mu) ** 2, axis=-1, keepdims=True)
    return (x - mu) * lax.rsqrt(var + EPS) * gamma + beta


def metaformer_block_kernel(x_ref, p_ref, w1_ref, w2_ref, sr_ref, o_ref, *,
                            compute_bf16):
    """Fused MetaFormer block for one (tile_t, C) slab of tokens.

    x_ref : (tile_t, C)    token activations (math in f32)
    p_ref : (8, C)         rows 0..3 = gamma1*ls1, beta1*ls1, gamma2, beta2
    w1_ref: (nk, C, hk)    fc1 weight, bf16, hidden dim chunked
    w2_ref: (nk, hk, C)    fc2 weight with layer_scale2 pre-folded, bf16
    sr_ref: (2,)  SMEM     StarReLU [scale, bias]
    """
    x = x_ref[...].astype(jnp.float32)

    g1, b1 = p_ref[0:1, :], p_ref[1:2, :]
    g2, b2 = p_ref[2:3, :], p_ref[3:4, :]

    # branch 1: x + layer_scale1 * Identity(LayerNorm1(x));  ls1 folded into g1/b1.
    x1 = x + _layernorm(x, g1, b1)

    # branch 2: x1 + layer_scale2 * fc2(StarReLU(fc1(LayerNorm2(x1))));
    # ls2 is folded into w2's output columns on the host.
    n2 = _layernorm(x1, g2, b2).astype(jnp.bfloat16)

    nk = w1_ref.shape[0]
    sr_s, sr_b = sr_ref[0], sr_ref[1]

    def mlp_chunk(c, acc):
        h = jnp.dot(n2, w1_ref[c], preferred_element_type=jnp.float32)
        if compute_bf16:
            # v6e/v7x: bf16 VALU -> do the big (tile_t, hk) elementwise block in bf16.
            r = jnp.maximum(h.astype(jnp.bfloat16), 0.0)
            a = sr_s.astype(jnp.bfloat16) * (r * r) + sr_b.astype(jnp.bfloat16)
        else:
            # v5e: no bf16 VALU -> stay in f32, cast once for the MXU.
            r = jnp.maximum(h, 0.0)
            a = (sr_s * (r * r) + sr_b).astype(jnp.bfloat16)
        return acc + jnp.dot(a, w2_ref[c], preferred_element_type=jnp.float32)

    y = lax.fori_loop(0, nk, mlp_chunk, jnp.zeros_like(x1), unroll=True)

    o_ref[...] = (x1 + y).astype(o_ref.dtype)


def _tpu_defaults():
    """(tile_t, vmem_limit_bytes, use_bf16_elementwise) per TPU generation."""
    try:
        kind = jax.devices()[0].device_kind.lower()
    except Exception:  # pragma: no cover
        kind = ""
    is_v5 = "v5" in kind
    is_v7 = ("v7" in kind) or ("tpu7" in kind) or ("7x" in kind)
    if is_v7:
        # 64 MiB physical VMEM per TensorCore on v7x.
        return 256, 56 * 1024 * 1024, True
    # v5e / v6e: 128 MiB physical VMEM.
    return 512, 96 * 1024 * 1024, (not is_v5)


def _vmem_estimate(tile_t, C, Hd, hk, itemsize):
    weights = 2 * C * Hd * 2                # bf16 w1 + w2, single-buffered
    pvec = 8 * C * 4                        # packed LN/scale vectors
    io = 2 * 2 * tile_t * C * itemsize      # double-buffered x-in + out tiles
    inter = tile_t * hk * (4 + 2)           # fc1 f32 result + bf16 StarReLU copy
    inter += 4 * tile_t * C * 4             # x, x1, n2, fc2 accumulator (f32)
    return weights + pvec + io + inter


def metaformer_block(x_nhwc, params, *, tile_t=None, hd_chunk=1024):
    B, H, W, C = x_nhwc.shape
    T = B * H * W
    assert C % 128 == 0, "channel dim must be lane-dense (multiple of 128)"

    default_tile, vmem_limit, compute_bf16 = _tpu_defaults()
    if tile_t is None:
        tile_t = default_tile

    x2d = x_nhwc.reshape(T, C)

    # ---- host-side parameter folding ------------------------------------
    ls1, ls2 = params["ls1"], params["ls2"]
    g1 = params["g1"] * ls1                 # fold layer_scale1 into LN1 gamma/beta
    b1 = params["b1"] * ls1
    pvec = jnp.concatenate(
        [g1, b1, params["g2"], params["b2"], jnp.zeros((4, C), jnp.float32)],
        axis=0,
    )

    w1f = params["w1"].astype(jnp.float32)              # (C, Hd)
    w2f = params["w2"].astype(jnp.float32) * ls2        # fold layer_scale2 into fc2 cols
    Hd = w1f.shape[1]
    assert Hd % 128 == 0, "hidden dim must be lane-dense (multiple of 128)"

    # Hidden-dim chunking (caps the (tile_t, Hd) intermediate for large Hd).
    hk = Hd
    if Hd > hd_chunk:
        for cand in range(hd_chunk - hd_chunk % 128, 127, -128):
            if Hd % cand == 0:
                hk = cand
                break
    nk = Hd // hk
    w1 = w1f.reshape(C, nk, hk).transpose(1, 0, 2).astype(jnp.bfloat16)  # (nk, C, hk)
    w2 = w2f.reshape(nk, hk, C).astype(jnp.bfloat16)                     # (nk, hk, C)

    sr = params["sr"].reshape(2).astype(jnp.float32)

    # ---- tile sizing / padding ------------------------------------------
    tile_t = int(min(tile_t, T))
    tile_t = max(8, (tile_t // 8) * 8)
    budget = int(0.85 * vmem_limit)
    while tile_t > 64 and _vmem_estimate(tile_t, C, Hd, hk, x2d.dtype.itemsize) > budget:
        tile_t = max(64, ((tile_t // 2) // 8) * 8)

    n_t = pl.cdiv(T, tile_t)
    T_pad = n_t * tile_t
    if T_pad != T:   # pad so every grid step is a full, unmasked block
        x2d = jnp.concatenate([x2d, jnp.zeros((T_pad - T, C), x2d.dtype)], axis=0)

    kernel = functools.partial(metaformer_block_kernel, compute_bf16=compute_bf16)

    def run(single_buffer_weights):
        def cspec(shape):
            # Grid-invariant operands: single-buffer (double buffering is pure
            # VMEM waste when the index_map is constant).
            if single_buffer_weights:
                return pl.BlockSpec(shape, lambda i: (0,) * len(shape),
                                    pipeline_mode=pl.Buffered(buffer_count=1))
            return pl.BlockSpec(shape, lambda i: (0,) * len(shape))

        return pl.pallas_call(
            kernel,
            out_shape=jax.ShapeDtypeStruct((T_pad, C), x2d.dtype),
            grid_spec=pltpu.PrefetchScalarGridSpec(
                num_scalar_prefetch=0,
                grid=(n_t,),
                in_specs=[
                    pl.BlockSpec((tile_t, C), lambda i: (i, 0)),         # x tokens
                    cspec((8, C)),                                       # packed params
                    cspec((nk, C, hk)),                                  # w1 (resident)
                    cspec((nk, hk, C)),                                  # w2 (resident)
                    pl.BlockSpec(memory_space=pltpu.MemorySpace.SMEM),   # StarReLU scalars
                ],
                out_specs=pl.BlockSpec((tile_t, C), lambda i: (i, 0)),
            ),
            compiler_params=pltpu.CompilerParams(
                dimension_semantics=("parallel",),
                vmem_limit_bytes=vmem_limit,
            ),
        )(x2d, pvec, w1, w2, sr)

    try:
        out2d = run(True)
    except Exception:
        # Fallback for jax builds that reject Buffered(1): default double buffering.
        out2d = run(False)

    return out2d[:T].reshape(B, H, W, C)


def reference(x_nhwc, params):
    """Pure-JAX reference mirroring the PyTorch forward (f32 math)."""
    x = x_nhwc.astype(jnp.float32)
    g1, b1 = params["g1"][0], params["b1"][0]
    g2, b2 = params["g2"][0], params["b2"][0]
    ls1, ls2 = params["ls1"][0], params["ls2"][0]
    sr_s, sr_b = params["sr"][0], params["sr"][1]
    w1 = params["w1"].astype(jnp.float32)
    w2 = params["w2"].astype(jnp.float32)

    def ln(v, g, b):
        mu = jnp.mean(v, axis=-1, keepdims=True)
        var = jnp.mean((v - mu) ** 2, axis=-1, keepdims=True)
        return (v - mu) * lax.rsqrt(var + EPS) * g + b

    x = x + ln(x, g1, b1) * ls1                      # token_mixer = Identity
    n2 = ln(x, g2, b2)
    h = n2 @ w1
    a = sr_s * jnp.maximum(h, 0.0) ** 2 + sr_b
    y = a @ w2
    return x + y * ls2


def init_params(key, dim, mlp_ratio=4, layer_scale_init_value=1e-5):
    hidden = int(mlp_ratio * dim)
    k1, k2 = jax.random.split(key)
    # PyTorch Linear stores weight as (out, in); keep pre-transposed (in, out)
    # so the kernel computes x @ W.  Stored f32; wrapper folds + casts to bf16.
    w1 = jax.random.normal(k1, (dim, hidden), jnp.float32) * dim ** -0.5
    w2 = jax.random.normal(k2, (hidden, dim), jnp.float32) * hidden ** -0.5
    return {
        "g1": jnp.ones((1, dim), jnp.float32),    # LayerNorm default weight
        "b1": jnp.zeros((1, dim), jnp.float32),   # LayerNorm default bias
        "ls1": jnp.full((1, dim), layer_scale_init_value, jnp.float32),
        "g2": jnp.ones((1, dim), jnp.float32),
        "b2": jnp.zeros((1, dim), jnp.float32),
        "w1": w1,
        "w2": w2,
        "ls2": jnp.full((1, dim), layer_scale_init_value, jnp.float32),
        "sr": jnp.array([1.0, 0.0], jnp.float32),  # StarReLU scale=1, bias=0
    }


if __name__ == "__main__":
    key = jax.random.PRNGKey(0)
    kx, kp = jax.random.split(key)

    # Small NHWC input; C=128 keeps the lane dimension dense (hidden = 512).
    B, H, W, C = 2, 16, 16, 128
    x = jax.random.normal(kx, (B, H, W, C), jnp.float32)

    # 1) module-default layer scale (1e-5): tight tolerance vs f32 reference.
    params = init_params(kp, C)
    out = jax.block_until_ready(metaformer_block(x, params))
    ref = reference(x, params)
    assert out.shape == ref.shape
    err = float(jnp.max(jnp.abs(out - ref)))
    assert err < 1e-4, err

    # 2) trained-like O(1) layer scales: bf16-appropriate (looser) tolerance.
    params_big = dict(params)
    params_big["ls1"] = jnp.ones((1, C), jnp.float32)
    params_big["ls2"] = jnp.ones((1, C), jnp.float32)
    out2 = jax.block_until_ready(metaformer_block(x, params_big))
    ref2 = reference(x, params_big)
    rel = float(jnp.max(jnp.abs(out2 - ref2)) / jnp.max(jnp.abs(ref2)))
    assert rel < 5e-2, rel

    print("KERNEL_OK")
</pallas_src>

<mosaic_0001>
module attributes {stable_mosaic.version = 11 : i64} {
  func.func @metaformer_block_kernel(%arg0: i32, %arg1: memref<512x128xf32, #tpu.memory_space<vmem>>, %arg2: memref<8x128xf32, #tpu.memory_space<vmem>>, %arg3: memref<1x128x512xbf16, #tpu.memory_space<vmem>>, %arg4: memref<1x512x128xbf16, #tpu.memory_space<vmem>>, %arg5: memref<2xf32, #tpu.memory_space<smem>>, %arg6: memref<512x128xf32, #tpu.memory_space<vmem>>) attributes {dimension_semantics = [#tpu.dimension_semantics<parallel>], iteration_bounds = array<i64: 1>, scalar_prefetch = 0 : i64, scratch_operands = 0 : i64, tpu.core_type = #tpu.core_type<tc>, window_params = [{transform_indices = @transform_0, window_bounds = array<i64: 512, 128>}, {pipeline_mode = #tpu.pipeline_mode<synchronous>, transform_indices = @transform_1, window_bounds = array<i64: 8, 128>}, {pipeline_mode = #tpu.pipeline_mode<synchronous>, transform_indices = @transform_2, window_bounds = array<i64: 1, 128, 512>}, {pipeline_mode = #tpu.pipeline_mode<synchronous>, transform_indices = @transform_3, window_bounds = array<i64: 1, 512, 128>}, {transform_indices = @transform_4, window_bounds = array<i64: 2>}, {transform_indices = @transform_5, window_bounds = array<i64: 512, 128>}]} {
    %c0 = arith.constant 0 : index
    %c0_0 = arith.constant 0 : index
    %0 = vector.load %arg1[%c0, %c0_0] : memref<512x128xf32, #tpu.memory_space<vmem>>, vector<512x128xf32>
    %c0_1 = arith.constant 0 : index
    %c0_2 = arith.constant 0 : index
    %1 = vector.load %arg2[%c0_1, %c0_2] : memref<8x128xf32, #tpu.memory_space<vmem>>, vector<1x128xf32>
    %c1 = arith.constant 1 : index
    %c0_3 = arith.constant 0 : index
    %2 = vector.load %arg2[%c1, %c0_3] : memref<8x128xf32, #tpu.memory_space<vmem>>, vector<1x128xf32>
    %c2 = arith.constant 2 : index
    %c0_4 = arith.constant 0 : index
    %3 = vector.load %arg2[%c2, %c0_4] : memref<8x128xf32, #tpu.memory_space<vmem>>, vector<1x128xf32>
    %c3 = arith.constant 3 : index
    %c0_5 = arith.constant 0 : index
    %4 = vector.load %arg2[%c3, %c0_5] : memref<8x128xf32, #tpu.memory_space<vmem>>, vector<1x128xf32>
    %cst = arith.constant dense<0.000000e+00> : vector<512xf32>
    %5 = vector.multi_reduction <add>, %0, %cst [1] : vector<512x128xf32> to vector<512xf32>
    %6 = vector.shape_cast %5 : vector<512xf32> to vector<512x1xf32>
    %cst_6 = arith.constant 1.280000e+02 : f32
    %7 = vector.broadcast %cst_6 : f32 to vector<512x1xf32>
    %8 = arith.divf %6, %7 : vector<512x1xf32>
    %9 = vector.broadcast %8 : vector<512x1xf32> to vector<512x128xf32>
    %10 = arith.subf %0, %9 : vector<512x128xf32>
    %11 = arith.mulf %10, %10 : vector<512x128xf32>
    %cst_7 = arith.constant dense<0.000000e+00> : vector<512xf32>
    %12 = vector.multi_reduction <add>, %11, %cst_7 [1] : vector<512x128xf32> to vector<512xf32>
    %13 = vector.shape_cast %12 : vector<512xf32> to vector<512x1xf32>
    %cst_8 = arith.constant 1.280000e+02 : f32
    %14 = vector.broadcast %cst_8 : f32 to vector<512x1xf32>
    %15 = arith.divf %13, %14 : vector<512x1xf32>
    %16 = vector.broadcast %8 : vector<512x1xf32> to vector<512x128xf32>
    %17 = arith.subf %0, %16 : vector<512x128xf32>
    %cst_9 = arith.constant 9.99999974E-6 : f32
    %18 = vector.broadcast %cst_9 : f32 to vector<512x1xf32>
    %19 = arith.addf %15, %18 : vector<512x1xf32>
    %20 = math.rsqrt %19 : vector<512x1xf32>
    %21 = vector.broadcast %20 : vector<512x1xf32> to vector<512x128xf32>
    %22 = arith.mulf %17, %21 : vector<512x128xf32>
    %23 = vector.broadcast %1 : vector<1x128xf32> to vector<512x128xf32>
    %24 = arith.mulf %22, %23 : vector<512x128xf32>
    %25 = vector.broadcast %2 : vector<1x128xf32> to vector<512x128xf32>
    %26 = arith.addf %24, %25 : vector<512x128xf32>
    %27 = arith.addf %0, %26 : vector<512x128xf32>
    %cst_10 = arith.constant dense<0.000000e+00> : vector<512xf32>
    %28 = vector.multi_reduction <add>, %27, %cst_10 [1] : vector<512x128xf32> to vector<512xf32>
    %29 = vector.shape_cast %28 : vector<512xf32> to vector<512x1xf32>
    %cst_11 = arith.constant 1.280000e+02 : f32
    %30 = vector.broadcast %cst_11 : f32 to vector<512x1xf32>
    %31 = arith.divf %29, %30 : vector<512x1xf32>
    %32 = vector.broadcast %31 : vector<512x1xf32> to vector<512x128xf32>
    %33 = arith.subf %27, %32 : vector<512x128xf32>
    %34 = arith.mulf %33, %33 : vector<512x128xf32>
    %cst_12 = arith.constant dense<0.000000e+00> : vector<512xf32>
    %35 = vector.multi_reduction <add>, %34, %cst_12 [1] : vector<512x128xf32> to vector<512xf32>
    %36 = vector.shape_cast %35 : vector<512xf32> to vector<512x1xf32>
    %cst_13 = arith.constant 1.280000e+02 : f32
    %37 = vector.broadcast %cst_13 : f32 to vector<512x1xf32>
    %38 = arith.divf %36, %37 : vector<512x1xf32>
    %39 = vector.broadcast %31 : vector<512x1xf32> to vector<512x128xf32>
    %40 = arith.subf %27, %39 : vector<512x128xf32>
    %cst_14 = arith.constant 9.99999974E-6 : f32
    %41 = vector.broadcast %cst_14 : f32 to vector<512x1xf32>
    %42 = arith.addf %38, %41 : vector<512x1xf32>
    %43 = math.rsqrt %42 : vector<512x1xf32>
    %44 = vector.broadcast %43 : vector<512x1xf32> to vector<512x128xf32>
    %45 = arith.mulf %40, %44 : vector<512x128xf32>
    %46 = vector.broadcast %3 : vector<1x128xf32> to vector<512x128xf32>
    %47 = arith.mulf %45, %46 : vector<512x128xf32>
    %48 = vector.broadcast %4 : vector<1x128xf32> to vector<512x128xf32>
    %49 = arith.addf %47, %48 : vector<512x128xf32>
    %50 = arith.truncf %49 : vector<512x128xf32> to vector<512x128xbf16>
    %c0_15 = arith.constant 0 : index
    %51 = memref.load %arg5[%c0_15] : memref<2xf32, #tpu.memory_space<smem>>
    %c1_16 = arith.constant 1 : index
    %52 = memref.load %arg5[%c1_16] : memref<2xf32, #tpu.memory_space<smem>>
    %cst_17 = arith.constant 0.000000e+00 : f32
    %53 = vector.broadcast %cst_17 : f32 to vector<512x128xf32>
    %c0_i32 = arith.constant 0 : i32
    %54 = arith.index_cast %c0_i32 : i32 to index
    %c0_18 = arith.constant 0 : index
    %c0_19 = arith.constant 0 : index
    %55 = vector.load %arg3[%54, %c0_18, %c0_19] : memref<1x128x512xbf16, #tpu.memory_space<vmem>>, vector<1x128x512xbf16>
    %56 = vector.shape_cast %55 : vector<1x128x512xbf16> to vector<128x512xbf16>
    %cst_20 = arith.constant dense<0.000000e+00> : vector<512x512xf32>
    %57 = tpu.matmul %50, %56, %cst_20 {dimension_numbers = #tpu.dot_dimension_numbers<[1], [0], [0], [1], [0, 0, 1, 1], [], []>} : vector<512x128xbf16>, vector<128x512xbf16>, vector<512x512xf32> -> vector<512x512xf32>
    %58 = arith.truncf %57 : vector<512x512xf32> to vector<512x512xbf16>
    %cst_21 = arith.constant 0.000000e+00 : bf16
    %59 = vector.broadcast %cst_21 : bf16 to vector<512x512xbf16>
    %60 = arith.maximumf %58, %59 : vector<512x512xbf16>
    %61 = arith.truncf %51 : f32 to bf16
    %62 = arith.mulf %60, %60 : vector<512x512xbf16>
    %63 = vector.broadcast %61 : bf16 to vector<512x512xbf16>
    %64 = arith.mulf %63, %62 : vector<512x512xbf16>
    %65 = arith.truncf %52 : f32 to bf16
    %66 = vector.broadcast %65 : bf16 to vector<512x512xbf16>
    %67 = arith.addf %64, %66 : vector<512x512xbf16>
    %68 = arith.index_cast %c0_i32 : i32 to index
    %c0_22 = arith.constant 0 : index
    %c0_23 = arith.constant 0 : index
    %69 = vector.load %arg4[%68, %c0_22, %c0_23] : memref<1x512x128xbf16, #tpu.memory_space<vmem>>, vector<1x512x128xbf16>
    %70 = vector.shape_cast %69 : vector<1x512x128xbf16> to vector<512x128xbf16>
    %cst_24 = arith.constant dense<0.000000e+00> : vector<512x128xf32>
    %71 = tpu.matmul %67, %70, %cst_24 {dimension_numbers = #tpu.dot_dimension_numbers<[1], [0], [0], [1], [0, 0, 1, 1], [], []>} : vector<512x512xbf16>, vector<512x128xbf16>, vector<512x128xf32> -> vector<512x128xf32>
    %72 = arith.addf %53, %71 : vector<512x128xf32>
    %c1_i32 = arith.constant 1 : i32
    %73 = arith.addf %27, %72 : vector<512x128xf32>
    %c0_25 = arith.constant 0 : index
    %c0_26 = arith.constant 0 : index
    %74 = vector.load %arg6[%c0_25, %c0_26] : memref<512x128xf32, #tpu.memory_space<vmem>>, vector<512x128xf32>
    tpu.vector_store %arg6[%c0_25, %c0_26], %73 {strides = array<i32>} : memref<512x128xf32, #tpu.memory_space<vmem>>, vector<512x128xf32>,
    return
  }
  func.func @transform_0(%arg0: i32) -> (i32, i32) {
    %c0_i32 = arith.constant 0 : i32
    %c0_i32_0 = arith.constant 0 : i32
    return %arg0, %c0_i32 : i32, i32
  }
  func.func @transform_1(%arg0: i32) -> (i32, i32) {
    %c0_i32 = arith.constant 0 : i32
    %c0_i32_0 = arith.constant 0 : i32
    %c0_i32_1 = arith.constant 0 : i32
    return %c0_i32, %c0_i32_0 : i32, i32
  }
  func.func @transform_2(%arg0: i32) -> (i32, i32, i32) {
    %c0_i32 = arith.constant 0 : i32
    %c0_i32_0 = arith.constant 0 : i32
    %c0_i32_1 = arith.constant 0 : i32
    %c0_i32_2 = arith.constant 0 : i32
    return %c0_i32, %c0_i32_0, %c0_i32_1 : i32, i32, i32
  }
  func.func @transform_3(%arg0: i32) -> (i32, i32, i32) {
    %c0_i32 = arith.constant 0 : i32
    %c0_i32_0 = arith.constant 0 : i32
    %c0_i32_1 = arith.constant 0 : i32
    %c0_i32_2 = arith.constant 0 : i32
    return %c0_i32, %c0_i32_0, %c0_i32_1 : i32, i32, i32
  }
  func.func @transform_4(%arg0: i32) -> i32 {
    %c0_i32 = arith.constant 0 : i32
    %c0_i32_0 = arith.constant 0 : i32
    return %c0_i32 : i32
  }
  func.func @transform_5(%arg0: i32) -> (i32, i32) {
    %c0_i32 = arith.constant 0 : i32
    %c0_i32_0 = arith.constant 0 : i32
    return %arg0, %c0_i32 : i32, i32
  }
}

module attributes {stable_mosaic.version = 11 : i64} {
  func.func @metaformer_block_kernel(%arg0: i32, %arg1: memref<512x128xf32, #tpu.memory_space<vmem>>, %arg2: memref<8x128xf32, #tpu.memory_space<vmem>>, %arg3: memref<1x128x512xbf16, #tpu.memory_space<vmem>>, %arg4: memref<1x512x128xbf16, #tpu.memory_space<vmem>>, %arg5: memref<2xf32, #tpu.memory_space<smem>>, %arg6: memref<512x128xf32, #tpu.memory_space<vmem>>) attributes {dimension_semantics = [#tpu.dimension_semantics<parallel>], iteration_bounds = array<i64: 1>, scalar_prefetch = 0 : i64, scratch_operands = 0 : i64, tpu.core_type = #tpu.core_type<tc>, window_params = [{transform_indices = @transform_0, window_bounds = array<i64: 512, 128>}, {pipeline_mode = #tpu.pipeline_mode<synchronous>, transform_indices = @transform_1, window_bounds = array<i64: 8, 128>}, {pipeline_mode = #tpu.pipeline_mode<synchronous>, transform_indices = @transform_2, window_bounds = array<i64: 1, 128, 512>}, {pipeline_mode = #tpu.pipeline_mode<synchronous>, transform_indices = @transform_3, window_bounds = array<i64: 1, 512, 128>}, {transform_indices = @transform_4, window_bounds = array<i64: 2>}, {transform_indices = @transform_5, window_bounds = array<i64: 512, 128>}]} {
    %c0 = arith.constant 0 : index
    %c0_0 = arith.constant 0 : index
    %0 = vector.load %arg1[%c0, %c0_0] : memref<512x128xf32, #tpu.memory_space<vmem>>, vector<512x128xf32>
    %c0_1 = arith.constant 0 : index
    %c0_2 = arith.constant 0 : index
    %1 = vector.load %arg2[%c0_1, %c0_2] : memref<8x128xf32, #tpu.memory_space<vmem>>, vector<1x128xf32>
    %c1 = arith.constant 1 : index
    %c0_3 = arith.constant 0 : index
    %2 = vector.load %arg2[%c1, %c0_3] : memref<8x128xf32, #tpu.memory_space<vmem>>, vector<1x128xf32>
    %c2 = arith.constant 2 : index
    %c0_4 = arith.constant 0 : index
    %3 = vector.load %arg2[%c2, %c0_4] : memref<8x128xf32, #tpu.memory_space<vmem>>, vector<1x128xf32>
    %c3 = arith.constant 3 : index
    %c0_5 = arith.constant 0 : index
    %4 = vector.load %arg2[%c3, %c0_5] : memref<8x128xf32, #tpu.memory_space<vmem>>, vector<1x128xf32>
    %cst = arith.constant dense<0.000000e+00> : vector<512xf32>
    %5 = vector.multi_reduction <add>, %0, %cst [1] : vector<512x128xf32> to vector<512xf32>
    %6 = vector.shape_cast %5 : vector<512xf32> to vector<512x1xf32>
    %cst_6 = arith.constant 1.280000e+02 : f32
    %7 = vector.broadcast %cst_6 : f32 to vector<512x1xf32>
    %8 = arith.divf %6, %7 : vector<512x1xf32>
    %9 = vector.broadcast %8 : vector<512x1xf32> to vector<512x128xf32>
    %10 = arith.subf %0, %9 : vector<512x128xf32>
    %11 = arith.mulf %10, %10 : vector<512x128xf32>
    %cst_7 = arith.constant dense<0.000000e+00> : vector<512xf32>
    %12 = vector.multi_reduction <add>, %11, %cst_7 [1] : vector<512x128xf32> to vector<512xf32>
    %13 = vector.shape_cast %12 : vector<512xf32> to vector<512x1xf32>
    %cst_8 = arith.constant 1.280000e+02 : f32
    %14 = vector.broadcast %cst_8 : f32 to vector<512x1xf32>
    %15 = arith.divf %13, %14 : vector<512x1xf32>
    %16 = vector.broadcast %8 : vector<512x1xf32> to vector<512x128xf32>
    %17 = arith.subf %0, %16 : vector<512x128xf32>
    %cst_9 = arith.constant 9.99999974E-6 : f32
    %18 = vector.broadcast %cst_9 : f32 to vector<512x1xf32>
    %19 = arith.addf %15, %18 : vector<512x1xf32>
    %20 = math.rsqrt %19 : vector<512x1xf32>
    %21 = vector.broadcast %20 : vector<512x1xf32> to vector<512x128xf32>
    %22 = arith.mulf %17, %21 : vector<512x128xf32>
    %23 = vector.broadcast %1 : vector<1x128xf32> to vector<512x128xf32>
    %24 = arith.mulf %22, %23 : vector<512x128xf32>
    %25 = vector.broadcast %2 : vector<1x128xf32> to vector<512x128xf32>
    %26 = arith.addf %24, %25 : vector<512x128xf32>
    %27 = arith.addf %0, %26 : vector<512x128xf32>
    %cst_10 = arith.constant dense<0.000000e+00> : vector<512xf32>
    %28 = vector.multi_reduction <add>, %27, %cst_10 [1] : vector<512x128xf32> to vector<512xf32>
    %29 = vector.shape_cast %28 : vector<512xf32> to vector<512x1xf32>
    %cst_11 = arith.constant 1.280000e+02 : f32
    %30 = vector.broadcast %cst_11 : f32 to vector<512x1xf32>
    %31 = arith.divf %29, %30 : vector<512x1xf32>
    %32 = vector.broadcast %31 : vector<512x1xf32> to vector<512x128xf32>
    %33 = arith.subf %27, %32 : vector<512x128xf32>
    %34 = arith.mulf %33, %33 : vector<512x128xf32>
    %cst_12 = arith.constant dense<0.000000e+00> : vector<512xf32>
    %35 = vector.multi_reduction <add>, %34, %cst_12 [1] : vector<512x128xf32> to vector<512xf32>
    %36 = vector.shape_cast %35 : vector<512xf32> to vector<512x1xf32>
    %cst_13 = arith.constant 1.280000e+02 : f32
    %37 = vector.broadcast %cst_13 : f32 to vector<512x1xf32>
    %38 = arith.divf %36, %37 : vector<512x1xf32>
    %39 = vector.broadcast %31 : vector<512x1xf32> to vector<512x128xf32>
    %40 = arith.subf %27, %39 : vector<512x128xf32>
    %cst_14 = arith.constant 9.99999974E-6 : f32
    %41 = vector.broadcast %cst_14 : f32 to vector<512x1xf32>
    %42 = arith.addf %38, %41 : vector<512x1xf32>
    %43 = math.rsqrt %42 : vector<512x1xf32>
    %44 = vector.broadcast %43 : vector<512x1xf32> to vector<512x128xf32>
    %45 = arith.mulf %40, %44 : vector<512x128xf32>
    %46 = vector.broadcast %3 : vector<1x128xf32> to vector<512x128xf32>
    %47 = arith.mulf %45, %46 : vector<512x128xf32>
    %48 = vector.broadcast %4 : vector<1x128xf32> to vector<512x128xf32>
    %49 = arith.addf %47, %48 : vector<512x128xf32>
    %50 = arith.truncf %49 : vector<512x128xf32> to vector<512x128xbf16>
    %c0_15 = arith.constant 0 : index
    %51 = memref.load %arg5[%c0_15] : memref<2xf32, #tpu.memory_space<smem>>
    %c1_16 = arith.constant 1 : index
    %52 = memref.load %arg5[%c1_16] : memref<2xf32, #tpu.memory_space<smem>>
    %cst_17 = arith.constant 0.000000e+00 : f32
    %53 = vector.broadcast %cst_17 : f32 to vector<512x128xf32>
    %c0_i32 = arith.constant 0 : i32
    %54 = arith.index_cast %c0_i32 : i32 to index
    %c0_18 = arith.constant 0 : index
    %c0_19 = arith.constant 0 : index
    %55 = vector.load %arg3[%54, %c0_18, %c0_19] : memref<1x128x512xbf16, #tpu.memory_space<vmem>>, vector<1x128x512xbf16>
    %56 = vector.shape_cast %55 : vector<1x128x512xbf16> to vector<128x512xbf16>
    %cst_20 = arith.constant dense<0.000000e+00> : vector<512x512xf32>
    %57 = tpu.matmul %50, %56, %cst_20 {dimension_numbers = #tpu.dot_dimension_numbers<[1], [0], [0], [1], [0, 0, 1, 1], [], []>} : vector<512x128xbf16>, vector<128x512xbf16>, vector<512x512xf32> -> vector<512x512xf32>
    %58 = arith.truncf %57 : vector<512x512xf32> to vector<512x512xbf16>
    %cst_21 = arith.constant 0.000000e+00 : bf16
    %59 = vector.broadcast %cst_21 : bf16 to vector<512x512xbf16>
    %60 = arith.maximumf %58, %59 : vector<512x512xbf16>
    %61 = arith.truncf %51 : f32 to bf16
    %62 = arith.mulf %60, %60 : vector<512x512xbf16>
    %63 = vector.broadcast %61 : bf16 to vector<512x512xbf16>
    %64 = arith.mulf %63, %62 : vector<512x512xbf16>
    %65 = arith.truncf %52 : f32 to bf16
    %66 = vector.broadcast %65 : bf16 to vector<512x512xbf16>
    %67 = arith.addf %64, %66 : vector<512x512xbf16>
    %68 = arith.index_cast %c0_i32 : i32 to index
    %c0_22 = arith.constant 0 : index
    %c0_23 = arith.constant 0 : index
    %69 = vector.load %arg4[%68, %c0_22, %c0_23] : memref<1x512x128xbf16, #tpu.memory_space<vmem>>, vector<1x512x128xbf16>
    %70 = vector.shape_cast %69 : vector<1x512x128xbf16> to vector<512x128xbf16>
    %cst_24 = arith.constant dense<0.000000e+00> : vector<512x128xf32>
    %71 = tpu.matmul %67, %70, %cst_24 {dimension_numbers = #tpu.dot_dimension_numbers<[1], [0], [0], [1], [0, 0, 1, 1], [], []>} : vector<512x512xbf16>, vector<512x128xbf16>, vector<512x128xf32> -> vector<512x128xf32>
    %72 = arith.addf %53, %71 : vector<512x128xf32>
    %c1_i32 = arith.constant 1 : i32
    %73 = arith.addf %27, %72 : vector<512x128xf32>
    %c0_25 = arith.constant 0 : index
    %c0_26 = arith.constant 0 : index
    %74 = vector.load %arg6[%c0_25, %c0_26] : memref<512x128xf32, #tpu.memory_space<vmem>>, vector<512x128xf32>
    tpu.vector_store %arg6[%c0_25, %c0_26], %73 {strides = array<i32>} : memref<512x128xf32, #tpu.memory_space<vmem>>, vector<512x128xf32>,
    return
  }
  func.func @transform_0(%arg0: i32) -> (i32, i32) {
    %c0_i32 = arith.constant 0 : i32
    %c0_i32_0 = arith.constant 0 : i32
    return %arg0, %c0_i32 : i32, i32
  }
  func.func @transform_1(%arg0: i32) -> (i32, i32) {
    %c0_i32 = arith.constant 0 : i32
    %c0_i32_0 = arith.constant 0 : i32
    %c0_i32_1 = arith.constant 0 : i32
    return %c0_i32, %c0_i32_0 : i32, i32
  }
  func.func @transform_2(%arg0: i32) -> (i32, i32, i32) {
    %c0_i32 = arith.constant 0 : i32
    %c0_i32_0 = arith.constant 0 : i32
    %c0_i32_1 = arith.constant 0 : i32
    %c0_i32_2 = arith.constant 0 : i32
    return %c0_i32, %c0_i32_0, %c0_i32_1 : i32, i32, i32
  }
  func.func @transform_3(%arg0: i32) -> (i32, i32, i32) {
    %c0_i32 = arith.constant 0 : i32
    %c0_i32_0 = arith.constant 0 : i32
    %c0_i32_1 = arith.constant 0 : i32
    %c0_i32_2 = arith.constant 0 : i32
    return %c0_i32, %c0_i32_0, %c0_i32_1 : i32, i32, i32
  }
  func.func @transform_4(%arg0: i32) -> i32 {
    %c0_i32 = arith.constant 0 : i32
    %c0_i32_0 = arith.constant 0 : i32
    return %c0_i32 : i32
  }
  func.func @transform_5(%arg0: i32) -> (i32, i32) {
    %c0_i32 = arith.constant 0 : i32
    %c0_i32_0 = arith.constant 0 : i32
    return %arg0, %c0_i32 : i32, i32
  }
}

</mosaic_0001>

<llo_original>
// kernel: tpu_custom_call.1
$region0: #{tpu_custom_call.1}
  #allocation0 [shape = 'u32[]', space=smem, size = 0x4, offset = 0x4, fixed_abs, tag = 'smem constant byte address 0x4 - core index']
  #allocation1 [shape = 'u32[144,128]{1,0:T(1,128)}', space=vmem, size = 0x12000, scoped, tag = 'internal scratch']
  %s0 = inlined_call_operand.hbm [shape: f32[512,128], index: 0, kind: input, shape index: {}]
  %s1 = inlined_call_operand.hbm [shape: f32[8,128], index: 1, kind: input, shape index: {}]
  %s2 = inlined_call_operand.hbm [shape: bf16[1,128,512], index: 2, kind: input, shape index: {}]
  %s3 = inlined_call_operand.hbm [shape: bf16[1,512,128], index: 3, kind: input, shape index: {}]
  %s4 = inlined_call_operand.vmem [shape: f32[2], index: 4, kind: input, shape index: {}]
  %s5 = inlined_call_operand.hbm [shape: f32[512,128], index: 5, kind: output, shape index: {}]
  %s6 = sld [smem:[#allocation0]]
  $region50: #{tpu_custom_call.1} parent=0
    _
  %s8 = ssub.s32 1, %s6
  %s9 = scalar_select 0, %s8, %s6
  $region1: #{tpu_custom_call.1} parent=0
    #allocation2 [shape = 'u8[262144]{0}', space=vmem, size = 0x40000, scoped, tag = 'input window, operand 0, single buffered']
    #allocation3 [shape = 's32[1]{0}', space=sflag, size = 0x4, scoped, tag = 'scoped memory for tpu_custom_call.1']
    #allocation4 [shape = 's32[1]{0}', space=sflag, size = 0x4, scoped, tag = 'scoped memory for tpu_custom_call.1']
    #allocation5 [shape = 's32[1]{0}', space=sflag, size = 0x4, scoped, tag = 'scoped memory for tpu_custom_call.1']
    #allocation6 [shape = 'u8[4096]{0}', space=vmem, size = 0x1000, scoped, tag = 'input window, operand 1, single buffered']
    #allocation7 [shape = 's32[1]{0}', space=sflag, size = 0x4, scoped, tag = 'scoped memory for tpu_custom_call.1']
    #allocation8 [shape = 'u8[131072]{0}', space=vmem, size = 0x20000, scoped, tag = 'input window, operand 2, single buffered']
    #allocation9 [shape = 'u8[131072]{0}', space=vmem, size = 0x20000, scoped, tag = 'input window, operand 3, single buffered']
    #allocation10 [shape = 's32[1]{0}', space=sflag, size = 0x4, scoped, tag = 'scoped memory for tpu_custom_call.1']
    #allocation11 [shape = 'u8[512]{0}', space=smem, size = 0x200, scoped, tag = 'input window, operand 4, single buffered']
    #allocation12 [shape = 'u8[262144]{0}', space=vmem, size = 0x40000, scoped, tag = 'output window, operand 0, single buffered']
    %10 = vsyncpa [#allocation3], 0
    %11 = vsyncpa [#allocation7], 0
    %12 = vsyncpa [#allocation10], 0
    %13 = vsyncpa [#allocation5], 0
    %14 = vsyncpa [#allocation4], 0
    // Predicated region
    $region2: #{tpu_custom_call.1} parent=1 // pred_check
      _
    $region3: #{tpu_custom_call.1} parent=1 // pred_check_branch
      %16 = sbr.rel (0) target = $region5
    $region4: #{tpu_custom_call.1} parent=1 // pred_region
      %s18 = ssub.s32 8192, 8192
      %19 = vsyncadd [#allocation3], %s18
      %s20 = sshll.u32 [#allocation2], 4
      %s21 = int_to_ptr.vmem [resolvable:$true] %s20
      %26 = dma.hbm_to_vmem [thread:$0]  %s0, 8192, %s21, [#allocation3], 128, 128, 8
    $region5: #{tpu_custom_call.1} parent=1 // pred_fallthru
      _
    // Predicated region
    $region6: #{tpu_custom_call.1} parent=1 // pred_check
      _
    $region7: #{tpu_custom_call.1} parent=1 // pred_check_branch
      %28 = sbr.rel (0) target = $region9
    $region8: #{tpu_custom_call.1} parent=1 // pred_region
      %s30 = ssub.s32 128, 128
      %31 = vsyncadd [#allocation7], %s30
      %s33 = sshll.u32 [#allocation6], 4
      %s34 = int_to_ptr.vmem [resolvable:$true] %s33
      %36 = dma.hbm_to_vmem [thread:$0]  %s1, 128, %s34, [#allocation7]
    $region9: #{tpu_custom_call.1} parent=1 // pred_fallthru
      _
    // Predicated region
    $region10: #{tpu_custom_call.1} parent=1 // pred_check
      _
    $region11: #{tpu_custom_call.1} parent=1 // pred_check_branch
      %38 = sbr.rel (0) target = $region13
    $region12: #{tpu_custom_call.1} parent=1 // pred_region
      %s40 = ssub.s32 4096, 4096
      %41 = vsyncadd [#allocation7], %s40
      %s42 = sshll.u32 [#allocation8], 4
      %s43 = int_to_ptr.vmem [resolvable:$true] %s42
      %48 = dma.hbm_to_vmem [thread:$0]  %s2, 4096, %s43, [#allocation7], 256, 256, 16
    $region13: #{tpu_custom_call.1} parent=1 // pred_fallthru
      _
    // Predicated region
    $region14: #{tpu_custom_call.1} parent=1 // pred_check
      _
    $region15: #{tpu_custom_call.1} parent=1 // pred_check_branch
      %50 = sbr.rel (0) target = $region17
    $region16: #{tpu_custom_call.1} parent=1 // pred_region
      %s52 = ssub.s32 4096, 4096
      %53 = vsyncadd [#allocation10], %s52
      %s54 = sshll.u32 [#allocation9], 4
      %s55 = int_to_ptr.vmem [resolvable:$true] %s54
      %60 = dma.hbm_to_vmem [thread:$0]  %s3, 4096, %s55, [#allocation10], 64, 64, 4
    $region17: #{tpu_custom_call.1} parent=1 // pred_fallthru
      _
    // Predicated region
    $region18: #{tpu_custom_call.1} parent=1 // pred_check
      _
    $region19: #{tpu_custom_call.1} parent=1 // pred_check_branch
      %62 = sbr.rel (0) target = $region21
    $region20: #{tpu_custom_call.1} parent=1 // pred_region
      %s64 = ssub.s32 16, 16
      %65 = vsyncadd [#allocation5], %s64
      %s67 = sshll.u32 %s4, 4
      %s68 = int_to_ptr.vmem [resolvable:$true] %s67
      %70 = dma.vmem_to_smem %s68, 16, [#allocation11], [#allocation5]
    $region21: #{tpu_custom_call.1} parent=1 // pred_fallthru
      _
    // Predicated region
    $region22: #{tpu_custom_call.1} parent=1 // pred_check
      _
    $region23: #{tpu_custom_call.1} parent=1 // pred_check_branch
      %72 = sbr.rel (0) target = $region25
    $region24: #{tpu_custom_call.1} parent=1 // pred_region
      %73 = dma.done [#allocation3], 8192
    $region25: #{tpu_custom_call.1} parent=1 // pred_fallthru
      _
    // Predicated region
    $region26: #{tpu_custom_call.1} parent=1 // pred_check
      _
    $region27: #{tpu_custom_call.1} parent=1 // pred_check_branch
      %75 = sbr.rel (0) target = $region29
    $region28: #{tpu_custom_call.1} parent=1 // pred_region
      %76 = dma.done [#allocation7], 128
    $region29: #{tpu_custom_call.1} parent=1 // pred_fallthru
      _
    // Predicated region
    $region30: #{tpu_custom_call.1} parent=1 // pred_check
      _
    $region31: #{tpu_custom_call.1} parent=1 // pred_check_branch
      %78 = sbr.rel (0) target = $region33
    $region32: #{tpu_custom_call.1} parent=1 // pred_region
      %79 = dma.done [#allocation7], 4096
    $region33: #{tpu_custom_call.1} parent=1 // pred_fallthru
      _
    // Predicated region
    $region34: #{tpu_custom_call.1} parent=1 // pred_check
      _
    $region35: #{tpu_custom_call.1} parent=1 // pred_check_branch
      %81 = sbr.rel (0) target = $region37
    $region36: #{tpu_custom_call.1} parent=1 // pred_region
      %82 = dma.done [#allocation10], 4096
    $region37: #{tpu_custom_call.1} parent=1 // pred_fallthru
      _
    // Predicated region
    $region38: #{tpu_custom_call.1} parent=1 // pred_check
      _
    $region39: #{tpu_custom_call.1} parent=1 // pred_check_branch
      %84 = sbr.rel (0) target = $region41
    $region40: #{tpu_custom_call.1} parent=1 // pred_region
      %85 = dma.done [#allocation5], 16
    $region41: #{tpu_custom_call.1} parent=1 // pred_fallthru
      _
    %86 = sfence
    %v88 = vld [vmem:[#allocation2] sm:$0xff]
    %v89 = vld [vmem:[#allocation2 + $0x8] sm:$0xff]
    %v90 = vld [vmem:[#allocation2 + $0x10] sm:$0xff]
    %v91 = vld [vmem:[#allocation2 + $0x18] sm:$0xff]
    %v92 = vld [vmem:[#allocation2 + $0x20] sm:$0xff]
    %v93 = vld [vmem:[#allocation2 + $0x28] sm:$0xff]
    %v94 = vld [vmem:[#allocation2 + $0x30] sm:$0xff]
    %v95 = vld [vmem:[#allocation2 + $0x38] sm:$0xff]
    %v96 = vld [vmem:[#allocation2 + $0x40] sm:$0xff]
    %v97 = vld [vmem:[#allocation2 + $0x48] sm:$0xff]
    %v98 = vld [vmem:[#allocation2 + $0x50] sm:$0xff]
    %v99 = vld [vmem:[#allocation2 + $0x58] sm:$0xff]
    %v100 = vld [vmem:[#allocation2 + $0x60] sm:$0xff]
    %v101 = vld [vmem:[#allocation2 + $0x68] sm:$0xff]
    %v102 = vld [vmem:[#allocation2 + $0x70] sm:$0xff]
    %v103 = vld [vmem:[#allocation2 + $0x78] sm:$0xff]
    %v104 = vld [vmem:[#allocation2 + $0x80] sm:$0xff]
    %v105 = vld [vmem:[#allocation2 + $0x88] sm:$0xff]
    %v106 = vld [vmem:[#allocation2 + $0x90] sm:$0xff]
    %v107 = vld [vmem:[#allocation2 + $0x98] sm:$0xff]
    %v108 = vld [vmem:[#allocation2 + $0xa0] sm:$0xff]
    %v109 = vld [vmem:[#allocation2 + $0xa8] sm:$0xff]
    %v110 = vld [vmem:[#allocation2 + $0xb0] sm:$0xff]
    %v111 = vld [vmem:[#allocation2 + $0xb8] sm:$0xff]
    %v112 = vld [vmem:[#allocation2 + $0xc0] sm:$0xff]
    %v113 = vld [vmem:[#allocation2 + $0xc8] sm:$0xff]
    %v114 = vld [vmem:[#allocation2 + $0xd0] sm:$0xff]
    %v115 = vld [vmem:[#allocation2 + $0xd8] sm:$0xff]
    %v116 = vld [vmem:[#allocation2 + $0xe0] sm:$0xff]
    %v117 = vld [vmem:[#allocation2 + $0xe8] sm:$0xff]
    %v118 = vld [vmem:[#allocation2 + $0xf0] sm:$0xff]
    %v119 = vld [vmem:[#allocation2 + $0xf8] sm:$0xff]
    %v120 = vld [vmem:[#allocation2 + $0x100] sm:$0xff]
    %v121 = vld [vmem:[#allocation2 + $0x108] sm:$0xff]
    %v122 = vld [vmem:[#allocation2 + $0x110] sm:$0xff]
    %v123 = vld [vmem:[#allocation2 + $0x118] sm:$0xff]
    %v124 = vld [vmem:[#allocation2 + $0x120] sm:$0xff]
    %v125 = vld [vmem:[#allocation2 + $0x128] sm:$0xff]
    %v126 = vld [vmem:[#allocation2 + $0x130] sm:$0xff]
    %v127 = vld [vmem:[#allocation2 + $0x138] sm:$0xff]
    %v128 = vld [vmem:[#allocation2 + $0x140] sm:$0xff]
    %v129 = vld [vmem:[#allocation2 + $0x148] sm:$0xff]
    %v130 = vld [vmem:[#allocation2 + $0x150] sm:$0xff]
    %v131 = vld [vmem:[#allocation2 + $0x158] sm:$0xff]
    %v132 = vld [vmem:[#allocation2 + $0x160] sm:$0xff]
    %v133 = vld [vmem:[#allocation2 + $0x168] sm:$0xff]
    %v134 = vld [vmem:[#allocation2 + $0x170] sm:$0xff]
    %v135 = vld [vmem:[#allocation2 + $0x178] sm:$0xff]
    %v136 = vld [vmem:[#allocation2 + $0x180] sm:$0xff]
    %v137 = vld [vmem:[#allocation2 + $0x188] sm:$0xff]
    %v138 = vld [vmem:[#allocation2 + $0x190] sm:$0xff]
    %v139 = vld [vmem:[#allocation2 + $0x198] sm:$0xff]
    %v140 = vld [vmem:[#allocation2 + $0x1a0] sm:$0xff]
    %v141 = vld [vmem:[#allocation2 + $0x1a8] sm:$0xff]
    %v142 = vld [vmem:[#allocation2 + $0x1b0] sm:$0xff]
    %v143 = vld [vmem:[#allocation2 + $0x1b8] sm:$0xff]
    %v144 = vld [vmem:[#allocation2 + $0x1c0] sm:$0xff]
    %v145 = vld [vmem:[#allocation2 + $0x1c8] sm:$0xff]
    %v146 = vld [vmem:[#allocation2 + $0x1d0] sm:$0xff]
    %v147 = vld [vmem:[#allocation2 + $0x1d8] sm:$0xff]
    %v148 = vld [vmem:[#allocation2 + $0x1e0] sm:$0xff]
    %v149 = vld [vmem:[#allocation2 + $0x1e8] sm:$0xff]
    %v150 = vld [vmem:[#allocation2 + $0x1f0] sm:$0xff]
    %v151 = vld [vmem:[#allocation2 + $0x1f8] sm:$0xff]
    %v152 = vld [vmem:[#allocation6] sm:$0x1]
    %v153 = vld [vmem:[#allocation6 + $0x1] sm:$0x1]
    %v154 = vld [vmem:[#allocation6 + $0x2] sm:$0x1]
    %v155 = vld [vmem:[#allocation6 + $0x3] sm:$0x1]
    %156 = vadd.xlane.f32.xlu0 %v88
    %v157 = vpop.xlane.xlu0 %156
    %158 = vadd.xlane.f32.xlu0 %v89
    %v159 = vpop.xlane.xlu0 %158
    %160 = vadd.xlane.f32.xlu0 %v90
    %v161 = vpop.xlane.xlu0 %160
    %162 = vadd.xlane.f32.xlu0 %v91
    %v163 = vpop.xlane.xlu0 %162
    %164 = vadd.xlane.f32.xlu0 %v92
    %v165 = vpop.xlane.xlu0 %164
    %166 = vadd.xlane.f32.xlu0 %v93
    %v167 = vpop.xlane.xlu0 %166
    %168 = vadd.xlane.f32.xlu0 %v94
    %v169 = vpop.xlane.xlu0 %168
    %170 = vadd.xlane.f32.xlu0 %v95
    %v171 = vpop.xlane.xlu0 %170
    %172 = vadd.xlane.f32.xlu0 %v96
    %v173 = vpop.xlane.xlu0 %172
    %174 = vadd.xlane.f32.xlu0 %v97
    %v175 = vpop.xlane.xlu0 %174
    %176 = vadd.xlane.f32.xlu0 %v98
    %v177 = vpop.xlane.xlu0 %176
    %178 = vadd.xlane.f32.xlu0 %v99
    %v179 = vpop.xlane.xlu0 %178
    %180 = vadd.xlane.f32.xlu0 %v100
    %v181 = vpop.xlane.xlu0 %180
    %182 = vadd.xlane.f32.xlu0 %v101
    %v183 = vpop.xlane.xlu0 %182
    %184 = vadd.xlane.f32.xlu0 %v102
    %v185 = vpop.xlane.xlu0 %184
    %186 = vadd.xlane.f32.xlu0 %v103
    %v187 = vpop.xlane.xlu0 %186
    %188 = vadd.xlane.f32.xlu0 %v104
    %v189 = vpop.xlane.xlu0 %188
    %190 = vadd.xlane.f32.xlu0 %v105
    %v191 = vpop.xlane.xlu0 %190
    %192 = vadd.xlane.f32.xlu0 %v106
    %v193 = vpop.xlane.xlu0 %192
    %194 = vadd.xlane.f32.xlu0 %v107
    %v195 = vpop.xlane.xlu0 %194
    %196 = vadd.xlane.f32.xlu0 %v108
    %v197 = vpop.xlane.xlu0 %196
    %198 = vadd.xlane.f32.xlu0 %v109
    %v199 = vpop.xlane.xlu0 %198
    %200 = vadd.xlane.f32.xlu0 %v110
    %v201 = vpop.xlane.xlu0 %200
    %202 = vadd.xlane.f32.xlu0 %v111
    %v203 = vpop.xlane.xlu0 %202
    %204 = vadd.xlane.f32.xlu0 %v112
    %v205 = vpop.xlane.xlu0 %204
    %206 = vadd.xlane.f32.xlu0 %v113
    %v207 = vpop.xlane.xlu0 %206
    %208 = vadd.xlane.f32.xlu0 %v114
    %v209 = vpop.xlane.xlu0 %208
    %210 = vadd.xlane.f32.xlu0 %v115
    %v211 = vpop.xlane.xlu0 %210
    %212 = vadd.xlane.f32.xlu0 %v116
    %v213 = vpop.xlane.xlu0 %212
    %214 = vadd.xlane.f32.xlu0 %v117
    %v215 = vpop.xlane.xlu0 %214
    %216 = vadd.xlane.f32.xlu0 %v118
    %v217 = vpop.xlane.xlu0 %216
    %218 = vadd.xlane.f32.xlu0 %v119
    %v219 = vpop.xlane.xlu0 %218
    %220 = vadd.xlane.f32.xlu0 %v120
    %v221 = vpop.xlane.xlu0 %220
    %222 = vadd.xlane.f32.xlu0 %v121
    %v223 = vpop.xlane.xlu0 %222
    %224 = vadd.xlane.f32.xlu0 %v122
    %v225 = vpop.xlane.xlu0 %224
    %226 = vadd.xlane.f32.xlu0 %v123
    %v227 = vpop.xlane.xlu0 %226
    %228 = vadd.xlane.f32.xlu0 %v124
    %v229 = vpop.xlane.xlu0 %228
    %230 = vadd.xlane.f32.xlu0 %v125
    %v231 = vpop.xlane.xlu0 %230
    %232 = vadd.xlane.f32.xlu0 %v126
    %v233 = vpop.xlane.xlu0 %232
    %234 = vadd.xlane.f32.xlu0 %v127
    %v235 = vpop.xlane.xlu0 %234
    %236 = vadd.xlane.f32.xlu0 %v128
    %v237 = vpop.xlane.xlu0 %236
    %238 = vadd.xlane.f32.xlu0 %v129
    %v239 = vpop.xlane.xlu0 %238
    %240 = vadd.xlane.f32.xlu0 %v130
    %v241 = vpop.xlane.xlu0 %240
    %242 = vadd.xlane.f32.xlu0 %v131
    %v243 = vpop.xlane.xlu0 %242
    %244 = vadd.xlane.f32.xlu0 %v132
    %v245 = vpop.xlane.xlu0 %244
    %246 = vadd.xlane.f32.xlu0 %v133
    %v247 = vpop.xlane.xlu0 %246
    %248 = vadd.xlane.f32.xlu0 %v134
    %v249 = vpop.xlane.xlu0 %248
    %250 = vadd.xlane.f32.xlu0 %v135
    %v251 = vpop.xlane.xlu0 %250
    %252 = vadd.xlane.f32.xlu0 %v136
    %v253 = vpop.xlane.xlu0 %252
    %254 = vadd.xlane.f32.xlu0 %v137
    %v255 = vpop.xlane.xlu0 %254
    %256 = vadd.xlane.f32.xlu0 %v138
    %v257 = vpop.xlane.xlu0 %256
    %258 = vadd.xlane.f32.xlu0 %v139
    %v259 = vpop.xlane.xlu0 %258
    %260 = vadd.xlane.f32.xlu0 %v140
    %v261 = vpop.xlane.xlu0 %260
    %262 = vadd.xlane.f32.xlu0 %v141
    %v263 = vpop.xlane.xlu0 %262
    %264 = vadd.xlane.f32.xlu0 %v142
    %v265 = vpop.xlane.xlu0 %264
    %266 = vadd.xlane.f32.xlu0 %v143
    %v267 = vpop.xlane.xlu0 %266
    %268 = vadd.xlane.f32.xlu0 %v144
    %v269 = vpop.xlane.xlu0 %268
    %270 = vadd.xlane.f32.xlu0 %v145
    %v271 = vpop.xlane.xlu0 %270
    %272 = vadd.xlane.f32.xlu0 %v146
    %v273 = vpop.xlane.xlu0 %272
    %274 = vadd.xlane.f32.xlu0 %v147
    %v275 = vpop.xlane.xlu0 %274
    %276 = vadd.xlane.f32.xlu0 %v148
    %v277 = vpop.xlane.xlu0 %276
    %278 = vadd.xlane.f32.xlu0 %v149
    %v279 = vpop.xlane.xlu0 %278
    %280 = vadd.xlane.f32.xlu0 %v150
    %v281 = vpop.xlane.xlu0 %280
    %282 = vadd.xlane.f32.xlu0 %v151
    %v283 = vpop.xlane.xlu0 %282
    %v284 = vrcp.pop 128.0
    %v285 = vmul.f32 %v157, %v284
    %v286 = vmul.f32 %v159, %v284
    %v287 = vmul.f32 %v161, %v284
    %v288 = vmul.f32 %v163, %v284
    %v289 = vmul.f32 %v165, %v284
    %v290 = vmul.f32 %v167, %v284
    %v291 = vmul.f32 %v169, %v284
    %v292 = vmul.f32 %v171, %v284
    %v293 = vmul.f32 %v173, %v284
    %v294 = vmul.f32 %v175, %v284
    %v295 = vmul.f32 %v177, %v284
    %v296 = vmul.f32 %v179, %v284
    %v297 = vmul.f32 %v181, %v284
    %v298 = vmul.f32 %v183, %v284
    %v299 = vmul.f32 %v185, %v284
    %v300 = vmul.f32 %v187, %v284
    %v301 = vmul.f32 %v189, %v284
    %v302 = vmul.f32 %v191, %v284
    %v303 = vmul.f32 %v193, %v284
    %v304 = vmul.f32 %v195, %v284
    %v305 = vmul.f32 %v197, %v284
    %v306 = vmul.f32 %v199, %v284
    %v307 = vmul.f32 %v201, %v284
    %v308 = vmul.f32 %v203, %v284
    %v309 = vmul.f32 %v205, %v284
    %v310 = vmul.f32 %v207, %v284
    %v311 = vmul.f32 %v209, %v284
    %v312 = vmul.f32 %v211, %v284
    %v313 = vmul.f32 %v213, %v284
    %v314 = vmul.f32 %v215, %v284
    %v315 = vmul.f32 %v217, %v284
    %v316 = vmul.f32 %v219, %v284
    %v317 = vmul.f32 %v221, %v284
    %v318 = vmul.f32 %v223, %v284
    %v319 = vmul.f32 %v225, %v284
    %v320 = vmul.f32 %v227, %v284
    %v321 = vmul.f32 %v229, %v284
    %v322 = vmul.f32 %v231, %v284
    %v323 = vmul.f32 %v233, %v284
    %v324 = vmul.f32 %v235, %v284
    %v325 = vmul.f32 %v237, %v284
    %v326 = vmul.f32 %v239, %v284
    %v327 = vmul.f32 %v241, %v284
    %v328 = vmul.f32 %v243, %v284
    %v329 = vmul.f32 %v245, %v284
    %v330 = vmul.f32 %v247, %v284
    %v331 = vmul.f32 %v249, %v284
    %v332 = vmul.f32 %v251, %v284
    %v333 = vmul.f32 %v253, %v284
    %v334 = vmul.f32 %v255, %v284
    %v335 = vmul.f32 %v257, %v284
    %v336 = vmul.f32 %v259, %v284
    %v337 = vmul.f32 %v261, %v284
    %v338 = vmul.f32 %v263, %v284
    %v339 = vmul.f32 %v265, %v284
    %v340 = vmul.f32 %v267, %v284
    %v341 = vmul.f32 %v269, %v284
    %v342 = vmul.f32 %v271, %v284
    %v343 = vmul.f32 %v273, %v284
    %v344 = vmul.f32 %v275, %v284
    %v345 = vmul.f32 %v277, %v284
    %v346 = vmul.f32 %v279, %v284
    %v347 = vmul.f32 %v281, %v284
    %v348 = vmul.f32 %v283, %v284
    %v349 = vsub.f32 %v88, %v285
    %v350 = vsub.f32 %v89, %v286
    %v351 = vsub.f32 %v90, %v287
    %v352 = vsub.f32 %v91, %v288
    %v353 = vsub.f32 %v92, %v289
    %v354 = vsub.f32 %v93, %v290
    %v355 = vsub.f32 %v94, %v291
    %v356 = vsub.f32 %v95, %v292
    %v357 = vsub.f32 %v96, %v293
    %v358 = vsub.f32 %v97, %v294
    %v359 = vsub.f32 %v98, %v295
    %v360 = vsub.f32 %v99, %v296
    %v361 = vsub.f32 %v100, %v297
    %v362 = vsub.f32 %v101, %v298
    %v363 = vsub.f32 %v102, %v299
    %v364 = vsub.f32 %v103, %v300
    %v365 = vsub.f32 %v104, %v301
    %v366 = vsub.f32 %v105, %v302
    %v367 = vsub.f32 %v106, %v303
    %v368 = vsub.f32 %v107, %v304
    %v369 = vsub.f32 %v108, %v305
    %v370 = vsub.f32 %v109, %v306
    %v371 = vsub.f32 %v110, %v307
    %v372 = vsub.f32 %v111, %v308
    %v373 = vsub.f32 %v112, %v309
    %v374 = vsub.f32 %v113, %v310
    %v375 = vsub.f32 %v114, %v311
    %v376 = vsub.f32 %v115, %v312
    %v377 = vsub.f32 %v116, %v313
    %v378 = vsub.f32 %v117, %v314
    %v379 = vsub.f32 %v118, %v315
    %v380 = vsub.f32 %v119, %v316
    %v381 = vsub.f32 %v120, %v317
    %v382 = vsub.f32 %v121, %v318
    %v383 = vsub.f32 %v122, %v319
    %v384 = vsub.f32 %v123, %v320
    %v385 = vsub.f32 %v124, %v321
    %v386 = vsub.f32 %v125, %v322
    %v387 = vsub.f32 %v126, %v323
    %v388 = vsub.f32 %v127, %v324
    %v389 = vsub.f32 %v128, %v325
    %v390 = vsub.f32 %v129, %v326
    %v391 = vsub.f32 %v130, %v327
    %v392 = vsub.f32 %v131, %v328
    %v393 = vsub.f32 %v132, %v329
    %v394 = vsub.f32 %v133, %v330
    %v395 = vsub.f32 %v134, %v331
    %v396 = vsub.f32 %v135, %v332
    %v397 = vsub.f32 %v136, %v333
    %v398 = vsub.f32 %v137, %v334
    %v399 = vsub.f32 %v138, %v335
    %v400 = vsub.f32 %v139, %v336
    %v401 = vsub.f32 %v140, %v337
    %v402 = vsub.f32 %v141, %v338
    %v403 = vsub.f32 %v142, %v339
    %v404 = vsub.f32 %v143, %v340
    %v405 = vsub.f32 %v144, %v341
    %v406 = vsub.f32 %v145, %v342
    %v407 = vsub.f32 %v146, %v343
    %v408 = vsub.f32 %v147, %v344
    %v409 = vsub.f32 %v148, %v345
    %v410 = vsub.f32 %v149, %v346
    %v411 = vsub.f32 %v150, %v347
    %v412 = vsub.f32 %v151, %v348
    %v413 = vmul.f32 %v349, %v349
    %v414 = vmul.f32 %v350, %v350
    %v415 = vmul.f32 %v351, %v351
    %v416 = vmul.f32 %v352, %v352
    %v417 = vmul.f32 %v353, %v353
    %v418 = vmul.f32 %v354, %v354
    %v419 = vmul.f32 %v355, %v355
    %v420 = vmul.f32 %v356, %v356
    %v421 = vmul.f32 %v357, %v357
    %v422 = vmul.f32 %v358, %v358
    %v423 = vmul.f32 %v359, %v359
    %v424 = vmul.f32 %v360, %v360
    %v425 = vmul.f32 %v361, %v361
    %v426 = vmul.f32 %v362, %v362
    %v427 = vmul.f32 %v363, %v363
    %v428 = vmul.f32 %v364, %v364
    %v429 = vmul.f32 %v365, %v365
    %v430 = vmul.f32 %v366, %v366
    %v431 = vmul.f32 %v367, %v367
    %v432 = vmul.f32 %v368, %v368
    %v433 = vmul.f32 %v369, %v369
    %v434 = vmul.f32 %v370, %v370
    %v435 = vmul.f32 %v371, %v371
    %v436 = vmul.f32 %v372, %v372
    %v437 = vmul.f32 %v373, %v373
    %v438 = vmul.f32 %v374, %v374
    %v439 = vmul.f32 %v375, %v375
    %v440 = vmul.f32 %v376, %v376
    %v441 = vmul.f32 %v377, %v377
    %v442 = vmul.f32 %v378, %v378
    %v443 = vmul.f32 %v379, %v379
    %v444 = vmul.f32 %v380, %v380
    %v445 = vmul.f32 %v381, %v381
    %v446 = vmul.f32 %v382, %v382
    %v447 = vmul.f32 %v383, %v383
    %v448 = vmul.f32 %v384, %v384
    %v449 = vmul.f32 %v385, %v385
    %v450 = vmul.f32 %v386, %v386
    %v451 = vmul.f32 %v387, %v387
    %v452 = vmul.f32 %v388, %v388
    %v453 = vmul.f32 %v389, %v389
    %v454 = vmul.f32 %v390, %v390
    %v455 = vmul.f32 %v391, %v391
    %v456 = vmul.f32 %v392, %v392
    %v457 = vmul.f32 %v393, %v393
    %v458 = vmul.f32 %v394, %v394
    %v459 = vmul.f32 %v395, %v395
    %v460 = vmul.f32 %v396, %v396
    %v461 = vmul.f32 %v397, %v397
    %v462 = vmul.f32 %v398, %v398
    %v463 = vmul.f32 %v399, %v399
    %v464 = vmul.f32 %v400, %v400
    %v465 = vmul.f32 %v401, %v401
    %v466 = vmul.f32 %v402, %v402
    %v467 = vmul.f32 %v403, %v403
    %v468 = vmul.f32 %v404, %v404
    %v469 = vmul.f32 %v405, %v405
    %v470 = vmul.f32 %v406, %v406
    %v471 = vmul.f32 %v407, %v407
    %v472 = vmul.f32 %v408, %v408
    %v473 = vmul.f32 %v409, %v409
    %v474 = vmul.f32 %v410, %v410
    %v475 = vmul.f32 %v411, %v411
    %v476 = vmul.f32 %v412, %v412
    %477 = vadd.xlane.f32.xlu0 %v413
    %v478 = vpop.xlane.xlu0 %477
    %479 = vadd.xlane.f32.xlu0 %v414
    %v480 = vpop.xlane.xlu0 %479
    %481 = vadd.xlane.f32.xlu0 %v415
    %v482 = vpop.xlane.xlu0 %481
    %483 = vadd.xlane.f32.xlu0 %v416
    %v484 = vpop.xlane.xlu0 %483
    %485 = vadd.xlane.f32.xlu0 %v417
    %v486 = vpop.xlane.xlu0 %485
    %487 = vadd.xlane.f32.xlu0 %v418
    %v488 = vpop.xlane.xlu0 %487
    %489 = vadd.xlane.f32.xlu0 %v419
    %v490 = vpop.xlane.xlu0 %489
    %491 = vadd.xlane.f32.xlu0 %v420
    %v492 = vpop.xlane.xlu0 %491
    %493 = vadd.xlane.f32.xlu0 %v421
    %v494 = vpop.xlane.xlu0 %493
    %495 = vadd.xlane.f32.xlu0 %v422
    %v496 = vpop.xlane.xlu0 %495
    %497 = vadd.xlane.f32.xlu0 %v423
    %v498 = vpop.xlane.xlu0 %497
    %499 = vadd.xlane.f32.xlu0 %v424
    %v500 = vpop.xlane.xlu0 %499
    %501 = vadd.xlane.f32.xlu0 %v425
    %v502 = vpop.xlane.xlu0 %501
    %503 = vadd.xlane.f32.xlu0 %v426
    %v504 = vpop.xlane.xlu0 %503
    %505 = vadd.xlane.f32.xlu0 %v427
    %v506 = vpop.xlane.xlu0 %505
    %507 = vadd.xlane.f32.xlu0 %v428
    %v508 = vpop.xlane.xlu0 %507
    %509 = vadd.xlane.f32.xlu0 %v429
    %v510 = vpop.xlane.xlu0 %509
    %511 = vadd.xlane.f32.xlu0 %v430
    %v512 = vpop.xlane.xlu0 %511
    %513 = vadd.xlane.f32.xlu0 %v431
    %v514 = vpop.xlane.xlu0 %513
    %515 = vadd.xlane.f32.xlu0 %v432
    %v516 = vpop.xlane.xlu0 %515
    %517 = vadd.xlane.f32.xlu0 %v433
    %v518 = vpop.xlane.xlu0 %517
    %519 = vadd.xlane.f32.xlu0 %v434
    %v520 = vpop.xlane.xlu0 %519
    %521 = vadd.xlane.f32.xlu0 %v435
    %v522 = vpop.xlane.xlu0 %521
    %523 = vadd.xlane.f32.xlu0 %v436
    %v524 = vpop.xlane.xlu0 %523
    %525 = vadd.xlane.f32.xlu0 %v437
    %v526 = vpop.xlane.xlu0 %525
    %527 = vadd.xlane.f32.xlu0 %v438
    %v528 = vpop.xlane.xlu0 %527
    %529 = vadd.xlane.f32.xlu0 %v439
    %v530 = vpop.xlane.xlu0 %529
    %531 = vadd.xlane.f32.xlu0 %v440
    %v532 = vpop.xlane.xlu0 %531
    %533 = vadd.xlane.f32.xlu0 %v441
    %v534 = vpop.xlane.xlu0 %533
    %535 = vadd.xlane.f32.xlu0 %v442
    %v536 = vpop.xlane.xlu0 %535
    %537 = vadd.xlane.f32.xlu0 %v443
    %v538 = vpop.xlane.xlu0 %537
    %539 = vadd.xlane.f32.xlu0 %v444
    %v540 = vpop.xlane.xlu0 %539
    %541 = vadd.xlane.f32.xlu0 %v445
    %v542 = vpop.xlane.xlu0 %541
    %543 = vadd.xlane.f32.xlu0 %v446
    %v544 = vpop.xlane.xlu0 %543
    %545 = vadd.xlane.f32.xlu0 %v447
    %v546 = vpop.xlane.xlu0 %545
    %547 = vadd.xlane.f32.xlu0 %v448
    %v548 = vpop.xlane.xlu0 %547
    %549 = vadd.xlane.f32.xlu0 %v449
    %v550 = vpop.xlane.xlu0 %549
    %551 = vadd.xlane.f32.xlu0 %v450
    %v552 = vpop.xlane.xlu0 %551
    %553 = vadd.xlane.f32.xlu0 %v451
    %v554 = vpop.xlane.xlu0 %553
    %555 = vadd.xlane.f32.xlu0 %v452
    %v556 = vpop.xlane.xlu0 %555
    %557 = vadd.xlane.f32.xlu0 %v453
    %v558 = vpop.xlane.xlu0 %557
    %559 = vadd.xlane.f32.xlu0 %v454
    %v560 = vpop.xlane.xlu0 %559
    %561 = vadd.xlane.f32.xlu0 %v455
    %v562 = vpop.xlane.xlu0 %561
    %563 = vadd.xlane.f32.xlu0 %v456
    %v564 = vpop.xlane.xlu0 %563
    %565 = vadd.xlane.f32.xlu0 %v457
    %v566 = vpop.xlane.xlu0 %565
    %567 = vadd.xlane.f32.xlu0 %v458
    %v568 = vpop.xlane.xlu0 %567
    %569 = vadd.xlane.f32.xlu0 %v459
    %v570 = vpop.xlane.xlu0 %569
    %571 = vadd.xlane.f32.xlu0 %v460
    %v572 = vpop.xlane.xlu0 %571
    %573 = vadd.xlane.f32.xlu0 %v461
    %v574 = vpop.xlane.xlu0 %573
    %575 = vadd.xlane.f32.xlu0 %v462
    %v576 = vpop.xlane.xlu0 %575
    %577 = vadd.xlane.f32.xlu0 %v463
    %v578 = vpop.xlane.xlu0 %577
    %579 = vadd.xlane.f32.xlu0 %v464
    %v580 = vpop.xlane.xlu0 %579
    %581 = vadd.xlane.f32.xlu0 %v465
    %v582 = vpop.xlane.xlu0 %581
    %583 = vadd.xlane.f32.xlu0 %v466
    %v584 = vpop.xlane.xlu0 %583
    %585 = vadd.xlane.f32.xlu0 %v467
    %v586 = vpop.xlane.xlu0 %585
    %587 = vadd.xlane.f32.xlu0 %v468
    %v588 = vpop.xlane.xlu0 %587
    %589 = vadd.xlane.f32.xlu0 %v469
    %v590 = vpop.xlane.xlu0 %589
    %591 = vadd.xlane.f32.xlu0 %v470
    %v592 = vpop.xlane.xlu0 %591
    %593 = vadd.xlane.f32.xlu0 %v471
    %v594 = vpop.xlane.xlu0 %593
    %595 = vadd.xlane.f32.xlu0 %v472
    %v596 = vpop.xlane.xlu0 %595
    %597 = vadd.xlane.f32.xlu0 %v473
    %v598 = vpop.xlane.xlu0 %597
    %599 = vadd.xlane.f32.xlu0 %v474
    %v600 = vpop.xlane.xlu0 %599
    %601 = vadd.xlane.f32.xlu0 %v475
    %v602 = vpop.xlane.xlu0 %601
    %603 = vadd.xlane.f32.xlu0 %v476
    %v604 = vpop.xlane.xlu0 %603
    %v605 = vmul.f32 %v478, %v284
    %v606 = vmul.f32 %v480, %v284
    %v607 = vmul.f32 %v482, %v284
    %v608 = vmul.f32 %v484, %v284
    %v609 = vmul.f32 %v486, %v284
    %v610 = vmul.f32 %v488, %v284
    %v611 = vmul.f32 %v490, %v284
    %v612 = vmul.f32 %v492, %v284
    %v613 = vmul.f32 %v494, %v284
    %v614 = vmul.f32 %v496, %v284
    %v615 = vmul.f32 %v498, %v284
    %v616 = vmul.f32 %v500, %v284
    %v617 = vmul.f32 %v502, %v284
    %v618 = vmul.f32 %v504, %v284
    %v619 = vmul.f32 %v506, %v284
    %v620 = vmul.f32 %v508, %v284
    %v621 = vmul.f32 %v510, %v284
    %v622 = vmul.f32 %v512, %v284
    %v623 = vmul.f32 %v514, %v284
    %v624 = vmul.f32 %v516, %v284
    %v625 = vmul.f32 %v518, %v284
    %v626 = vmul.f32 %v520, %v284
    %v627 = vmul.f32 %v522, %v284
    %v628 = vmul.f32 %v524, %v284
    %v629 = vmul.f32 %v526, %v284
    %v630 = vmul.f32 %v528, %v284
    %v631 = vmul.f32 %v530, %v284
    %v632 = vmul.f32 %v532, %v284
    %v633 = vmul.f32 %v534, %v284
    %v634 = vmul.f32 %v536, %v284
    %v635 = vmul.f32 %v538, %v284
    %v636 = vmul.f32 %v540, %v284
    %v637 = vmul.f32 %v542, %v284
    %v638 = vmul.f32 %v544, %v284
    %v639 = vmul.f32 %v546, %v284
    %v640 = vmul.f32 %v548, %v284
    %v641 = vmul.f32 %v550, %v284
    %v642 = vmul.f32 %v552, %v284
    %v643 = vmul.f32 %v554, %v284
    %v644 = vmul.f32 %v556, %v284
    %v645 = vmul.f32 %v558, %v284
    %v646 = vmul.f32 %v560, %v284
    %v647 = vmul.f32 %v562, %v284
    %v648 = vmul.f32 %v564, %v284
    %v649 = vmul.f32 %v566, %v284
    %v650 = vmul.f32 %v568, %v284
    %v651 = vmul.f32 %v570, %v284
    %v652 = vmul.f32 %v572, %v284
    %v653 = vmul.f32 %v574, %v284
    %v654 = vmul.f32 %v576, %v284
    %v655 = vmul.f32 %v578, %v284
    %v656 = vmul.f32 %v580, %v284
    %v657 = vmul.f32 %v582, %v284
    %v658 = vmul.f32 %v584, %v284
    %v659 = vmul.f32 %v586, %v284
    %v660 = vmul.f32 %v588, %v284
    %v661 = vmul.f32 %v590, %v284
    %v662 = vmul.f32 %v592, %v284
    %v663 = vmul.f32 %v594, %v284
    %v664 = vmul.f32 %v596, %v284
    %v665 = vmul.f32 %v598, %v284
    %v666 = vmul.f32 %v600, %v284
    %v667 = vmul.f32 %v602, %v284
    %v668 = vmul.f32 %v604, %v284
    %v669 = vadd.f32 %v605, 1e-05
    %v670 = vadd.f32 %v606, 1e-05
    %v671 = vadd.f32 %v607, 1e-05
    %v672 = vadd.f32 %v608, 1e-05
    %v673 = vadd.f32 %v609, 1e-05
    %v674 = vadd.f32 %v610, 1e-05
    %v675 = vadd.f32 %v611, 1e-05
    %v676 = vadd.f32 %v612, 1e-05
    %v677 = vadd.f32 %v613, 1e-05
    %v678 = vadd.f32 %v614, 1e-05
    %v679 = vadd.f32 %v615, 1e-05
    %v680 = vadd.f32 %v616, 1e-05
    %v681 = vadd.f32 %v617, 1e-05
    %v682 = vadd.f32 %v618, 1e-05
    %v683 = vadd.f32 %v619, 1e-05
    %v684 = vadd.f32 %v620, 1e-05
    %v685 = vadd.f32 %v621, 1e-05
    %v686 = vadd.f32 %v622, 1e-05
    %v687 = vadd.f32 %v623, 1e-05
    %v688 = vadd.f32 %v624, 1e-05
    %v689 = vadd.f32 %v625, 1e-05
    %v690 = vadd.f32 %v626, 1e-05
    %v691 = vadd.f32 %v627, 1e-05
    %v692 = vadd.f32 %v628, 1e-05
    %v693 = vadd.f32 %v629, 1e-05
    %v694 = vadd.f32 %v630, 1e-05
    %v695 = vadd.f32 %v631, 1e-05
    %v696 = vadd.f32 %v632, 1e-05
    %v697 = vadd.f32 %v633, 1e-05
    %v698 = vadd.f32 %v634, 1e-05
    %v699 = vadd.f32 %v635, 1e-05
    %v700 = vadd.f32 %v636, 1e-05
    %v701 = vadd.f32 %v637, 1e-05
    %v702 = vadd.f32 %v638, 1e-05
    %v703 = vadd.f32 %v639, 1e-05
    %v704 = vadd.f32 %v640, 1e-05
    %v705 = vadd.f32 %v641, 1e-05
    %v706 = vadd.f32 %v642, 1e-05
    %v707 = vadd.f32 %v643, 1e-05
    %v708 = vadd.f32 %v644, 1e-05
    %v709 = vadd.f32 %v645, 1e-05
    %v710 = vadd.f32 %v646, 1e-05
    %v711 = vadd.f32 %v647, 1e-05
    %v712 = vadd.f32 %v648, 1e-05
    %v713 = vadd.f32 %v649, 1e-05
    %v714 = vadd.f32 %v650, 1e-05
    %v715 = vadd.f32 %v651, 1e-05
    %v716 = vadd.f32 %v652, 1e-05
    %v717 = vadd.f32 %v653, 1e-05
    %v718 = vadd.f32 %v654, 1e-05
    %v719 = vadd.f32 %v655, 1e-05
    %v720 = vadd.f32 %v656, 1e-05
    %v721 = vadd.f32 %v657, 1e-05
    %v722 = vadd.f32 %v658, 1e-05
    %v723 = vadd.f32 %v659, 1e-05
    %v724 = vadd.f32 %v660, 1e-05
    %v725 = vadd.f32 %v661, 1e-05
    %v726 = vadd.f32 %v662, 1e-05
    %v727 = vadd.f32 %v663, 1e-05
    %v728 = vadd.f32 %v664, 1e-05
    %v729 = vadd.f32 %v665, 1e-05
    %v730 = vadd.f32 %v666, 1e-05
    %v731 = vadd.f32 %v667, 1e-05
    %v732 = vadd.f32 %v668, 1e-05
    %v733 = vrsqrt.pop %v669
    %v734 = vrsqrt.pop %v670
    %v735 = vrsqrt.pop %v671
    %v736 = vrsqrt.pop %v672
    %v737 = vrsqrt.pop %v673
    %v738 = vrsqrt.pop %v674
    %v739 = vrsqrt.pop %v675
    %v740 = vrsqrt.pop %v676
    %v741 = vrsqrt.pop %v677
    %v742 = vrsqrt.pop %v678
    %v743 = vrsqrt.pop %v679
    %v744 = vrsqrt.pop %v680
    %v745 = vrsqrt.pop %v681
    %v746 = vrsqrt.pop %v682
    %v747 = vrsqrt.pop %v683
    %v748 = vrsqrt.pop %v684
    %v749 = vrsqrt.pop %v685
    %v750 = vrsqrt.pop %v686
    %v751 = vrsqrt.pop %v687
    %v752 = vrsqrt.pop %v688
    %v753 = vrsqrt.pop %v689
    %v754 = vrsqrt.pop %v690
    %v755 = vrsqrt.pop %v691
    %v756 = vrsqrt.pop %v692
    %v757 = vrsqrt.pop %v693
    %v758 = vrsqrt.pop %v694
    %v759 = vrsqrt.pop %v695
    %v760 = vrsqrt.pop %v696
    %v761 = vrsqrt.pop %v697
    %v762 = vrsqrt.pop %v698
    %v763 = vrsqrt.pop %v699
    %v764 = vrsqrt.pop %v700
    %v765 = vrsqrt.pop %v701
    %v766 = vrsqrt.pop %v702
    %v767 = vrsqrt.pop %v703
    %v768 = vrsqrt.pop %v704
    %v769 = vrsqrt.pop %v705
    %v770 = vrsqrt.pop %v706
    %v771 = vrsqrt.pop %v707
    %v772 = vrsqrt.pop %v708
    %v773 = vrsqrt.pop %v709
    %v774 = vrsqrt.pop %v710
    %v775 = vrsqrt.pop %v711
    %v776 = vrsqrt.pop %v712
    %v777 = vrsqrt.pop %v713
    %v778 = vrsqrt.pop %v714
    %v779 = vrsqrt.pop %v715
    %v780 = vrsqrt.pop %v716
    %v781 = vrsqrt.pop %v717
    %v782 = vrsqrt.pop %v718
    %v783 = vrsqrt.pop %v719
    %v784 = vrsqrt.pop %v720
    %v785 = vrsqrt.pop %v721
    %v786 = vrsqrt.pop %v722
    %v787 = vrsqrt.pop %v723
    %v788 = vrsqrt.pop %v724
    %v789 = vrsqrt.pop %v725
    %v790 = vrsqrt.pop %v726
    %v791 = vrsqrt.pop %v727
    %v792 = vrsqrt.pop %v728
    %v793 = vrsqrt.pop %v729
    %v794 = vrsqrt.pop %v730
    %v795 = vrsqrt.pop %v731
    %v796 = vrsqrt.pop %v732
    %v797 = vmul.f32 %v349, %v733
    %v798 = vmul.f32 %v350, %v734
    %v799 = vmul.f32 %v351, %v735
    %v800 = vmul.f32 %v352, %v736
    %v801 = vmul.f32 %v353, %v737
    %v802 = vmul.f32 %v354, %v738
    %v803 = vmul.f32 %v355, %v739
    %v804 = vmul.f32 %v356, %v740
    %v805 = vmul.f32 %v357, %v741
    %v806 = vmul.f32 %v358, %v742
    %v807 = vmul.f32 %v359, %v743
    %v808 = vmul.f32 %v360, %v744
    %v809 = vmul.f32 %v361, %v745
    %v810 = vmul.f32 %v362, %v746
    %v811 = vmul.f32 %v363, %v747
    %v812 = vmul.f32 %v364, %v748
    %v813 = vmul.f32 %v365, %v749
    %v814 = vmul.f32 %v366, %v750
    %v815 = vmul.f32 %v367, %v751
    %v816 = vmul.f32 %v368, %v752
    %v817 = vmul.f32 %v369, %v753
    %v818 = vmul.f32 %v370, %v754
    %v819 = vmul.f32 %v371, %v755
    %v820 = vmul.f32 %v372, %v756
    %v821 = vmul.f32 %v373, %v757
    %v822 = vmul.f32 %v374, %v758
    %v823 = vmul.f32 %v375, %v759
    %v824 = vmul.f32 %v376, %v760
    %v825 = vmul.f32 %v377, %v761
    %v826 = vmul.f32 %v378, %v762
    %v827 = vmul.f32 %v379, %v763
    %v828 = vmul.f32 %v380, %v764
    %v829 = vmul.f32 %v381, %v765
    %v830 = vmul.f32 %v382, %v766
    %v831 = vmul.f32 %v383, %v767
    %v832 = vmul.f32 %v384, %v768
    %v833 = vmul.f32 %v385, %v769
    %v834 = vmul.f32 %v386, %v770
    %v835 = vmul.f32 %v387, %v771
    %v836 = vmul.f32 %v388, %v772
    %v837 = vmul.f32 %v389, %v773
    %v838 = vmul.f32 %v390, %v774
    %v839 = vmul.f32 %v391, %v775
    %v840 = vmul.f32 %v392, %v776
    %v841 = vmul.f32 %v393, %v777
    %v842 = vmul.f32 %v394, %v778
    %v843 = vmul.f32 %v395, %v779
    %v844 = vmul.f32 %v396, %v780
    %v845 = vmul.f32 %v397, %v781
    %v846 = vmul.f32 %v398, %v782
    %v847 = vmul.f32 %v399, %v783
    %v848 = vmul.f32 %v400, %v784
    %v849 = vmul.f32 %v401, %v785
    %v850 = vmul.f32 %v402, %v786
    %v851 = vmul.f32 %v403, %v787
    %v852 = vmul.f32 %v404, %v788
    %v853 = vmul.f32 %v405, %v789
    %v854 = vmul.f32 %v406, %v790
    %v855 = vmul.f32 %v407, %v791
    %v856 = vmul.f32 %v408, %v792
    %v857 = vmul.f32 %v409, %v793
    %v858 = vmul.f32 %v410, %v794
    %v859 = vmul.f32 %v411, %v795
    %v860 = vmul.f32 %v412, %v796
    %v861 = vlaneseq
    %v862 = vshrl.u32 %v861, 7
    %v863 = vsub.s32 0, %v862
    %v864 = vrot.slane %v152, %v863
    %v865 = vmul.f32 %v797, %v864
    %v866 = vmul.f32 %v798, %v864
    %v867 = vmul.f32 %v799, %v864
    %v868 = vmul.f32 %v800, %v864
    %v869 = vmul.f32 %v801, %v864
    %v870 = vmul.f32 %v802, %v864
    %v871 = vmul.f32 %v803, %v864
    %v872 = vmul.f32 %v804, %v864
    %v873 = vmul.f32 %v805, %v864
    %v874 = vmul.f32 %v806, %v864
    %v875 = vmul.f32 %v807, %v864
    %v876 = vmul.f32 %v808, %v864
    %v877 = vmul.f32 %v809, %v864
    %v878 = vmul.f32 %v810, %v864
    %v879 = vmul.f32 %v811, %v864
    %v880 = vmul.f32 %v812, %v864
    %v881 = vmul.f32 %v813, %v864
    %v882 = vmul.f32 %v814, %v864
    %v883 = vmul.f32 %v815, %v864
    %v884 = vmul.f32 %v816, %v864
    %v885 = vmul.f32 %v817, %v864
    %v886 = vmul.f32 %v818, %v864
    %v887 = vmul.f32 %v819, %v864
    %v888 = vmul.f32 %v820, %v864
    %v889 = vmul.f32 %v821, %v864
    %v890 = vmul.f32 %v822, %v864
    %v891 = vmul.f32 %v823, %v864
    %v892 = vmul.f32 %v824, %v864
    %v893 = vmul.f32 %v825, %v864
    %v894 = vmul.f32 %v826, %v864
    %v895 = vmul.f32 %v827, %v864
    %v896 = vmul.f32 %v828, %v864
    %v897 = vmul.f32 %v829, %v864
    %v898 = vmul.f32 %v830, %v864
    %v899 = vmul.f32 %v831, %v864
    %v900 = vmul.f32 %v832, %v864
    %v901 = vmul.f32 %v833, %v864
    %v902 = vmul.f32 %v834, %v864
    %v903 = vmul.f32 %v835, %v864
    %v904 = vmul.f32 %v836, %v864
    %v905 = vmul.f32 %v837, %v864
    %v906 = vmul.f32 %v838, %v864
    %v907 = vmul.f32 %v839, %v864
    %v908 = vmul.f32 %v840, %v864
    %v909 = vmul.f32 %v841, %v864
    %v910 = vmul.f32 %v842, %v864
    %v911 = vmul.f32 %v843, %v864
    %v912 = vmul.f32 %v844, %v864
    %v913 = vmul.f32 %v845, %v864
    %v914 = vmul.f32 %v846, %v864
    %v915 = vmul.f32 %v847, %v864
    %v916 = vmul.f32 %v848, %v864
    %v917 = vmul.f32 %v849, %v864
    %v918 = vmul.f32 %v850, %v864
    %v919 = vmul.f32 %v851, %v864
    %v920 = vmul.f32 %v852, %v864
    %v921 = vmul.f32 %v853, %v864
    %v922 = vmul.f32 %v854, %v864
    %v923 = vmul.f32 %v855, %v864
    %v924 = vmul.f32 %v856, %v864
    %v925 = vmul.f32 %v857, %v864
    %v926 = vmul.f32 %v858, %v864
    %v927 = vmul.f32 %v859, %v864
    %v928 = vmul.f32 %v860, %v864
    %v929 = vlaneseq
    %v930 = vshrl.u32 %v929, 7
    %v931 = vsub.s32 0, %v930
    %v932 = vrot.slane %v153, %v931
    %v933 = vadd.f32 %v865, %v932
    %v934 = vadd.f32 %v866, %v932
    %v935 = vadd.f32 %v867, %v932
    %v936 = vadd.f32 %v868, %v932
    %v937 = vadd.f32 %v869, %v932
    %v938 = vadd.f32 %v870, %v932
    %v939 = vadd.f32 %v871, %v932
    %v940 = vadd.f32 %v872, %v932
    %v941 = vadd.f32 %v873, %v932
    %v942 = vadd.f32 %v874, %v932
    %v943 = vadd.f32 %v875, %v932
    %v944 = vadd.f32 %v876, %v932
    %v945 = vadd.f32 %v877, %v932
    %v946 = vadd.f32 %v878, %v932
    %v947 = vadd.f32 %v879, %v932
    %v948 = vadd.f32 %v880, %v932
    %v949 = vadd.f32 %v881, %v932
    %v950 = vadd.f32 %v882, %v932
    %v951 = vadd.f32 %v883, %v932
    %v952 = vadd.f32 %v884, %v932
    %v953 = vadd.f32 %v885, %v932
    %v954 = vadd.f32 %v886, %v932
    %v955 = vadd.f32 %v887, %v932
    %v956 = vadd.f32 %v888, %v932
    %v957 = vadd.f32 %v889, %v932
    %v958 = vadd.f32 %v890, %v932
    %v959 = vadd.f32 %v891, %v932
    %v960 = vadd.f32 %v892, %v932
    %v961 = vadd.f32 %v893, %v932
    %v962 = vadd.f32 %v894, %v932
    %v963 = vadd.f32 %v895, %v932
    %v964 = vadd.f32 %v896, %v932
    %v965 = vadd.f32 %v897, %v932
    %v966 = vadd.f32 %v898, %v932
    %v967 = vadd.f32 %v899, %v932
    %v968 = vadd.f32 %v900, %v932
    %v969 = vadd.f32 %v901, %v932
    %v970 = vadd.f32 %v902, %v932
    %v971 = vadd.f32 %v903, %v932
    %v972 = vadd.f32 %v904, %v932
    %v973 = vadd.f32 %v905, %v932
    %v974 = vadd.f32 %v906, %v932
    %v975 = vadd.f32 %v907, %v932
    %v976 = vadd.f32 %v908, %v932
    %v977 = vadd.f32 %v909, %v932
    %v978 = vadd.f32 %v910, %v932
    %v979 = vadd.f32 %v911, %v932
    %v980 = vadd.f32 %v912, %v932
    %v981 = vadd.f32 %v913, %v932
    %v982 = vadd.f32 %v914, %v932
    %v983 = vadd.f32 %v915, %v932
    %v984 = vadd.f32 %v916, %v932
    %v985 = vadd.f32 %v917, %v932
    %v986 = vadd.f32 %v918, %v932
    %v987 = vadd.f32 %v919, %v932
    %v988 = vadd.f32 %v920, %v932
    %v989 = vadd.f32 %v921, %v932
    %v990 = vadd.f32 %v922, %v932
    %v991 = vadd.f32 %v923, %v932
    %v992 = vadd.f32 %v924, %v932
    %v993 = vadd.f32 %v925, %v932
    %v994 = vadd.f32 %v926, %v932
    %v995 = vadd.f32 %v927, %v932
    %v996 = vadd.f32 %v928, %v932
    %v997 = vadd.f32 %v88, %v933
    %v998 = vadd.f32 %v89, %v934
    %v999 = vadd.f32 %v90, %v935
    %v1000 = vadd.f32 %v91, %v936
    %v1001 = vadd.f32 %v92, %v937
    %v1002 = vadd.f32 %v93, %v938
    %v1003 = vadd.f32 %v94, %v939
    %v1004 = vadd.f32 %v95, %v940
    %v1005 = vadd.f32 %v96, %v941
    %v1006 = vadd.f32 %v97, %v942
    %v1007 = vadd.f32 %v98, %v943
    %v1008 = vadd.f32 %v99, %v944
    %v1009 = vadd.f32 %v100, %v945
    %v1010 = vadd.f32 %v101, %v946
    %v1011 = vadd.f32 %v102, %v947
    %v1012 = vadd.f32 %v103, %v948
    %v1013 = vadd.f32 %v104, %v949
    %v1014 = vadd.f32 %v105, %v950
    %v1015 = vadd.f32 %v106, %v951
    %v1016 = vadd.f32 %v107, %v952
    %v1017 = vadd.f32 %v108, %v953
    %v1018 = vadd.f32 %v109, %v954
    %v1019 = vadd.f32 %v110, %v955
    %v1020 = vadd.f32 %v111, %v956
    %v1021 = vadd.f32 %v112, %v957
    %v1022 = vadd.f32 %v113, %v958
    %v1023 = vadd.f32 %v114, %v959
    %v1024 = vadd.f32 %v115, %v960
    %v1025 = vadd.f32 %v116, %v961
    %v1026 = vadd.f32 %v117, %v962
    %v1027 = vadd.f32 %v118, %v963
    %v1028 = vadd.f32 %v119, %v964
    %v1029 = vadd.f32 %v120, %v965
    %v1030 = vadd.f32 %v121, %v966
    %v1031 = vadd.f32 %v122, %v967
    %v1032 = vadd.f32 %v123, %v968
    %v1033 = vadd.f32 %v124, %v969
    %v1034 = vadd.f32 %v125, %v970
    %v1035 = vadd.f32 %v126, %v971
    %v1036 = vadd.f32 %v127, %v972
    %v1037 = vadd.f32 %v128, %v973
    %v1038 = vadd.f32 %v129, %v974
    %v1039 = vadd.f32 %v130, %v975
    %v1040 = vadd.f32 %v131, %v976
    %v1041 = vadd.f32 %v132, %v977
    %v1042 = vadd.f32 %v133, %v978
    %v1043 = vadd.f32 %v134, %v979
    %v1044 = vadd.f32 %v135, %v980
    %v1045 = vadd.f32 %v136, %v981
    %v1046 = vadd.f32 %v137, %v982
    %v1047 = vadd.f32 %v138, %v983
    %v1048 = vadd.f32 %v139, %v984
    %v1049 = vadd.f32 %v140, %v985
    %v1050 = vadd.f32 %v141, %v986
    %v1051 = vadd.f32 %v142, %v987
    %v1052 = vadd.f32 %v143, %v988
    %v1053 = vadd.f32 %v144, %v989
    %v1054 = vadd.f32 %v145, %v990
    %v1055 = vadd.f32 %v146, %v991
    %v1056 = vadd.f32 %v147, %v992
    %v1057 = vadd.f32 %v148, %v993
    %v1058 = vadd.f32 %v149, %v994
    %v1059 = vadd.f32 %v150, %v995
    %v1060 = vadd.f32 %v151, %v996
    %1061 = vadd.xlane.f32.xlu0 %v997
    %v1062 = vpop.xlane.xlu0 %1061
    %1063 = vadd.xlane.f32.xlu0 %v998
    %v1064 = vpop.xlane.xlu0 %1063
    %1065 = vadd.xlane.f32.xlu0 %v999
    %v1066 = vpop.xlane.xlu0 %1065
    %1067 = vadd.xlane.f32.xlu0 %v1000
    %v1068 = vpop.xlane.xlu0 %1067
    %1069 = vadd.xlane.f32.xlu0 %v1001
    %v1070 = vpop.xlane.xlu0 %1069
    %1071 = vadd.xlane.f32.xlu0 %v1002
    %v1072 = vpop.xlane.xlu0 %1071
    %1073 = vadd.xlane.f32.xlu0 %v1003
    %v1074 = vpop.xlane.xlu0 %1073
    %1075 = vadd.xlane.f32.xlu0 %v1004
    %v1076 = vpop.xlane.xlu0 %1075
    %1077 = vadd.xlane.f32.xlu0 %v1005
    %v1078 = vpop.xlane.xlu0 %1077
    %1079 = vadd.xlane.f32.xlu0 %v1006
    %v1080 = vpop.xlane.xlu0 %1079
    %1081 = vadd.xlane.f32.xlu0 %v1007
    %v1082 = vpop.xlane.xlu0 %1081
    %1083 = vadd.xlane.f32.xlu0 %v1008
    %v1084 = vpop.xlane.xlu0 %1083
    %1085 = vadd.xlane.f32.xlu0 %v1009
    %v1086 = vpop.xlane.xlu0 %1085
    %1087 = vadd.xlane.f32.xlu0 %v1010
    %v1088 = vpop.xlane.xlu0 %1087
    %1089 = vadd.xlane.f32.xlu0 %v1011
    %v1090 = vpop.xlane.xlu0 %1089
    %1091 = vadd.xlane.f32.xlu0 %v1012
    %v1092 = vpop.xlane.xlu0 %1091
    %1093 = vadd.xlane.f32.xlu0 %v1013
    %v1094 = vpop.xlane.xlu0 %1093
    %1095 = vadd.xlane.f32.xlu0 %v1014
    %v1096 = vpop.xlane.xlu0 %1095
    %1097 = vadd.xlane.f32.xlu0 %v1015
    %v1098 = vpop.xlane.xlu0 %1097
    %1099 = vadd.xlane.f32.xlu0 %v1016
    %v1100 = vpop.xlane.xlu0 %1099
    %1101 = vadd.xlane.f32.xlu0 %v1017
    %v1102 = vpop.xlane.xlu0 %1101
    %1103 = vadd.xlane.f32.xlu0 %v1018
    %v1104 = vpop.xlane.xlu0 %1103
    %1105 = vadd.xlane.f32.xlu0 %v1019
    %v1106 = vpop.xlane.xlu0 %1105
    %1107 = vadd.xlane.f32.xlu0 %v1020
    %v1108 = vpop.xlane.xlu0 %1107
    %1109 = vadd.xlane.f32.xlu0 %v1021
    %v1110 = vpop.xlane.xlu0 %1109
    %1111 = vadd.xlane.f32.xlu0 %v1022
    %v1112 = vpop.xlane.xlu0 %1111
    %1113 = vadd.xlane.f32.xlu0 %v1023
    %v1114 = vpop.xlane.xlu0 %1113
    %1115 = vadd.xlane.f32.xlu0 %v1024
    %v1116 = vpop.xlane.xlu0 %1115
    %1117 = vadd.xlane.f32.xlu0 %v1025
    %v1118 = vpop.xlane.xlu0 %1117
    %1119 = vadd.xlane.f32.xlu0 %v1026
    %v1120 = vpop.xlane.xlu0 %1119
    %1121 = vadd.xlane.f32.xlu0 %v1027
    %v1122 = vpop.xlane.xlu0 %1121
    %1123 = vadd.xlane.f32.xlu0 %v1028
    %v1124 = vpop.xlane.xlu0 %1123
    %1125 = vadd.xlane.f32.xlu0 %v1029
    %v1126 = vpop.xlane.xlu0 %1125
    %1127 = vadd.xlane.f32.xlu0 %v1030
    %v1128 = vpop.xlane.xlu0 %1127
    %1129 = vadd.xlane.f32.xlu0 %v1031
    %v1130 = vpop.xlane.xlu0 %1129
    %1131 = vadd.xlane.f32.xlu0 %v1032
    %v1132 = vpop.xlane.xlu0 %1131
    %1133 = vadd.xlane.f32.xlu0 %v1033
    %v1134 = vpop.xlane.xlu0 %1133
    %1135 = vadd.xlane.f32.xlu0 %v1034
    %v1136 = vpop.xlane.xlu0 %1135
    %1137 = vadd.xlane.f32.xlu0 %v1035
    %v1138 = vpop.xlane.xlu0 %1137
    %1139 = vadd.xlane.f32.xlu0 %v1036
    %v1140 = vpop.xlane.xlu0 %1139
    %1141 = vadd.xlane.f32.xlu0 %v1037
    %v1142 = vpop.xlane.xlu0 %1141
    %1143 = vadd.xlane.f32.xlu0 %v1038
    %v1144 = vpop.xlane.xlu0 %1143
    %1145 = vadd.xlane.f32.xlu0 %v1039
    %v1146 = vpop.xlane.xlu0 %1145
    %1147 = vadd.xlane.f32.xlu0 %v1040
    %v1148 = vpop.xlane.xlu0 %1147
    %1149 = vadd.xlane.f32.xlu0 %v1041
    %v1150 = vpop.xlane.xlu0 %1149
    %1151 = vadd.xlane.f32.xlu0 %v1042
    %v1152 = vpop.xlane.xlu0 %1151
    %1153 = vadd.xlane.f32.xlu0 %v1043
    %v1154 = vpop.xlane.xlu0 %1153
    %1155 = vadd.xlane.f32.xlu0 %v1044
    %v1156 = vpop.xlane.xlu0 %1155
    %1157 = vadd.xlane.f32.xlu0 %v1045
    %v1158 = vpop.xlane.xlu0 %1157
    %1159 = vadd.xlane.f32.xlu0 %v1046
    %v1160 = vpop.xlane.xlu0 %1159
    %1161 = vadd.xlane.f32.xlu0 %v1047
    %v1162 = vpop.xlane.xlu0 %1161
    %1163 = vadd.xlane.f32.xlu0 %v1048
    %v1164 = vpop.xlane.xlu0 %1163
    %1165 = vadd.xlane.f32.xlu0 %v1049
    %v1166 = vpop.xlane.xlu0 %1165
    %1167 = vadd.xlane.f32.xlu0 %v1050
    %v1168 = vpop.xlane.xlu0 %1167
    %1169 = vadd.xlane.f32.xlu0 %v1051
    %v1170 = vpop.xlane.xlu0 %1169
    %1171 = vadd.xlane.f32.xlu0 %v1052
    %v1172 = vpop.xlane.xlu0 %1171
    %1173 = vadd.xlane.f32.xlu0 %v1053
    %v1174 = vpop.xlane.xlu0 %1173
    %1175 = vadd.xlane.f32.xlu0 %v1054
    %v1176 = vpop.xlane.xlu0 %1175
    %1177 = vadd.xlane.f32.xlu0 %v1055
    %v1178 = vpop.xlane.xlu0 %1177
    %1179 = vadd.xlane.f32.xlu0 %v1056
    %v1180 = vpop.xlane.xlu0 %1179
    %1181 = vadd.xlane.f32.xlu0 %v1057
    %v1182 = vpop.xlane.xlu0 %1181
    %1183 = vadd.xlane.f32.xlu0 %v1058
    %v1184 = vpop.xlane.xlu0 %1183
    %1185 = vadd.xlane.f32.xlu0 %v1059
    %v1186 = vpop.xlane.xlu0 %1185
    %1187 = vadd.xlane.f32.xlu0 %v1060
    %v1188 = vpop.xlane.xlu0 %1187
    %v1189 = vmul.f32 %v1062, %v284
    %v1190 = vmul.f32 %v1064, %v284
    %v1191 = vmul.f32 %v1066, %v284
    %v1192 = vmul.f32 %v1068, %v284
    %v1193 = vmul.f32 %v1070, %v284
    %v1194 = vmul.f32 %v1072, %v284
    %v1195 = vmul.f32 %v1074, %v284
    %v1196 = vmul.f32 %v1076, %v284
    %v1197 = vmul.f32 %v1078, %v284
    %v1198 = vmul.f32 %v1080, %v284
    %v1199 = vmul.f32 %v1082, %v284
    %v1200 = vmul.f32 %v1084, %v284
    %v1201 = vmul.f32 %v1086, %v284
    %v1202 = vmul.f32 %v1088, %v284
    %v1203 = vmul.f32 %v1090, %v284
    %v1204 = vmul.f32 %v1092, %v284
    %v1205 = vmul.f32 %v1094, %v284
    %v1206 = vmul.f32 %v1096, %v284
    %v1207 = vmul.f32 %v1098, %v284
    %v1208 = vmul.f32 %v1100, %v284
    %v1209 = vmul.f32 %v1102, %v284
    %v1210 = vmul.f32 %v1104, %v284
    %v1211 = vmul.f32 %v1106, %v284
    %v1212 = vmul.f32 %v1108, %v284
    %v1213 = vmul.f32 %v1110, %v284
    %v1214 = vmul.f32 %v1112, %v284
    %v1215 = vmul.f32 %v1114, %v284
    %v1216 = vmul.f32 %v1116, %v284
    %v1217 = vmul.f32 %v1118, %v284
    %v1218 = vmul.f32 %v1120, %v284
    %v1219 = vmul.f32 %v1122, %v284
    %v1220 = vmul.f32 %v1124, %v284
    %v1221 = vmul.f32 %v1126, %v284
    %v1222 = vmul.f32 %v1128, %v284
    %v1223 = vmul.f32 %v1130, %v284
    %v1224 = vmul.f32 %v1132, %v284
    %v1225 = vmul.f32 %v1134, %v284
    %v1226 = vmul.f32 %v1136, %v284
    %v1227 = vmul.f32 %v1138, %v284
    %v1228 = vmul.f32 %v1140, %v284
    %v1229 = vmul.f32 %v1142, %v284
    %v1230 = vmul.f32 %v1144, %v284
    %v1231 = vmul.f32 %v1146, %v284
    %v1232 = vmul.f32 %v1148, %v284
    %v1233 = vmul.f32 %v1150, %v284
    %v1234 = vmul.f32 %v1152, %v284
    %v1235 = vmul.f32 %v1154, %v284
    %v1236 = vmul.f32 %v1156, %v284
    %v1237 = vmul.f32 %v1158, %v284
    %v1238 = vmul.f32 %v1160, %v284
    %v1239 = vmul.f32 %v1162, %v284
    %v1240 = vmul.f32 %v1164, %v284
    %v1241 = vmul.f32 %v1166, %v284
    %v1242 = vmul.f32 %v1168, %v284
    %v1243 = vmul.f32 %v1170, %v284
    %v1244 = vmul.f32 %v1172, %v284
    %v1245 = vmul.f32 %v1174, %v284
    %v1246 = vmul.f32 %v1176, %v284
    %v1247 = vmul.f32 %v1178, %v284
    %v1248 = vmul.f32 %v1180, %v284
    %v1249 = vmul.f32 %v1182, %v284
    %v1250 = vmul.f32 %v1184, %v284
    %v1251 = vmul.f32 %v1186, %v284
    %v1252 = vmul.f32 %v1188, %v284
    %v1253 = vsub.f32 %v997, %v1189
    %v1254 = vsub.f32 %v998, %v1190
    %v1255 = vsub.f32 %v999, %v1191
    %v1256 = vsub.f32 %v1000, %v1192
    %v1257 = vsub.f32 %v1001, %v1193
    %v1258 = vsub.f32 %v1002, %v1194
    %v1259 = vsub.f32 %v1003, %v1195
    %v1260 = vsub.f32 %v1004, %v1196
    %v1261 = vsub.f32 %v1005, %v1197
    %v1262 = vsub.f32 %v1006, %v1198
    %v1263 = vsub.f32 %v1007, %v1199
    %v1264 = vsub.f32 %v1008, %v1200
    %v1265 = vsub.f32 %v1009, %v1201
    %v1266 = vsub.f32 %v1010, %v1202
    %v1267 = vsub.f32 %v1011, %v1203
    %v1268 = vsub.f32 %v1012, %v1204
    %v1269 = vsub.f32 %v1013, %v1205
    %v1270 = vsub.f32 %v1014, %v1206
    %v1271 = vsub.f32 %v1015, %v1207
    %v1272 = vsub.f32 %v1016, %v1208
    %v1273 = vsub.f32 %v1017, %v1209
    %v1274 = vsub.f32 %v1018, %v1210
    %v1275 = vsub.f32 %v1019, %v1211
    %v1276 = vsub.f32 %v1020, %v1212
    %v1277 = vsub.f32 %v1021, %v1213
    %v1278 = vsub.f32 %v1022, %v1214
    %v1279 = vsub.f32 %v1023, %v1215
    %v1280 = vsub.f32 %v1024, %v1216
    %v1281 = vsub.f32 %v1025, %v1217
    %v1282 = vsub.f32 %v1026, %v1218
    %v1283 = vsub.f32 %v1027, %v1219
    %v1284 = vsub.f32 %v1028, %v1220
    %v1285 = vsub.f32 %v1029, %v1221
    %v1286 = vsub.f32 %v1030, %v1222
    %v1287 = vsub.f32 %v1031, %v1223
    %v1288 = vsub.f32 %v1032, %v1224
    %v1289 = vsub.f32 %v1033, %v1225
    %v1290 = vsub.f32 %v1034, %v1226
    %v1291 = vsub.f32 %v1035, %v1227
    %v1292 = vsub.f32 %v1036, %v1228
    %v1293 = vsub.f32 %v1037, %v1229
    %v1294 = vsub.f32 %v1038, %v1230
    %v1295 = vsub.f32 %v1039, %v1231
    %v1296 = vsub.f32 %v1040, %v1232
    %v1297 = vsub.f32 %v1041, %v1233
    %v1298 = vsub.f32 %v1042, %v1234
    %v1299 = vsub.f32 %v1043, %v1235
    %v1300 = vsub.f32 %v1044, %v1236
    %v1301 = vsub.f32 %v1045, %v1237
    %v1302 = vsub.f32 %v1046, %v1238
    %v1303 = vsub.f32 %v1047, %v1239
    %v1304 = vsub.f32 %v1048, %v1240
    %v1305 = vsub.f32 %v1049, %v1241
    %v1306 = vsub.f32 %v1050, %v1242
    %v1307 = vsub.f32 %v1051, %v1243
    %v1308 = vsub.f32 %v1052, %v1244
    %v1309 = vsub.f32 %v1053, %v1245
    %v1310 = vsub.f32 %v1054, %v1246
    %v1311 = vsub.f32 %v1055, %v1247
    %v1312 = vsub.f32 %v1056, %v1248
    %v1313 = vsub.f32 %v1057, %v1249
    %v1314 = vsub.f32 %v1058, %v1250
    %v1315 = vsub.f32 %v1059, %v1251
    %v1316 = vsub.f32 %v1060, %v1252
    %v1317 = vmul.f32 %v1253, %v1253
    %v1318 = vmul.f32 %v1254, %v1254
    %v1319 = vmul.f32 %v1255, %v1255
    %v1320 = vmul.f32 %v1256, %v1256
    %v1321 = vmul.f32 %v1257, %v1257
    %v1322 = vmul.f32 %v1258, %v1258
    %v1323 = vmul.f32 %v1259, %v1259
    %v1324 = vmul.f32 %v1260, %v1260
    %v1325 = vmul.f32 %v1261, %v1261
    %v1326 = vmul.f32 %v1262, %v1262
    %v1327 = vmul.f32 %v1263, %v1263
    %v1328 = vmul.f32 %v1264, %v1264
    %v1329 = vmul.f32 %v1265, %v1265
    %v1330 = vmul.f32 %v1266, %v1266
    %v1331 = vmul.f32 %v1267, %v1267
    %v1332 = vmul.f32 %v1268, %v1268
    %v1333 = vmul.f32 %v1269, %v1269
    %v1334 = vmul.f32 %v1270, %v1270
    %v1335 = vmul.f32 %v1271, %v1271
    %v1336 = vmul.f32 %v1272, %v1272
    %v1337 = vmul.f32 %v1273, %v1273
    %v1338 = vmul.f32 %v1274, %v1274
    %v1339 = vmul.f32 %v1275, %v1275
    %v1340 = vmul.f32 %v1276, %v1276
    %v1341 = vmul.f32 %v1277, %v1277
    %v1342 = vmul.f32 %v1278, %v1278
    %v1343 = vmul.f32 %v1279, %v1279
    %v1344 = vmul.f32 %v1280, %v1280
    %v1345 = vmul.f32 %v1281, %v1281
    %v1346 = vmul.f32 %v1282, %v1282
    %v1347 = vmul.f32 %v1283, %v1283
    %v1348 = vmul.f32 %v1284, %v1284
    %v1349 = vmul.f32 %v1285, %v1285
    %v1350 = vmul.f32 %v1286, %v1286
    %v1351 = vmul.f32 %v1287, %v1287
    %v1352 = vmul.f32 %v1288, %v1288
    %v1353 = vmul.f32 %v1289, %v1289
    %v1354 = vmul.f32 %v1290, %v1290
    %v1355 = vmul.f32 %v1291, %v1291
    %v1356 = vmul.f32 %v1292, %v1292
    %v1357 = vmul.f32 %v1293, %v1293
    %v1358 = vmul.f32 %v1294, %v1294
    %v1359 = vmul.f32 %v1295, %v1295
    %v1360 = vmul.f32 %v1296, %v1296
    %v1361 = vmul.f32 %v1297, %v1297
    %v1362 = vmul.f32 %v1298, %v1298
    %v1363 = vmul.f32 %v1299, %v1299
    %v1364 = vmul.f32 %v1300, %v1300
    %v1365 = vmul.f32 %v1301, %v1301
    %v1366 = vmul.f32 %v1302, %v1302
    %v1367 = vmul.f32 %v1303, %v1303
    %v1368 = vmul.f32 %v1304, %v1304
    %v1369 = vmul.f32 %v1305, %v1305
    %v1370 = vmul.f32 %v1306, %v1306
    %v1371 = vmul.f32 %v1307, %v1307
    %v1372 = vmul.f32 %v1308, %v1308
    %v1373 = vmul.f32 %v1309, %v1309
    %v1374 = vmul.f32 %v1310, %v1310
    %v1375 = vmul.f32 %v1311, %v1311
    %v1376 = vmul.f32 %v1312, %v1312
    %v1377 = vmul.f32 %v1313, %v1313
    %v1378 = vmul.f32 %v1314, %v1314
    %v1379 = vmul.f32 %v1315, %v1315
    %v1380 = vmul.f32 %v1316, %v1316
    %1381 = vadd.xlane.f32.xlu0 %v1317
    %v1382 = vpop.xlane.xlu0 %1381
    %1383 = vadd.xlane.f32.xlu0 %v1318
    %v1384 = vpop.xlane.xlu0 %1383
    %1385 = vadd.xlane.f32.xlu0 %v1319
    %v1386 = vpop.xlane.xlu0 %1385
    %1387 = vadd.xlane.f32.xlu0 %v1320
    %v1388 = vpop.xlane.xlu0 %1387
    %1389 = vadd.xlane.f32.xlu0 %v1321
    %v1390 = vpop.xlane.xlu0 %1389
    %1391 = vadd.xlane.f32.xlu0 %v1322
    %v1392 = vpop.xlane.xlu0 %1391
    %1393 = vadd.xlane.f32.xlu0 %v1323
    %v1394 = vpop.xlane.xlu0 %1393
    %1395 = vadd.xlane.f32.xlu0 %v1324
    %v1396 = vpop.xlane.xlu0 %1395
    %1397 = vadd.xlane.f32.xlu0 %v1325
    %v1398 = vpop.xlane.xlu0 %1397
    %1399 = vadd.xlane.f32.xlu0 %v1326
    %v1400 = vpop.xlane.xlu0 %1399
    %1401 = vadd.xlane.f32.xlu0 %v1327
    %v1402 = vpop.xlane.xlu0 %1401
    %1403 = vadd.xlane.f32.xlu0 %v1328
    %v1404 = vpop.xlane.xlu0 %1403
    %1405 = vadd.xlane.f32.xlu0 %v1329
    %v1406 = vpop.xlane.xlu0 %1405
    %1407 = vadd.xlane.f32.xlu0 %v1330
    %v1408 = vpop.xlane.xlu0 %1407
    %1409 = vadd.xlane.f32.xlu0 %v1331
    %v1410 = vpop.xlane.xlu0 %1409
    %1411 = vadd.xlane.f32.xlu0 %v1332
    %v1412 = vpop.xlane.xlu0 %1411
    %1413 = vadd.xlane.f32.xlu0 %v1333
    %v1414 = vpop.xlane.xlu0 %1413
    %1415 = vadd.xlane.f32.xlu0 %v1334
    %v1416 = vpop.xlane.xlu0 %1415
    %1417 = vadd.xlane.f32.xlu0 %v1335
    %v1418 = vpop.xlane.xlu0 %1417
    %1419 = vadd.xlane.f32.xlu0 %v1336
    %v1420 = vpop.xlane.xlu0 %1419
    %1421 = vadd.xlane.f32.xlu0 %v1337
    %v1422 = vpop.xlane.xlu0 %1421
    %1423 = vadd.xlane.f32.xlu0 %v1338
    %v1424 = vpop.xlane.xlu0 %1423
    %1425 = vadd.xlane.f32.xlu0 %v1339
    %v1426 = vpop.xlane.xlu0 %1425
    %1427 = vadd.xlane.f32.xlu0 %v1340
    %v1428 = vpop.xlane.xlu0 %1427
    %1429 = vadd.xlane.f32.xlu0 %v1341
    %v1430 = vpop.xlane.xlu0 %1429
    %1431 = vadd.xlane.f32.xlu0 %v1342
    %v1432 = vpop.xlane.xlu0 %1431
    %1433 = vadd.xlane.f32.xlu0 %v1343
    %v1434 = vpop.xlane.xlu0 %1433
    %1435 = vadd.xlane.f32.xlu0 %v1344
    %v1436 = vpop.xlane.xlu0 %1435
    %1437 = vadd.xlane.f32.xlu0 %v1345
    %v1438 = vpop.xlane.xlu0 %1437
    %1439 = vadd.xlane.f32.xlu0 %v1346
    %v1440 = vpop.xlane.xlu0 %1439
    %1441 = vadd.xlane.f32.xlu0 %v1347
    %v1442 = vpop.xlane.xlu0 %1441
    %1443 = vadd.xlane.f32.xlu0 %v1348
    %v1444 = vpop.xlane.xlu0 %1443
    %1445 = vadd.xlane.f32.xlu0 %v1349
    %v1446 = vpop.xlane.xlu0 %1445
    %1447 = vadd.xlane.f32.xlu0 %v1350
    %v1448 = vpop.xlane.xlu0 %1447
    %1449 = vadd.xlane.f32.xlu0 %v1351
    %v1450 = vpop.xlane.xlu0 %1449
    %1451 = vadd.xlane.f32.xlu0 %v1352
    %v1452 = vpop.xlane.xlu0 %1451
    %1453 = vadd.xlane.f32.xlu0 %v1353
    %v1454 = vpop.xlane.xlu0 %1453
    %1455 = vadd.xlane.f32.xlu0 %v1354
    %v1456 = vpop.xlane.xlu0 %1455
    %1457 = vadd.xlane.f32.xlu0 %v1355
    %v1458 = vpop.xlane.xlu0 %1457
    %1459 = vadd.xlane.f32.xlu0 %v1356
    %v1460 = vpop.xlane.xlu0 %1459
    %1461 = vadd.xlane.f32.xlu0 %v1357
    %v1462 = vpop.xlane.xlu0 %1461
    %1463 = vadd.xlane.f32.xlu0 %v1358
    %v1464 = vpop.xlane.xlu0 %1463
    %1465 = vadd.xlane.f32.xlu0 %v1359
    %v1466 = vpop.xlane.xlu0 %1465
    %1467 = vadd.xlane.f32.xlu0 %v1360
    %v1468 = vpop.xlane.xlu0 %1467
    %1469 = vadd.xlane.f32.xlu0 %v1361
    %v1470 = vpop.xlane.xlu0 %1469
    %1471 = vadd.xlane.f32.xlu0 %v1362
    %v1472 = vpop.xlane.xlu0 %1471
    %1473 = vadd.xlane.f32.xlu0 %v1363
    %v1474 = vpop.xlane.xlu0 %1473
    %1475 = vadd.xlane.f32.xlu0 %v1364
    %v1476 = vpop.xlane.xlu0 %1475
    %1477 = vadd.xlane.f32.xlu0 %v1365
    %v1478 = vpop.xlane.xlu0 %1477
    %1479 = vadd.xlane.f32.xlu0 %v1366
    %v1480 = vpop.xlane.xlu0 %1479
    %1481 = vadd.xlane.f32.xlu0 %v1367
    %v1482 = vpop.xlane.xlu0 %1481
    %1483 = vadd.xlane.f32.xlu0 %v1368
    %v1484 = vpop.xlane.xlu0 %1483
    %1485 = vadd.xlane.f32.xlu0 %v1369
    %v1486 = vpop.xlane.xlu0 %1485
    %1487 = vadd.xlane.f32.xlu0 %v1370
    %v1488 = vpop.xlane.xlu0 %1487
    %1489 = vadd.xlane.f32.xlu0 %v1371
    %v1490 = vpop.xlane.xlu0 %1489
    %1491 = vadd.xlane.f32.xlu0 %v1372
    %v1492 = vpop.xlane.xlu0 %1491
    %1493 = vadd.xlane.f32.xlu0 %v1373
    %v1494 = vpop.xlane.xlu0 %1493
    %1495 = vadd.xlane.f32.xlu0 %v1374
    %v1496 = vpop.xlane.xlu0 %1495
    %1497 = vadd.xlane.f32.xlu0 %v1375
    %v1498 = vpop.xlane.xlu0 %1497
    %1499 = vadd.xlane.f32.xlu0 %v1376
    %v1500 = vpop.xlane.xlu0 %1499
    %1501 = vadd.xlane.f32.xlu0 %v1377
    %v1502 = vpop.xlane.xlu0 %1501
    %1503 = vadd.xlane.f32.xlu0 %v1378
    %v1504 = vpop.xlane.xlu0 %1503
    %1505 = vadd.xlane.f32.xlu0 %v1379
    %v1506 = vpop.xlane.xlu0 %1505
    %1507 = vadd.xlane.f32.xlu0 %v1380
    %v1508 = vpop.xlane.xlu0 %1507
    %v1509 = vmul.f32 %v1382, %v284
    %v1510 = vmul.f32 %v1384, %v284
    %v1511 = vmul.f32 %v1386, %v284
    %v1512 = vmul.f32 %v1388, %v284
    %v1513 = vmul.f32 %v1390, %v284
    %v1514 = vmul.f32 %v1392, %v284
    %v1515 = vmul.f32 %v1394, %v284
    %v1516 = vmul.f32 %v1396, %v284
    %v1517 = vmul.f32 %v1398, %v284
    %v1518 = vmul.f32 %v1400, %v284
    %v1519 = vmul.f32 %v1402, %v284
    %v1520 = vmul.f32 %v1404, %v284
    %v1521 = vmul.f32 %v1406, %v284
    %v1522 = vmul.f32 %v1408, %v284
    %v1523 = vmul.f32 %v1410, %v284
    %v1524 = vmul.f32 %v1412, %v284
    %v1525 = vmul.f32 %v1414, %v284
    %v1526 = vmul.f32 %v1416, %v284
    %v1527 = vmul.f32 %v1418, %v284
    %v1528 = vmul.f32 %v1420, %v284
    %v1529 = vmul.f32 %v1422, %v284
    %v1530 = vmul.f32 %v1424, %v284
    %v1531 = vmul.f32 %v1426, %v284
    %v1532 = vmul.f32 %v1428, %v284
    %v1533 = vmul.f32 %v1430, %v284
    %v1534 = vmul.f32 %v1432, %v284
    %v1535 = vmul.f32 %v1434, %v284
    %v1536 = vmul.f32 %v1436, %v284
    %v1537 = vmul.f32 %v1438, %v284
    %v1538 = vmul.f32 %v1440, %v284
    %v1539 = vmul.f32 %v1442, %v284
    %v1540 = vmul.f32 %v1444, %v284
    %v1541 = vmul.f32 %v1446, %v284
    %v1542 = vmul.f32 %v1448, %v284
    %v1543 = vmul.f32 %v1450, %v284
    %v1544 = vmul.f32 %v1452, %v284
    %v1545 = vmul.f32 %v1454, %v284
    %v1546 = vmul.f32 %v1456, %v284
    %v1547 = vmul.f32 %v1458, %v284
    %v1548 = vmul.f32 %v1460, %v284
    %v1549 = vmul.f32 %v1462, %v284
    %v1550 = vmul.f32 %v1464, %v284
    %v1551 = vmul.f32 %v1466, %v284
    %v1552 = vmul.f32 %v1468, %v284
    %v1553 = vmul.f32 %v1470, %v284
    %v1554 = vmul.f32 %v1472, %v284
    %v1555 = vmul.f32 %v1474, %v284
    %v1556 = vmul.f32 %v1476, %v284
    %v1557 = vmul.f32 %v1478, %v284
    %v1558 = vmul.f32 %v1480, %v284
    %v1559 = vmul.f32 %v1482, %v284
    %v1560 = vmul.f32 %v1484, %v284
    %v1561 = vmul.f32 %v1486, %v284
    %v1562 = vmul.f32 %v1488, %v284
    %v1563 = vmul.f32 %v1490, %v284
    %v1564 = vmul.f32 %v1492, %v284
    %v1565 = vmul.f32 %v1494, %v284
    %v1566 = vmul.f32 %v1496, %v284
    %v1567 = vmul.f32 %v1498, %v284
    %v1568 = vmul.f32 %v1500, %v284
    %v1569 = vmul.f32 %v1502, %v284
    %v1570 = vmul.f32 %v1504, %v284
    %v1571 = vmul.f32 %v1506, %v284
    %v1572 = vmul.f32 %v1508, %v284
    %v1573 = vadd.f32 %v1509, 1e-05
    %v1574 = vadd.f32 %v1510, 1e-05
    %v1575 = vadd.f32 %v1511, 1e-05
    %v1576 = vadd.f32 %v1512, 1e-05
    %v1577 = vadd.f32 %v1513, 1e-05
    %v1578 = vadd.f32 %v1514, 1e-05
    %v1579 = vadd.f32 %v1515, 1e-05
    %v1580 = vadd.f32 %v1516, 1e-05
    %v1581 = vadd.f32 %v1517, 1e-05
    %v1582 = vadd.f32 %v1518, 1e-05
    %v1583 = vadd.f32 %v1519, 1e-05
    %v1584 = vadd.f32 %v1520, 1e-05
    %v1585 = vadd.f32 %v1521, 1e-05
    %v1586 = vadd.f32 %v1522, 1e-05
    %v1587 = vadd.f32 %v1523, 1e-05
    %v1588 = vadd.f32 %v1524, 1e-05
    %v1589 = vadd.f32 %v1525, 1e-05
    %v1590 = vadd.f32 %v1526, 1e-05
    %v1591 = vadd.f32 %v1527, 1e-05
    %v1592 = vadd.f32 %v1528, 1e-05
    %v1593 = vadd.f32 %v1529, 1e-05
    %v1594 = vadd.f32 %v1530, 1e-05
    %v1595 = vadd.f32 %v1531, 1e-05
    %v1596 = vadd.f32 %v1532, 1e-05
    %v1597 = vadd.f32 %v1533, 1e-05
    %v1598 = vadd.f32 %v1534, 1e-05
    %v1599 = vadd.f32 %v1535, 1e-05
    %v1600 = vadd.f32 %v1536, 1e-05
    %v1601 = vadd.f32 %v1537, 1e-05
    %v1602 = vadd.f32 %v1538, 1e-05
    %v1603 = vadd.f32 %v1539, 1e-05
    %v1604 = vadd.f32 %v1540, 1e-05
    %v1605 = vadd.f32 %v1541, 1e-05
    %v1606 = vadd.f32 %v1542, 1e-05
    %v1607 = vadd.f32 %v1543, 1e-05
    %v1608 = vadd.f32 %v1544, 1e-05
    %v1609 = vadd.f32 %v1545, 1e-05
    %v1610 = vadd.f32 %v1546, 1e-05
    %v1611 = vadd.f32 %v1547, 1e-05
    %v1612 = vadd.f32 %v1548, 1e-05
    %v1613 = vadd.f32 %v1549, 1e-05
    %v1614 = vadd.f32 %v1550, 1e-05
    %v1615 = vadd.f32 %v1551, 1e-05
    %v1616 = vadd.f32 %v1552, 1e-05
    %v1617 = vadd.f32 %v1553, 1e-05
    %v1618 = vadd.f32 %v1554, 1e-05
    %v1619 = vadd.f32 %v1555, 1e-05
    %v1620 = vadd.f32 %v1556, 1e-05
    %v1621 = vadd.f32 %v1557, 1e-05
    %v1622 = vadd.f32 %v1558, 1e-05
    %v1623 = vadd.f32 %v1559, 1e-05
    %v1624 = vadd.f32 %v1560, 1e-05
    %v1625 = vadd.f32 %v1561, 1e-05
    %v1626 = vadd.f32 %v1562, 1e-05
    %v1627 = vadd.f32 %v1563, 1e-05
    %v1628 = vadd.f32 %v1564, 1e-05
    %v1629 = vadd.f32 %v1565, 1e-05
    %v1630 = vadd.f32 %v1566, 1e-05
    %v1631 = vadd.f32 %v1567, 1e-05
    %v1632 = vadd.f32 %v1568, 1e-05
    %v1633 = vadd.f32 %v1569, 1e-05
    %v1634 = vadd.f32 %v1570, 1e-05
    %v1635 = vadd.f32 %v1571, 1e-05
    %v1636 = vadd.f32 %v1572, 1e-05
    %v1637 = vrsqrt.pop %v1573
    %v1638 = vrsqrt.pop %v1574
    %v1639 = vrsqrt.pop %v1575
    %v1640 = vrsqrt.pop %v1576
    %v1641 = vrsqrt.pop %v1577
    %v1642 = vrsqrt.pop %v1578
    %v1643 = vrsqrt.pop %v1579
    %v1644 = vrsqrt.pop %v1580
    %v1645 = vrsqrt.pop %v1581
    %v1646 = vrsqrt.pop %v1582
    %v1647 = vrsqrt.pop %v1583
    %v1648 = vrsqrt.pop %v1584
    %v1649 = vrsqrt.pop %v1585
    %v1650 = vrsqrt.pop %v1586
    %v1651 = vrsqrt.pop %v1587
    %v1652 = vrsqrt.pop %v1588
    %v1653 = vrsqrt.pop %v1589
    %v1654 = vrsqrt.pop %v1590
    %v1655 = vrsqrt.pop %v1591
    %v1656 = vrsqrt.pop %v1592
    %v1657 = vrsqrt.pop %v1593
    %v1658 = vrsqrt.pop %v1594
    %v1659 = vrsqrt.pop %v1595
    %v1660 = vrsqrt.pop %v1596
    %v1661 = vrsqrt.pop %v1597
    %v1662 = vrsqrt.pop %v1598
    %v1663 = vrsqrt.pop %v1599
    %v1664 = vrsqrt.pop %v1600
    %v1665 = vrsqrt.pop %v1601
    %v1666 = vrsqrt.pop %v1602
    %v1667 = vrsqrt.pop %v1603
    %v1668 = vrsqrt.pop %v1604
    %v1669 = vrsqrt.pop %v1605
    %v1670 = vrsqrt.pop %v1606
    %v1671 = vrsqrt.pop %v1607
    %v1672 = vrsqrt.pop %v1608
    %v1673 = vrsqrt.pop %v1609
    %v1674 = vrsqrt.pop %v1610
    %v1675 = vrsqrt.pop %v1611
    %v1676 = vrsqrt.pop %v1612
    %v1677 = vrsqrt.pop %v1613
    %v1678 = vrsqrt.pop %v1614
    %v1679 = vrsqrt.pop %v1615
    %v1680 = vrsqrt.pop %v1616
    %v1681 = vrsqrt.pop %v1617
    %v1682 = vrsqrt.pop %v1618
    %v1683 = vrsqrt.pop %v1619
    %v1684 = vrsqrt.pop %v1620
    %v1685 = vrsqrt.pop %v1621
    %v1686 = vrsqrt.pop %v1622
    %v1687 = vrsqrt.pop %v1623
    %v1688 = vrsqrt.pop %v1624
    %v1689 = vrsqrt.pop %v1625
    %v1690 = vrsqrt.pop %v1626
    %v1691 = vrsqrt.pop %v1627
    %v1692 = vrsqrt.pop %v1628
    %v1693 = vrsqrt.pop %v1629
    %v1694 = vrsqrt.pop %v1630
    %v1695 = vrsqrt.pop %v1631
    %v1696 = vrsqrt.pop %v1632
    %v1697 = vrsqrt.pop %v1633
    %v1698 = vrsqrt.pop %v1634
    %v1699 = vrsqrt.pop %v1635
    %v1700 = vrsqrt.pop %v1636
    %v1701 = vmul.f32 %v1253, %v1637
    %v1702 = vmul.f32 %v1254, %v1638
    %v1703 = vmul.f32 %v1255, %v1639
    %v1704 = vmul.f32 %v1256, %v1640
    %v1705 = vmul.f32 %v1257, %v1641
    %v1706 = vmul.f32 %v1258, %v1642
    %v1707 = vmul.f32 %v1259, %v1643
    %v1708 = vmul.f32 %v1260, %v1644
    %v1709 = vmul.f32 %v1261, %v1645
    %v1710 = vmul.f32 %v1262, %v1646
    %v1711 = vmul.f32 %v1263, %v1647
    %v1712 = vmul.f32 %v1264, %v1648
    %v1713 = vmul.f32 %v1265, %v1649
    %v1714 = vmul.f32 %v1266, %v1650
    %v1715 = vmul.f32 %v1267, %v1651
    %v1716 = vmul.f32 %v1268, %v1652
    %v1717 = vmul.f32 %v1269, %v1653
    %v1718 = vmul.f32 %v1270, %v1654
    %v1719 = vmul.f32 %v1271, %v1655
    %v1720 = vmul.f32 %v1272, %v1656
    %v1721 = vmul.f32 %v1273, %v1657
    %v1722 = vmul.f32 %v1274, %v1658
    %v1723 = vmul.f32 %v1275, %v1659
    %v1724 = vmul.f32 %v1276, %v1660
    %v1725 = vmul.f32 %v1277, %v1661
    %v1726 = vmul.f32 %v1278, %v1662
    %v1727 = vmul.f32 %v1279, %v1663
    %v1728 = vmul.f32 %v1280, %v1664
    %v1729 = vmul.f32 %v1281, %v1665
    %v1730 = vmul.f32 %v1282, %v1666
    %v1731 = vmul.f32 %v1283, %v1667
    %v1732 = vmul.f32 %v1284, %v1668
    %v1733 = vmul.f32 %v1285, %v1669
    %v1734 = vmul.f32 %v1286, %v1670
    %v1735 = vmul.f32 %v1287, %v1671
    %v1736 = vmul.f32 %v1288, %v1672
    %v1737 = vmul.f32 %v1289, %v1673
    %v1738 = vmul.f32 %v1290, %v1674
    %v1739 = vmul.f32 %v1291, %v1675
    %v1740 = vmul.f32 %v1292, %v1676
    %v1741 = vmul.f32 %v1293, %v1677
    %v1742 = vmul.f32 %v1294, %v1678
    %v1743 = vmul.f32 %v1295, %v1679
    %v1744 = vmul.f32 %v1296, %v1680
    %v1745 = vmul.f32 %v1297, %v1681
    %v1746 = vmul.f32 %v1298, %v1682
    %v1747 = vmul.f32 %v1299, %v1683
    %v1748 = vmul.f32 %v1300, %v1684
    %v1749 = vmul.f32 %v1301, %v1685
    %v1750 = vmul.f32 %v1302, %v1686
    %v1751 = vmul.f32 %v1303, %v1687
    %v1752 = vmul.f32 %v1304, %v1688
    %v1753 = vmul.f32 %v1305, %v1689
    %v1754 = vmul.f32 %v1306, %v1690
    %v1755 = vmul.f32 %v1307, %v1691
    %v1756 = vmul.f32 %v1308, %v1692
    %v1757 = vmul.f32 %v1309, %v1693
    %v1758 = vmul.f32 %v1310, %v1694
    %v1759 = vmul.f32 %v1311, %v1695
    %v1760 = vmul.f32 %v1312, %v1696
    %v1761 = vmul.f32 %v1313, %v1697
    %v1762 = vmul.f32 %v1314, %v1698
    %v1763 = vmul.f32 %v1315, %v1699
    %v1764 = vmul.f32 %v1316, %v1700
    %v1765 = vlaneseq
    %v1766 = vshrl.u32 %v1765, 7
    %v1767 = vsub.s32 0, %v1766
    %v1768 = vrot.slane %v154, %v1767
    %v1769 = vmul.f32 %v1701, %v1768
    %v1770 = vmul.f32 %v1702, %v1768
    %v1771 = vmul.f32 %v1703, %v1768
    %v1772 = vmul.f32 %v1704, %v1768
    %v1773 = vmul.f32 %v1705, %v1768
    %v1774 = vmul.f32 %v1706, %v1768
    %v1775 = vmul.f32 %v1707, %v1768
    %v1776 = vmul.f32 %v1708, %v1768
    %v1777 = vmul.f32 %v1709, %v1768
    %v1778 = vmul.f32 %v1710, %v1768
    %v1779 = vmul.f32 %v1711, %v1768
    %v1780 = vmul.f32 %v1712, %v1768
    %v1781 = vmul.f32 %v1713, %v1768
    %v1782 = vmul.f32 %v1714, %v1768
    %v1783 = vmul.f32 %v1715, %v1768
    %v1784 = vmul.f32 %v1716, %v1768
    %v1785 = vmul.f32 %v1717, %v1768
    %v1786 = vmul.f32 %v1718, %v1768
    %v1787 = vmul.f32 %v1719, %v1768
    %v1788 = vmul.f32 %v1720, %v1768
    %v1789 = vmul.f32 %v1721, %v1768
    %v1790 = vmul.f32 %v1722, %v1768
    %v1791 = vmul.f32 %v1723, %v1768
    %v1792 = vmul.f32 %v1724, %v1768
    %v1793 = vmul.f32 %v1725, %v1768
    %v1794 = vmul.f32 %v1726, %v1768
    %v1795 = vmul.f32 %v1727, %v1768
    %v1796 = vmul.f32 %v1728, %v1768
    %v1797 = vmul.f32 %v1729, %v1768
    %v1798 = vmul.f32 %v1730, %v1768
    %v1799 = vmul.f32 %v1731, %v1768
    %v1800 = vmul.f32 %v1732, %v1768
    %v1801 = vmul.f32 %v1733, %v1768
    %v1802 = vmul.f32 %v1734, %v1768
    %v1803 = vmul.f32 %v1735, %v1768
    %v1804 = vmul.f32 %v1736, %v1768
    %v1805 = vmul.f32 %v1737, %v1768
    %v1806 = vmul.f32 %v1738, %v1768
    %v1807 = vmul.f32 %v1739, %v1768
    %v1808 = vmul.f32 %v1740, %v1768
    %v1809 = vmul.f32 %v1741, %v1768
    %v1810 = vmul.f32 %v1742, %v1768
    %v1811 = vmul.f32 %v1743, %v1768
    %v1812 = vmul.f32 %v1744, %v1768
    %v1813 = vmul.f32 %v1745, %v1768
    %v1814 = vmul.f32 %v1746, %v1768
    %v1815 = vmul.f32 %v1747, %v1768
    %v1816 = vmul.f32 %v1748, %v1768
    %v1817 = vmul.f32 %v1749, %v1768
    %v1818 = vmul.f32 %v1750, %v1768
    %v1819 = vmul.f32 %v1751, %v1768
    %v1820 = vmul.f32 %v1752, %v1768
    %v1821 = vmul.f32 %v1753, %v1768
    %v1822 = vmul.f32 %v1754, %v1768
    %v1823 = vmul.f32 %v1755, %v1768
    %v1824 = vmul.f32 %v1756, %v1768
    %v1825 = vmul.f32 %v1757, %v1768
    %v1826 = vmul.f32 %v1758, %v1768
    %v1827 = vmul.f32 %v1759, %v1768
    %v1828 = vmul.f32 %v1760, %v1768
    %v1829 = vmul.f32 %v1761, %v1768
    %v1830 = vmul.f32 %v1762, %v1768
    %v1831 = vmul.f32 %v1763, %v1768
    %v1832 = vmul.f32 %v1764, %v1768
    %v1833 = vlaneseq
    %v1834 = vshrl.u32 %v1833, 7
    %v1835 = vsub.s32 0, %v1834
    %v1836 = vrot.slane %v155, %v1835
    %v1837 = vadd.f32 %v1769, %v1836
    %v1838 = vadd.f32 %v1770, %v1836
    %v1839 = vadd.f32 %v1771, %v1836
    %v1840 = vadd.f32 %v1772, %v1836
    %v1841 = vadd.f32 %v1773, %v1836
    %v1842 = vadd.f32 %v1774, %v1836
    %v1843 = vadd.f32 %v1775, %v1836
    %v1844 = vadd.f32 %v1776, %v1836
    %v1845 = vadd.f32 %v1777, %v1836
    %v1846 = vadd.f32 %v1778, %v1836
    %v1847 = vadd.f32 %v1779, %v1836
    %v1848 = vadd.f32 %v1780, %v1836
    %v1849 = vadd.f32 %v1781, %v1836
    %v1850 = vadd.f32 %v1782, %v1836
    %v1851 = vadd.f32 %v1783, %v1836
    %v1852 = vadd.f32 %v1784, %v1836
    %v1853 = vadd.f32 %v1785, %v1836
    %v1854 = vadd.f32 %v1786, %v1836
    %v1855 = vadd.f32 %v1787, %v1836
    %v1856 = vadd.f32 %v1788, %v1836
    %v1857 = vadd.f32 %v1789, %v1836
    %v1858 = vadd.f32 %v1790, %v1836
    %v1859 = vadd.f32 %v1791, %v1836
    %v1860 = vadd.f32 %v1792, %v1836
    %v1861 = vadd.f32 %v1793, %v1836
    %v1862 = vadd.f32 %v1794, %v1836
    %v1863 = vadd.f32 %v1795, %v1836
    %v1864 = vadd.f32 %v1796, %v1836
    %v1865 = vadd.f32 %v1797, %v1836
    %v1866 = vadd.f32 %v1798, %v1836
    %v1867 = vadd.f32 %v1799, %v1836
    %v1868 = vadd.f32 %v1800, %v1836
    %v1869 = vadd.f32 %v1801, %v1836
    %v1870 = vadd.f32 %v1802, %v1836
    %v1871 = vadd.f32 %v1803, %v1836
    %v1872 = vadd.f32 %v1804, %v1836
    %v1873 = vadd.f32 %v1805, %v1836
    %v1874 = vadd.f32 %v1806, %v1836
    %v1875 = vadd.f32 %v1807, %v1836
    %v1876 = vadd.f32 %v1808, %v1836
    %v1877 = vadd.f32 %v1809, %v1836
    %v1878 = vadd.f32 %v1810, %v1836
    %v1879 = vadd.f32 %v1811, %v1836
    %v1880 = vadd.f32 %v1812, %v1836
    %v1881 = vadd.f32 %v1813, %v1836
    %v1882 = vadd.f32 %v1814, %v1836
    %v1883 = vadd.f32 %v1815, %v1836
    %v1884 = vadd.f32 %v1816, %v1836
    %v1885 = vadd.f32 %v1817, %v1836
    %v1886 = vadd.f32 %v1818, %v1836
    %v1887 = vadd.f32 %v1819, %v1836
    %v1888 = vadd.f32 %v1820, %v1836
    %v1889 = vadd.f32 %v1821, %v1836
    %v1890 = vadd.f32 %v1822, %v1836
    %v1891 = vadd.f32 %v1823, %v1836
    %v1892 = vadd.f32 %v1824, %v1836
    %v1893 = vadd.f32 %v1825, %v1836
    %v1894 = vadd.f32 %v1826, %v1836
    %v1895 = vadd.f32 %v1827, %v1836
    %v1896 = vadd.f32 %v1828, %v1836
    %v1897 = vadd.f32 %v1829, %v1836
    %v1898 = vadd.f32 %v1830, %v1836
    %v1899 = vadd.f32 %v1831, %v1836
    %v1900 = vadd.f32 %v1832, %v1836
    %v1901 = vpack.c.bf16 %v1838, %v1837
    %v1902 = vpack.c.bf16 %v1840, %v1839
    %v1903 = vpack.c.bf16 %v1842, %v1841
    %v1904 = vpack.c.bf16 %v1844, %v1843
    %v1905 = vpack.c.bf16 %v1846, %v1845
    %v1906 = vpack.c.bf16 %v1848, %v1847
    %v1907 = vpack.c.bf16 %v1850, %v1849
    %v1908 = vpack.c.bf16 %v1852, %v1851
    %v1909 = vpack.c.bf16 %v1854, %v1853
    %v1910 = vpack.c.bf16 %v1856, %v1855
    %v1911 = vpack.c.bf16 %v1858, %v1857
    %v1912 = vpack.c.bf16 %v1860, %v1859
    %v1913 = vpack.c.bf16 %v1862, %v1861
    %v1914 = vpack.c.bf16 %v1864, %v1863
    %v1915 = vpack.c.bf16 %v1866, %v1865
    %v1916 = vpack.c.bf16 %v1868, %v1867
    %v1917 = vpack.c.bf16 %v1870, %v1869
    %v1918 = vpack.c.bf16 %v1872, %v1871
    %v1919 = vpack.c.bf16 %v1874, %v1873
    %v1920 = vpack.c.bf16 %v1876, %v1875
    %v1921 = vpack.c.bf16 %v1878, %v1877
    %v1922 = vpack.c.bf16 %v1880, %v1879
    %v1923 = vpack.c.bf16 %v1882, %v1881
    %v1924 = vpack.c.bf16 %v1884, %v1883
    %v1925 = vpack.c.bf16 %v1886, %v1885
    %v1926 = vpack.c.bf16 %v1888, %v1887
    %v1927 = vpack.c.bf16 %v1890, %v1889
    %v1928 = vpack.c.bf16 %v1892, %v1891
    %v1929 = vpack.c.bf16 %v1894, %v1893
    %v1930 = vpack.c.bf16 %v1896, %v1895
    %v1931 = vpack.c.bf16 %v1898, %v1897
    %v1932 = vpack.c.bf16 %v1900, %v1899
    %s1933 = sld [smem:[#allocation11]]
    %s1934 = sld [smem:[#allocation11 + $0x1]]
    %v1935 = vld [vmem:[#allocation8] sm:$0xff]
    %v1936 = vld [vmem:[#allocation8 + $0x8] sm:$0xff]
    %v1937 = vld [vmem:[#allocation8 + $0x10] sm:$0xff]
    %v1938 = vld [vmem:[#allocation8 + $0x18] sm:$0xff]
    %v1939 = vld [vmem:[#allocation8 + $0x20] sm:$0xff]
    %v1940 = vld [vmem:[#allocation8 + $0x28] sm:$0xff]
    %v1941 = vld [vmem:[#allocation8 + $0x30] sm:$0xff]
    %v1942 = vld [vmem:[#allocation8 + $0x38] sm:$0xff]
    %v1943 = vld [vmem:[#allocation8 + $0x40] sm:$0xff]
    %v1944 = vld [vmem:[#allocation8 + $0x48] sm:$0xff]
    %v1945 = vld [vmem:[#allocation8 + $0x50] sm:$0xff]
    %v1946 = vld [vmem:[#allocation8 + $0x58] sm:$0xff]
    %v1947 = vld [vmem:[#allocation8 + $0x60] sm:$0xff]
    %v1948 = vld [vmem:[#allocation8 + $0x68] sm:$0xff]
    %v1949 = vld [vmem:[#allocation8 + $0x70] sm:$0xff]
    %v1950 = vld [vmem:[#allocation8 + $0x78] sm:$0xff]
    %v1951 = vld [vmem:[#allocation8 + $0x80] sm:$0xff]
    %v1952 = vld [vmem:[#allocation8 + $0x88] sm:$0xff]
    %v1953 = vld [vmem:[#allocation8 + $0x90] sm:$0xff]
    %v1954 = vld [vmem:[#allocation8 + $0x98] sm:$0xff]
    %v1955 = vld [vmem:[#allocation8 + $0xa0] sm:$0xff]
    %v1956 = vld [vmem:[#allocation8 + $0xa8] sm:$0xff]
    %v1957 = vld [vmem:[#allocation8 + $0xb0] sm:$0xff]
    %v1958 = vld [vmem:[#allocation8 + $0xb8] sm:$0xff]
    %v1959 = vld [vmem:[#allocation8 + $0xc0] sm:$0xff]
    %v1960 = vld [vmem:[#allocation8 + $0xc8] sm:$0xff]
    %v1961 = vld [vmem:[#allocation8 + $0xd0] sm:$0xff]
    %v1962 = vld [vmem:[#allocation8 + $0xd8] sm:$0xff]
    %v1963 = vld [vmem:[#allocation8 + $0xe0] sm:$0xff]
    %v1964 = vld [vmem:[#allocation8 + $0xe8] sm:$0xff]
    %v1965 = vld [vmem:[#allocation8 + $0xf0] sm:$0xff]
    %v1966 = vld [vmem:[#allocation8 + $0xf8] sm:$0xff]
    %v1999 = vunpack.c.l.b16 %v1935
    %v2000 = vunpack.c.h.b16 %v1935
    %v2001 = vunpack.c.l.b16 %v1936
    %v2002 = vunpack.c.h.b16 %v1936
    %v2003 = vunpack.c.l.b16 %v1937
    %v2004 = vunpack.c.h.b16 %v1937
    %v2005 = vunpack.c.l.b16 %v1938
    %v2006 = vunpack.c.h.b16 %v1938
    %v2007 = vunpack.c.l.b16 %v1939
    %v2008 = vunpack.c.h.b16 %v1939
    %v2009 = vunpack.c.l.b16 %v1940
    %v2010 = vunpack.c.h.b16 %v1940
    %v2011 = vunpack.c.l.b16 %v1941
    %v2012 = vunpack.c.h.b16 %v1941
    %v2013 = vunpack.c.l.b16 %v1942
    %v2014 = vunpack.c.h.b16 %v1942
    %v2015 = vunpack.c.l.b16 %v1943
    %v2016 = vunpack.c.h.b16 %v1943
    %v2017 = vunpack.c.l.b16 %v1944
    %v2018 = vunpack.c.h.b16 %v1944
    %v2019 = vunpack.c.l.b16 %v1945
    %v2020 = vunpack.c.h.b16 %v1945
    %v2021 = vunpack.c.l.b16 %v1946
    %v2022 = vunpack.c.h.b16 %v1946
    %v2023 = vunpack.c.l.b16 %v1947
    %v2024 = vunpack.c.h.b16 %v1947
    %v2025 = vunpack.c.l.b16 %v1948
    %v2026 = vunpack.c.h.b16 %v1948
    %v2027 = vunpack.c.l.b16 %v1949
    %v2028 = vunpack.c.h.b16 %v1949
    %v2029 = vunpack.c.l.b16 %v1950
    %v2030 = vunpack.c.h.b16 %v1950
    %v2031 = vunpack.c.l.b16 %v1951
    %v2032 = vunpack.c.h.b16 %v1951
    %v2033 = vunpack.c.l.b16 %v1952
    %v2034 = vunpack.c.h.b16 %v1952
    %v2035 = vunpack.c.l.b16 %v1953
    %v2036 = vunpack.c.h.b16 %v1953
    %v2037 = vunpack.c.l.b16 %v1954
    %v2038 = vunpack.c.h.b16 %v1954
    %v2039 = vunpack.c.l.b16 %v1955
    %v2040 = vunpack.c.h.b16 %v1955
    %v2041 = vunpack.c.l.b16 %v1956
    %v2042 = vunpack.c.h.b16 %v1956
    %v2043 = vunpack.c.l.b16 %v1957
    %v2044 = vunpack.c.h.b16 %v1957
    %v2045 = vunpack.c.l.b16 %v1958
    %v2046 = vunpack.c.h.b16 %v1958
    %v2047 = vunpack.c.l.b16 %v1959
    %v2048 = vunpack.c.h.b16 %v1959
    %v2049 = vunpack.c.l.b16 %v1960
    %v2050 = vunpack.c.h.b16 %v1960
    %v2051 = vunpack.c.l.b16 %v1961
    %v2052 = vunpack.c.h.b16 %v1961
    %v2053 = vunpack.c.l.b16 %v1962
    %v2054 = vunpack.c.h.b16 %v1962
    %v2055 = vunpack.c.l.b16 %v1963
    %v2056 = vunpack.c.h.b16 %v1963
    %v2057 = vunpack.c.l.b16 %v1964
    %v2058 = vunpack.c.h.b16 %v1964
    %v2059 = vunpack.c.l.b16 %v1965
    %v2060 = vunpack.c.h.b16 %v1965
    %v2061 = vunpack.c.l.b16 %v1966
    %v2062 = vunpack.c.h.b16 %v1966
    %v2063 = vpack.c.b16 %v2003, %v1999
    %v2064 = vpack.c.b16 %v2004, %v2000
    %v2065 = vpack.c.b16 %v2005, %v2001
    %v2066 = vpack.c.b16 %v2006, %v2002
    %v2067 = vpack.c.b16 %v2011, %v2007
    %v2068 = vpack.c.b16 %v2012, %v2008
    %v2069 = vpack.c.b16 %v2013, %v2009
    %v2070 = vpack.c.b16 %v2014, %v2010
    %v2071 = vpack.c.b16 %v2019, %v2015
    %v2072 = vpack.c.b16 %v2020, %v2016
    %v2073 = vpack.c.b16 %v2021, %v2017
    %v2074 = vpack.c.b16 %v2022, %v2018
    %v2075 = vpack.c.b16 %v2027, %v2023
    %v2076 = vpack.c.b16 %v2028, %v2024
    %v2077 = vpack.c.b16 %v2029, %v2025
    %v2078 = vpack.c.b16 %v2030, %v2026
    %v2079 = vpack.c.b16 %v2035, %v2031
    %v2080 = vpack.c.b16 %v2036, %v2032
    %v2081 = vpack.c.b16 %v2037, %v2033
    %v2082 = vpack.c.b16 %v2038, %v2034
    %v2083 = vpack.c.b16 %v2043, %v2039
    %v2084 = vpack.c.b16 %v2044, %v2040
    %v2085 = vpack.c.b16 %v2045, %v2041
    %v2086 = vpack.c.b16 %v2046, %v2042
    %v2087 = vpack.c.b16 %v2051, %v2047
    %v2088 = vpack.c.b16 %v2052, %v2048
    %v2089 = vpack.c.b16 %v2053, %v2049
    %v2090 = vpack.c.b16 %v2054, %v2050
    %v2091 = vpack.c.b16 %v2059, %v2055
    %v2092 = vpack.c.b16 %v2060, %v2056
    %v2093 = vpack.c.b16 %v2061, %v2057
    %v2094 = vpack.c.b16 %v2062, %v2058
    %2127 = vmatprep.subr.bf16.mxu0 %v2092
    %2128 = vmatpush1.bf16.msra.mxu0 %v2091
    %2129 = vmatprep.subr.bf16.mxu0 %v2088
    %2130 = vmatpush1.bf16.msra.mxu0 %v2087
    %2131 = vmatprep.subr.bf16.mxu0 %v2084
    %2132 = vmatpush1.bf16.msra.mxu0 %v2083
    %2133 = vmatprep.subr.bf16.mxu0 %v2080
    %2134 = vmatpush1.bf16.msra.mxu0 %v2079
    %2135 = vmatprep.subr.bf16.mxu0 %v2076
    %2136 = vmatpush1.bf16.msra.mxu0 %v2075
    %2137 = vmatprep.subr.bf16.mxu0 %v2072
    %2138 = vmatpush1.bf16.msra.mxu0 %v2071
    %2139 = vmatprep.subr.bf16.mxu0 %v2068
    %2140 = vmatpush1.bf16.msra.mxu0 %v2067
    %2141 = vmatprep.subr.bf16.mxu0 %v2064
    %2142 = vmatpush1.bf16.msra.mxu0 %v2063
    %2143 = vmatprep.subr.bf16.mxu0 0
    %2144 = vmatpush2.bf16.msra.mxu0 0
    %2145 = vmatprep.subr.bf16.mxu0 0
    %2146 = vmatpush2.bf16.msra.mxu0 0
    %2147 = vmatprep.subr.bf16.mxu0 0
    %2148 = vmatpush2.bf16.msra.mxu0 0
    %2149 = vmatprep.subr.bf16.mxu0 0
    %2150 = vmatpush2.bf16.msra.mxu0 0
    %2151 = vmatprep.subr.bf16.mxu0 0
    %2152 = vmatpush2.bf16.msra.mxu0 0
    %2153 = vmatprep.subr.bf16.mxu0 0
    %2154 = vmatpush2.bf16.msra.mxu0 0
    %2155 = vmatprep.subr.bf16.mxu0 0
    %2156 = vmatpush2.bf16.msra.mxu0 0
    %2157 = vmatprep.subr.bf16.mxu0 0
    %2158 = vmatpush2.bf16.msra.mxu0 0
    %2159 = vmatprep.mubr.bf16.mxu0 0
    %2160 = vmatmul.mubr.bf16.gmra.mxu0 %v1901
    %v2161 = vpop.f32.mrf.mxu0
    %v2162 = vadd.f32 0.0, %v2161
    %v2163 = vpop.f32.mrf.mxu0
    %v2164 = vadd.f32 0.0, %v2163
    %v2165 = vpop.f32.mrf.mxu0
    %v2166 = vadd.f32 0.0, %v2165
    %v2167 = vpop.f32.mrf.mxu0
    %v2168 = vadd.f32 0.0, %v2167
    %2169 = vmatprep.mubr.bf16.mxu0 0
    %2170 = vmatmul.mubr.bf16.gmra.mxu0 %v1902
    %v2171 = vpop.f32.mrf.mxu0
    %v2172 = vadd.f32 0.0, %v2171
    %v2173 = vpop.f32.mrf.mxu0
    %v2174 = vadd.f32 0.0, %v2173
    %v2175 = vpop.f32.mrf.mxu0
    %v2176 = vadd.f32 0.0, %v2175
    %v2177 = vpop.f32.mrf.mxu0
    %v2178 = vadd.f32 0.0, %v2177
    %2179 = vmatprep.mubr.bf16.mxu0 0
    %2180 = vmatmul.mubr.bf16.gmra.mxu0 %v1903
    %v2181 = vpop.f32.mrf.mxu0
    %v2182 = vadd.f32 0.0, %v2181
    %v2183 = vpop.f32.mrf.mxu0
    %v2184 = vadd.f32 0.0, %v2183
    %v2185 = vpop.f32.mrf.mxu0
    %v2186 = vadd.f32 0.0, %v2185
    %v2187 = vpop.f32.mrf.mxu0
    %v2188 = vadd.f32 0.0, %v2187
    %2189 = vmatprep.mubr.bf16.mxu0 0
    %2190 = vmatmul.mubr.bf16.gmra.mxu0 %v1904
    %v2191 = vpop.f32.mrf.mxu0
    %v2192 = vadd.f32 0.0, %v2191
    %v2193 = vpop.f32.mrf.mxu0
    %v2194 = vadd.f32 0.0, %v2193
    %v2195 = vpop.f32.mrf.mxu0
    %v2196 = vadd.f32 0.0, %v2195
    %v2197 = vpop.f32.mrf.mxu0
    %v2198 = vadd.f32 0.0, %v2197
    %2199 = vmatprep.mubr.bf16.mxu0 0
    %2200 = vmatmul.mubr.bf16.gmra.mxu0 %v1905
    %v2201 = vpop.f32.mrf.mxu0
    %v2202 = vadd.f32 0.0, %v2201
    %v2203 = vpop.f32.mrf.mxu0
    %v2204 = vadd.f32 0.0, %v2203
    %v2205 = vpop.f32.mrf.mxu0
    %v2206 = vadd.f32 0.0, %v2205
    %v2207 = vpop.f32.mrf.mxu0
    %v2208 = vadd.f32 0.0, %v2207
    %2209 = vmatprep.mubr.bf16.mxu0 0
    %2210 = vmatmul.mubr.bf16.gmra.mxu0 %v1906
    %v2211 = vpop.f32.mrf.mxu0
    %v2212 = vadd.f32 0.0, %v2211
    %v2213 = vpop.f32.mrf.mxu0
    %v2214 = vadd.f32 0.0, %v2213
    %v2215 = vpop.f32.mrf.mxu0
    %v2216 = vadd.f32 0.0, %v2215
    %v2217 = vpop.f32.mrf.mxu0
    %v2218 = vadd.f32 0.0, %v2217
    %2219 = vmatprep.mubr.bf16.mxu0 0
    %2220 = vmatmul.mubr.bf16.gmra.mxu0 %v1907
    %v2221 = vpop.f32.mrf.mxu0
    %v2222 = vadd.f32 0.0, %v2221
    %v2223 = vpop.f32.mrf.mxu0
    %v2224 = vadd.f32 0.0, %v2223
    %v2225 = vpop.f32.mrf.mxu0
    %v2226 = vadd.f32 0.0, %v2225
    %v2227 = vpop.f32.mrf.mxu0
    %v2228 = vadd.f32 0.0, %v2227
    %2229 = vmatprep.mubr.bf16.mxu0 0
    %2230 = vmatmul.mubr.bf16.gmra.mxu0 %v1908
    %v2231 = vpop.f32.mrf.mxu0
    %v2232 = vadd.f32 0.0, %v2231
    %v2233 = vpop.f32.mrf.mxu0
    %v2234 = vadd.f32 0.0, %v2233
    %v2235 = vpop.f32.mrf.mxu0
    %v2236 = vadd.f32 0.0, %v2235
    %v2237 = vpop.f32.mrf.mxu0
    %v2238 = vadd.f32 0.0, %v2237
    %2239 = vmatprep.mubr.bf16.mxu0 0
    %2240 = vmatmul.mubr.bf16.gmra.mxu0 %v1909
    %v2241 = vpop.f32.mrf.mxu0
    %v2242 = vadd.f32 0.0, %v2241
    %v2243 = vpop.f32.mrf.mxu0
    %v2244 = vadd.f32 0.0, %v2243
    %v2245 = vpop.f32.mrf.mxu0
    %v2246 = vadd.f32 0.0, %v2245
    %v2247 = vpop.f32.mrf.mxu0
    %v2248 = vadd.f32 0.0, %v2247
    %2249 = vmatprep.mubr.bf16.mxu0 0
    %2250 = vmatmul.mubr.bf16.gmra.mxu0 %v1910
    %v2251 = vpop.f32.mrf.mxu0
    %v2252 = vadd.f32 0.0, %v2251
    %v2253 = vpop.f32.mrf.mxu0
    %v2254 = vadd.f32 0.0, %v2253
    %v2255 = vpop.f32.mrf.mxu0
    %v2256 = vadd.f32 0.0, %v2255
    %v2257 = vpop.f32.mrf.mxu0
    %v2258 = vadd.f32 0.0, %v2257
    %2259 = vmatprep.mubr.bf16.mxu0 0
    %2260 = vmatmul.mubr.bf16.gmra.mxu0 %v1911
    %v2261 = vpop.f32.mrf.mxu0
    %v2262 = vadd.f32 0.0, %v2261
    %v2263 = vpop.f32.mrf.mxu0
    %v2264 = vadd.f32 0.0, %v2263
    %v2265 = vpop.f32.mrf.mxu0
    %v2266 = vadd.f32 0.0, %v2265
    %v2267 = vpop.f32.mrf.mxu0
    %v2268 = vadd.f32 0.0, %v2267
    %2269 = vmatprep.mubr.bf16.mxu0 0
    %2270 = vmatmul.mubr.bf16.gmra.mxu0 %v1912
    %v2271 = vpop.f32.mrf.mxu0
    %v2272 = vadd.f32 0.0, %v2271
    %v2273 = vpop.f32.mrf.mxu0
    %v2274 = vadd.f32 0.0, %v2273
    %v2275 = vpop.f32.mrf.mxu0
    %v2276 = vadd.f32 0.0, %v2275
    %v2277 = vpop.f32.mrf.mxu0
    %v2278 = vadd.f32 0.0, %v2277
    %2279 = vmatprep.mubr.bf16.mxu0 0
    %2280 = vmatmul.mubr.bf16.gmra.mxu0 %v1913
    %v2281 = vpop.f32.mrf.mxu0
    %v2282 = vadd.f32 0.0, %v2281
    %v2283 = vpop.f32.mrf.mxu0
    %v2284 = vadd.f32 0.0, %v2283
    %v2285 = vpop.f32.mrf.mxu0
    %v2286 = vadd.f32 0.0, %v2285
    %v2287 = vpop.f32.mrf.mxu0
    %v2288 = vadd.f32 0.0, %v2287
    %2289 = vmatprep.mubr.bf16.mxu0 0
    %2290 = vmatmul.mubr.bf16.gmra.mxu0 %v1914
    %v2291 = vpop.f32.mrf.mxu0
    %v2292 = vadd.f32 0.0, %v2291
    %v2293 = vpop.f32.mrf.mxu0
    %v2294 = vadd.f32 0.0, %v2293
    %v2295 = vpop.f32.mrf.mxu0
    %v2296 = vadd.f32 0.0, %v2295
    %v2297 = vpop.f32.mrf.mxu0
    %v2298 = vadd.f32 0.0, %v2297
    %2299 = vmatprep.mubr.bf16.mxu0 0
    %2300 = vmatmul.mubr.bf16.gmra.mxu0 %v1915
    %v2301 = vpop.f32.mrf.mxu0
    %v2302 = vadd.f32 0.0, %v2301
    %v2303 = vpop.f32.mrf.mxu0
    %v2304 = vadd.f32 0.0, %v2303
    %v2305 = vpop.f32.mrf.mxu0
    %v2306 = vadd.f32 0.0, %v2305
    %v2307 = vpop.f32.mrf.mxu0
    %v2308 = vadd.f32 0.0, %v2307
    %2309 = vmatprep.mubr.bf16.mxu0 0
    %2310 = vmatmul.mubr.bf16.gmra.mxu0 %v1916
    %v2311 = vpop.f32.mrf.mxu0
    %v2312 = vadd.f32 0.0, %v2311
    %v2313 = vpop.f32.mrf.mxu0
    %v2314 = vadd.f32 0.0, %v2313
    %v2315 = vpop.f32.mrf.mxu0
    %v2316 = vadd.f32 0.0, %v2315
    %v2317 = vpop.f32.mrf.mxu0
    %v2318 = vadd.f32 0.0, %v2317
    %2319 = vmatprep.mubr.bf16.mxu0 0
    %2320 = vmatmul.mubr.bf16.gmra.mxu0 %v1917
    %v2321 = vpop.f32.mrf.mxu0
    %v2322 = vadd.f32 0.0, %v2321
    %v2323 = vpop.f32.mrf.mxu0
    %v2324 = vadd.f32 0.0, %v2323
    %v2325 = vpop.f32.mrf.mxu0
    %v2326 = vadd.f32 0.0, %v2325
    %v2327 = vpop.f32.mrf.mxu0
    %v2328 = vadd.f32 0.0, %v2327
    %2329 = vmatprep.mubr.bf16.mxu0 0
    %2330 = vmatmul.mubr.bf16.gmra.mxu0 %v1918
    %v2331 = vpop.f32.mrf.mxu0
    %v2332 = vadd.f32 0.0, %v2331
    %v2333 = vpop.f32.mrf.mxu0
    %v2334 = vadd.f32 0.0, %v2333
    %v2335 = vpop.f32.mrf.mxu0
    %v2336 = vadd.f32 0.0, %v2335
    %v2337 = vpop.f32.mrf.mxu0
    %v2338 = vadd.f32 0.0, %v2337
    %2339 = vmatprep.mubr.bf16.mxu0 0
    %2340 = vmatmul.mubr.bf16.gmra.mxu0 %v1919
    %v2341 = vpop.f32.mrf.mxu0
    %v2342 = vadd.f32 0.0, %v2341
    %v2343 = vpop.f32.mrf.mxu0
    %v2344 = vadd.f32 0.0, %v2343
    %v2345 = vpop.f32.mrf.mxu0
    %v2346 = vadd.f32 0.0, %v2345
    %v2347 = vpop.f32.mrf.mxu0
    %v2348 = vadd.f32 0.0, %v2347
    %2349 = vmatprep.mubr.bf16.mxu0 0
    %2350 = vmatmul.mubr.bf16.gmra.mxu0 %v1920
    %v2351 = vpop.f32.mrf.mxu0
    %v2352 = vadd.f32 0.0, %v2351
    %v2353 = vpop.f32.mrf.mxu0
    %v2354 = vadd.f32 0.0, %v2353
    %v2355 = vpop.f32.mrf.mxu0
    %v2356 = vadd.f32 0.0, %v2355
    %v2357 = vpop.f32.mrf.mxu0
    %v2358 = vadd.f32 0.0, %v2357
    %2359 = vmatprep.mubr.bf16.mxu0 0
    %2360 = vmatmul.mubr.bf16.gmra.mxu0 %v1921
    %v2361 = vpop.f32.mrf.mxu0
    %v2362 = vadd.f32 0.0, %v2361
    %v2363 = vpop.f32.mrf.mxu0
    %v2364 = vadd.f32 0.0, %v2363
    %v2365 = vpop.f32.mrf.mxu0
    %v2366 = vadd.f32 0.0, %v2365
    %v2367 = vpop.f32.mrf.mxu0
    %v2368 = vadd.f32 0.0, %v2367
    %2369 = vmatprep.mubr.bf16.mxu0 0
    %2370 = vmatmul.mubr.bf16.gmra.mxu0 %v1922
    %v2371 = vpop.f32.mrf.mxu0
    %v2372 = vadd.f32 0.0, %v2371
    %v2373 = vpop.f32.mrf.mxu0
    %v2374 = vadd.f32 0.0, %v2373
    %v2375 = vpop.f32.mrf.mxu0
    %v2376 = vadd.f32 0.0, %v2375
    %v2377 = vpop.f32.mrf.mxu0
    %v2378 = vadd.f32 0.0, %v2377
    %2379 = vmatprep.mubr.bf16.mxu0 0
    %2380 = vmatmul.mubr.bf16.gmra.mxu0 %v1923
    %v2381 = vpop.f32.mrf.mxu0
    %v2382 = vadd.f32 0.0, %v2381
    %v2383 = vpop.f32.mrf.mxu0
    %v2384 = vadd.f32 0.0, %v2383
    %v2385 = vpop.f32.mrf.mxu0
    %v2386 = vadd.f32 0.0, %v2385
    %v2387 = vpop.f32.mrf.mxu0
    %v2388 = vadd.f32 0.0, %v2387
    %2389 = vmatprep.mubr.bf16.mxu0 0
    %2390 = vmatmul.mubr.bf16.gmra.mxu0 %v1924
    %v2391 = vpop.f32.mrf.mxu0
    %v2392 = vadd.f32 0.0, %v2391
    %v2393 = vpop.f32.mrf.mxu0
    %v2394 = vadd.f32 0.0, %v2393
    %v2395 = vpop.f32.mrf.mxu0
    %v2396 = vadd.f32 0.0, %v2395
    %v2397 = vpop.f32.mrf.mxu0
    %v2398 = vadd.f32 0.0, %v2397
    %2399 = vmatprep.mubr.bf16.mxu0 0
    %2400 = vmatmul.mubr.bf16.gmra.mxu0 %v1925
    %v2401 = vpop.f32.mrf.mxu0
    %v2402 = vadd.f32 0.0, %v2401
    %v2403 = vpop.f32.mrf.mxu0
    %v2404 = vadd.f32 0.0, %v2403
    %v2405 = vpop.f32.mrf.mxu0
    %v2406 = vadd.f32 0.0, %v2405
    %v2407 = vpop.f32.mrf.mxu0
    %v2408 = vadd.f32 0.0, %v2407
    %2409 = vmatprep.mubr.bf16.mxu0 0
    %2410 = vmatmul.mubr.bf16.gmra.mxu0 %v1926
    %v2411 = vpop.f32.mrf.mxu0
    %v2412 = vadd.f32 0.0, %v2411
    %v2413 = vpop.f32.mrf.mxu0
    %v2414 = vadd.f32 0.0, %v2413
    %v2415 = vpop.f32.mrf.mxu0
    %v2416 = vadd.f32 0.0, %v2415
    %v2417 = vpop.f32.mrf.mxu0
    %v2418 = vadd.f32 0.0, %v2417
    %2419 = vmatprep.mubr.bf16.mxu0 0
    %2420 = vmatmul.mubr.bf16.gmra.mxu0 %v1927
    %v2421 = vpop.f32.mrf.mxu0
    %v2422 = vadd.f32 0.0, %v2421
    %v2423 = vpop.f32.mrf.mxu0
    %v2424 = vadd.f32 0.0, %v2423
    %v2425 = vpop.f32.mrf.mxu0
    %v2426 = vadd.f32 0.0, %v2425
    %v2427 = vpop.f32.mrf.mxu0
    %v2428 = vadd.f32 0.0, %v2427
    %2429 = vmatprep.mubr.bf16.mxu0 0
    %2430 = vmatmul.mubr.bf16.gmra.mxu0 %v1928
    %v2431 = vpop.f32.mrf.mxu0
    %v2432 = vadd.f32 0.0, %v2431
    %v2433 = vpop.f32.mrf.mxu0
    %v2434 = vadd.f32 0.0, %v2433
    %v2435 = vpop.f32.mrf.mxu0
    %v2436 = vadd.f32 0.0, %v2435
    %v2437 = vpop.f32.mrf.mxu0
    %v2438 = vadd.f32 0.0, %v2437
    %2439 = vmatprep.mubr.bf16.mxu0 0
    %2440 = vmatmul.mubr.bf16.gmra.mxu0 %v1929
    %v2441 = vpop.f32.mrf.mxu0
    %v2442 = vadd.f32 0.0, %v2441
    %v2443 = vpop.f32.mrf.mxu0
    %v2444 = vadd.f32 0.0, %v2443
    %v2445 = vpop.f32.mrf.mxu0
    %v2446 = vadd.f32 0.0, %v2445
    %v2447 = vpop.f32.mrf.mxu0
    %v2448 = vadd.f32 0.0, %v2447
    %2449 = vmatprep.mubr.bf16.mxu0 0
    %2450 = vmatmul.mubr.bf16.gmra.mxu0 %v1930
    %v2451 = vpop.f32.mrf.mxu0
    %v2452 = vadd.f32 0.0, %v2451
    %v2453 = vpop.f32.mrf.mxu0
    %v2454 = vadd.f32 0.0, %v2453
    %v2455 = vpop.f32.mrf.mxu0
    %v2456 = vadd.f32 0.0, %v2455
    %v2457 = vpop.f32.mrf.mxu0
    %v2458 = vadd.f32 0.0, %v2457
    %2459 = vmatprep.mubr.bf16.mxu0 0
    %2460 = vmatmul.mubr.bf16.gmra.mxu0 %v1931
    %v2461 = vpop.f32.mrf.mxu0
    %v2462 = vadd.f32 0.0, %v2461
    %v2463 = vpop.f32.mrf.mxu0
    %v2464 = vadd.f32 0.0, %v2463
    %v2465 = vpop.f32.mrf.mxu0
    %v2466 = vadd.f32 0.0, %v2465
    %v2467 = vpop.f32.mrf.mxu0
    %v2468 = vadd.f32 0.0, %v2467
    %2469 = vmatprep.mubr.bf16.mxu0 0
    %2470 = vmatmul.mubr.bf16.gmra.mxu0 %v1932
    %v2471 = vpop.f32.mrf.mxu0
    %v2472 = vadd.f32 0.0, %v2471
    %v2473 = vpop.f32.mrf.mxu0
    %v2474 = vadd.f32 0.0, %v2473
    %v2475 = vpop.f32.mrf.mxu0
    %v2476 = vadd.f32 0.0, %v2475
    %v2477 = vpop.f32.mrf.mxu0
    %v2478 = vadd.f32 0.0, %v2477
    %2479 = vdwg.mxu0
    %2480 = vmatprep.subr.bf16.mxu0 %v2094
    %2481 = vmatpush1.bf16.msra.mxu0 %v2093
    %2482 = vmatprep.subr.bf16.mxu0 %v2090
    %2483 = vmatpush1.bf16.msra.mxu0 %v2089
    %2484 = vmatprep.subr.bf16.mxu0 %v2086
    %2485 = vmatpush1.bf16.msra.mxu0 %v2085
    %2486 = vmatprep.subr.bf16.mxu0 %v2082
    %2487 = vmatpush1.bf16.msra.mxu0 %v2081
    %2488 = vmatprep.subr.bf16.mxu0 %v2078
    %2489 = vmatpush1.bf16.msra.mxu0 %v2077
    %2490 = vmatprep.subr.bf16.mxu0 %v2074
    %2491 = vmatpush1.bf16.msra.mxu0 %v2073
    %2492 = vmatprep.subr.bf16.mxu0 %v2070
    %2493 = vmatpush1.bf16.msra.mxu0 %v2069
    %2494 = vmatprep.subr.bf16.mxu0 %v2066
    %2495 = vmatpush1.bf16.msra.mxu0 %v2065
    %2496 = vmatprep.subr.bf16.mxu0 0
    %2497 = vmatpush2.bf16.msra.mxu0 0
    %2498 = vmatprep.subr.bf16.mxu0 0
    %2499 = vmatpush2.bf16.msra.mxu0 0
    %2500 = vmatprep.subr.bf16.mxu0 0
    %2501 = vmatpush2.bf16.msra.mxu0 0
    %2502 = vmatprep.subr.bf16.mxu0 0
    %2503 = vmatpush2.bf16.msra.mxu0 0
    %2504 = vmatprep.subr.bf16.mxu0 0
    %2505 = vmatpush2.bf16.msra.mxu0 0
    %2506 = vmatprep.subr.bf16.mxu0 0
    %2507 = vmatpush2.bf16.msra.mxu0 0
    %2508 = vmatprep.subr.bf16.mxu0 0
    %2509 = vmatpush2.bf16.msra.mxu0 0
    %2510 = vmatprep.subr.bf16.mxu0 0
    %2511 = vmatpush2.bf16.msra.mxu0 0
    %2512 = vmatprep.mubr.bf16.mxu0 0
    %2513 = vmatmul.mubr.bf16.gmra.mxu0 %v1901
    %v2514 = vpop.f32.mrf.mxu0
    %v2515 = vadd.f32 0.0, %v2514
    %v2516 = vpop.f32.mrf.mxu0
    %v2517 = vadd.f32 0.0, %v2516
    %v2518 = vpop.f32.mrf.mxu0
    %v2519 = vadd.f32 0.0, %v2518
    %v2520 = vpop.f32.mrf.mxu0
    %v2521 = vadd.f32 0.0, %v2520
    %2522 = vmatprep.mubr.bf16.mxu0 0
    %2523 = vmatmul.mubr.bf16.gmra.mxu0 %v1902
    %v2524 = vpop.f32.mrf.mxu0
    %v2525 = vadd.f32 0.0, %v2524
    %v2526 = vpop.f32.mrf.mxu0
    %v2527 = vadd.f32 0.0, %v2526
    %v2528 = vpop.f32.mrf.mxu0
    %v2529 = vadd.f32 0.0, %v2528
    %v2530 = vpop.f32.mrf.mxu0
    %v2531 = vadd.f32 0.0, %v2530
    %2532 = vmatprep.mubr.bf16.mxu0 0
    %2533 = vmatmul.mubr.bf16.gmra.mxu0 %v1903
    %v2534 = vpop.f32.mrf.mxu0
    %v2535 = vadd.f32 0.0, %v2534
    %v2536 = vpop.f32.mrf.mxu0
    %v2537 = vadd.f32 0.0, %v2536
    %v2538 = vpop.f32.mrf.mxu0
    %v2539 = vadd.f32 0.0, %v2538
    %v2540 = vpop.f32.mrf.mxu0
    %v2541 = vadd.f32 0.0, %v2540
    %2542 = vmatprep.mubr.bf16.mxu0 0
    %2543 = vmatmul.mubr.bf16.gmra.mxu0 %v1904
    %v2544 = vpop.f32.mrf.mxu0
    %v2545 = vadd.f32 0.0, %v2544
    %v2546 = vpop.f32.mrf.mxu0
    %v2547 = vadd.f32 0.0, %v2546
    %v2548 = vpop.f32.mrf.mxu0
    %v2549 = vadd.f32 0.0, %v2548
    %v2550 = vpop.f32.mrf.mxu0
    %v2551 = vadd.f32 0.0, %v2550
    %2552 = vmatprep.mubr.bf16.mxu0 0
    %2553 = vmatmul.mubr.bf16.gmra.mxu0 %v1905
    %v2554 = vpop.f32.mrf.mxu0
    %v2555 = vadd.f32 0.0, %v2554
    %v2556 = vpop.f32.mrf.mxu0
    %v2557 = vadd.f32 0.0, %v2556
    %v2558 = vpop.f32.mrf.mxu0
    %v2559 = vadd.f32 0.0, %v2558
    %v2560 = vpop.f32.mrf.mxu0
    %v2561 = vadd.f32 0.0, %v2560
    %2562 = vmatprep.mubr.bf16.mxu0 0
    %2563 = vmatmul.mubr.bf16.gmra.mxu0 %v1906
    %v2564 = vpop.f32.mrf.mxu0
    %v2565 = vadd.f32 0.0, %v2564
    %v2566 = vpop.f32.mrf.mxu0
    %v2567 = vadd.f32 0.0, %v2566
    %v2568 = vpop.f32.mrf.mxu0
    %v2569 = vadd.f32 0.0, %v2568
    %v2570 = vpop.f32.mrf.mxu0
    %v2571 = vadd.f32 0.0, %v2570
    %2572 = vmatprep.mubr.bf16.mxu0 0
    %2573 = vmatmul.mubr.bf16.gmra.mxu0 %v1907
    %v2574 = vpop.f32.mrf.mxu0
    %v2575 = vadd.f32 0.0, %v2574
    %v2576 = vpop.f32.mrf.mxu0
    %v2577 = vadd.f32 0.0, %v2576
    %v2578 = vpop.f32.mrf.mxu0
    %v2579 = vadd.f32 0.0, %v2578
    %v2580 = vpop.f32.mrf.mxu0
    %v2581 = vadd.f32 0.0, %v2580
    %2582 = vmatprep.mubr.bf16.mxu0 0
    %2583 = vmatmul.mubr.bf16.gmra.mxu0 %v1908
    %v2584 = vpop.f32.mrf.mxu0
    %v2585 = vadd.f32 0.0, %v2584
    %v2586 = vpop.f32.mrf.mxu0
    %v2587 = vadd.f32 0.0, %v2586
    %v2588 = vpop.f32.mrf.mxu0
    %v2589 = vadd.f32 0.0, %v2588
    %v2590 = vpop.f32.mrf.mxu0
    %v2591 = vadd.f32 0.0, %v2590
    %2592 = vmatprep.mubr.bf16.mxu0 0
    %2593 = vmatmul.mubr.bf16.gmra.mxu0 %v1909
    %v2594 = vpop.f32.mrf.mxu0
    %v2595 = vadd.f32 0.0, %v2594
    %v2596 = vpop.f32.mrf.mxu0
    %v2597 = vadd.f32 0.0, %v2596
    %v2598 = vpop.f32.mrf.mxu0
    %v2599 = vadd.f32 0.0, %v2598
    %v2600 = vpop.f32.mrf.mxu0
    %v2601 = vadd.f32 0.0, %v2600
    %2602 = vmatprep.mubr.bf16.mxu0 0
    %2603 = vmatmul.mubr.bf16.gmra.mxu0 %v1910
    %v2604 = vpop.f32.mrf.mxu0
    %v2605 = vadd.f32 0.0, %v2604
    %v2606 = vpop.f32.mrf.mxu0
    %v2607 = vadd.f32 0.0, %v2606
    %v2608 = vpop.f32.mrf.mxu0
    %v2609 = vadd.f32 0.0, %v2608
    %v2610 = vpop.f32.mrf.mxu0
    %v2611 = vadd.f32 0.0, %v2610
    %2612 = vmatprep.mubr.bf16.mxu0 0
    %2613 = vmatmul.mubr.bf16.gmra.mxu0 %v1911
    %v2614 = vpop.f32.mrf.mxu0
    %v2615 = vadd.f32 0.0, %v2614
    %v2616 = vpop.f32.mrf.mxu0
    %v2617 = vadd.f32 0.0, %v2616
    %v2618 = vpop.f32.mrf.mxu0
    %v2619 = vadd.f32 0.0, %v2618
    %v2620 = vpop.f32.mrf.mxu0
    %v2621 = vadd.f32 0.0, %v2620
    %2622 = vmatprep.mubr.bf16.mxu0 0
    %2623 = vmatmul.mubr.bf16.gmra.mxu0 %v1912
    %v2624 = vpop.f32.mrf.mxu0
    %v2625 = vadd.f32 0.0, %v2624
    %v2626 = vpop.f32.mrf.mxu0
    %v2627 = vadd.f32 0.0, %v2626
    %v2628 = vpop.f32.mrf.mxu0
    %v2629 = vadd.f32 0.0, %v2628
    %v2630 = vpop.f32.mrf.mxu0
    %v2631 = vadd.f32 0.0, %v2630
    %2632 = vmatprep.mubr.bf16.mxu0 0
    %2633 = vmatmul.mubr.bf16.gmra.mxu0 %v1913
    %v2634 = vpop.f32.mrf.mxu0
    %v2635 = vadd.f32 0.0, %v2634
    %v2636 = vpop.f32.mrf.mxu0
    %v2637 = vadd.f32 0.0, %v2636
    %v2638 = vpop.f32.mrf.mxu0
    %v2639 = vadd.f32 0.0, %v2638
    %v2640 = vpop.f32.mrf.mxu0
    %v2641 = vadd.f32 0.0, %v2640
    %2642 = vmatprep.mubr.bf16.mxu0 0
    %2643 = vmatmul.mubr.bf16.gmra.mxu0 %v1914
    %v2644 = vpop.f32.mrf.mxu0
    %v2645 = vadd.f32 0.0, %v2644
    %v2646 = vpop.f32.mrf.mxu0
    %v2647 = vadd.f32 0.0, %v2646
    %v2648 = vpop.f32.mrf.mxu0
    %v2649 = vadd.f32 0.0, %v2648
    %v2650 = vpop.f32.mrf.mxu0
    %v2651 = vadd.f32 0.0, %v2650
    %2652 = vmatprep.mubr.bf16.mxu0 0
    %2653 = vmatmul.mubr.bf16.gmra.mxu0 %v1915
    %v2654 = vpop.f32.mrf.mxu0
    %v2655 = vadd.f32 0.0, %v2654
    %v2656 = vpop.f32.mrf.mxu0
    %v2657 = vadd.f32 0.0, %v2656
    %v2658 = vpop.f32.mrf.mxu0
    %v2659 = vadd.f32 0.0, %v2658
    %v2660 = vpop.f32.mrf.mxu0
    %v2661 = vadd.f32 0.0, %v2660
    %2662 = vmatprep.mubr.bf16.mxu0 0
    %2663 = vmatmul.mubr.bf16.gmra.mxu0 %v1916
    %v2664 = vpop.f32.mrf.mxu0
    %v2665 = vadd.f32 0.0, %v2664
    %v2666 = vpop.f32.mrf.mxu0
    %v2667 = vadd.f32 0.0, %v2666
    %v2668 = vpop.f32.mrf.mxu0
    %v2669 = vadd.f32 0.0, %v2668
    %v2670 = vpop.f32.mrf.mxu0
    %v2671 = vadd.f32 0.0, %v2670
    %2672 = vmatprep.mubr.bf16.mxu0 0
    %2673 = vmatmul.mubr.bf16.gmra.mxu0 %v1917
    %v2674 = vpop.f32.mrf.mxu0
    %v2675 = vadd.f32 0.0, %v2674
    %v2676 = vpop.f32.mrf.mxu0
    %v2677 = vadd.f32 0.0, %v2676
    %v2678 = vpop.f32.mrf.mxu0
    %v2679 = vadd.f32 0.0, %v2678
    %v2680 = vpop.f32.mrf.mxu0
    %v2681 = vadd.f32 0.0, %v2680
    %2682 = vmatprep.mubr.bf16.mxu0 0
    %2683 = vmatmul.mubr.bf16.gmra.mxu0 %v1918
    %v2684 = vpop.f32.mrf.mxu0
    %v2685 = vadd.f32 0.0, %v2684
    %v2686 = vpop.f32.mrf.mxu0
    %v2687 = vadd.f32 0.0, %v2686
    %v2688 = vpop.f32.mrf.mxu0
    %v2689 = vadd.f32 0.0, %v2688
    %v2690 = vpop.f32.mrf.mxu0
    %v2691 = vadd.f32 0.0, %v2690
    %2692 = vmatprep.mubr.bf16.mxu0 0
    %2693 = vmatmul.mubr.bf16.gmra.mxu0 %v1919
    %v2694 = vpop.f32.mrf.mxu0
    %v2695 = vadd.f32 0.0, %v2694
    %v2696 = vpop.f32.mrf.mxu0
    %v2697 = vadd.f32 0.0, %v2696
    %v2698 = vpop.f32.mrf.mxu0
    %v2699 = vadd.f32 0.0, %v2698
    %v2700 = vpop.f32.mrf.mxu0
    %v2701 = vadd.f32 0.0, %v2700
    %2702 = vmatprep.mubr.bf16.mxu0 0
    %2703 = vmatmul.mubr.bf16.gmra.mxu0 %v1920
    %v2704 = vpop.f32.mrf.mxu0
    %v2705 = vadd.f32 0.0, %v2704
    %v2706 = vpop.f32.mrf.mxu0
    %v2707 = vadd.f32 0.0, %v2706
    %v2708 = vpop.f32.mrf.mxu0
    %v2709 = vadd.f32 0.0, %v2708
    %v2710 = vpop.f32.mrf.mxu0
    %v2711 = vadd.f32 0.0, %v2710
    %2712 = vmatprep.mubr.bf16.mxu0 0
    %2713 = vmatmul.mubr.bf16.gmra.mxu0 %v1921
    %v2714 = vpop.f32.mrf.mxu0
    %v2715 = vadd.f32 0.0, %v2714
    %v2716 = vpop.f32.mrf.mxu0
    %v2717 = vadd.f32 0.0, %v2716
    %v2718 = vpop.f32.mrf.mxu0
    %v2719 = vadd.f32 0.0, %v2718
    %v2720 = vpop.f32.mrf.mxu0
    %v2721 = vadd.f32 0.0, %v2720
    %2722 = vmatprep.mubr.bf16.mxu0 0
    %2723 = vmatmul.mubr.bf16.gmra.mxu0 %v1922
    %v2724 = vpop.f32.mrf.mxu0
    %v2725 = vadd.f32 0.0, %v2724
    %v2726 = vpop.f32.mrf.mxu0
    %v2727 = vadd.f32 0.0, %v2726
    %v2728 = vpop.f32.mrf.mxu0
    %v2729 = vadd.f32 0.0, %v2728
    %v2730 = vpop.f32.mrf.mxu0
    %v2731 = vadd.f32 0.0, %v2730
    %2732 = vmatprep.mubr.bf16.mxu0 0
    %2733 = vmatmul.mubr.bf16.gmra.mxu0 %v1923
    %v2734 = vpop.f32.mrf.mxu0
    %v2735 = vadd.f32 0.0, %v2734
    %v2736 = vpop.f32.mrf.mxu0
    %v2737 = vadd.f32 0.0, %v2736
    %v2738 = vpop.f32.mrf.mxu0
    %v2739 = vadd.f32 0.0, %v2738
    %v2740 = vpop.f32.mrf.mxu0
    %v2741 = vadd.f32 0.0, %v2740
    %2742 = vmatprep.mubr.bf16.mxu0 0
    %2743 = vmatmul.mubr.bf16.gmra.mxu0 %v1924
    %v2744 = vpop.f32.mrf.mxu0
    %v2745 = vadd.f32 0.0, %v2744
    %v2746 = vpop.f32.mrf.mxu0
    %v2747 = vadd.f32 0.0, %v2746
    %v2748 = vpop.f32.mrf.mxu0
    %v2749 = vadd.f32 0.0, %v2748
    %v2750 = vpop.f32.mrf.mxu0
    %v2751 = vadd.f32 0.0, %v2750
    %2752 = vmatprep.mubr.bf16.mxu0 0
    %2753 = vmatmul.mubr.bf16.gmra.mxu0 %v1925
    %v2754 = vpop.f32.mrf.mxu0
    %v2755 = vadd.f32 0.0, %v2754
    %v2756 = vpop.f32.mrf.mxu0
    %v2757 = vadd.f32 0.0, %v2756
    %v2758 = vpop.f32.mrf.mxu0
    %v2759 = vadd.f32 0.0, %v2758
    %v2760 = vpop.f32.mrf.mxu0
    %v2761 = vadd.f32 0.0, %v2760
    %2762 = vmatprep.mubr.bf16.mxu0 0
    %2763 = vmatmul.mubr.bf16.gmra.mxu0 %v1926
    %v2764 = vpop.f32.mrf.mxu0
    %v2765 = vadd.f32 0.0, %v2764
    %v2766 = vpop.f32.mrf.mxu0
    %v2767 = vadd.f32 0.0, %v2766
    %v2768 = vpop.f32.mrf.mxu0
    %v2769 = vadd.f32 0.0, %v2768
    %v2770 = vpop.f32.mrf.mxu0
    %v2771 = vadd.f32 0.0, %v2770
    %2772 = vmatprep.mubr.bf16.mxu0 0
    %2773 = vmatmul.mubr.bf16.gmra.mxu0 %v1927
    %v2774 = vpop.f32.mrf.mxu0
    %v2775 = vadd.f32 0.0, %v2774
    %v2776 = vpop.f32.mrf.mxu0
    %v2777 = vadd.f32 0.0, %v2776
    %v2778 = vpop.f32.mrf.mxu0
    %v2779 = vadd.f32 0.0, %v2778
    %v2780 = vpop.f32.mrf.mxu0
    %v2781 = vadd.f32 0.0, %v2780
    %2782 = vmatprep.mubr.bf16.mxu0 0
    %2783 = vmatmul.mubr.bf16.gmra.mxu0 %v1928
    %v2784 = vpop.f32.mrf.mxu0
    %v2785 = vadd.f32 0.0, %v2784
    %v2786 = vpop.f32.mrf.mxu0
    %v2787 = vadd.f32 0.0, %v2786
    %v2788 = vpop.f32.mrf.mxu0
    %v2789 = vadd.f32 0.0, %v2788
    %v2790 = vpop.f32.mrf.mxu0
    %v2791 = vadd.f32 0.0, %v2790
    %2792 = vmatprep.mubr.bf16.mxu0 0
    %2793 = vmatmul.mubr.bf16.gmra.mxu0 %v1929
    %v2794 = vpop.f32.mrf.mxu0
    %v2795 = vadd.f32 0.0, %v2794
    %v2796 = vpop.f32.mrf.mxu0
    %v2797 = vadd.f32 0.0, %v2796
    %v2798 = vpop.f32.mrf.mxu0
    %v2799 = vadd.f32 0.0, %v2798
    %v2800 = vpop.f32.mrf.mxu0
    %v2801 = vadd.f32 0.0, %v2800
    %2802 = vmatprep.mubr.bf16.mxu0 0
    %2803 = vmatmul.mubr.bf16.gmra.mxu0 %v1930
    %v2804 = vpop.f32.mrf.mxu0
    %v2805 = vadd.f32 0.0, %v2804
    %v2806 = vpop.f32.mrf.mxu0
    %v2807 = vadd.f32 0.0, %v2806
    %v2808 = vpop.f32.mrf.mxu0
    %v2809 = vadd.f32 0.0, %v2808
    %v2810 = vpop.f32.mrf.mxu0
    %v2811 = vadd.f32 0.0, %v2810
    %2812 = vmatprep.mubr.bf16.mxu0 0
    %2813 = vmatmul.mubr.bf16.gmra.mxu0 %v1931
    %v2814 = vpop.f32.mrf.mxu0
    %v2815 = vadd.f32 0.0, %v2814
    %v2816 = vpop.f32.mrf.mxu0
    %v2817 = vadd.f32 0.0, %v2816
    %v2818 = vpop.f32.mrf.mxu0
    %v2819 = vadd.f32 0.0, %v2818
    %v2820 = vpop.f32.mrf.mxu0
    %v2821 = vadd.f32 0.0, %v2820
    %2822 = vmatprep.mubr.bf16.mxu0 0
    %2823 = vmatmul.mubr.bf16.gmra.mxu0 %v1932
    %v2824 = vpop.f32.mrf.mxu0
    %v2825 = vadd.f32 0.0, %v2824
    %v2826 = vpop.f32.mrf.mxu0
    %v2827 = vadd.f32 0.0, %v2826
    %v2828 = vpop.f32.mrf.mxu0
    %v2829 = vadd.f32 0.0, %v2828
    %v2830 = vpop.f32.mrf.mxu0
    %v2831 = vadd.f32 0.0, %v2830
    %2832 = vdwg.mxu0
    %v2833 = vpack.c.bf16 %v2166, %v2162
    %v2834 = vpack.c.bf16 %v2168, %v2164
    %v2835 = vpack.c.bf16 %v2519, %v2515
    %v2836 = vpack.c.bf16 %v2521, %v2517
    %v2837 = vpack.c.bf16 %v2176, %v2172
    %v2838 = vpack.c.bf16 %v2178, %v2174
    %v2839 = vpack.c.bf16 %v2529, %v2525
    %v2840 = vpack.c.bf16 %v2531, %v2527
    %v2841 = vpack.c.bf16 %v2186, %v2182
    %v2842 = vpack.c.bf16 %v2188, %v2184
    %v2843 = vpack.c.bf16 %v2539, %v2535
    %v2844 = vpack.c.bf16 %v2541, %v2537
    %v2845 = vpack.c.bf16 %v2196, %v2192
    %v2846 = vpack.c.bf16 %v2198, %v2194
    %v2847 = vpack.c.bf16 %v2549, %v2545
    %v2848 = vpack.c.bf16 %v2551, %v2547
    %v2849 = vpack.c.bf16 %v2206, %v2202
    %v2850 = vpack.c.bf16 %v2208, %v2204
    %v2851 = vpack.c.bf16 %v2559, %v2555
    %v2852 = vpack.c.bf16 %v2561, %v2557
    %v2853 = vpack.c.bf16 %v2216, %v2212
    %v2854 = vpack.c.bf16 %v2218, %v2214
    %v2855 = vpack.c.bf16 %v2569, %v2565
    %v2856 = vpack.c.bf16 %v2571, %v2567
    %v2857 = vpack.c.bf16 %v2226, %v2222
    %v2858 = vpack.c.bf16 %v2228, %v2224
    %v2859 = vpack.c.bf16 %v2579, %v2575
    %v2860 = vpack.c.bf16 %v2581, %v2577
    %v2861 = vpack.c.bf16 %v2236, %v2232
    %v2862 = vpack.c.bf16 %v2238, %v2234
    %v2863 = vpack.c.bf16 %v2589, %v2585
    %v2864 = vpack.c.bf16 %v2591, %v2587
    %v2865 = vpack.c.bf16 %v2246, %v2242
    %v2866 = vpack.c.bf16 %v2248, %v2244
    %v2867 = vpack.c.bf16 %v2599, %v2595
    %v2868 = vpack.c.bf16 %v2601, %v2597
    %v2869 = vpack.c.bf16 %v2256, %v2252
    %v2870 = vpack.c.bf16 %v2258, %v2254
    %v2871 = vpack.c.bf16 %v2609, %v2605
    %v2872 = vpack.c.bf16 %v2611, %v2607
    %v2873 = vpack.c.bf16 %v2266, %v2262
    %v2874 = vpack.c.bf16 %v2268, %v2264
    %v2875 = vpack.c.bf16 %v2619, %v2615
    %v2876 = vpack.c.bf16 %v2621, %v2617
    %v2877 = vpack.c.bf16 %v2276, %v2272
    %v2878 = vpack.c.bf16 %v2278, %v2274
    %v2879 = vpack.c.bf16 %v2629, %v2625
    %v2880 = vpack.c.bf16 %v2631, %v2627
    %v2881 = vpack.c.bf16 %v2286, %v2282
    %v2882 = vpack.c.bf16 %v2288, %v2284
    %v2883 = vpack.c.bf16 %v2639, %v2635
    %v2884 = vpack.c.bf16 %v2641, %v2637
    %v2885 = vpack.c.bf16 %v2296, %v2292
    %v2886 = vpack.c.bf16 %v2298, %v2294
    %v2887 = vpack.c.bf16 %v2649, %v2645
    %v2888 = vpack.c.bf16 %v2651, %v2647
    %v2889 = vpack.c.bf16 %v2306, %v2302
    %v2890 = vpack.c.bf16 %v2308, %v2304
    %v2891 = vpack.c.bf16 %v2659, %v2655
    %v2892 = vpack.c.bf16 %v2661, %v2657
    %v2893 = vpack.c.bf16 %v2316, %v2312
    %v2894 = vpack.c.bf16 %v2318, %v2314
    %v2895 = vpack.c.bf16 %v2669, %v2665
    %v2896 = vpack.c.bf16 %v2671, %v2667
    %v2897 = vpack.c.bf16 %v2326, %v2322
    %v2898 = vpack.c.bf16 %v2328, %v2324
    %v2899 = vpack.c.bf16 %v2679, %v2675
    %v2900 = vpack.c.bf16 %v2681, %v2677
    %v2901 = vpack.c.bf16 %v2336, %v2332
    %v2902 = vpack.c.bf16 %v2338, %v2334
    %v2903 = vpack.c.bf16 %v2689, %v2685
    %v2904 = vpack.c.bf16 %v2691, %v2687
    %v2905 = vpack.c.bf16 %v2346, %v2342
    %v2906 = vpack.c.bf16 %v2348, %v2344
    %v2907 = vpack.c.bf16 %v2699, %v2695
    %v2908 = vpack.c.bf16 %v2701, %v2697
    %v2909 = vpack.c.bf16 %v2356, %v2352
    %v2910 = vpack.c.bf16 %v2358, %v2354
    %v2911 = vpack.c.bf16 %v2709, %v2705
    %v2912 = vpack.c.bf16 %v2711, %v2707
    %v2913 = vpack.c.bf16 %v2366, %v2362
    %v2914 = vpack.c.bf16 %v2368, %v2364
    %v2915 = vpack.c.bf16 %v2719, %v2715
    %v2916 = vpack.c.bf16 %v2721, %v2717
    %v2917 = vpack.c.bf16 %v2376, %v2372
    %v2918 = vpack.c.bf16 %v2378, %v2374
    %v2919 = vpack.c.bf16 %v2729, %v2725
    %v2920 = vpack.c.bf16 %v2731, %v2727
    %v2921 = vpack.c.bf16 %v2386, %v2382
    %v2922 = vpack.c.bf16 %v2388, %v2384
    %v2923 = vpack.c.bf16 %v2739, %v2735
    %v2924 = vpack.c.bf16 %v2741, %v2737
    %v2925 = vpack.c.bf16 %v2396, %v2392
    %v2926 = vpack.c.bf16 %v2398, %v2394
    %v2927 = vpack.c.bf16 %v2749, %v2745
    %v2928 = vpack.c.bf16 %v2751, %v2747
    %v2929 = vpack.c.bf16 %v2406, %v2402
    %v2930 = vpack.c.bf16 %v2408, %v2404
    %v2931 = vpack.c.bf16 %v2759, %v2755
    %v2932 = vpack.c.bf16 %v2761, %v2757
    %v2933 = vpack.c.bf16 %v2416, %v2412
    %v2934 = vpack.c.bf16 %v2418, %v2414
    %v2935 = vpack.c.bf16 %v2769, %v2765
    %v2936 = vpack.c.bf16 %v2771, %v2767
    %v2937 = vpack.c.bf16 %v2426, %v2422
    %v2938 = vpack.c.bf16 %v2428, %v2424
    %v2939 = vpack.c.bf16 %v2779, %v2775
    %v2940 = vpack.c.bf16 %v2781, %v2777
    %v2941 = vpack.c.bf16 %v2436, %v2432
    %v2942 = vpack.c.bf16 %v2438, %v2434
    %v2943 = vpack.c.bf16 %v2789, %v2785
    %v2944 = vpack.c.bf16 %v2791, %v2787
    %v2945 = vpack.c.bf16 %v2446, %v2442
    %v2946 = vpack.c.bf16 %v2448, %v2444
    %v2947 = vpack.c.bf16 %v2799, %v2795
    %v2948 = vpack.c.bf16 %v2801, %v2797
    %v2949 = vpack.c.bf16 %v2456, %v2452
    %v2950 = vpack.c.bf16 %v2458, %v2454
    %v2951 = vpack.c.bf16 %v2809, %v2805
    %v2952 = vpack.c.bf16 %v2811, %v2807
    %v2953 = vpack.c.bf16 %v2466, %v2462
    %v2954 = vpack.c.bf16 %v2468, %v2464
    %v2955 = vpack.c.bf16 %v2819, %v2815
    %v2956 = vpack.c.bf16 %v2821, %v2817
    %v2957 = vpack.c.bf16 %v2476, %v2472
    %v2958 = vpack.c.bf16 %v2478, %v2474
    %v2959 = vpack.c.bf16 %v2829, %v2825
    %v2960 = vpack.c.bf16 %v2831, %v2827
    %v2961 = vmax.bf16 %v2833, 0
    %v2962 = vmax.bf16 %v2834, 0
    %v2963 = vmax.bf16 %v2835, 0
    %v2964 = vmax.bf16 %v2836, 0
    %v2965 = vmax.bf16 %v2837, 0
    %v2966 = vmax.bf16 %v2838, 0
    %v2967 = vmax.bf16 %v2839, 0
    %v2968 = vmax.bf16 %v2840, 0
    %v2969 = vmax.bf16 %v2841, 0
    %v2970 = vmax.bf16 %v2842, 0
    %v2971 = vmax.bf16 %v2843, 0
    %v2972 = vmax.bf16 %v2844, 0
    %v2973 = vmax.bf16 %v2845, 0
    %v2974 = vmax.bf16 %v2846, 0
    %v2975 = vmax.bf16 %v2847, 0
    %v2976 = vmax.bf16 %v2848, 0
    %v2977 = vmax.bf16 %v2849, 0
    %v2978 = vmax.bf16 %v2850, 0
    %v2979 = vmax.bf16 %v2851, 0
    %v2980 = vmax.bf16 %v2852, 0
    %v2981 = vmax.bf16 %v2853, 0
    %v2982 = vmax.bf16 %v2854, 0
    %v2983 = vmax.bf16 %v2855, 0
    %v2984 = vmax.bf16 %v2856, 0
    %v2985 = vmax.bf16 %v2857, 0
    %v2986 = vmax.bf16 %v2858, 0
    %v2987 = vmax.bf16 %v2859, 0
    %v2988 = vmax.bf16 %v2860, 0
    %v2989 = vmax.bf16 %v2861, 0
    %v2990 = vmax.bf16 %v2862, 0
    %v2991 = vmax.bf16 %v2863, 0
    %v2992 = vmax.bf16 %v2864, 0
    %v2993 = vmax.bf16 %v2865, 0
    %v2994 = vmax.bf16 %v2866, 0
    %v2995 = vmax.bf16 %v2867, 0
    %v2996 = vmax.bf16 %v2868, 0
    %v2997 = vmax.bf16 %v2869, 0
    %v2998 = vmax.bf16 %v2870, 0
    %v2999 = vmax.bf16 %v2871, 0
    %v3000 = vmax.bf16 %v2872, 0
    %v3001 = vmax.bf16 %v2873, 0
    %v3002 = vmax.bf16 %v2874, 0
    %v3003 = vmax.bf16 %v2875, 0
    %v3004 = vmax.bf16 %v2876, 0
    %v3005 = vmax.bf16 %v2877, 0
    %v3006 = vmax.bf16 %v2878, 0
    %v3007 = vmax.bf16 %v2879, 0
    %v3008 = vmax.bf16 %v2880, 0
    %v3009 = vmax.bf16 %v2881, 0
    %v3010 = vmax.bf16 %v2882, 0
    %v3011 = vmax.bf16 %v2883, 0
    %v3012 = vmax.bf16 %v2884, 0
    %v3013 = vmax.bf16 %v2885, 0
    %v3014 = vmax.bf16 %v2886, 0
    %v3015 = vmax.bf16 %v2887, 0
    %v3016 = vmax.bf16 %v2888, 0
    %v3017 = vmax.bf16 %v2889, 0
    %v3018 = vmax.bf16 %v2890, 0
    %v3019 = vmax.bf16 %v2891, 0
    %v3020 = vmax.bf16 %v2892, 0
    %v3021 = vmax.bf16 %v2893, 0
    %v3022 = vmax.bf16 %v2894, 0
    %v3023 = vmax.bf16 %v2895, 0
    %v3024 = vmax.bf16 %v2896, 0
    %v3025 = vmax.bf16 %v2897, 0
    %v3026 = vmax.bf16 %v2898, 0
    %v3027 = vmax.bf16 %v2899, 0
    %v3028 = vmax.bf16 %v2900, 0
    %v3029 = vmax.bf16 %v2901, 0
    %v3030 = vmax.bf16 %v2902, 0
    %v3031 = vmax.bf16 %v2903, 0
    %v3032 = vmax.bf16 %v2904, 0
    %v3033 = vmax.bf16 %v2905, 0
    %v3034 = vmax.bf16 %v2906, 0
    %v3035 = vmax.bf16 %v2907, 0
    %v3036 = vmax.bf16 %v2908, 0
    %v3037 = vmax.bf16 %v2909, 0
    %v3038 = vmax.bf16 %v2910, 0
    %v3039 = vmax.bf16 %v2911, 0
    %v3040 = vmax.bf16 %v2912, 0
    %v3041 = vmax.bf16 %v2913, 0
    %v3042 = vmax.bf16 %v2914, 0
    %v3043 = vmax.bf16 %v2915, 0
    %v3044 = vmax.bf16 %v2916, 0
    %v3045 = vmax.bf16 %v2917, 0
    %v3046 = vmax.bf16 %v2918, 0
    %v3047 = vmax.bf16 %v2919, 0
    %v3048 = vmax.bf16 %v2920, 0
    %v3049 = vmax.bf16 %v2921, 0
    %v3050 = vmax.bf16 %v2922, 0
    %v3051 = vmax.bf16 %v2923, 0
    %v3052 = vmax.bf16 %v2924, 0
    %v3053 = vmax.bf16 %v2925, 0
    %v3054 = vmax.bf16 %v2926, 0
    %v3055 = vmax.bf16 %v2927, 0
    %v3056 = vmax.bf16 %v2928, 0
    %v3057 = vmax.bf16 %v2929, 0
    %v3058 = vmax.bf16 %v2930, 0
    %v3059 = vmax.bf16 %v2931, 0
    %v3060 = vmax.bf16 %v2932, 0
    %v3061 = vmax.bf16 %v2933, 0
    %v3062 = vmax.bf16 %v2934, 0
    %v3063 = vmax.bf16 %v2935, 0
    %v3064 = vmax.bf16 %v2936, 0
    %v3065 = vmax.bf16 %v2937, 0
    %v3066 = vmax.bf16 %v2938, 0
    %v3067 = vmax.bf16 %v2939, 0
    %v3068 = vmax.bf16 %v2940, 0
    %v3069 = vmax.bf16 %v2941, 0
    %v3070 = vmax.bf16 %v2942, 0
    %v3071 = vmax.bf16 %v2943, 0
    %v3072 = vmax.bf16 %v2944, 0
    %v3073 = vmax.bf16 %v2945, 0
    %v3074 = vmax.bf16 %v2946, 0
    %v3075 = vmax.bf16 %v2947, 0
    %v3076 = vmax.bf16 %v2948, 0
    %v3077 = vmax.bf16 %v2949, 0
    %v3078 = vmax.bf16 %v2950, 0
    %v3079 = vmax.bf16 %v2951, 0
    %v3080 = vmax.bf16 %v2952, 0
    %v3081 = vmax.bf16 %v2953, 0
    %v3082 = vmax.bf16 %v2954, 0
    %v3083 = vmax.bf16 %v2955, 0
    %v3084 = vmax.bf16 %v2956, 0
    %v3085 = vmax.bf16 %v2957, 0
    %v3086 = vmax.bf16 %v2958, 0
    %v3087 = vmax.bf16 %v2959, 0
    %v3088 = vmax.bf16 %v2960, 0
    %p3090 = scmp.ne.f32.partialorder %s1933, %s1933
    %s3091 = sshrl.u32 %s1933, 16
    %s3092 = sand.u32 %s3091, 1
    %s3093 = sadd.s32 32767, %s3092
    %s3094 = sadd.s32 %s1933, %s3093
    %s3095 = sand.u32 %s3094, 4294901760
    %s3096 = scalar_select %p3090, 2143289344, %s3095
    %s3098 = sshrl.u32 %s3096, 16
    %v3099 = vmul.bf16 %v2961, %v2961
    %v3100 = vmul.bf16 %v2962, %v2962
    %v3101 = vmul.bf16 %v2963, %v2963
    %v3102 = vmul.bf16 %v2964, %v2964
    %v3103 = vmul.bf16 %v2965, %v2965
    %v3104 = vmul.bf16 %v2966, %v2966
    %v3105 = vmul.bf16 %v2967, %v2967
    %v3106 = vmul.bf16 %v2968, %v2968
    %v3107 = vmul.bf16 %v2969, %v2969
    %v3108 = vmul.bf16 %v2970, %v2970
    %v3109 = vmul.bf16 %v2971, %v2971
    %v3110 = vmul.bf16 %v2972, %v2972
    %v3111 = vmul.bf16 %v2973, %v2973
    %v3112 = vmul.bf16 %v2974, %v2974
    %v3113 = vmul.bf16 %v2975, %v2975
    %v3114 = vmul.bf16 %v2976, %v2976
    %v3115 = vmul.bf16 %v2977, %v2977
    %v3116 = vmul.bf16 %v2978, %v2978
    %v3117 = vmul.bf16 %v2979, %v2979
    %v3118 = vmul.bf16 %v2980, %v2980
    %v3119 = vmul.bf16 %v2981, %v2981
    %v3120 = vmul.bf16 %v2982, %v2982
    %v3121 = vmul.bf16 %v2983, %v2983
    %v3122 = vmul.bf16 %v2984, %v2984
    %v3123 = vmul.bf16 %v2985, %v2985
    %v3124 = vmul.bf16 %v2986, %v2986
    %v3125 = vmul.bf16 %v2987, %v2987
    %v3126 = vmul.bf16 %v2988, %v2988
    %v3127 = vmul.bf16 %v2989, %v2989
    %v3128 = vmul.bf16 %v2990, %v2990
    %v3129 = vmul.bf16 %v2991, %v2991
    %v3130 = vmul.bf16 %v2992, %v2992
    %v3131 = vmul.bf16 %v2993, %v2993
    %v3132 = vmul.bf16 %v2994, %v2994
    %v3133 = vmul.bf16 %v2995, %v2995
    %v3134 = vmul.bf16 %v2996, %v2996
    %v3135 = vmul.bf16 %v2997, %v2997
    %v3136 = vmul.bf16 %v2998, %v2998
    %v3137 = vmul.bf16 %v2999, %v2999
    %v3138 = vmul.bf16 %v3000, %v3000
    %v3139 = vmul.bf16 %v3001, %v3001
    %v3140 = vmul.bf16 %v3002, %v3002
    %v3141 = vmul.bf16 %v3003, %v3003
    %v3142 = vmul.bf16 %v3004, %v3004
    %v3143 = vmul.bf16 %v3005, %v3005
    %v3144 = vmul.bf16 %v3006, %v3006
    %v3145 = vmul.bf16 %v3007, %v3007
    %v3146 = vmul.bf16 %v3008, %v3008
    %v3147 = vmul.bf16 %v3009, %v3009
    %v3148 = vmul.bf16 %v3010, %v3010
    %v3149 = vmul.bf16 %v3011, %v3011
    %v3150 = vmul.bf16 %v3012, %v3012
    %v3151 = vmul.bf16 %v3013, %v3013
    %v3152 = vmul.bf16 %v3014, %v3014
    %v3153 = vmul.bf16 %v3015, %v3015
    %v3154 = vmul.bf16 %v3016, %v3016
    %v3155 = vmul.bf16 %v3017, %v3017
    %v3156 = vmul.bf16 %v3018, %v3018
    %v3157 = vmul.bf16 %v3019, %v3019
    %v3158 = vmul.bf16 %v3020, %v3020
    %v3159 = vmul.bf16 %v3021, %v3021
    %v3160 = vmul.bf16 %v3022, %v3022
    %v3161 = vmul.bf16 %v3023, %v3023
    %v3162 = vmul.bf16 %v3024, %v3024
    %v3163 = vmul.bf16 %v3025, %v3025
    %v3164 = vmul.bf16 %v3026, %v3026
    %v3165 = vmul.bf16 %v3027, %v3027
    %v3166 = vmul.bf16 %v3028, %v3028
    %v3167 = vmul.bf16 %v3029, %v3029
    %v3168 = vmul.bf16 %v3030, %v3030
    %v3169 = vmul.bf16 %v3031, %v3031
    %v3170 = vmul.bf16 %v3032, %v3032
    %v3171 = vmul.bf16 %v3033, %v3033
    %v3172 = vmul.bf16 %v3034, %v3034
    %v3173 = vmul.bf16 %v3035, %v3035
    %v3174 = vmul.bf16 %v3036, %v3036
    %v3175 = vmul.bf16 %v3037, %v3037
    %v3176 = vmul.bf16 %v3038, %v3038
    %v3177 = vmul.bf16 %v3039, %v3039
    %v3178 = vmul.bf16 %v3040, %v3040
    %v3179 = vmul.bf16 %v3041, %v3041
    %v3180 = vmul.bf16 %v3042, %v3042
    %v3181 = vmul.bf16 %v3043, %v3043
    %v3182 = vmul.bf16 %v3044, %v3044
    %v3183 = vmul.bf16 %v3045, %v3045
    %v3184 = vmul.bf16 %v3046, %v3046
    %v3185 = vmul.bf16 %v3047, %v3047
    %v3186 = vmul.bf16 %v3048, %v3048
    %v3187 = vmul.bf16 %v3049, %v3049
    %v3188 = vmul.bf16 %v3050, %v3050
    %v3189 = vmul.bf16 %v3051, %v3051
    %v3190 = vmul.bf16 %v3052, %v3052
    %v3191 = vmul.bf16 %v3053, %v3053
    %v3192 = vmul.bf16 %v3054, %v3054
    %v3193 = vmul.bf16 %v3055, %v3055
    %v3194 = vmul.bf16 %v3056, %v3056
    %v3195 = vmul.bf16 %v3057, %v3057
    %v3196 = vmul.bf16 %v3058, %v3058
    %v3197 = vmul.bf16 %v3059, %v3059
    %v3198 = vmul.bf16 %v3060, %v3060
    %v3199 = vmul.bf16 %v3061, %v3061
    %v3200 = vmul.bf16 %v3062, %v3062
    %v3201 = vmul.bf16 %v3063, %v3063
    %v3202 = vmul.bf16 %v3064, %v3064
    %v3203 = vmul.bf16 %v3065, %v3065
    %v3204 = vmul.bf16 %v3066, %v3066
    %v3205 = vmul.bf16 %v3067, %v3067
    %v3206 = vmul.bf16 %v3068, %v3068
    %v3207 = vmul.bf16 %v3069, %v3069
    %v3208 = vmul.bf16 %v3070, %v3070
    %v3209 = vmul.bf16 %v3071, %v3071
    %v3210 = vmul.bf16 %v3072, %v3072
    %v3211 = vmul.bf16 %v3073, %v3073
    %v3212 = vmul.bf16 %v3074, %v3074
    %v3213 = vmul.bf16 %v3075, %v3075
    %v3214 = vmul.bf16 %v3076, %v3076
    %v3215 = vmul.bf16 %v3077, %v3077
    %v3216 = vmul.bf16 %v3078, %v3078
    %v3217 = vmul.bf16 %v3079, %v3079
    %v3218 = vmul.bf16 %v3080, %v3080
    %v3219 = vmul.bf16 %v3081, %v3081
    %v3220 = vmul.bf16 %v3082, %v3082
    %v3221 = vmul.bf16 %v3083, %v3083
    %v3222 = vmul.bf16 %v3084, %v3084
    %v3223 = vmul.bf16 %v3085, %v3085
    %v3224 = vmul.bf16 %v3086, %v3086
    %v3225 = vmul.bf16 %v3087, %v3087
    %v3226 = vmul.bf16 %v3088, %v3088
    %s3227 = sshll.u32 %s3098, 16
    %s3228 = sor.u32 %s3098, %s3227
    %v3229 = vstv %s3228
    %v3231 = vmul.bf16 %v3229, %v3099
    %v3232 = vmul.bf16 %v3229, %v3100
    %v3233 = vmul.bf16 %v3229, %v3101
    %v3234 = vmul.bf16 %v3229, %v3102
    %v3235 = vmul.bf16 %v3229, %v3103
    %v3236 = vmul.bf16 %v3229, %v3104
    %v3237 = vmul.bf16 %v3229, %v3105
    %v3238 = vmul.bf16 %v3229, %v3106
    %v3239 = vmul.bf16 %v3229, %v3107
    %v3240 = vmul.bf16 %v3229, %v3108
    %v3241 = vmul.bf16 %v3229, %v3109
    %v3242 = vmul.bf16 %v3229, %v3110
    %v3243 = vmul.bf16 %v3229, %v3111
    %v3244 = vmul.bf16 %v3229, %v3112
    %v3245 = vmul.bf16 %v3229, %v3113
    %v3246 = vmul.bf16 %v3229, %v3114
    %v3247 = vmul.bf16 %v3229, %v3115
    %v3248 = vmul.bf16 %v3229, %v3116
    %v3249 = vmul.bf16 %v3229, %v3117
    %v3250 = vmul.bf16 %v3229, %v3118
    %v3251 = vmul.bf16 %v3229, %v3119
    %v3252 = vmul.bf16 %v3229, %v3120
    %v3253 = vmul.bf16 %v3229, %v3121
    %v3254 = vmul.bf16 %v3229, %v3122
    %v3255 = vmul.bf16 %v3229, %v3123
    %v3256 = vmul.bf16 %v3229, %v3124
    %v3257 = vmul.bf16 %v3229, %v3125
    %v3258 = vmul.bf16 %v3229, %v3126
    %v3259 = vmul.bf16 %v3229, %v3127
    %v3260 = vmul.bf16 %v3229, %v3128
    %v3261 = vmul.bf16 %v3229, %v3129
    %v3262 = vmul.bf16 %v3229, %v3130
    %v3263 = vmul.bf16 %v3229, %v3131
    %v3264 = vmul.bf16 %v3229, %v3132
    %v3265 = vmul.bf16 %v3229, %v3133
    %v3266 = vmul.bf16 %v3229, %v3134
    %v3267 = vmul.bf16 %v3229, %v3135
    %v3268 = vmul.bf16 %v3229, %v3136
    %v3269 = vmul.bf16 %v3229, %v3137
    %v3270 = vmul.bf16 %v3229, %v3138
    %v3271 = vmul.bf16 %v3229, %v3139
    %v3272 = vmul.bf16 %v3229, %v3140
    %v3273 = vmul.bf16 %v3229, %v3141
    %v3274 = vmul.bf16 %v3229, %v3142
    %v3275 = vmul.bf16 %v3229, %v3143
    %v3276 = vmul.bf16 %v3229, %v3144
    %v3277 = vmul.bf16 %v3229, %v3145
    %v3278 = vmul.bf16 %v3229, %v3146
    %v3279 = vmul.bf16 %v3229, %v3147
    %v3280 = vmul.bf16 %v3229, %v3148
    %v3281 = vmul.bf16 %v3229, %v3149
    %v3282 = vmul.bf16 %v3229, %v3150
    %v3283 = vmul.bf16 %v3229, %v3151
    %v3284 = vmul.bf16 %v3229, %v3152
    %v3285 = vmul.bf16 %v3229, %v3153
    %v3286 = vmul.bf16 %v3229, %v3154
    %v3287 = vmul.bf16 %v3229, %v3155
    %v3288 = vmul.bf16 %v3229, %v3156
    %v3289 = vmul.bf16 %v3229, %v3157
    %v3290 = vmul.bf16 %v3229, %v3158
    %v3291 = vmul.bf16 %v3229, %v3159
    %v3292 = vmul.bf16 %v3229, %v3160
    %v3293 = vmul.bf16 %v3229, %v3161
    %v3294 = vmul.bf16 %v3229, %v3162
    %v3295 = vmul.bf16 %v3229, %v3163
    %v3296 = vmul.bf16 %v3229, %v3164
    %v3297 = vmul.bf16 %v3229, %v3165
    %v3298 = vmul.bf16 %v3229, %v3166
    %v3299 = vmul.bf16 %v3229, %v3167
    %v3300 = vmul.bf16 %v3229, %v3168
    %v3301 = vmul.bf16 %v3229, %v3169
    %v3302 = vmul.bf16 %v3229, %v3170
    %v3303 = vmul.bf16 %v3229, %v3171
    %v3304 = vmul.bf16 %v3229, %v3172
    %v3305 = vmul.bf16 %v3229, %v3173
    %v3306 = vmul.bf16 %v3229, %v3174
    %v3307 = vmul.bf16 %v3229, %v3175
    %v3308 = vmul.bf16 %v3229, %v3176
    %v3309 = vmul.bf16 %v3229, %v3177
    %v3310 = vmul.bf16 %v3229, %v3178
    %v3311 = vmul.bf16 %v3229, %v3179
    %v3312 = vmul.bf16 %v3229, %v3180
    %v3313 = vmul.bf16 %v3229, %v3181
    %v3314 = vmul.bf16 %v3229, %v3182
    %v3315 = vmul.bf16 %v3229, %v3183
    %v3316 = vmul.bf16 %v3229, %v3184
    %v3317 = vmul.bf16 %v3229, %v3185
    %v3318 = vmul.bf16 %v3229, %v3186
    %v3319 = vmul.bf16 %v3229, %v3187
    %v3320 = vmul.bf16 %v3229, %v3188
    %v3321 = vmul.bf16 %v3229, %v3189
    %v3322 = vmul.bf16 %v3229, %v3190
    %v3323 = vmul.bf16 %v3229, %v3191
    %v3324 = vmul.bf16 %v3229, %v3192
    %v3325 = vmul.bf16 %v3229, %v3193
    %v3326 = vmul.bf16 %v3229, %v3194
    %v3327 = vmul.bf16 %v3229, %v3195
    %v3328 = vmul.bf16 %v3229, %v3196
    %v3329 = vmul.bf16 %v3229, %v3197
    %v3330 = vmul.bf16 %v3229, %v3198
    %v3331 = vmul.bf16 %v3229, %v3199
    %v3332 = vmul.bf16 %v3229, %v3200
    %v3333 = vmul.bf16 %v3229, %v3201
    %v3334 = vmul.bf16 %v3229, %v3202
    %v3335 = vmul.bf16 %v3229, %v3203
    %v3336 = vmul.bf16 %v3229, %v3204
    %v3337 = vmul.bf16 %v3229, %v3205
    %v3338 = vmul.bf16 %v3229, %v3206
    %v3339 = vmul.bf16 %v3229, %v3207
    %v3340 = vmul.bf16 %v3229, %v3208
    %v3341 = vmul.bf16 %v3229, %v3209
    %v3342 = vmul.bf16 %v3229, %v3210
    %v3343 = vmul.bf16 %v3229, %v3211
    %v3344 = vmul.bf16 %v3229, %v3212
    %v3345 = vmul.bf16 %v3229, %v3213
    %v3346 = vmul.bf16 %v3229, %v3214
    %v3347 = vmul.bf16 %v3229, %v3215
    %v3348 = vmul.bf16 %v3229, %v3216
    %v3349 = vmul.bf16 %v3229, %v3217
    %v3350 = vmul.bf16 %v3229, %v3218
    %v3351 = vmul.bf16 %v3229, %v3219
    %v3352 = vmul.bf16 %v3229, %v3220
    %v3353 = vmul.bf16 %v3229, %v3221
    %v3354 = vmul.bf16 %v3229, %v3222
    %v3355 = vmul.bf16 %v3229, %v3223
    %v3356 = vmul.bf16 %v3229, %v3224
    %v3357 = vmul.bf16 %v3229, %v3225
    %v3358 = vmul.bf16 %v3229, %v3226
    %p3360 = scmp.ne.f32.partialorder %s1934, %s1934
    %s3361 = sshrl.u32 %s1934, 16
    %s3362 = sand.u32 %s3361, 1
    %s3363 = sadd.s32 32767, %s3362
    %s3364 = sadd.s32 %s1934, %s3363
    %s3365 = sand.u32 %s3364, 4294901760
    %s3366 = scalar_select %p3360, 2143289344, %s3365
    %s3368 = sshrl.u32 %s3366, 16
    %s3369 = sshll.u32 %s3368, 16
    %s3370 = sor.u32 %s3368, %s3369
    %v3371 = vstv %s3370
    %v3373 = vadd.bf16 %v3231, %v3371
    %v3374 = vadd.bf16 %v3232, %v3371
    %v3375 = vadd.bf16 %v3233, %v3371
    %v3376 = vadd.bf16 %v3234, %v3371
    %v3377 = vadd.bf16 %v3235, %v3371
    %v3378 = vadd.bf16 %v3236, %v3371
    %v3379 = vadd.bf16 %v3237, %v3371
    %v3380 = vadd.bf16 %v3238, %v3371
    %v3381 = vadd.bf16 %v3239, %v3371
    %v3382 = vadd.bf16 %v3240, %v3371
    %v3383 = vadd.bf16 %v3241, %v3371
    %v3384 = vadd.bf16 %v3242, %v3371
    %v3385 = vadd.bf16 %v3243, %v3371
    %v3386 = vadd.bf16 %v3244, %v3371
    %v3387 = vadd.bf16 %v3245, %v3371
    %v3388 = vadd.bf16 %v3246, %v3371
    %v3389 = vadd.bf16 %v3247, %v3371
    %v3390 = vadd.bf16 %v3248, %v3371
    %v3391 = vadd.bf16 %v3249, %v3371
    %v3392 = vadd.bf16 %v3250, %v3371
    %v3393 = vadd.bf16 %v3251, %v3371
    %v3394 = vadd.bf16 %v3252, %v3371
    %v3395 = vadd.bf16 %v3253, %v3371
    %v3396 = vadd.bf16 %v3254, %v3371
    %v3397 = vadd.bf16 %v3255, %v3371
    %v3398 = vadd.bf16 %v3256, %v3371
    %v3399 = vadd.bf16 %v3257, %v3371
    %v3400 = vadd.bf16 %v3258, %v3371
    %v3401 = vadd.bf16 %v3259, %v3371
    %v3402 = vadd.bf16 %v3260, %v3371
    %v3403 = vadd.bf16 %v3261, %v3371
    %v3404 = vadd.bf16 %v3262, %v3371
    %v3405 = vadd.bf16 %v3263, %v3371
    %v3406 = vadd.bf16 %v3264, %v3371
    %v3407 = vadd.bf16 %v3265, %v3371
    %v3408 = vadd.bf16 %v3266, %v3371
    %v3409 = vadd.bf16 %v3267, %v3371
    %v3410 = vadd.bf16 %v3268, %v3371
    %v3411 = vadd.bf16 %v3269, %v3371
    %v3412 = vadd.bf16 %v3270, %v3371
    %v3413 = vadd.bf16 %v3271, %v3371
    %v3414 = vadd.bf16 %v3272, %v3371
    %v3415 = vadd.bf16 %v3273, %v3371
    %v3416 = vadd.bf16 %v3274, %v3371
    %v3417 = vadd.bf16 %v3275, %v3371
    %v3418 = vadd.bf16 %v3276, %v3371
    %v3419 = vadd.bf16 %v3277, %v3371
    %v3420 = vadd.bf16 %v3278, %v3371
    %v3421 = vadd.bf16 %v3279, %v3371
    %v3422 = vadd.bf16 %v3280, %v3371
    %v3423 = vadd.bf16 %v3281, %v3371
    %v3424 = vadd.bf16 %v3282, %v3371
    %v3425 = vadd.bf16 %v3283, %v3371
    %v3426 = vadd.bf16 %v3284, %v3371
    %v3427 = vadd.bf16 %v3285, %v3371
    %v3428 = vadd.bf16 %v3286, %v3371
    %v3429 = vadd.bf16 %v3287, %v3371
    %v3430 = vadd.bf16 %v3288, %v3371
    %v3431 = vadd.bf16 %v3289, %v3371
    %v3432 = vadd.bf16 %v3290, %v3371
    %v3433 = vadd.bf16 %v3291, %v3371
    %v3434 = vadd.bf16 %v3292, %v3371
    %v3435 = vadd.bf16 %v3293, %v3371
    %v3436 = vadd.bf16 %v3294, %v3371
    %v3437 = vadd.bf16 %v3295, %v3371
    %v3438 = vadd.bf16 %v3296, %v3371
    %v3439 = vadd.bf16 %v3297, %v3371
    %v3440 = vadd.bf16 %v3298, %v3371
    %v3441 = vadd.bf16 %v3299, %v3371
    %v3442 = vadd.bf16 %v3300, %v3371
    %v3443 = vadd.bf16 %v3301, %v3371
    %v3444 = vadd.bf16 %v3302, %v3371
    %v3445 = vadd.bf16 %v3303, %v3371
    %v3446 = vadd.bf16 %v3304, %v3371
    %v3447 = vadd.bf16 %v3305, %v3371
    %v3448 = vadd.bf16 %v3306, %v3371
    %v3449 = vadd.bf16 %v3307, %v3371
    %v3450 = vadd.bf16 %v3308, %v3371
    %v3451 = vadd.bf16 %v3309, %v3371
    %v3452 = vadd.bf16 %v3310, %v3371
    %v3453 = vadd.bf16 %v3311, %v3371
    %v3454 = vadd.bf16 %v3312, %v3371
    %v3455 = vadd.bf16 %v3313, %v3371
    %v3456 = vadd.bf16 %v3314, %v3371
    %v3457 = vadd.bf16 %v3315, %v3371
    %v3458 = vadd.bf16 %v3316, %v3371
    %v3459 = vadd.bf16 %v3317, %v3371
    %v3460 = vadd.bf16 %v3318, %v3371
    %v3461 = vadd.bf16 %v3319, %v3371
    %v3462 = vadd.bf16 %v3320, %v3371
    %v3463 = vadd.bf16 %v3321, %v3371
    %v3464 = vadd.bf16 %v3322, %v3371
    %v3465 = vadd.bf16 %v3323, %v3371
    %v3466 = vadd.bf16 %v3324, %v3371
    %v3467 = vadd.bf16 %v3325, %v3371
    %v3468 = vadd.bf16 %v3326, %v3371
    %v3469 = vadd.bf16 %v3327, %v3371
    %v3470 = vadd.bf16 %v3328, %v3371
    %v3471 = vadd.bf16 %v3329, %v3371
    %v3472 = vadd.bf16 %v3330, %v3371
    %v3473 = vadd.bf16 %v3331, %v3371
    %v3474 = vadd.bf16 %v3332, %v3371
    %v3475 = vadd.bf16 %v3333, %v3371
    %v3476 = vadd.bf16 %v3334, %v3371
    %v3477 = vadd.bf16 %v3335, %v3371
    %v3478 = vadd.bf16 %v3336, %v3371
    %v3479 = vadd.bf16 %v3337, %v3371
    %v3480 = vadd.bf16 %v3338, %v3371
    %v3481 = vadd.bf16 %v3339, %v3371
    %v3482 = vadd.bf16 %v3340, %v3371
    %v3483 = vadd.bf16 %v3341, %v3371
    %v3484 = vadd.bf16 %v3342, %v3371
    %v3485 = vadd.bf16 %v3343, %v3371
    %v3486 = vadd.bf16 %v3344, %v3371
    %v3487 = vadd.bf16 %v3345, %v3371
    %v3488 = vadd.bf16 %v3346, %v3371
    %v3489 = vadd.bf16 %v3347, %v3371
    %v3490 = vadd.bf16 %v3348, %v3371
    %v3491 = vadd.bf16 %v3349, %v3371
    %v3492 = vadd.bf16 %v3350, %v3371
    %v3493 = vadd.bf16 %v3351, %v3371
    %v3494 = vadd.bf16 %v3352, %v3371
    %v3495 = vadd.bf16 %v3353, %v3371
    %v3496 = vadd.bf16 %v3354, %v3371
    %v3497 = vadd.bf16 %v3355, %v3371
    %v3498 = vadd.bf16 %v3356, %v3371
    %v3499 = vadd.bf16 %v3357, %v3371
    %v3500 = vadd.bf16 %v3358, %v3371
    %v3501 = vld [vmem:[#allocation9] sm:$0xf]
    %v3502 = vld [vmem:[#allocation9 + $0x4] sm:$0xf]
    %v3503 = vld [vmem:[#allocation9 + $0x8] sm:$0xf]
    %v3504 = vld [vmem:[#allocation9 + $0xc] sm:$0xf]
    %v3505 = vld [vmem:[#allocation9 + $0x10] sm:$0xf]
    %v3506 = vld [vmem:[#allocation9 + $0x14] sm:$0xf]
    %v3507 = vld [vmem:[#allocation9 + $0x18] sm:$0xf]
    %v3508 = vld [vmem:[#allocation9 + $0x1c] sm:$0xf]
    %v3509 = vld [vmem:[#allocation9 + $0x20] sm:$0xf]
    %v3510 = vld [vmem:[#allocation9 + $0x24] sm:$0xf]
    %v3511 = vld [vmem:[#allocation9 + $0x28] sm:$0xf]
    %v3512 = vld [vmem:[#allocation9 + $0x2c] sm:$0xf]
    %v3513 = vld [vmem:[#allocation9 + $0x30] sm:$0xf]
    %v3514 = vld [vmem:[#allocation9 + $0x34] sm:$0xf]
    %v3515 = vld [vmem:[#allocation9 + $0x38] sm:$0xf]
    %v3516 = vld [vmem:[#allocation9 + $0x3c] sm:$0xf]
    %v3517 = vld [vmem:[#allocation9 + $0x40] sm:$0xf]
    %v3518 = vld [vmem:[#allocation9 + $0x44] sm:$0xf]
    %v3519 = vld [vmem:[#allocation9 + $0x48] sm:$0xf]
    %v3520 = vld [vmem:[#allocation9 + $0x4c] sm:$0xf]
    %v3521 = vld [vmem:[#allocation9 + $0x50] sm:$0xf]
    %v3522 = vld [vmem:[#allocation9 + $0x54] sm:$0xf]
    %v3523 = vld [vmem:[#allocation9 + $0x58] sm:$0xf]
    %v3524 = vld [vmem:[#allocation9 + $0x5c] sm:$0xf]
    %v3525 = vld [vmem:[#allocation9 + $0x60] sm:$0xf]
    %v3526 = vld [vmem:[#allocation9 + $0x64] sm:$0xf]
    %v3527 = vld [vmem:[#allocation9 + $0x68] sm:$0xf]
    %v3528 = vld [vmem:[#allocation9 + $0x6c] sm:$0xf]
    %v3529 = vld [vmem:[#allocation9 + $0x70] sm:$0xf]
    %v3530 = vld [vmem:[#allocation9 + $0x74] sm:$0xf]
    %v3531 = vld [vmem:[#allocation9 + $0x78] sm:$0xf]
    %v3532 = vld [vmem:[#allocation9 + $0x7c] sm:$0xf]
    %v3533 = vld [vmem:[#allocation9 + $0x80] sm:$0xf]
    %v3534 = vld [vmem:[#allocation9 + $0x84] sm:$0xf]
    %v3535 = vld [vmem:[#allocation9 + $0x88] sm:$0xf]
    %v3536 = vld [vmem:[#allocation9 + $0x8c] sm:$0xf]
    %v3537 = vld [vmem:[#allocation9 + $0x90] sm:$0xf]
    %v3538 = vld [vmem:[#allocation9 + $0x94] sm:$0xf]
    %v3539 = vld [vmem:[#allocation9 + $0x98] sm:$0xf]
    %v3540 = vld [vmem:[#allocation9 + $0x9c] sm:$0xf]
    %v3541 = vld [vmem:[#allocation9 + $0xa0] sm:$0xf]
    %v3542 = vld [vmem:[#allocation9 + $0xa4] sm:$0xf]
    %v3543 = vld [vmem:[#allocation9 + $0xa8] sm:$0xf]
    %v3544 = vld [vmem:[#allocation9 + $0xac] sm:$0xf]
    %v3545 = vld [vmem:[#allocation9 + $0xb0] sm:$0xf]
    %v3546 = vld [vmem:[#allocation9 + $0xb4] sm:$0xf]
    %v3547 = vld [vmem:[#allocation9 + $0xb8] sm:$0xf]
    %v3548 = vld [vmem:[#allocation9 + $0xbc] sm:$0xf]
    %v3549 = vld [vmem:[#allocation9 + $0xc0] sm:$0xf]
    %v3550 = vld [vmem:[#allocation9 + $0xc4] sm:$0xf]
    %v3551 = vld [vmem:[#allocation9 + $0xc8] sm:$0xf]
    %v3552 = vld [vmem:[#allocation9 + $0xcc] sm:$0xf]
    %v3553 = vld [vmem:[#allocation9 + $0xd0] sm:$0xf]
    %v3554 = vld [vmem:[#allocation9 + $0xd4] sm:$0xf]
    %v3555 = vld [vmem:[#allocation9 + $0xd8] sm:$0xf]
    %v3556 = vld [vmem:[#allocation9 + $0xdc] sm:$0xf]
    %v3557 = vld [vmem:[#allocation9 + $0xe0] sm:$0xf]
    %v3558 = vld [vmem:[#allocation9 + $0xe4] sm:$0xf]
    %v3559 = vld [vmem:[#allocation9 + $0xe8] sm:$0xf]
    %v3560 = vld [vmem:[#allocation9 + $0xec] sm:$0xf]
    %v3561 = vld [vmem:[#allocation9 + $0xf0] sm:$0xf]
    %v3562 = vld [vmem:[#allocation9 + $0xf4] sm:$0xf]
    %v3563 = vld [vmem:[#allocation9 + $0xf8] sm:$0xf]
    %v3564 = vld [vmem:[#allocation9 + $0xfc] sm:$0xf]
    %v3629 = vunpack.c.l.b16 %v3501
    %v3630 = vunpack.c.l.b16 %v3502
    %v3631 = vunpack.c.l.b16 %v3503
    %v3632 = vunpack.c.l.b16 %v3504
    %v3633 = vunpack.c.l.b16 %v3505
    %v3634 = vunpack.c.l.b16 %v3506
    %v3635 = vunpack.c.l.b16 %v3507
    %v3636 = vunpack.c.l.b16 %v3508
    %v3637 = vunpack.c.l.b16 %v3509
    %v3638 = vunpack.c.l.b16 %v3510
    %v3639 = vunpack.c.l.b16 %v3511
    %v3640 = vunpack.c.l.b16 %v3512
    %v3641 = vunpack.c.l.b16 %v3513
    %v3642 = vunpack.c.l.b16 %v3514
    %v3643 = vunpack.c.l.b16 %v3515
    %v3644 = vunpack.c.l.b16 %v3516
    %v3645 = vunpack.c.l.b16 %v3517
    %v3646 = vunpack.c.l.b16 %v3518
    %v3647 = vunpack.c.l.b16 %v3519
    %v3648 = vunpack.c.l.b16 %v3520
    %v3649 = vunpack.c.l.b16 %v3521
    %v3650 = vunpack.c.l.b16 %v3522
    %v3651 = vunpack.c.l.b16 %v3523
    %v3652 = vunpack.c.l.b16 %v3524
    %v3653 = vunpack.c.l.b16 %v3525
    %v3654 = vunpack.c.l.b16 %v3526
    %v3655 = vunpack.c.l.b16 %v3527
    %v3656 = vunpack.c.l.b16 %v3528
    %v3657 = vunpack.c.l.b16 %v3529
    %v3658 = vunpack.c.l.b16 %v3530
    %v3659 = vunpack.c.l.b16 %v3531
    %v3660 = vunpack.c.l.b16 %v3532
    %v3661 = vunpack.c.l.b16 %v3533
    %v3662 = vunpack.c.l.b16 %v3534
    %v3663 = vunpack.c.l.b16 %v3535
    %v3664 = vunpack.c.l.b16 %v3536
    %v3665 = vunpack.c.l.b16 %v3537
    %v3666 = vunpack.c.l.b16 %v3538
    %v3667 = vunpack.c.l.b16 %v3539
    %v3668 = vunpack.c.l.b16 %v3540
    %v3669 = vunpack.c.l.b16 %v3541
    %v3670 = vunpack.c.l.b16 %v3542
    %v3671 = vunpack.c.l.b16 %v3543
    %v3672 = vunpack.c.l.b16 %v3544
    %v3673 = vunpack.c.l.b16 %v3545
    %v3674 = vunpack.c.l.b16 %v3546
    %v3675 = vunpack.c.l.b16 %v3547
    %v3676 = vunpack.c.l.b16 %v3548
    %v3677 = vunpack.c.l.b16 %v3549
    %v3678 = vunpack.c.l.b16 %v3550
    %v3679 = vunpack.c.l.b16 %v3551
    %v3680 = vunpack.c.l.b16 %v3552
    %v3681 = vunpack.c.l.b16 %v3553
    %v3682 = vunpack.c.l.b16 %v3554
    %v3683 = vunpack.c.l.b16 %v3555
    %v3684 = vunpack.c.l.b16 %v3556
    %v3685 = vunpack.c.l.b16 %v3557
    %v3686 = vunpack.c.l.b16 %v3558
    %v3687 = vunpack.c.l.b16 %v3559
    %v3688 = vunpack.c.l.b16 %v3560
    %v3689 = vunpack.c.l.b16 %v3561
    %v3690 = vunpack.c.l.b16 %v3562
    %v3691 = vunpack.c.l.b16 %v3563
    %v3692 = vunpack.c.l.b16 %v3564
    %v3693 = vpack.c.b16 %v3630, %v3629
    %v3694 = vpack.c.b16 %v3632, %v3631
    %v3695 = vpack.c.b16 %v3634, %v3633
    %v3696 = vpack.c.b16 %v3636, %v3635
    %v3697 = vpack.c.b16 %v3638, %v3637
    %v3698 = vpack.c.b16 %v3640, %v3639
    %v3699 = vpack.c.b16 %v3642, %v3641
    %v3700 = vpack.c.b16 %v3644, %v3643
    %v3701 = vpack.c.b16 %v3646, %v3645
    %v3702 = vpack.c.b16 %v3648, %v3647
    %v3703 = vpack.c.b16 %v3650, %v3649
    %v3704 = vpack.c.b16 %v3652, %v3651
    %v3705 = vpack.c.b16 %v3654, %v3653
    %v3706 = vpack.c.b16 %v3656, %v3655
    %v3707 = vpack.c.b16 %v3658, %v3657
    %v3708 = vpack.c.b16 %v3660, %v3659
    %v3709 = vpack.c.b16 %v3662, %v3661
    %v3710 = vpack.c.b16 %v3664, %v3663
    %v3711 = vpack.c.b16 %v3666, %v3665
    %v3712 = vpack.c.b16 %v3668, %v3667
    %v3713 = vpack.c.b16 %v3670, %v3669
    %v3714 = vpack.c.b16 %v3672, %v3671
    %v3715 = vpack.c.b16 %v3674, %v3673
    %v3716 = vpack.c.b16 %v3676, %v3675
    %v3717 = vpack.c.b16 %v3678, %v3677
    %v3718 = vpack.c.b16 %v3680, %v3679
    %v3719 = vpack.c.b16 %v3682, %v3681
    %v3720 = vpack.c.b16 %v3684, %v3683
    %v3721 = vpack.c.b16 %v3686, %v3685
    %v3722 = vpack.c.b16 %v3688, %v3687
    %v3723 = vpack.c.b16 %v3690, %v3689
    %v3724 = vpack.c.b16 %v3692, %v3691
    %3757 = vmatprep.subr.bf16.mxu0 0
    %3758 = vmatpush1.bf16.msra.mxu0 %v3700
    %3759 = vmatprep.subr.bf16.mxu0 0
    %3760 = vmatpush1.bf16.msra.mxu0 %v3699
    %3761 = vmatprep.subr.bf16.mxu0 0
    %3762 = vmatpush1.bf16.msra.mxu0 %v3698
    %3763 = vmatprep.subr.bf16.mxu0 0
    %3764 = vmatpush1.bf16.msra.mxu0 %v3697
    %3765 = vmatprep.subr.bf16.mxu0 0
    %3766 = vmatpush1.bf16.msra.mxu0 %v3696
    %3767 = vmatprep.subr.bf16.mxu0 0
    %3768 = vmatpush1.bf16.msra.mxu0 %v3695
    %3769 = vmatprep.subr.bf16.mxu0 0
    %3770 = vmatpush1.bf16.msra.mxu0 %v3694
    %3771 = vmatprep.subr.bf16.mxu0 0
    %3772 = vmatpush1.bf16.msra.mxu0 %v3693
    %3773 = vmatprep.subr.bf16.mxu0 0
    %3774 = vmatpush2.bf16.msra.mxu0 %v3708
    %3775 = vmatprep.subr.bf16.mxu0 0
    %3776 = vmatpush2.bf16.msra.mxu0 %v3707
    %3777 = vmatprep.subr.bf16.mxu0 0
    %3778 = vmatpush2.bf16.msra.mxu0 %v3706
    %3779 = vmatprep.subr.bf16.mxu0 0
    %3780 = vmatpush2.bf16.msra.mxu0 %v3705
    %3781 = vmatprep.subr.bf16.mxu0 0
    %3782 = vmatpush2.bf16.msra.mxu0 %v3704
    %3783 = vmatprep.subr.bf16.mxu0 0
    %3784 = vmatpush2.bf16.msra.mxu0 %v3703
    %3785 = vmatprep.subr.bf16.mxu0 0
    %3786 = vmatpush2.bf16.msra.mxu0 %v3702
    %3787 = vmatprep.subr.bf16.mxu0 0
    %3788 = vmatpush2.bf16.msra.mxu0 %v3701
    %3789 = vmatprep.mubr.bf16.mxu0 %v3374
    %3790 = vmatmul.mubr.bf16.gmra.mxu0 %v3373
    %v3791 = vpop.f32.mrf.mxu0
    %v3792 = vadd.f32 0.0, %v3791
    %v3793 = vpop.f32.mrf.mxu0
    %v3794 = vpop.f32.mrf.mxu0
    %v3795 = vadd.f32 0.0, %v3794
    %v3796 = vpop.f32.mrf.mxu0
    %3797 = vmatprep.mubr.bf16.mxu0 %v3378
    %3798 = vmatmul.mubr.bf16.gmra.mxu0 %v3377
    %v3799 = vpop.f32.mrf.mxu0
    %v3800 = vadd.f32 0.0, %v3799
    %v3801 = vpop.f32.mrf.mxu0
    %v3802 = vpop.f32.mrf.mxu0
    %v3803 = vadd.f32 0.0, %v3802
    %v3804 = vpop.f32.mrf.mxu0
    %3805 = vmatprep.mubr.bf16.mxu0 %v3382
    %3806 = vmatmul.mubr.bf16.gmra.mxu0 %v3381
    %v3807 = vpop.f32.mrf.mxu0
    %v3808 = vadd.f32 0.0, %v3807
    %v3809 = vpop.f32.mrf.mxu0
    %v3810 = vpop.f32.mrf.mxu0
    %v3811 = vadd.f32 0.0, %v3810
    %v3812 = vpop.f32.mrf.mxu0
    %3813 = vmatprep.mubr.bf16.mxu0 %v3386
    %3814 = vmatmul.mubr.bf16.gmra.mxu0 %v3385
    %v3815 = vpop.f32.mrf.mxu0
    %v3816 = vadd.f32 0.0, %v3815
    %v3817 = vpop.f32.mrf.mxu0
    %v3818 = vpop.f32.mrf.mxu0
    %v3819 = vadd.f32 0.0, %v3818
    %v3820 = vpop.f32.mrf.mxu0
    %3821 = vmatprep.mubr.bf16.mxu0 %v3390
    %3822 = vmatmul.mubr.bf16.gmra.mxu0 %v3389
    %v3823 = vpop.f32.mrf.mxu0
    %v3824 = vadd.f32 0.0, %v3823
    %v3825 = vpop.f32.mrf.mxu0
    %v3826 = vpop.f32.mrf.mxu0
    %v3827 = vadd.f32 0.0, %v3826
    %v3828 = vpop.f32.mrf.mxu0
    %3829 = vmatprep.mubr.bf16.mxu0 %v3394
    %3830 = vmatmul.mubr.bf16.gmra.mxu0 %v3393
    %v3831 = vpop.f32.mrf.mxu0
    %v3832 = vadd.f32 0.0, %v3831
    %v3833 = vpop.f32.mrf.mxu0
    %v3834 = vpop.f32.mrf.mxu0
    %v3835 = vadd.f32 0.0, %v3834
    %v3836 = vpop.f32.mrf.mxu0
    %3837 = vmatprep.mubr.bf16.mxu0 %v3398
    %3838 = vmatmul.mubr.bf16.gmra.mxu0 %v3397
    %v3839 = vpop.f32.mrf.mxu0
    %v3840 = vadd.f32 0.0, %v3839
    %v3841 = vpop.f32.mrf.mxu0
    %v3842 = vpop.f32.mrf.mxu0
    %v3843 = vadd.f32 0.0, %v3842
    %v3844 = vpop.f32.mrf.mxu0
    %3845 = vmatprep.mubr.bf16.mxu0 %v3402
    %3846 = vmatmul.mubr.bf16.gmra.mxu0 %v3401
    %v3847 = vpop.f32.mrf.mxu0
    %v3848 = vadd.f32 0.0, %v3847
    %v3849 = vpop.f32.mrf.mxu0
    %v3850 = vpop.f32.mrf.mxu0
    %v3851 = vadd.f32 0.0, %v3850
    %v3852 = vpop.f32.mrf.mxu0
    %3853 = vmatprep.mubr.bf16.mxu0 %v3406
    %3854 = vmatmul.mubr.bf16.gmra.mxu0 %v3405
    %v3855 = vpop.f32.mrf.mxu0
    %v3856 = vadd.f32 0.0, %v3855
    %v3857 = vpop.f32.mrf.mxu0
    %v3858 = vpop.f32.mrf.mxu0
    %v3859 = vadd.f32 0.0, %v3858
    %v3860 = vpop.f32.mrf.mxu0
    %3861 = vmatprep.mubr.bf16.mxu0 %v3410
    %3862 = vmatmul.mubr.bf16.gmra.mxu0 %v3409
    %v3863 = vpop.f32.mrf.mxu0
    %v3864 = vadd.f32 0.0, %v3863
    %v3865 = vpop.f32.mrf.mxu0
    %v3866 = vpop.f32.mrf.mxu0
    %v3867 = vadd.f32 0.0, %v3866
    %v3868 = vpop.f32.mrf.mxu0
    %3869 = vmatprep.mubr.bf16.mxu0 %v3414
    %3870 = vmatmul.mubr.bf16.gmra.mxu0 %v3413
    %v3871 = vpop.f32.mrf.mxu0
    %v3872 = vadd.f32 0.0, %v3871
    %v3873 = vpop.f32.mrf.mxu0
    %v3874 = vpop.f32.mrf.mxu0
    %v3875 = vadd.f32 0.0, %v3874
    %v3876 = vpop.f32.mrf.mxu0
    %3877 = vmatprep.mubr.bf16.mxu0 %v3418
    %3878 = vmatmul.mubr.bf16.gmra.mxu0 %v3417
    %v3879 = vpop.f32.mrf.mxu0
    %v3880 = vadd.f32 0.0, %v3879
    %v3881 = vpop.f32.mrf.mxu0
    %v3882 = vpop.f32.mrf.mxu0
    %v3883 = vadd.f32 0.0, %v3882
    %v3884 = vpop.f32.mrf.mxu0
    %3885 = vmatprep.mubr.bf16.mxu0 %v3422
    %3886 = vmatmul.mubr.bf16.gmra.mxu0 %v3421
    %v3887 = vpop.f32.mrf.mxu0
    %v3888 = vadd.f32 0.0, %v3887
    %v3889 = vpop.f32.mrf.mxu0
    %v3890 = vpop.f32.mrf.mxu0
    %v3891 = vadd.f32 0.0, %v3890
    %v3892 = vpop.f32.mrf.mxu0
    %3893 = vmatprep.mubr.bf16.mxu0 %v3426
    %3894 = vmatmul.mubr.bf16.gmra.mxu0 %v3425
    %v3895 = vpop.f32.mrf.mxu0
    %v3896 = vadd.f32 0.0, %v3895
    %v3897 = vpop.f32.mrf.mxu0
    %v3898 = vpop.f32.mrf.mxu0
    %v3899 = vadd.f32 0.0, %v3898
    %v3900 = vpop.f32.mrf.mxu0
    %3901 = vmatprep.mubr.bf16.mxu0 %v3430
    %3902 = vmatmul.mubr.bf16.gmra.mxu0 %v3429
    %v3903 = vpop.f32.mrf.mxu0
    %v3904 = vadd.f32 0.0, %v3903
    %v3905 = vpop.f32.mrf.mxu0
    %v3906 = vpop.f32.mrf.mxu0
    %v3907 = vadd.f32 0.0, %v3906
    %v3908 = vpop.f32.mrf.mxu0
    %3909 = vmatprep.mubr.bf16.mxu0 %v3434
    %3910 = vmatmul.mubr.bf16.gmra.mxu0 %v3433
    %v3911 = vpop.f32.mrf.mxu0
    %v3912 = vadd.f32 0.0, %v3911
    %v3913 = vpop.f32.mrf.mxu0
    %v3914 = vpop.f32.mrf.mxu0
    %v3915 = vadd.f32 0.0, %v3914
    %v3916 = vpop.f32.mrf.mxu0
    %3917 = vmatprep.mubr.bf16.mxu0 %v3438
    %3918 = vmatmul.mubr.bf16.gmra.mxu0 %v3437
    %v3919 = vpop.f32.mrf.mxu0
    %v3920 = vadd.f32 0.0, %v3919
    %v3921 = vpop.f32.mrf.mxu0
    %v3922 = vpop.f32.mrf.mxu0
    %v3923 = vadd.f32 0.0, %v3922
    %v3924 = vpop.f32.mrf.mxu0
    %3925 = vmatprep.mubr.bf16.mxu0 %v3442
    %3926 = vmatmul.mubr.bf16.gmra.mxu0 %v3441
    %v3927 = vpop.f32.mrf.mxu0
    %v3928 = vadd.f32 0.0, %v3927
    %v3929 = vpop.f32.mrf.mxu0
    %v3930 = vpop.f32.mrf.mxu0
    %v3931 = vadd.f32 0.0, %v3930
    %v3932 = vpop.f32.mrf.mxu0
    %3933 = vmatprep.mubr.bf16.mxu0 %v3446
    %3934 = vmatmul.mubr.bf16.gmra.mxu0 %v3445
    %v3935 = vpop.f32.mrf.mxu0
    %v3936 = vadd.f32 0.0, %v3935
    %v3937 = vpop.f32.mrf.mxu0
    %v3938 = vpop.f32.mrf.mxu0
    %v3939 = vadd.f32 0.0, %v3938
    %v3940 = vpop.f32.mrf.mxu0
    %3941 = vmatprep.mubr.bf16.mxu0 %v3450
    %3942 = vmatmul.mubr.bf16.gmra.mxu0 %v3449
    %v3943 = vpop.f32.mrf.mxu0
    %v3944 = vadd.f32 0.0, %v3943
    %v3945 = vpop.f32.mrf.mxu0
    %v3946 = vpop.f32.mrf.mxu0
    %v3947 = vadd.f32 0.0, %v3946
    %v3948 = vpop.f32.mrf.mxu0
    %3949 = vmatprep.mubr.bf16.mxu0 %v3454
    %3950 = vmatmul.mubr.bf16.gmra.mxu0 %v3453
    %v3951 = vpop.f32.mrf.mxu0
    %v3952 = vadd.f32 0.0, %v3951
    %v3953 = vpop.f32.mrf.mxu0
    %v3954 = vpop.f32.mrf.mxu0
    %v3955 = vadd.f32 0.0, %v3954
    %v3956 = vpop.f32.mrf.mxu0
    %3957 = vmatprep.mubr.bf16.mxu0 %v3458
    %3958 = vmatmul.mubr.bf16.gmra.mxu0 %v3457
    %v3959 = vpop.f32.mrf.mxu0
    %v3960 = vadd.f32 0.0, %v3959
    %v3961 = vpop.f32.mrf.mxu0
    %v3962 = vpop.f32.mrf.mxu0
    %v3963 = vadd.f32 0.0, %v3962
    %v3964 = vpop.f32.mrf.mxu0
    %3965 = vmatprep.mubr.bf16.mxu0 %v3462
    %3966 = vmatmul.mubr.bf16.gmra.mxu0 %v3461
    %v3967 = vpop.f32.mrf.mxu0
    %v3968 = vadd.f32 0.0, %v3967
    %v3969 = vpop.f32.mrf.mxu0
    %v3970 = vpop.f32.mrf.mxu0
    %v3971 = vadd.f32 0.0, %v3970
    %v3972 = vpop.f32.mrf.mxu0
    %3973 = vmatprep.mubr.bf16.mxu0 %v3466
    %3974 = vmatmul.mubr.bf16.gmra.mxu0 %v3465
    %v3975 = vpop.f32.mrf.mxu0
    %v3976 = vadd.f32 0.0, %v3975
    %v3977 = vpop.f32.mrf.mxu0
    %v3978 = vpop.f32.mrf.mxu0
    %v3979 = vadd.f32 0.0, %v3978
    %v3980 = vpop.f32.mrf.mxu0
    %3981 = vmatprep.mubr.bf16.mxu0 %v3470
    %3982 = vmatmul.mubr.bf16.gmra.mxu0 %v3469
    %v3983 = vpop.f32.mrf.mxu0
    %v3984 = vadd.f32 0.0, %v3983
    %v3985 = vpop.f32.mrf.mxu0
    %v3986 = vpop.f32.mrf.mxu0
    %v3987 = vadd.f32 0.0, %v3986
    %v3988 = vpop.f32.mrf.mxu0
    %3989 = vmatprep.mubr.bf16.mxu0 %v3474
    %3990 = vmatmul.mubr.bf16.gmra.mxu0 %v3473
    %v3991 = vpop.f32.mrf.mxu0
    %v3992 = vadd.f32 0.0, %v3991
    %v3993 = vpop.f32.mrf.mxu0
    %v3994 = vpop.f32.mrf.mxu0
    %v3995 = vadd.f32 0.0, %v3994
    %v3996 = vpop.f32.mrf.mxu0
    %3997 = vmatprep.mubr.bf16.mxu0 %v3478
    %3998 = vmatmul.mubr.bf16.gmra.mxu0 %v3477
    %v3999 = vpop.f32.mrf.mxu0
    %v4000 = vadd.f32 0.0, %v3999
    %v4001 = vpop.f32.mrf.mxu0
    %v4002 = vpop.f32.mrf.mxu0
    %v4003 = vadd.f32 0.0, %v4002
    %v4004 = vpop.f32.mrf.mxu0
    %4005 = vmatprep.mubr.bf16.mxu0 %v3482
    %4006 = vmatmul.mubr.bf16.gmra.mxu0 %v3481
    %v4007 = vpop.f32.mrf.mxu0
    %v4008 = vadd.f32 0.0, %v4007
    %v4009 = vpop.f32.mrf.mxu0
    %v4010 = vpop.f32.mrf.mxu0
    %v4011 = vadd.f32 0.0, %v4010
    %v4012 = vpop.f32.mrf.mxu0
    %4013 = vmatprep.mubr.bf16.mxu0 %v3486
    %4014 = vmatmul.mubr.bf16.gmra.mxu0 %v3485
    %v4015 = vpop.f32.mrf.mxu0
    %v4016 = vadd.f32 0.0, %v4015
    %v4017 = vpop.f32.mrf.mxu0
    %v4018 = vpop.f32.mrf.mxu0
    %v4019 = vadd.f32 0.0, %v4018
    %v4020 = vpop.f32.mrf.mxu0
    %4021 = vmatprep.mubr.bf16.mxu0 %v3490
    %4022 = vmatmul.mubr.bf16.gmra.mxu0 %v3489
    %v4023 = vpop.f32.mrf.mxu0
    %v4024 = vadd.f32 0.0, %v4023
    %v4025 = vpop.f32.mrf.mxu0
    %v4026 = vpop.f32.mrf.mxu0
    %v4027 = vadd.f32 0.0, %v4026
    %v4028 = vpop.f32.mrf.mxu0
    %4029 = vmatprep.mubr.bf16.mxu0 %v3494
    %4030 = vmatmul.mubr.bf16.gmra.mxu0 %v3493
    %v4031 = vpop.f32.mrf.mxu0
    %v4032 = vadd.f32 0.0, %v4031
    %v4033 = vpop.f32.mrf.mxu0
    %v4034 = vpop.f32.mrf.mxu0
    %v4035 = vadd.f32 0.0, %v4034
    %v4036 = vpop.f32.mrf.mxu0
    %4037 = vmatprep.mubr.bf16.mxu0 %v3498
    %4038 = vmatmul.mubr.bf16.gmra.mxu0 %v3497
    %v4039 = vpop.f32.mrf.mxu0
    %v4040 = vadd.f32 0.0, %v4039
    %v4041 = vpop.f32.mrf.mxu0
    %v4042 = vpop.f32.mrf.mxu0
    %v4043 = vadd.f32 0.0, %v4042
    %v4044 = vpop.f32.mrf.mxu0
    %4045 = vdwg.mxu0
    %4046 = vmatprep.subr.bf16.mxu0 0
    %4047 = vmatpush1.bf16.msra.mxu0 %v3716
    %4048 = vmatprep.subr.bf16.mxu0 0
    %4049 = vmatpush1.bf16.msra.mxu0 %v3715
    %4050 = vmatprep.subr.bf16.mxu0 0
    %4051 = vmatpush1.bf16.msra.mxu0 %v3714
    %4052 = vmatprep.subr.bf16.mxu0 0
    %4053 = vmatpush1.bf16.msra.mxu0 %v3713
    %4054 = vmatprep.subr.bf16.mxu0 0
    %4055 = vmatpush1.bf16.msra.mxu0 %v3712
    %4056 = vmatprep.subr.bf16.mxu0 0
    %4057 = vmatpush1.bf16.msra.mxu0 %v3711
    %4058 = vmatprep.subr.bf16.mxu0 0
    %4059 = vmatpush1.bf16.msra.mxu0 %v3710
    %4060 = vmatprep.subr.bf16.mxu0 0
    %4061 = vmatpush1.bf16.msra.mxu0 %v3709
    %4062 = vmatprep.subr.bf16.mxu0 0
    %4063 = vmatpush2.bf16.msra.mxu0 %v3724
    %4064 = vmatprep.subr.bf16.mxu0 0
    %4065 = vmatpush2.bf16.msra.mxu0 %v3723
    %4066 = vmatprep.subr.bf16.mxu0 0
    %4067 = vmatpush2.bf16.msra.mxu0 %v3722
    %4068 = vmatprep.subr.bf16.mxu0 0
    %4069 = vmatpush2.bf16.msra.mxu0 %v3721
    %4070 = vmatprep.subr.bf16.mxu0 0
    %4071 = vmatpush2.bf16.msra.mxu0 %v3720
    %4072 = vmatprep.subr.bf16.mxu0 0
    %4073 = vmatpush2.bf16.msra.mxu0 %v3719
    %4074 = vmatprep.subr.bf16.mxu0 0
    %4075 = vmatpush2.bf16.msra.mxu0 %v3718
    %4076 = vmatprep.subr.bf16.mxu0 0
    %4077 = vmatpush2.bf16.msra.mxu0 %v3717
    %4078 = vmatprep.mubr.bf16.mxu0 %v3376
    %4079 = vmatmul.mubr.bf16.gmra.mxu0 %v3375
    %v4080 = vpop.f32.mrf.mxu0
    %v4081 = vadd.f32 %v3792, %v4080
    %v4082 = vpop.f32.mrf.mxu0
    %v4083 = vpop.f32.mrf.mxu0
    %v4084 = vadd.f32 %v3795, %v4083
    %v4085 = vpop.f32.mrf.mxu0
    %4086 = vmatprep.mubr.bf16.mxu0 %v3380
    %4087 = vmatmul.mubr.bf16.gmra.mxu0 %v3379
    %v4088 = vpop.f32.mrf.mxu0
    %v4089 = vadd.f32 %v3800, %v4088
    %v4090 = vpop.f32.mrf.mxu0
    %v4091 = vpop.f32.mrf.mxu0
    %v4092 = vadd.f32 %v3803, %v4091
    %v4093 = vpop.f32.mrf.mxu0
    %4094 = vmatprep.mubr.bf16.mxu0 %v3384
    %4095 = vmatmul.mubr.bf16.gmra.mxu0 %v3383
    %v4096 = vpop.f32.mrf.mxu0
    %v4097 = vadd.f32 %v3808, %v4096
    %v4098 = vpop.f32.mrf.mxu0
    %v4099 = vpop.f32.mrf.mxu0
    %v4100 = vadd.f32 %v3811, %v4099
    %v4101 = vpop.f32.mrf.mxu0
    %4102 = vmatprep.mubr.bf16.mxu0 %v3388
    %4103 = vmatmul.mubr.bf16.gmra.mxu0 %v3387
    %v4104 = vpop.f32.mrf.mxu0
    %v4105 = vadd.f32 %v3816, %v4104
    %v4106 = vpop.f32.mrf.mxu0
    %v4107 = vpop.f32.mrf.mxu0
    %v4108 = vadd.f32 %v3819, %v4107
    %v4109 = vpop.f32.mrf.mxu0
    %4110 = vmatprep.mubr.bf16.mxu0 %v3392
    %4111 = vmatmul.mubr.bf16.gmra.mxu0 %v3391
    %v4112 = vpop.f32.mrf.mxu0
    %v4113 = vadd.f32 %v3824, %v4112
    %v4114 = vpop.f32.mrf.mxu0
    %v4115 = vpop.f32.mrf.mxu0
    %v4116 = vadd.f32 %v3827, %v4115
    %v4117 = vpop.f32.mrf.mxu0
    %4118 = vmatprep.mubr.bf16.mxu0 %v3396
    %4119 = vmatmul.mubr.bf16.gmra.mxu0 %v3395
    %v4120 = vpop.f32.mrf.mxu0
    %v4121 = vadd.f32 %v3832, %v4120
    %v4122 = vpop.f32.mrf.mxu0
    %v4123 = vpop.f32.mrf.mxu0
    %v4124 = vadd.f32 %v3835, %v4123
    %v4125 = vpop.f32.mrf.mxu0
    %4126 = vmatprep.mubr.bf16.mxu0 %v3400
    %4127 = vmatmul.mubr.bf16.gmra.mxu0 %v3399
    %v4128 = vpop.f32.mrf.mxu0
    %v4129 = vadd.f32 %v3840, %v4128
    %v4130 = vpop.f32.mrf.mxu0
    %v4131 = vpop.f32.mrf.mxu0
    %v4132 = vadd.f32 %v3843, %v4131
    %v4133 = vpop.f32.mrf.mxu0
    %4134 = vmatprep.mubr.bf16.mxu0 %v3404
    %4135 = vmatmul.mubr.bf16.gmra.mxu0 %v3403
    %v4136 = vpop.f32.mrf.mxu0
    %v4137 = vadd.f32 %v3848, %v4136
    %v4138 = vpop.f32.mrf.mxu0
    %v4139 = vpop.f32.mrf.mxu0
    %v4140 = vadd.f32 %v3851, %v4139
    %v4141 = vpop.f32.mrf.mxu0
    %4142 = vmatprep.mubr.bf16.mxu0 %v3408
    %4143 = vmatmul.mubr.bf16.gmra.mxu0 %v3407
    %v4144 = vpop.f32.mrf.mxu0
    %v4145 = vadd.f32 %v3856, %v4144
    %v4146 = vpop.f32.mrf.mxu0
    %v4147 = vpop.f32.mrf.mxu0
    %v4148 = vadd.f32 %v3859, %v4147
    %v4149 = vpop.f32.mrf.mxu0
    %4150 = vmatprep.mubr.bf16.mxu0 %v3412
    %4151 = vmatmul.mubr.bf16.gmra.mxu0 %v3411
    %v4152 = vpop.f32.mrf.mxu0
    %v4153 = vadd.f32 %v3864, %v4152
    %v4154 = vpop.f32.mrf.mxu0
    %v4155 = vpop.f32.mrf.mxu0
    %v4156 = vadd.f32 %v3867, %v4155
    %v4157 = vpop.f32.mrf.mxu0
    %4158 = vmatprep.mubr.bf16.mxu0 %v3416
    %4159 = vmatmul.mubr.bf16.gmra.mxu0 %v3415
    %v4160 = vpop.f32.mrf.mxu0
    %v4161 = vadd.f32 %v3872, %v4160
    %v4162 = vpop.f32.mrf.mxu0
    %v4163 = vpop.f32.mrf.mxu0
    %v4164 = vadd.f32 %v3875, %v4163
    %v4165 = vpop.f32.mrf.mxu0
    %4166 = vmatprep.mubr.bf16.mxu0 %v3420
    %4167 = vmatmul.mubr.bf16.gmra.mxu0 %v3419
    %v4168 = vpop.f32.mrf.mxu0
    %v4169 = vadd.f32 %v3880, %v4168
    %v4170 = vpop.f32.mrf.mxu0
    %v4171 = vpop.f32.mrf.mxu0
    %v4172 = vadd.f32 %v3883, %v4171
    %v4173 = vpop.f32.mrf.mxu0
    %4174 = vmatprep.mubr.bf16.mxu0 %v3424
    %4175 = vmatmul.mubr.bf16.gmra.mxu0 %v3423
    %v4176 = vpop.f32.mrf.mxu0
    %v4177 = vadd.f32 %v3888, %v4176
    %v4178 = vpop.f32.mrf.mxu0
    %v4179 = vpop.f32.mrf.mxu0
    %v4180 = vadd.f32 %v3891, %v4179
    %v4181 = vpop.f32.mrf.mxu0
    %4182 = vmatprep.mubr.bf16.mxu0 %v3428
    %4183 = vmatmul.mubr.bf16.gmra.mxu0 %v3427
    %v4184 = vpop.f32.mrf.mxu0
    %v4185 = vadd.f32 %v3896, %v4184
    %v4186 = vpop.f32.mrf.mxu0
    %v4187 = vpop.f32.mrf.mxu0
    %v4188 = vadd.f32 %v3899, %v4187
    %v4189 = vpop.f32.mrf.mxu0
    %4190 = vmatprep.mubr.bf16.mxu0 %v3432
    %4191 = vmatmul.mubr.bf16.gmra.mxu0 %v3431
    %v4192 = vpop.f32.mrf.mxu0
    %v4193 = vadd.f32 %v3904, %v4192
    %v4194 = vpop.f32.mrf.mxu0
    %v4195 = vpop.f32.mrf.mxu0
    %v4196 = vadd.f32 %v3907, %v4195
    %v4197 = vpop.f32.mrf.mxu0
    %4198 = vmatprep.mubr.bf16.mxu0 %v3436
    %4199 = vmatmul.mubr.bf16.gmra.mxu0 %v3435
    %v4200 = vpop.f32.mrf.mxu0
    %v4201 = vadd.f32 %v3912, %v4200
    %v4202 = vpop.f32.mrf.mxu0
    %v4203 = vpop.f32.mrf.mxu0
    %v4204 = vadd.f32 %v3915, %v4203
    %v4205 = vpop.f32.mrf.mxu0
    %4206 = vmatprep.mubr.bf16.mxu0 %v3440
    %4207 = vmatmul.mubr.bf16.gmra.mxu0 %v3439
    %v4208 = vpop.f32.mrf.mxu0
    %v4209 = vadd.f32 %v3920, %v4208
    %v4210 = vpop.f32.mrf.mxu0
    %v4211 = vpop.f32.mrf.mxu0
    %v4212 = vadd.f32 %v3923, %v4211
    %v4213 = vpop.f32.mrf.mxu0
    %4214 = vmatprep.mubr.bf16.mxu0 %v3444
    %4215 = vmatmul.mubr.bf16.gmra.mxu0 %v3443
    %v4216 = vpop.f32.mrf.mxu0
    %v4217 = vadd.f32 %v3928, %v4216
    %v4218 = vpop.f32.mrf.mxu0
    %v4219 = vpop.f32.mrf.mxu0
    %v4220 = vadd.f32 %v3931, %v4219
    %v4221 = vpop.f32.mrf.mxu0
    %4222 = vmatprep.mubr.bf16.mxu0 %v3448
    %4223 = vmatmul.mubr.bf16.gmra.mxu0 %v3447
    %v4224 = vpop.f32.mrf.mxu0
    %v4225 = vadd.f32 %v3936, %v4224
    %v4226 = vpop.f32.mrf.mxu0
    %v4227 = vpop.f32.mrf.mxu0
    %v4228 = vadd.f32 %v3939, %v4227
    %v4229 = vpop.f32.mrf.mxu0
    %4230 = vmatprep.mubr.bf16.mxu0 %v3452
    %4231 = vmatmul.mubr.bf16.gmra.mxu0 %v3451
    %v4232 = vpop.f32.mrf.mxu0
    %v4233 = vadd.f32 %v3944, %v4232
    %v4234 = vpop.f32.mrf.mxu0
    %v4235 = vpop.f32.mrf.mxu0
    %v4236 = vadd.f32 %v3947, %v4235
    %v4237 = vpop.f32.mrf.mxu0
    %4238 = vmatprep.mubr.bf16.mxu0 %v3456
    %4239 = vmatmul.mubr.bf16.gmra.mxu0 %v3455
    %v4240 = vpop.f32.mrf.mxu0
    %v4241 = vadd.f32 %v3952, %v4240
    %v4242 = vpop.f32.mrf.mxu0
    %v4243 = vpop.f32.mrf.mxu0
    %v4244 = vadd.f32 %v3955, %v4243
    %v4245 = vpop.f32.mrf.mxu0
    %4246 = vmatprep.mubr.bf16.mxu0 %v3460
    %4247 = vmatmul.mubr.bf16.gmra.mxu0 %v3459
    %v4248 = vpop.f32.mrf.mxu0
    %v4249 = vadd.f32 %v3960, %v4248
    %v4250 = vpop.f32.mrf.mxu0
    %v4251 = vpop.f32.mrf.mxu0
    %v4252 = vadd.f32 %v3963, %v4251
    %v4253 = vpop.f32.mrf.mxu0
    %4254 = vmatprep.mubr.bf16.mxu0 %v3464
    %4255 = vmatmul.mubr.bf16.gmra.mxu0 %v3463
    %v4256 = vpop.f32.mrf.mxu0
    %v4257 = vadd.f32 %v3968, %v4256
    %v4258 = vpop.f32.mrf.mxu0
    %v4259 = vpop.f32.mrf.mxu0
    %v4260 = vadd.f32 %v3971, %v4259
    %v4261 = vpop.f32.mrf.mxu0
    %4262 = vmatprep.mubr.bf16.mxu0 %v3468
    %4263 = vmatmul.mubr.bf16.gmra.mxu0 %v3467
    %v4264 = vpop.f32.mrf.mxu0
    %v4265 = vadd.f32 %v3976, %v4264
    %v4266 = vpop.f32.mrf.mxu0
    %v4267 = vpop.f32.mrf.mxu0
    %v4268 = vadd.f32 %v3979, %v4267
    %v4269 = vpop.f32.mrf.mxu0
    %4270 = vmatprep.mubr.bf16.mxu0 %v3472
    %4271 = vmatmul.mubr.bf16.gmra.mxu0 %v3471
    %v4272 = vpop.f32.mrf.mxu0
    %v4273 = vadd.f32 %v3984, %v4272
    %v4274 = vpop.f32.mrf.mxu0
    %v4275 = vpop.f32.mrf.mxu0
    %v4276 = vadd.f32 %v3987, %v4275
    %v4277 = vpop.f32.mrf.mxu0
    %4278 = vmatprep.mubr.bf16.mxu0 %v3476
    %4279 = vmatmul.mubr.bf16.gmra.mxu0 %v3475
    %v4280 = vpop.f32.mrf.mxu0
    %v4281 = vadd.f32 %v3992, %v4280
    %v4282 = vpop.f32.mrf.mxu0
    %v4283 = vpop.f32.mrf.mxu0
    %v4284 = vadd.f32 %v3995, %v4283
    %v4285 = vpop.f32.mrf.mxu0
    %4286 = vmatprep.mubr.bf16.mxu0 %v3480
    %4287 = vmatmul.mubr.bf16.gmra.mxu0 %v3479
    %v4288 = vpop.f32.mrf.mxu0
    %v4289 = vadd.f32 %v4000, %v4288
    %v4290 = vpop.f32.mrf.mxu0
    %v4291 = vpop.f32.mrf.mxu0
    %v4292 = vadd.f32 %v4003, %v4291
    %v4293 = vpop.f32.mrf.mxu0
    %4294 = vmatprep.mubr.bf16.mxu0 %v3484
    %4295 = vmatmul.mubr.bf16.gmra.mxu0 %v3483
    %v4296 = vpop.f32.mrf.mxu0
    %v4297 = vadd.f32 %v4008, %v4296
    %v4298 = vpop.f32.mrf.mxu0
    %v4299 = vpop.f32.mrf.mxu0
    %v4300 = vadd.f32 %v4011, %v4299
    %v4301 = vpop.f32.mrf.mxu0
    %4302 = vmatprep.mubr.bf16.mxu0 %v3488
    %4303 = vmatmul.mubr.bf16.gmra.mxu0 %v3487
    %v4304 = vpop.f32.mrf.mxu0
    %v4305 = vadd.f32 %v4016, %v4304
    %v4306 = vpop.f32.mrf.mxu0
    %v4307 = vpop.f32.mrf.mxu0
    %v4308 = vadd.f32 %v4019, %v4307
    %v4309 = vpop.f32.mrf.mxu0
    %4310 = vmatprep.mubr.bf16.mxu0 %v3492
    %4311 = vmatmul.mubr.bf16.gmra.mxu0 %v3491
    %v4312 = vpop.f32.mrf.mxu0
    %v4313 = vadd.f32 %v4024, %v4312
    %v4314 = vpop.f32.mrf.mxu0
    %v4315 = vpop.f32.mrf.mxu0
    %v4316 = vadd.f32 %v4027, %v4315
    %v4317 = vpop.f32.mrf.mxu0
    %4318 = vmatprep.mubr.bf16.mxu0 %v3496
    %4319 = vmatmul.mubr.bf16.gmra.mxu0 %v3495
    %v4320 = vpop.f32.mrf.mxu0
    %v4321 = vadd.f32 %v4032, %v4320
    %v4322 = vpop.f32.mrf.mxu0
    %v4323 = vpop.f32.mrf.mxu0
    %v4324 = vadd.f32 %v4035, %v4323
    %v4325 = vpop.f32.mrf.mxu0
    %4326 = vmatprep.mubr.bf16.mxu0 %v3500
    %4327 = vmatmul.mubr.bf16.gmra.mxu0 %v3499
    %v4328 = vpop.f32.mrf.mxu0
    %v4329 = vadd.f32 %v4040, %v4328
    %v4330 = vpop.f32.mrf.mxu0
    %v4331 = vpop.f32.mrf.mxu0
    %v4332 = vadd.f32 %v4043, %v4331
    %v4333 = vpop.f32.mrf.mxu0
    %4334 = vdwg.mxu0
    %v4335 = vadd.f32 %v997, %v4081
    %v4336 = vadd.f32 %v998, %v4084
    %v4337 = vadd.f32 %v999, %v4089
    %v4338 = vadd.f32 %v1000, %v4092
    %v4339 = vadd.f32 %v1001, %v4097
    %v4340 = vadd.f32 %v1002, %v4100
    %v4341 = vadd.f32 %v1003, %v4105
    %v4342 = vadd.f32 %v1004, %v4108
    %v4343 = vadd.f32 %v1005, %v4113
    %v4344 = vadd.f32 %v1006, %v4116
    %v4345 = vadd.f32 %v1007, %v4121
    %v4346 = vadd.f32 %v1008, %v4124
    %v4347 = vadd.f32 %v1009, %v4129
    %v4348 = vadd.f32 %v1010, %v4132
    %v4349 = vadd.f32 %v1011, %v4137
    %v4350 = vadd.f32 %v1012, %v4140
    %v4351 = vadd.f32 %v1013, %v4145
    %v4352 = vadd.f32 %v1014, %v4148
    %v4353 = vadd.f32 %v1015, %v4153
    %v4354 = vadd.f32 %v1016, %v4156
    %v4355 = vadd.f32 %v1017, %v4161
    %v4356 = vadd.f32 %v1018, %v4164
    %v4357 = vadd.f32 %v1019, %v4169
    %v4358 = vadd.f32 %v1020, %v4172
    %v4359 = vadd.f32 %v1021, %v4177
    %v4360 = vadd.f32 %v1022, %v4180
    %v4361 = vadd.f32 %v1023, %v4185
    %v4362 = vadd.f32 %v1024, %v4188
    %v4363 = vadd.f32 %v1025, %v4193
    %v4364 = vadd.f32 %v1026, %v4196
    %v4365 = vadd.f32 %v1027, %v4201
    %v4366 = vadd.f32 %v1028, %v4204
    %v4367 = vadd.f32 %v1029, %v4209
    %v4368 = vadd.f32 %v1030, %v4212
    %v4369 = vadd.f32 %v1031, %v4217
    %v4370 = vadd.f32 %v1032, %v4220
    %v4371 = vadd.f32 %v1033, %v4225
    %v4372 = vadd.f32 %v1034, %v4228
    %v4373 = vadd.f32 %v1035, %v4233
    %v4374 = vadd.f32 %v1036, %v4236
    %v4375 = vadd.f32 %v1037, %v4241
    %v4376 = vadd.f32 %v1038, %v4244
    %v4377 = vadd.f32 %v1039, %v4249
    %v4378 = vadd.f32 %v1040, %v4252
    %v4379 = vadd.f32 %v1041, %v4257
    %v4380 = vadd.f32 %v1042, %v4260
    %v4381 = vadd.f32 %v1043, %v4265
    %v4382 = vadd.f32 %v1044, %v4268
    %v4383 = vadd.f32 %v1045, %v4273
    %v4384 = vadd.f32 %v1046, %v4276
    %v4385 = vadd.f32 %v1047, %v4281
    %v4386 = vadd.f32 %v1048, %v4284
    %v4387 = vadd.f32 %v1049, %v4289
    %v4388 = vadd.f32 %v1050, %v4292
    %v4389 = vadd.f32 %v1051, %v4297
    %v4390 = vadd.f32 %v1052, %v4300
    %v4391 = vadd.f32 %v1053, %v4305
    %v4392 = vadd.f32 %v1054, %v4308
    %v4393 = vadd.f32 %v1055, %v4313
    %v4394 = vadd.f32 %v1056, %v4316
    %v4395 = vadd.f32 %v1057, %v4321
    %v4396 = vadd.f32 %v1058, %v4324
    %v4397 = vadd.f32 %v1059, %v4329
    %v4398 = vadd.f32 %v1060, %v4332
    %4399 = vst [vmem:[#allocation12] sm:$0xff] %v4335
    %4400 = vst [vmem:[#allocation12 + $0x8] sm:$0xff] %v4336
    %4401 = vst [vmem:[#allocation12 + $0x10] sm:$0xff] %v4337
    %4402 = vst [vmem:[#allocation12 + $0x18] sm:$0xff] %v4338
    %4403 = vst [vmem:[#allocation12 + $0x20] sm:$0xff] %v4339
    %4404 = vst [vmem:[#allocation12 + $0x28] sm:$0xff] %v4340
    %4405 = vst [vmem:[#allocation12 + $0x30] sm:$0xff] %v4341
    %4406 = vst [vmem:[#allocation12 + $0x38] sm:$0xff] %v4342
    %4407 = vst [vmem:[#allocation12 + $0x40] sm:$0xff] %v4343
    %4408 = vst [vmem:[#allocation12 + $0x48] sm:$0xff] %v4344
    %4409 = vst [vmem:[#allocation12 + $0x50] sm:$0xff] %v4345
    %4410 = vst [vmem:[#allocation12 + $0x58] sm:$0xff] %v4346
    %4411 = vst [vmem:[#allocation12 + $0x60] sm:$0xff] %v4347
    %4412 = vst [vmem:[#allocation12 + $0x68] sm:$0xff] %v4348
    %4413 = vst [vmem:[#allocation12 + $0x70] sm:$0xff] %v4349
    %4414 = vst [vmem:[#allocation12 + $0x78] sm:$0xff] %v4350
    %4415 = vst [vmem:[#allocation12 + $0x80] sm:$0xff] %v4351
    %4416 = vst [vmem:[#allocation12 + $0x88] sm:$0xff] %v4352
    %4417 = vst [vmem:[#allocation12 + $0x90] sm:$0xff] %v4353
    %4418 = vst [vmem:[#allocation12 + $0x98] sm:$0xff] %v4354
    %4419 = vst [vmem:[#allocation12 + $0xa0] sm:$0xff] %v4355
    %4420 = vst [vmem:[#allocation12 + $0xa8] sm:$0xff] %v4356
    %4421 = vst [vmem:[#allocation12 + $0xb0] sm:$0xff] %v4357
    %4422 = vst [vmem:[#allocation12 + $0xb8] sm:$0xff] %v4358
    %4423 = vst [vmem:[#allocation12 + $0xc0] sm:$0xff] %v4359
    %4424 = vst [vmem:[#allocation12 + $0xc8] sm:$0xff] %v4360
    %4425 = vst [vmem:[#allocation12 + $0xd0] sm:$0xff] %v4361
    %4426 = vst [vmem:[#allocation12 + $0xd8] sm:$0xff] %v4362
    %4427 = vst [vmem:[#allocation12 + $0xe0] sm:$0xff] %v4363
    %4428 = vst [vmem:[#allocation12 + $0xe8] sm:$0xff] %v4364
    %4429 = vst [vmem:[#allocation12 + $0xf0] sm:$0xff] %v4365
    %4430 = vst [vmem:[#allocation12 + $0xf8] sm:$0xff] %v4366
    %4431 = vst [vmem:[#allocation12 + $0x100] sm:$0xff] %v4367
    %4432 = vst [vmem:[#allocation12 + $0x108] sm:$0xff] %v4368
    %4433 = vst [vmem:[#allocation12 + $0x110] sm:$0xff] %v4369
    %4434 = vst [vmem:[#allocation12 + $0x118] sm:$0xff] %v4370
    %4435 = vst [vmem:[#allocation12 + $0x120] sm:$0xff] %v4371
    %4436 = vst [vmem:[#allocation12 + $0x128] sm:$0xff] %v4372
    %4437 = vst [vmem:[#allocation12 + $0x130] sm:$0xff] %v4373
    %4438 = vst [vmem:[#allocation12 + $0x138] sm:$0xff] %v4374
    %4439 = vst [vmem:[#allocation12 + $0x140] sm:$0xff] %v4375
    %4440 = vst [vmem:[#allocation12 + $0x148] sm:$0xff] %v4376
    %4441 = vst [vmem:[#allocation12 + $0x150] sm:$0xff] %v4377
    %4442 = vst [vmem:[#allocation12 + $0x158] sm:$0xff] %v4378
    %4443 = vst [vmem:[#allocation12 + $0x160] sm:$0xff] %v4379
    %4444 = vst [vmem:[#allocation12 + $0x168] sm:$0xff] %v4380
    %4445 = vst [vmem:[#allocation12 + $0x170] sm:$0xff] %v4381
    %4446 = vst [vmem:[#allocation12 + $0x178] sm:$0xff] %v4382
    %4447 = vst [vmem:[#allocation12 + $0x180] sm:$0xff] %v4383
    %4448 = vst [vmem:[#allocation12 + $0x188] sm:$0xff] %v4384
    %4449 = vst [vmem:[#allocation12 + $0x190] sm:$0xff] %v4385
    %4450 = vst [vmem:[#allocation12 + $0x198] sm:$0xff] %v4386
    %4451 = vst [vmem:[#allocation12 + $0x1a0] sm:$0xff] %v4387
    %4452 = vst [vmem:[#allocation12 + $0x1a8] sm:$0xff] %v4388
    %4453 = vst [vmem:[#allocation12 + $0x1b0] sm:$0xff] %v4389
    %4454 = vst [vmem:[#allocation12 + $0x1b8] sm:$0xff] %v4390
    %4455 = vst [vmem:[#allocation12 + $0x1c0] sm:$0xff] %v4391
    %4456 = vst [vmem:[#allocation12 + $0x1c8] sm:$0xff] %v4392
    %4457 = vst [vmem:[#allocation12 + $0x1d0] sm:$0xff] %v4393
    %4458 = vst [vmem:[#allocation12 + $0x1d8] sm:$0xff] %v4394
    %4459 = vst [vmem:[#allocation12 + $0x1e0] sm:$0xff] %v4395
    %4460 = vst [vmem:[#allocation12 + $0x1e8] sm:$0xff] %v4396
    %4461 = vst [vmem:[#allocation12 + $0x1f0] sm:$0xff] %v4397
    %4462 = vst [vmem:[#allocation12 + $0x1f8] sm:$0xff] %v4398
    // Predicated region
    $region42: #{tpu_custom_call.1} parent=1 // pred_check
      _
    $region43: #{tpu_custom_call.1} parent=1 // pred_check_branch
      %4464 = sbr.rel (0) target = $region45
    $region44: #{tpu_custom_call.1} parent=1 // pred_region
      %s4466 = ssub.s32 8192, 8192
      %4467 = vsyncadd [#allocation4], %s4466
      %s4468 = sshll.u32 [#allocation12], 4
      %s4469 = int_to_ptr.vmem [resolvable:$true] %s4468
      %4474 = dma.vmem_to_hbm [thread:$0]  %s4469, 8192, %s5, [#allocation4], 128, 128, 8
    $region45: #{tpu_custom_call.1} parent=1 // pred_fallthru
      _
    // Predicated region
    $region46: #{tpu_custom_call.1} parent=1 // pred_check
      _
    $region47: #{tpu_custom_call.1} parent=1 // pred_check_branch
      %4476 = sbr.rel (0) target = $region49
    $region48: #{tpu_custom_call.1} parent=1 // pred_region
      %4477 = dma.done [#allocation4], 8192
    $region49: #{tpu_custom_call.1} parent=1 // pred_fallthru
      _
    %4478 = vsyncpa [#allocation3], 1
    %4479 = vsyncpa [#allocation7], 1
    %4480 = vsyncpa [#allocation10], 1
    %4481 = vsyncpa [#allocation4], 1
    %4482 = vsyncpa [#allocation5], 1

// kernel: tpu_custom_call.1
$region0: #{tpu_custom_call.1}
  #allocation0 [shape = 'u32[]', space=smem, size = 0x4, offset = 0x4, fixed_abs, tag = 'smem constant byte address 0x4 - core index']
  #allocation1 [shape = 'u32[144,128]{1,0:T(1,128)}', space=vmem, size = 0x12000, scoped, tag = 'internal scratch']
  %s0 = inlined_call_operand.hbm [shape: f32[512,128], index: 0, kind: input, shape index: {}]
  %s1 = inlined_call_operand.hbm [shape: f32[8,128], index: 1, kind: input, shape index: {}]
  %s2 = inlined_call_operand.hbm [shape: bf16[1,128,512], index: 2, kind: input, shape index: {}]
  %s3 = inlined_call_operand.hbm [shape: bf16[1,512,128], index: 3, kind: input, shape index: {}]
  %s4 = inlined_call_operand.vmem [shape: f32[2], index: 4, kind: input, shape index: {}]
  %s5 = inlined_call_operand.hbm [shape: f32[512,128], index: 5, kind: output, shape index: {}]
  %s6 = sld [smem:[#allocation0]]
  $region50: #{tpu_custom_call.1} parent=0
    _
  %s8 = ssub.s32 1, %s6
  %s9 = scalar_select 0, %s8, %s6
  $region1: #{tpu_custom_call.1} parent=0
    #allocation2 [shape = 'u8[262144]{0}', space=vmem, size = 0x40000, scoped, tag = 'input window, operand 0, single buffered']
    #allocation3 [shape = 's32[1]{0}', space=sflag, size = 0x4, scoped, tag = 'scoped memory for tpu_custom_call.1']
    #allocation4 [shape = 's32[1]{0}', space=sflag, size = 0x4, scoped, tag = 'scoped memory for tpu_custom_call.1']
    #allocation5 [shape = 's32[1]{0}', space=sflag, size = 0x4, scoped, tag = 'scoped memory for tpu_custom_call.1']
    #allocation6 [shape = 'u8[4096]{0}', space=vmem, size = 0x1000, scoped, tag = 'input window, operand 1, single buffered']
    #allocation7 [shape = 's32[1]{0}', space=sflag, size = 0x4, scoped, tag = 'scoped memory for tpu_custom_call.1']
    #allocation8 [shape = 'u8[131072]{0}', space=vmem, size = 0x20000, scoped, tag = 'input window, operand 2, single buffered']
    #allocation9 [shape = 'u8[131072]{0}', space=vmem, size = 0x20000, scoped, tag = 'input window, operand 3, single buffered']
    #allocation10 [shape = 's32[1]{0}', space=sflag, size = 0x4, scoped, tag = 'scoped memory for tpu_custom_call.1']
    #allocation11 [shape = 'u8[512]{0}', space=smem, size = 0x200, scoped, tag = 'input window, operand 4, single buffered']
    #allocation12 [shape = 'u8[262144]{0}', space=vmem, size = 0x40000, scoped, tag = 'output window, operand 0, single buffered']
    %10 = vsyncpa [#allocation3], 0
    %11 = vsyncpa [#allocation7], 0
    %12 = vsyncpa [#allocation10], 0
    %13 = vsyncpa [#allocation5], 0
    %14 = vsyncpa [#allocation4], 0
    // Predicated region
    $region2: #{tpu_custom_call.1} parent=1 // pred_check
      _
    $region3: #{tpu_custom_call.1} parent=1 // pred_check_branch
      %16 = sbr.rel (0) target = $region5
    $region4: #{tpu_custom_call.1} parent=1 // pred_region
      %s18 = ssub.s32 8192, 8192
      %19 = vsyncadd [#allocation3], %s18
      %s20 = sshll.u32 [#allocation2], 4
      %s21 = int_to_ptr.vmem [resolvable:$true] %s20
      %26 = dma.hbm_to_vmem [thread:$0]  %s0, 8192, %s21, [#allocation3], 128, 128, 8
    $region5: #{tpu_custom_call.1} parent=1 // pred_fallthru
      _
    // Predicated region
    $region6: #{tpu_custom_call.1} parent=1 // pred_check
      _
    $region7: #{tpu_custom_call.1} parent=1 // pred_check_branch
      %28 = sbr.rel (0) target = $region9
    $region8: #{tpu_custom_call.1} parent=1 // pred_region
      %s30 = ssub.s32 128, 128
      %31 = vsyncadd [#allocation7], %s30
      %s33 = sshll.u32 [#allocation6], 4
      %s34 = int_to_ptr.vmem [resolvable:$true] %s33
      %36 = dma.hbm_to_vmem [thread:$0]  %s1, 128, %s34, [#allocation7]
    $region9: #{tpu_custom_call.1} parent=1 // pred_fallthru
      _
    // Predicated region
    $region10: #{tpu_custom_call.1} parent=1 // pred_check
      _
    $region11: #{tpu_custom_call.1} parent=1 // pred_check_branch
      %38 = sbr.rel (0) target = $region13
    $region12: #{tpu_custom_call.1} parent=1 // pred_region
      %s40 = ssub.s32 4096, 4096
      %41 = vsyncadd [#allocation7], %s40
      %s42 = sshll.u32 [#allocation8], 4
      %s43 = int_to_ptr.vmem [resolvable:$true] %s42
      %48 = dma.hbm_to_vmem [thread:$0]  %s2, 4096, %s43, [#allocation7], 256, 256, 16
    $region13: #{tpu_custom_call.1} parent=1 // pred_fallthru
      _
    // Predicated region
    $region14: #{tpu_custom_call.1} parent=1 // pred_check
      _
    $region15: #{tpu_custom_call.1} parent=1 // pred_check_branch
      %50 = sbr.rel (0) target = $region17
    $region16: #{tpu_custom_call.1} parent=1 // pred_region
      %s52 = ssub.s32 4096, 4096
      %53 = vsyncadd [#allocation10], %s52
      %s54 = sshll.u32 [#allocation9], 4
      %s55 = int_to_ptr.vmem [resolvable:$true] %s54
      %60 = dma.hbm_to_vmem [thread:$0]  %s3, 4096, %s55, [#allocation10], 64, 64, 4
    $region17: #{tpu_custom_call.1} parent=1 // pred_fallthru
      _
    // Predicated region
    $region18: #{tpu_custom_call.1} parent=1 // pred_check
      _
    $region19: #{tpu_custom_call.1} parent=1 // pred_check_branch
      %62 = sbr.rel (0) target = $region21
    $region20: #{tpu_custom_call.1} parent=1 // pred_region
      %s64 = ssub.s32 16, 16
      %65 = vsyncadd [#allocation5], %s64
      %s67 = sshll.u32 %s4, 4
      %s68 = int_to_ptr.vmem [resolvable:$true] %s67
      %70 = dma.vmem_to_smem %s68, 16, [#allocation11], [#allocation5]
    $region21: #{tpu_custom_call.1} parent=1 // pred_fallthru
      _
    // Predicated region
    $region22: #{tpu_custom_call.1} parent=1 // pred_check
      _
    $region23: #{tpu_custom_call.1} parent=1 // pred_check_branch
      %72 = sbr.rel (0) target = $region25
    $region24: #{tpu_custom_call.1} parent=1 // pred_region
      %73 = dma.done [#allocation3], 8192
    $region25: #{tpu_custom_call.1} parent=1 // pred_fallthru
      _
    // Predicated region
    $region26: #{tpu_custom_call.1} parent=1 // pred_check
      _
    $region27: #{tpu_custom_call.1} parent=1 // pred_check_branch
      %75 = sbr.rel (0) target = $region29
    $region28: #{tpu_custom_call.1} parent=1 // pred_region
      %76 = dma.done [#allocation7], 128
    $region29: #{tpu_custom_call.1} parent=1 // pred_fallthru
      _
    // Predicated region
    $region30: #{tpu_custom_call.1} parent=1 // pred_check
      _
    $region31: #{tpu_custom_call.1} parent=1 // pred_check_branch
      %78 = sbr.rel (0) target = $region33
    $region32: #{tpu_custom_call.1} parent=1 // pred_region
      %79 = dma.done [#allocation7], 4096
    $region33: #{tpu_custom_call.1} parent=1 // pred_fallthru
      _
    // Predicated region
    $region34: #{tpu_custom_call.1} parent=1 // pred_check
      _
    $region35: #{tpu_custom_call.1} parent=1 // pred_check_branch
      %81 = sbr.rel (0) target = $region37
    $region36: #{tpu_custom_call.1} parent=1 // pred_region
      %82 = dma.done [#allocation10], 4096
    $region37: #{tpu_custom_call.1} parent=1 // pred_fallthru
      _
    // Predicated region
    $region38: #{tpu_custom_call.1} parent=1 // pred_check
      _
    $region39: #{tpu_custom_call.1} parent=1 // pred_check_branch
      %84 = sbr.rel (0) target = $region41
    $region40: #{tpu_custom_call.1} parent=1 // pred_region
      %85 = dma.done [#allocation5], 16
    $region41: #{tpu_custom_call.1} parent=1 // pred_fallthru
      _
    %86 = sfence
    %v88 = vld [vmem:[#allocation2] sm:$0xff]
    %v89 = vld [vmem:[#allocation2 + $0x8] sm:$0xff]
    %v90 = vld [vmem:[#allocation2 + $0x10] sm:$0xff]
    %v91 = vld [vmem:[#allocation2 + $0x18] sm:$0xff]
    %v92 = vld [vmem:[#allocation2 + $0x20] sm:$0xff]
    %v93 = vld [vmem:[#allocation2 + $0x28] sm:$0xff]
    %v94 = vld [vmem:[#allocation2 + $0x30] sm:$0xff]
    %v95 = vld [vmem:[#allocation2 + $0x38] sm:$0xff]
    %v96 = vld [vmem:[#allocation2 + $0x40] sm:$0xff]
    %v97 = vld [vmem:[#allocation2 + $0x48] sm:$0xff]
    %v98 = vld [vmem:[#allocation2 + $0x50] sm:$0xff]
    %v99 = vld [vmem:[#allocation2 + $0x58] sm:$0xff]
    %v100 = vld [vmem:[#allocation2 + $0x60] sm:$0xff]
    %v101 = vld [vmem:[#allocation2 + $0x68] sm:$0xff]
    %v102 = vld [vmem:[#allocation2 + $0x70] sm:$0xff]
    %v103 = vld [vmem:[#allocation2 + $0x78] sm:$0xff]
    %v104 = vld [vmem:[#allocation2 + $0x80] sm:$0xff]
    %v105 = vld [vmem:[#allocation2 + $0x88] sm:$0xff]
    %v106 = vld [vmem:[#allocation2 + $0x90] sm:$0xff]
    %v107 = vld [vmem:[#allocation2 + $0x98] sm:$0xff]
    %v108 = vld [vmem:[#allocation2 + $0xa0] sm:$0xff]
    %v109 = vld [vmem:[#allocation2 + $0xa8] sm:$0xff]
    %v110 = vld [vmem:[#allocation2 + $0xb0] sm:$0xff]
    %v111 = vld [vmem:[#allocation2 + $0xb8] sm:$0xff]
    %v112 = vld [vmem:[#allocation2 + $0xc0] sm:$0xff]
    %v113 = vld [vmem:[#allocation2 + $0xc8] sm:$0xff]
    %v114 = vld [vmem:[#allocation2 + $0xd0] sm:$0xff]
    %v115 = vld [vmem:[#allocation2 + $0xd8] sm:$0xff]
    %v116 = vld [vmem:[#allocation2 + $0xe0] sm:$0xff]
    %v117 = vld [vmem:[#allocation2 + $0xe8] sm:$0xff]
    %v118 = vld [vmem:[#allocation2 + $0xf0] sm:$0xff]
    %v119 = vld [vmem:[#allocation2 + $0xf8] sm:$0xff]
    %v120 = vld [vmem:[#allocation2 + $0x100] sm:$0xff]
    %v121 = vld [vmem:[#allocation2 + $0x108] sm:$0xff]
    %v122 = vld [vmem:[#allocation2 + $0x110] sm:$0xff]
    %v123 = vld [vmem:[#allocation2 + $0x118] sm:$0xff]
    %v124 = vld [vmem:[#allocation2 + $0x120] sm:$0xff]
    %v125 = vld [vmem:[#allocation2 + $0x128] sm:$0xff]
    %v126 = vld [vmem:[#allocation2 + $0x130] sm:$0xff]
    %v127 = vld [vmem:[#allocation2 + $0x138] sm:$0xff]
    %v128 = vld [vmem:[#allocation2 + $0x140] sm:$0xff]
    %v129 = vld [vmem:[#allocation2 + $0x148] sm:$0xff]
    %v130 = vld [vmem:[#allocation2 + $0x150] sm:$0xff]
    %v131 = vld [vmem:[#allocation2 + $0x158] sm:$0xff]
    %v132 = vld [vmem:[#allocation2 + $0x160] sm:$0xff]
    %v133 = vld [vmem:[#allocation2 + $0x168] sm:$0xff]
    %v134 = vld [vmem:[#allocation2 + $0x170] sm:$0xff]
    %v135 = vld [vmem:[#allocation2 + $0x178] sm:$0xff]
    %v136 = vld [vmem:[#allocation2 + $0x180] sm:$0xff]
    %v137 = vld [vmem:[#allocation2 + $0x188] sm:$0xff]
    %v138 = vld [vmem:[#allocation2 + $0x190] sm:$0xff]
    %v139 = vld [vmem:[#allocation2 + $0x198] sm:$0xff]
    %v140 = vld [vmem:[#allocation2 + $0x1a0] sm:$0xff]
    %v141 = vld [vmem:[#allocation2 + $0x1a8] sm:$0xff]
    %v142 = vld [vmem:[#allocation2 + $0x1b0] sm:$0xff]
    %v143 = vld [vmem:[#allocation2 + $0x1b8] sm:$0xff]
    %v144 = vld [vmem:[#allocation2 + $0x1c0] sm:$0xff]
    %v145 = vld [vmem:[#allocation2 + $0x1c8] sm:$0xff]
    %v146 = vld [vmem:[#allocation2 + $0x1d0] sm:$0xff]
    %v147 = vld [vmem:[#allocation2 + $0x1d8] sm:$0xff]
    %v148 = vld [vmem:[#allocation2 + $0x1e0] sm:$0xff]
    %v149 = vld [vmem:[#allocation2 + $0x1e8] sm:$0xff]
    %v150 = vld [vmem:[#allocation2 + $0x1f0] sm:$0xff]
    %v151 = vld [vmem:[#allocation2 + $0x1f8] sm:$0xff]
    %v152 = vld [vmem:[#allocation6] sm:$0x1]
    %v153 = vld [vmem:[#allocation6 + $0x1] sm:$0x1]
    %v154 = vld [vmem:[#allocation6 + $0x2] sm:$0x1]
    %v155 = vld [vmem:[#allocation6 + $0x3] sm:$0x1]
    %156 = vadd.xlane.f32.xlu0 %v88
    %v157 = vpop.xlane.xlu0 %156
    %158 = vadd.xlane.f32.xlu0 %v89
    %v159 = vpop.xlane.xlu0 %158
    %160 = vadd.xlane.f32.xlu0 %v90
    %v161 = vpop.xlane.xlu0 %160
    %162 = vadd.xlane.f32.xlu0 %v91
    %v163 = vpop.xlane.xlu0 %162
    %164 = vadd.xlane.f32.xlu0 %v92
    %v165 = vpop.xlane.xlu0 %164
    %166 = vadd.xlane.f32.xlu0 %v93
    %v167 = vpop.xlane.xlu0 %166
    %168 = vadd.xlane.f32.xlu0 %v94
    %v169 = vpop.xlane.xlu0 %168
    %170 = vadd.xlane.f32.xlu0 %v95
    %v171 = vpop.xlane.xlu0 %170
    %172 = vadd.xlane.f32.xlu0 %v96
    %v173 = vpop.xlane.xlu0 %172
    %174 = vadd.xlane.f32.xlu0 %v97
    %v175 = vpop.xlane.xlu0 %174
    %176 = vadd.xlane.f32.xlu0 %v98
    %v177 = vpop.xlane.xlu0 %176
    %178 = vadd.xlane.f32.xlu0 %v99
    %v179 = vpop.xlane.xlu0 %178
    %180 = vadd.xlane.f32.xlu0 %v100
    %v181 = vpop.xlane.xlu0 %180
    %182 = vadd.xlane.f32.xlu0 %v101
    %v183 = vpop.xlane.xlu0 %182
    %184 = vadd.xlane.f32.xlu0 %v102
    %v185 = vpop.xlane.xlu0 %184
    %186 = vadd.xlane.f32.xlu0 %v103
    %v187 = vpop.xlane.xlu0 %186
    %188 = vadd.xlane.f32.xlu0 %v104
    %v189 = vpop.xlane.xlu0 %188
    %190 = vadd.xlane.f32.xlu0 %v105
    %v191 = vpop.xlane.xlu0 %190
    %192 = vadd.xlane.f32.xlu0 %v106
    %v193 = vpop.xlane.xlu0 %192
    %194 = vadd.xlane.f32.xlu0 %v107
    %v195 = vpop.xlane.xlu0 %194
    %196 = vadd.xlane.f32.xlu0 %v108
    %v197 = vpop.xlane.xlu0 %196
    %198 = vadd.xlane.f32.xlu0 %v109
    %v199 = vpop.xlane.xlu0 %198
    %200 = vadd.xlane.f32.xlu0 %v110
    %v201 = vpop.xlane.xlu0 %200
    %202 = vadd.xlane.f32.xlu0 %v111
    %v203 = vpop.xlane.xlu0 %202
    %204 = vadd.xlane.f32.xlu0 %v112
    %v205 = vpop.xlane.xlu0 %204
    %206 = vadd.xlane.f32.xlu0 %v113
    %v207 = vpop.xlane.xlu0 %206
    %208 = vadd.xlane.f32.xlu0 %v114
    %v209 = vpop.xlane.xlu0 %208
    %210 = vadd.xlane.f32.xlu0 %v115
    %v211 = vpop.xlane.xlu0 %210
    %212 = vadd.xlane.f32.xlu0 %v116
    %v213 = vpop.xlane.xlu0 %212
    %214 = vadd.xlane.f32.xlu0 %v117
    %v215 = vpop.xlane.xlu0 %214
    %216 = vadd.xlane.f32.xlu0 %v118
    %v217 = vpop.xlane.xlu0 %216
    %218 = vadd.xlane.f32.xlu0 %v119
    %v219 = vpop.xlane.xlu0 %218
    %220 = vadd.xlane.f32.xlu0 %v120
    %v221 = vpop.xlane.xlu0 %220
    %222 = vadd.xlane.f32.xlu0 %v121
    %v223 = vpop.xlane.xlu0 %222
    %224 = vadd.xlane.f32.xlu0 %v122
    %v225 = vpop.xlane.xlu0 %224
    %226 = vadd.xlane.f32.xlu0 %v123
    %v227 = vpop.xlane.xlu0 %226
    %228 = vadd.xlane.f32.xlu0 %v124
    %v229 = vpop.xlane.xlu0 %228
    %230 = vadd.xlane.f32.xlu0 %v125
    %v231 = vpop.xlane.xlu0 %230
    %232 = vadd.xlane.f32.xlu0 %v126
    %v233 = vpop.xlane.xlu0 %232
    %234 = vadd.xlane.f32.xlu0 %v127
    %v235 = vpop.xlane.xlu0 %234
    %236 = vadd.xlane.f32.xlu0 %v128
    %v237 = vpop.xlane.xlu0 %236
    %238 = vadd.xlane.f32.xlu0 %v129
    %v239 = vpop.xlane.xlu0 %238
    %240 = vadd.xlane.f32.xlu0 %v130
    %v241 = vpop.xlane.xlu0 %240
    %242 = vadd.xlane.f32.xlu0 %v131
    %v243 = vpop.xlane.xlu0 %242
    %244 = vadd.xlane.f32.xlu0 %v132
    %v245 = vpop.xlane.xlu0 %244
    %246 = vadd.xlane.f32.xlu0 %v133
    %v247 = vpop.xlane.xlu0 %246
    %248 = vadd.xlane.f32.xlu0 %v134
    %v249 = vpop.xlane.xlu0 %248
    %250 = vadd.xlane.f32.xlu0 %v135
    %v251 = vpop.xlane.xlu0 %250
    %252 = vadd.xlane.f32.xlu0 %v136
    %v253 = vpop.xlane.xlu0 %252
    %254 = vadd.xlane.f32.xlu0 %v137
    %v255 = vpop.xlane.xlu0 %254
    %256 = vadd.xlane.f32.xlu0 %v138
    %v257 = vpop.xlane.xlu0 %256
    %258 = vadd.xlane.f32.xlu0 %v139
    %v259 = vpop.xlane.xlu0 %258
    %260 = vadd.xlane.f32.xlu0 %v140
    %v261 = vpop.xlane.xlu0 %260
    %262 = vadd.xlane.f32.xlu0 %v141
    %v263 = vpop.xlane.xlu0 %262
    %264 = vadd.xlane.f32.xlu0 %v142
    %v265 = vpop.xlane.xlu0 %264
    %266 = vadd.xlane.f32.xlu0 %v143
    %v267 = vpop.xlane.xlu0 %266
    %268 = vadd.xlane.f32.xlu0 %v144
    %v269 = vpop.xlane.xlu0 %268
    %270 = vadd.xlane.f32.xlu0 %v145
    %v271 = vpop.xlane.xlu0 %270
    %272 = vadd.xlane.f32.xlu0 %v146
    %v273 = vpop.xlane.xlu0 %272
    %274 = vadd.xlane.f32.xlu0 %v147
    %v275 = vpop.xlane.xlu0 %274
    %276 = vadd.xlane.f32.xlu0 %v148
    %v277 = vpop.xlane.xlu0 %276
    %278 = vadd.xlane.f32.xlu0 %v149
    %v279 = vpop.xlane.xlu0 %278
    %280 = vadd.xlane.f32.xlu0 %v150
    %v281 = vpop.xlane.xlu0 %280
    %282 = vadd.xlane.f32.xlu0 %v151
    %v283 = vpop.xlane.xlu0 %282
    %v284 = vrcp.pop 128.0
    %v285 = vmul.f32 %v157, %v284
    %v286 = vmul.f32 %v159, %v284
    %v287 = vmul.f32 %v161, %v284
    %v288 = vmul.f32 %v163, %v284
    %v289 = vmul.f32 %v165, %v284
    %v290 = vmul.f32 %v167, %v284
    %v291 = vmul.f32 %v169, %v284
    %v292 = vmul.f32 %v171, %v284
    %v293 = vmul.f32 %v173, %v284
    %v294 = vmul.f32 %v175, %v284
    %v295 = vmul.f32 %v177, %v284
    %v296 = vmul.f32 %v179, %v284
    %v297 = vmul.f32 %v181, %v284
    %v298 = vmul.f32 %v183, %v284
    %v299 = vmul.f32 %v185, %v284
    %v300 = vmul.f32 %v187, %v284
    %v301 = vmul.f32 %v189, %v284
    %v302 = vmul.f32 %v191, %v284
    %v303 = vmul.f32 %v193, %v284
    %v304 = vmul.f32 %v195, %v284
    %v305 = vmul.f32 %v197, %v284
    %v306 = vmul.f32 %v199, %v284
    %v307 = vmul.f32 %v201, %v284
    %v308 = vmul.f32 %v203, %v284
    %v309 = vmul.f32 %v205, %v284
    %v310 = vmul.f32 %v207, %v284
    %v311 = vmul.f32 %v209, %v284
    %v312 = vmul.f32 %v211, %v284
    %v313 = vmul.f32 %v213, %v284
    %v314 = vmul.f32 %v215, %v284
    %v315 = vmul.f32 %v217, %v284
    %v316 = vmul.f32 %v219, %v284
    %v317 = vmul.f32 %v221, %v284
    %v318 = vmul.f32 %v223, %v284
    %v319 = vmul.f32 %v225, %v284
    %v320 = vmul.f32 %v227, %v284
    %v321 = vmul.f32 %v229, %v284
    %v322 = vmul.f32 %v231, %v284
    %v323 = vmul.f32 %v233, %v284
    %v324 = vmul.f32 %v235, %v284
    %v325 = vmul.f32 %v237, %v284
    %v326 = vmul.f32 %v239, %v284
    %v327 = vmul.f32 %v241, %v284
    %v328 = vmul.f32 %v243, %v284
    %v329 = vmul.f32 %v245, %v284
    %v330 = vmul.f32 %v247, %v284
    %v331 = vmul.f32 %v249, %v284
    %v332 = vmul.f32 %v251, %v284
    %v333 = vmul.f32 %v253, %v284
    %v334 = vmul.f32 %v255, %v284
    %v335 = vmul.f32 %v257, %v284
    %v336 = vmul.f32 %v259, %v284
    %v337 = vmul.f32 %v261, %v284
    %v338 = vmul.f32 %v263, %v284
    %v339 = vmul.f32 %v265, %v284
    %v340 = vmul.f32 %v267, %v284
    %v341 = vmul.f32 %v269, %v284
    %v342 = vmul.f32 %v271, %v284
    %v343 = vmul.f32 %v273, %v284
    %v344 = vmul.f32 %v275, %v284
    %v345 = vmul.f32 %v277, %v284
    %v346 = vmul.f32 %v279, %v284
    %v347 = vmul.f32 %v281, %v284
    %v348 = vmul.f32 %v283, %v284
    %v349 = vsub.f32 %v88, %v285
    %v350 = vsub.f32 %v89, %v286
    %v351 = vsub.f32 %v90, %v287
    %v352 = vsub.f32 %v91, %v288
    %v353 = vsub.f32 %v92, %v289
    %v354 = vsub.f32 %v93, %v290
    %v355 = vsub.f32 %v94, %v291
    %v356 = vsub.f32 %v95, %v292
    %v357 = vsub.f32 %v96, %v293
    %v358 = vsub.f32 %v97, %v294
    %v359 = vsub.f32 %v98, %v295
    %v360 = vsub.f32 %v99, %v296
    %v361 = vsub.f32 %v100, %v297
    %v362 = vsub.f32 %v101, %v298
    %v363 = vsub.f32 %v102, %v299
    %v364 = vsub.f32 %v103, %v300
    %v365 = vsub.f32 %v104, %v301
    %v366 = vsub.f32 %v105, %v302
    %v367 = vsub.f32 %v106, %v303
    %v368 = vsub.f32 %v107, %v304
    %v369 = vsub.f32 %v108, %v305
    %v370 = vsub.f32 %v109, %v306
    %v371 = vsub.f32 %v110, %v307
    %v372 = vsub.f32 %v111, %v308
    %v373 = vsub.f32 %v112, %v309
    %v374 = vsub.f32 %v113, %v310
    %v375 = vsub.f32 %v114, %v311
    %v376 = vsub.f32 %v115, %v312
    %v377 = vsub.f32 %v116, %v313
    %v378 = vsub.f32 %v117, %v314
    %v379 = vsub.f32 %v118, %v315
    %v380 = vsub.f32 %v119, %v316
    %v381 = vsub.f32 %v120, %v317
    %v382 = vsub.f32 %v121, %v318
    %v383 = vsub.f32 %v122, %v319
    %v384 = vsub.f32 %v123, %v320
    %v385 = vsub.f32 %v124, %v321
    %v386 = vsub.f32 %v125, %v322
    %v387 = vsub.f32 %v126, %v323
    %v388 = vsub.f32 %v127, %v324
    %v389 = vsub.f32 %v128, %v325
    %v390 = vsub.f32 %v129, %v326
    %v391 = vsub.f32 %v130, %v327
    %v392 = vsub.f32 %v131, %v328
    %v393 = vsub.f32 %v132, %v329
    %v394 = vsub.f32 %v133, %v330
    %v395 = vsub.f32 %v134, %v331
    %v396 = vsub.f32 %v135, %v332
    %v397 = vsub.f32 %v136, %v333
    %v398 = vsub.f32 %v137, %v334
    %v399 = vsub.f32 %v138, %v335
    %v400 = vsub.f32 %v139, %v336
    %v401 = vsub.f32 %v140, %v337
    %v402 = vsub.f32 %v141, %v338
    %v403 = vsub.f32 %v142, %v339
    %v404 = vsub.f32 %v143, %v340
    %v405 = vsub.f32 %v144, %v341
    %v406 = vsub.f32 %v145, %v342
    %v407 = vsub.f32 %v146, %v343
    %v408 = vsub.f32 %v147, %v344
    %v409 = vsub.f32 %v148, %v345
    %v410 = vsub.f32 %v149, %v346
    %v411 = vsub.f32 %v150, %v347
    %v412 = vsub.f32 %v151, %v348
    %v413 = vmul.f32 %v349, %v349
    %v414 = vmul.f32 %v350, %v350
    %v415 = vmul.f32 %v351, %v351
    %v416 = vmul.f32 %v352, %v352
    %v417 = vmul.f32 %v353, %v353
    %v418 = vmul.f32 %v354, %v354
    %v419 = vmul.f32 %v355, %v355
    %v420 = vmul.f32 %v356, %v356
    %v421 = vmul.f32 %v357, %v357
    %v422 = vmul.f32 %v358, %v358
    %v423 = vmul.f32 %v359, %v359
    %v424 = vmul.f32 %v360, %v360
    %v425 = vmul.f32 %v361, %v361
    %v426 = vmul.f32 %v362, %v362
    %v427 = vmul.f32 %v363, %v363
    %v428 = vmul.f32 %v364, %v364
    %v429 = vmul.f32 %v365, %v365
    %v430 = vmul.f32 %v366, %v366
    %v431 = vmul.f32 %v367, %v367
    %v432 = vmul.f32 %v368, %v368
    %v433 = vmul.f32 %v369, %v369
    %v434 = vmul.f32 %v370, %v370
    %v435 = vmul.f32 %v371, %v371
    %v436 = vmul.f32 %v372, %v372
    %v437 = vmul.f32 %v373, %v373
    %v438 = vmul.f32 %v374, %v374
    %v439 = vmul.f32 %v375, %v375
    %v440 = vmul.f32 %v376, %v376
    %v441 = vmul.f32 %v377, %v377
    %v442 = vmul.f32 %v378, %v378
    %v443 = vmul.f32 %v379, %v379
    %v444 = vmul.f32 %v380, %v380
    %v445 = vmul.f32 %v381, %v381
    %v446 = vmul.f32 %v382, %v382
    %v447 = vmul.f32 %v383, %v383
    %v448 = vmul.f32 %v384, %v384
    %v449 = vmul.f32 %v385, %v385
    %v450 = vmul.f32 %v386, %v386
    %v451 = vmul.f32 %v387, %v387
    %v452 = vmul.f32 %v388, %v388
    %v453 = vmul.f32 %v389, %v389
    %v454 = vmul.f32 %v390, %v390
    %v455 = vmul.f32 %v391, %v391
    %v456 = vmul.f32 %v392, %v392
    %v457 = vmul.f32 %v393, %v393
    %v458 = vmul.f32 %v394, %v394
    %v459 = vmul.f32 %v395, %v395
    %v460 = vmul.f32 %v396, %v396
    %v461 = vmul.f32 %v397, %v397
    %v462 = vmul.f32 %v398, %v398
    %v463 = vmul.f32 %v399, %v399
    %v464 = vmul.f32 %v400, %v400
    %v465 = vmul.f32 %v401, %v401
    %v466 = vmul.f32 %v402, %v402
    %v467 = vmul.f32 %v403, %v403
    %v468 = vmul.f32 %v404, %v404
    %v469 = vmul.f32 %v405, %v405
    %v470 = vmul.f32 %v406, %v406
    %v471 = vmul.f32 %v407, %v407
    %v472 = vmul.f32 %v408, %v408
    %v473 = vmul.f32 %v409, %v409
    %v474 = vmul.f32 %v410, %v410
    %v475 = vmul.f32 %v411, %v411
    %v476 = vmul.f32 %v412, %v412
    %477 = vadd.xlane.f32.xlu0 %v413
    %v478 = vpop.xlane.xlu0 %477
    %479 = vadd.xlane.f32.xlu0 %v414
    %v480 = vpop.xlane.xlu0 %479
    %481 = vadd.xlane.f32.xlu0 %v415
    %v482 = vpop.xlane.xlu0 %481
    %483 = vadd.xlane.f32.xlu0 %v416
    %v484 = vpop.xlane.xlu0 %483
    %485 = vadd.xlane.f32.xlu0 %v417
    %v486 = vpop.xlane.xlu0 %485
    %487 = vadd.xlane.f32.xlu0 %v418
    %v488 = vpop.xlane.xlu0 %487
    %489 = vadd.xlane.f32.xlu0 %v419
    %v490 = vpop.xlane.xlu0 %489
    %491 = vadd.xlane.f32.xlu0 %v420
    %v492 = vpop.xlane.xlu0 %491
    %493 = vadd.xlane.f32.xlu0 %v421
    %v494 = vpop.xlane.xlu0 %493
    %495 = vadd.xlane.f32.xlu0 %v422
    %v496 = vpop.xlane.xlu0 %495
    %497 = vadd.xlane.f32.xlu0 %v423
    %v498 = vpop.xlane.xlu0 %497
    %499 = vadd.xlane.f32.xlu0 %v424
    %v500 = vpop.xlane.xlu0 %499
    %501 = vadd.xlane.f32.xlu0 %v425
    %v502 = vpop.xlane.xlu0 %501
    %503 = vadd.xlane.f32.xlu0 %v426
    %v504 = vpop.xlane.xlu0 %503
    %505 = vadd.xlane.f32.xlu0 %v427
    %v506 = vpop.xlane.xlu0 %505
    %507 = vadd.xlane.f32.xlu0 %v428
    %v508 = vpop.xlane.xlu0 %507
    %509 = vadd.xlane.f32.xlu0 %v429
    %v510 = vpop.xlane.xlu0 %509
    %511 = vadd.xlane.f32.xlu0 %v430
    %v512 = vpop.xlane.xlu0 %511
    %513 = vadd.xlane.f32.xlu0 %v431
    %v514 = vpop.xlane.xlu0 %513
    %515 = vadd.xlane.f32.xlu0 %v432
    %v516 = vpop.xlane.xlu0 %515
    %517 = vadd.xlane.f32.xlu0 %v433
    %v518 = vpop.xlane.xlu0 %517
    %519 = vadd.xlane.f32.xlu0 %v434
    %v520 = vpop.xlane.xlu0 %519
    %521 = vadd.xlane.f32.xlu0 %v435
    %v522 = vpop.xlane.xlu0 %521
    %523 = vadd.xlane.f32.xlu0 %v436
    %v524 = vpop.xlane.xlu0 %523
    %525 = vadd.xlane.f32.xlu0 %v437
    %v526 = vpop.xlane.xlu0 %525
    %527 = vadd.xlane.f32.xlu0 %v438
    %v528 = vpop.xlane.xlu0 %527
    %529 = vadd.xlane.f32.xlu0 %v439
    %v530 = vpop.xlane.xlu0 %529
    %531 = vadd.xlane.f32.xlu0 %v440
    %v532 = vpop.xlane.xlu0 %531
    %533 = vadd.xlane.f32.xlu0 %v441
    %v534 = vpop.xlane.xlu0 %533
    %535 = vadd.xlane.f32.xlu0 %v442
    %v536 = vpop.xlane.xlu0 %535
    %537 = vadd.xlane.f32.xlu0 %v443
    %v538 = vpop.xlane.xlu0 %537
    %539 = vadd.xlane.f32.xlu0 %v444
    %v540 = vpop.xlane.xlu0 %539
    %541 = vadd.xlane.f32.xlu0 %v445
    %v542 = vpop.xlane.xlu0 %541
    %543 = vadd.xlane.f32.xlu0 %v446
    %v544 = vpop.xlane.xlu0 %543
    %545 = vadd.xlane.f32.xlu0 %v447
    %v546 = vpop.xlane.xlu0 %545
    %547 = vadd.xlane.f32.xlu0 %v448
    %v548 = vpop.xlane.xlu0 %547
    %549 = vadd.xlane.f32.xlu0 %v449
    %v550 = vpop.xlane.xlu0 %549
    %551 = vadd.xlane.f32.xlu0 %v450
    %v552 = vpop.xlane.xlu0 %551
    %553 = vadd.xlane.f32.xlu0 %v451
    %v554 = vpop.xlane.xlu0 %553
    %555 = vadd.xlane.f32.xlu0 %v452
    %v556 = vpop.xlane.xlu0 %555
    %557 = vadd.xlane.f32.xlu0 %v453
    %v558 = vpop.xlane.xlu0 %557
    %559 = vadd.xlane.f32.xlu0 %v454
    %v560 = vpop.xlane.xlu0 %559
    %561 = vadd.xlane.f32.xlu0 %v455
    %v562 = vpop.xlane.xlu0 %561
    %563 = vadd.xlane.f32.xlu0 %v456
    %v564 = vpop.xlane.xlu0 %563
    %565 = vadd.xlane.f32.xlu0 %v457
    %v566 = vpop.xlane.xlu0 %565
    %567 = vadd.xlane.f32.xlu0 %v458
    %v568 = vpop.xlane.xlu0 %567
    %569 = vadd.xlane.f32.xlu0 %v459
    %v570 = vpop.xlane.xlu0 %569
    %571 = vadd.xlane.f32.xlu0 %v460
    %v572 = vpop.xlane.xlu0 %571
    %573 = vadd.xlane.f32.xlu0 %v461
    %v574 = vpop.xlane.xlu0 %573
    %575 = vadd.xlane.f32.xlu0 %v462
    %v576 = vpop.xlane.xlu0 %575
    %577 = vadd.xlane.f32.xlu0 %v463
    %v578 = vpop.xlane.xlu0 %577
    %579 = vadd.xlane.f32.xlu0 %v464
    %v580 = vpop.xlane.xlu0 %579
    %581 = vadd.xlane.f32.xlu0 %v465
    %v582 = vpop.xlane.xlu0 %581
    %583 = vadd.xlane.f32.xlu0 %v466
    %v584 = vpop.xlane.xlu0 %583
    %585 = vadd.xlane.f32.xlu0 %v467
    %v586 = vpop.xlane.xlu0 %585
    %587 = vadd.xlane.f32.xlu0 %v468
    %v588 = vpop.xlane.xlu0 %587
    %589 = vadd.xlane.f32.xlu0 %v469
    %v590 = vpop.xlane.xlu0 %589
    %591 = vadd.xlane.f32.xlu0 %v470
    %v592 = vpop.xlane.xlu0 %591
    %593 = vadd.xlane.f32.xlu0 %v471
    %v594 = vpop.xlane.xlu0 %593
    %595 = vadd.xlane.f32.xlu0 %v472
    %v596 = vpop.xlane.xlu0 %595
    %597 = vadd.xlane.f32.xlu0 %v473
    %v598 = vpop.xlane.xlu0 %597
    %599 = vadd.xlane.f32.xlu0 %v474
    %v600 = vpop.xlane.xlu0 %599
    %601 = vadd.xlane.f32.xlu0 %v475
    %v602 = vpop.xlane.xlu0 %601
    %603 = vadd.xlane.f32.xlu0 %v476
    %v604 = vpop.xlane.xlu0 %603
    %v605 = vmul.f32 %v478, %v284
    %v606 = vmul.f32 %v480, %v284
    %v607 = vmul.f32 %v482, %v284
    %v608 = vmul.f32 %v484, %v284
    %v609 = vmul.f32 %v486, %v284
    %v610 = vmul.f32 %v488, %v284
    %v611 = vmul.f32 %v490, %v284
    %v612 = vmul.f32 %v492, %v284
    %v613 = vmul.f32 %v494, %v284
    %v614 = vmul.f32 %v496, %v284
    %v615 = vmul.f32 %v498, %v284
    %v616 = vmul.f32 %v500, %v284
    %v617 = vmul.f32 %v502, %v284
    %v618 = vmul.f32 %v504, %v284
    %v619 = vmul.f32 %v506, %v284
    %v620 = vmul.f32 %v508, %v284
    %v621 = vmul.f32 %v510, %v284
    %v622 = vmul.f32 %v512, %v284
    %v623 = vmul.f32 %v514, %v284
    %v624 = vmul.f32 %v516, %v284
    %v625 = vmul.f32 %v518, %v284
    %v626 = vmul.f32 %v520, %v284
    %v627 = vmul.f32 %v522, %v284
    %v628 = vmul.f32 %v524, %v284
    %v629 = vmul.f32 %v526, %v284
    %v630 = vmul.f32 %v528, %v284
    %v631 = vmul.f32 %v530, %v284
    %v632 = vmul.f32 %v532, %v284
    %v633 = vmul.f32 %v534, %v284
    %v634 = vmul.f32 %v536, %v284
    %v635 = vmul.f32 %v538, %v284
    %v636 = vmul.f32 %v540, %v284
    %v637 = vmul.f32 %v542, %v284
    %v638 = vmul.f32 %v544, %v284
    %v639 = vmul.f32 %v546, %v284
    %v640 = vmul.f32 %v548, %v284
    %v641 = vmul.f32 %v550, %v284
    %v642 = vmul.f32 %v552, %v284
    %v643 = vmul.f32 %v554, %v284
    %v644 = vmul.f32 %v556, %v284
    %v645 = vmul.f32 %v558, %v284
    %v646 = vmul.f32 %v560, %v284
    %v647 = vmul.f32 %v562, %v284
    %v648 = vmul.f32 %v564, %v284
    %v649 = vmul.f32 %v566, %v284
    %v650 = vmul.f32 %v568, %v284
    %v651 = vmul.f32 %v570, %v284
    %v652 = vmul.f32 %v572, %v284
    %v653 = vmul.f32 %v574, %v284
    %v654 = vmul.f32 %v576, %v284
    %v655 = vmul.f32 %v578, %v284
    %v656 = vmul.f32 %v580, %v284
    %v657 = vmul.f32 %v582, %v284
    %v658 = vmul.f32 %v584, %v284
    %v659 = vmul.f32 %v586, %v284
    %v660 = vmul.f32 %v588, %v284
    %v661 = vmul.f32 %v590, %v284
    %v662 = vmul.f32 %v592, %v284
    %v663 = vmul.f32 %v594, %v284
    %v664 = vmul.f32 %v596, %v284
    %v665 = vmul.f32 %v598, %v284
    %v666 = vmul.f32 %v600, %v284
    %v667 = vmul.f32 %v602, %v284
    %v668 = vmul.f32 %v604, %v284
    %v669 = vadd.f32 %v605, 1e-05
    %v670 = vadd.f32 %v606, 1e-05
    %v671 = vadd.f32 %v607, 1e-05
    %v672 = vadd.f32 %v608, 1e-05
    %v673 = vadd.f32 %v609, 1e-05
    %v674 = vadd.f32 %v610, 1e-05
    %v675 = vadd.f32 %v611, 1e-05
    %v676 = vadd.f32 %v612, 1e-05
    %v677 = vadd.f32 %v613, 1e-05
    %v678 = vadd.f32 %v614, 1e-05
    %v679 = vadd.f32 %v615, 1e-05
    %v680 = vadd.f32 %v616, 1e-05
    %v681 = vadd.f32 %v617, 1e-05
    %v682 = vadd.f32 %v618, 1e-05
    %v683 = vadd.f32 %v619, 1e-05
    %v684 = vadd.f32 %v620, 1e-05
    %v685 = vadd.f32 %v621, 1e-05
    %v686 = vadd.f32 %v622, 1e-05
    %v687 = vadd.f32 %v623, 1e-05
    %v688 = vadd.f32 %v624, 1e-05
    %v689 = vadd.f32 %v625, 1e-05
    %v690 = vadd.f32 %v626, 1e-05
    %v691 = vadd.f32 %v627, 1e-05
    %v692 = vadd.f32 %v628, 1e-05
    %v693 = vadd.f32 %v629, 1e-05
    %v694 = vadd.f32 %v630, 1e-05
    %v695 = vadd.f32 %v631, 1e-05
    %v696 = vadd.f32 %v632, 1e-05
    %v697 = vadd.f32 %v633, 1e-05
    %v698 = vadd.f32 %v634, 1e-05
    %v699 = vadd.f32 %v635, 1e-05
    %v700 = vadd.f32 %v636, 1e-05
    %v701 = vadd.f32 %v637, 1e-05
    %v702 = vadd.f32 %v638, 1e-05
    %v703 = vadd.f32 %v639, 1e-05
    %v704 = vadd.f32 %v640, 1e-05
    %v705 = vadd.f32 %v641, 1e-05
    %v706 = vadd.f32 %v642, 1e-05
    %v707 = vadd.f32 %v643, 1e-05
    %v708 = vadd.f32 %v644, 1e-05
    %v709 = vadd.f32 %v645, 1e-05
    %v710 = vadd.f32 %v646, 1e-05
    %v711 = vadd.f32 %v647, 1e-05
    %v712 = vadd.f32 %v648, 1e-05
    %v713 = vadd.f32 %v649, 1e-05
    %v714 = vadd.f32 %v650, 1e-05
    %v715 = vadd.f32 %v651, 1e-05
    %v716 = vadd.f32 %v652, 1e-05
    %v717 = vadd.f32 %v653, 1e-05
    %v718 = vadd.f32 %v654, 1e-05
    %v719 = vadd.f32 %v655, 1e-05
    %v720 = vadd.f32 %v656, 1e-05
    %v721 = vadd.f32 %v657, 1e-05
    %v722 = vadd.f32 %v658, 1e-05
    %v723 = vadd.f32 %v659, 1e-05
    %v724 = vadd.f32 %v660, 1e-05
    %v725 = vadd.f32 %v661, 1e-05
    %v726 = vadd.f32 %v662, 1e-05
    %v727 = vadd.f32 %v663, 1e-05
    %v728 = vadd.f32 %v664, 1e-05
    %v729 = vadd.f32 %v665, 1e-05
    %v730 = vadd.f32 %v666, 1e-05
    %v731 = vadd.f32 %v667, 1e-05
    %v732 = vadd.f32 %v668, 1e-05
    %v733 = vrsqrt.pop %v669
    %v734 = vrsqrt.pop %v670
    %v735 = vrsqrt.pop %v671
    %v736 = vrsqrt.pop %v672
    %v737 = vrsqrt.pop %v673
    %v738 = vrsqrt.pop %v674
    %v739 = vrsqrt.pop %v675
    %v740 = vrsqrt.pop %v676
    %v741 = vrsqrt.pop %v677
    %v742 = vrsqrt.pop %v678
    %v743 = vrsqrt.pop %v679
    %v744 = vrsqrt.pop %v680
    %v745 = vrsqrt.pop %v681
    %v746 = vrsqrt.pop %v682
    %v747 = vrsqrt.pop %v683
    %v748 = vrsqrt.pop %v684
    %v749 = vrsqrt.pop %v685
    %v750 = vrsqrt.pop %v686
    %v751 = vrsqrt.pop %v687
    %v752 = vrsqrt.pop %v688
    %v753 = vrsqrt.pop %v689
    %v754 = vrsqrt.pop %v690
    %v755 = vrsqrt.pop %v691
    %v756 = vrsqrt.pop %v692
    %v757 = vrsqrt.pop %v693
    %v758 = vrsqrt.pop %v694
    %v759 = vrsqrt.pop %v695
    %v760 = vrsqrt.pop %v696
    %v761 = vrsqrt.pop %v697
    %v762 = vrsqrt.pop %v698
    %v763 = vrsqrt.pop %v699
    %v764 = vrsqrt.pop %v700
    %v765 = vrsqrt.pop %v701
    %v766 = vrsqrt.pop %v702
    %v767 = vrsqrt.pop %v703
    %v768 = vrsqrt.pop %v704
    %v769 = vrsqrt.pop %v705
    %v770 = vrsqrt.pop %v706
    %v771 = vrsqrt.pop %v707
    %v772 = vrsqrt.pop %v708
    %v773 = vrsqrt.pop %v709
    %v774 = vrsqrt.pop %v710
    %v775 = vrsqrt.pop %v711
    %v776 = vrsqrt.pop %v712
    %v777 = vrsqrt.pop %v713
    %v778 = vrsqrt.pop %v714
    %v779 = vrsqrt.pop %v715
    %v780 = vrsqrt.pop %v716
    %v781 = vrsqrt.pop %v717
    %v782 = vrsqrt.pop %v718
    %v783 = vrsqrt.pop %v719
    %v784 = vrsqrt.pop %v720
    %v785 = vrsqrt.pop %v721
    %v786 = vrsqrt.pop %v722
    %v787 = vrsqrt.pop %v723
    %v788 = vrsqrt.pop %v724
    %v789 = vrsqrt.pop %v725
    %v790 = vrsqrt.pop %v726
    %v791 = vrsqrt.pop %v727
    %v792 = vrsqrt.pop %v728
    %v793 = vrsqrt.pop %v729
    %v794 = vrsqrt.pop %v730
    %v795 = vrsqrt.pop %v731
    %v796 = vrsqrt.pop %v732
    %v797 = vmul.f32 %v349, %v733
    %v798 = vmul.f32 %v350, %v734
    %v799 = vmul.f32 %v351, %v735
    %v800 = vmul.f32 %v352, %v736
    %v801 = vmul.f32 %v353, %v737
    %v802 = vmul.f32 %v354, %v738
    %v803 = vmul.f32 %v355, %v739
    %v804 = vmul.f32 %v356, %v740
    %v805 = vmul.f32 %v357, %v741
    %v806 = vmul.f32 %v358, %v742
    %v807 = vmul.f32 %v359, %v743
    %v808 = vmul.f32 %v360, %v744
    %v809 = vmul.f32 %v361, %v745
    %v810 = vmul.f32 %v362, %v746
    %v811 = vmul.f32 %v363, %v747
    %v812 = vmul.f32 %v364, %v748
    %v813 = vmul.f32 %v365, %v749
    %v814 = vmul.f32 %v366, %v750
    %v815 = vmul.f32 %v367, %v751
    %v816 = vmul.f32 %v368, %v752
    %v817 = vmul.f32 %v369, %v753
    %v818 = vmul.f32 %v370, %v754
    %v819 = vmul.f32 %v371, %v755
    %v820 = vmul.f32 %v372, %v756
    %v821 = vmul.f32 %v373, %v757
    %v822 = vmul.f32 %v374, %v758
    %v823 = vmul.f32 %v375, %v759
    %v824 = vmul.f32 %v376, %v760
    %v825 = vmul.f32 %v377, %v761
    %v826 = vmul.f32 %v378, %v762
    %v827 = vmul.f32 %v379, %v763
    %v828 = vmul.f32 %v380, %v764
    %v829 = vmul.f32 %v381, %v765
    %v830 = vmul.f32 %v382, %v766
    %v831 = vmul.f32 %v383, %v767
    %v832 = vmul.f32 %v384, %v768
    %v833 = vmul.f32 %v385, %v769
    %v834 = vmul.f32 %v386, %v770
    %v835 = vmul.f32 %v387, %v771
    %v836 = vmul.f32 %v388, %v772
    %v837 = vmul.f32 %v389, %v773
    %v838 = vmul.f32 %v390, %v774
    %v839 = vmul.f32 %v391, %v775
    %v840 = vmul.f32 %v392, %v776
    %v841 = vmul.f32 %v393, %v777
    %v842 = vmul.f32 %v394, %v778
    %v843 = vmul.f32 %v395, %v779
    %v844 = vmul.f32 %v396, %v780
    %v845 = vmul.f32 %v397, %v781
    %v846 = vmul.f32 %v398, %v782
    %v847 = vmul.f32 %v399, %v783
    %v848 = vmul.f32 %v400, %v784
    %v849 = vmul.f32 %v401, %v785
    %v850 = vmul.f32 %v402, %v786
    %v851 = vmul.f32 %v403, %v787
    %v852 = vmul.f32 %v404, %v788
    %v853 = vmul.f32 %v405, %v789
    %v854 = vmul.f32 %v406, %v790
    %v855 = vmul.f32 %v407, %v791
    %v856 = vmul.f32 %v408, %v792
    %v857 = vmul.f32 %v409, %v793
    %v858 = vmul.f32 %v410, %v794
    %v859 = vmul.f32 %v411, %v795
    %v860 = vmul.f32 %v412, %v796
    %v861 = vlaneseq
    %v862 = vshrl.u32 %v861, 7
    %v863 = vsub.s32 0, %v862
    %v864 = vrot.slane %v152, %v863
    %v865 = vmul.f32 %v797, %v864
    %v866 = vmul.f32 %v798, %v864
    %v867 = vmul.f32 %v799, %v864
    %v868 = vmul.f32 %v800, %v864
    %v869 = vmul.f32 %v801, %v864
    %v870 = vmul.f32 %v802, %v864
    %v871 = vmul.f32 %v803, %v864
    %v872 = vmul.f32 %v804, %v864
    %v873 = vmul.f32 %v805, %v864
    %v874 = vmul.f32 %v806, %v864
    %v875 = vmul.f32 %v807, %v864
    %v876 = vmul.f32 %v808, %v864
    %v877 = vmul.f32 %v809, %v864
    %v878 = vmul.f32 %v810, %v864
    %v879 = vmul.f32 %v811, %v864
    %v880 = vmul.f32 %v812, %v864
    %v881 = vmul.f32 %v813, %v864
    %v882 = vmul.f32 %v814, %v864
    %v883 = vmul.f32 %v815, %v864
    %v884 = vmul.f32 %v816, %v864
    %v885 = vmul.f32 %v817, %v864
    %v886 = vmul.f32 %v818, %v864
    %v887 = vmul.f32 %v819, %v864
    %v888 = vmul.f32 %v820, %v864
    %v889 = vmul.f32 %v821, %v864
    %v890 = vmul.f32 %v822, %v864
    %v891 = vmul.f32 %v823, %v864
    %v892 = vmul.f32 %v824, %v864
    %v893 = vmul.f32 %v825, %v864
    %v894 = vmul.f32 %v826, %v864
    %v895 = vmul.f32 %v827, %v864
    %v896 = vmul.f32 %v828, %v864
    %v897 = vmul.f32 %v829, %v864
    %v898 = vmul.f32 %v830, %v864
    %v899 = vmul.f32 %v831, %v864
    %v900 = vmul.f32 %v832, %v864
    %v901 = vmul.f32 %v833, %v864
    %v902 = vmul.f32 %v834, %v864
    %v903 = vmul.f32 %v835, %v864
    %v904 = vmul.f32 %v836, %v864
    %v905 = vmul.f32 %v837, %v864
    %v906 = vmul.f32 %v838, %v864
    %v907 = vmul.f32 %v839, %v864
    %v908 = vmul.f32 %v840, %v864
    %v909 = vmul.f32 %v841, %v864
    %v910 = vmul.f32 %v842, %v864
    %v911 = vmul.f32 %v843, %v864
    %v912 = vmul.f32 %v844, %v864
    %v913 = vmul.f32 %v845, %v864
    %v914 = vmul.f32 %v846, %v864
    %v915 = vmul.f32 %v847, %v864
    %v916 = vmul.f32 %v848, %v864
    %v917 = vmul.f32 %v849, %v864
    %v918 = vmul.f32 %v850, %v864
    %v919 = vmul.f32 %v851, %v864
    %v920 = vmul.f32 %v852, %v864
    %v921 = vmul.f32 %v853, %v864
    %v922 = vmul.f32 %v854, %v864
    %v923 = vmul.f32 %v855, %v864
    %v924 = vmul.f32 %v856, %v864
    %v925 = vmul.f32 %v857, %v864
    %v926 = vmul.f32 %v858, %v864
    %v927 = vmul.f32 %v859, %v864
    %v928 = vmul.f32 %v860, %v864
    %v929 = vlaneseq
    %v930 = vshrl.u32 %v929, 7
    %v931 = vsub.s32 0, %v930
    %v932 = vrot.slane %v153, %v931
    %v933 = vadd.f32 %v865, %v932
    %v934 = vadd.f32 %v866, %v932
    %v935 = vadd.f32 %v867, %v932
    %v936 = vadd.f32 %v868, %v932
    %v937 = vadd.f32 %v869, %v932
    %v938 = vadd.f32 %v870, %v932
    %v939 = vadd.f32 %v871, %v932
    %v940 = vadd.f32 %v872, %v932
    %v941 = vadd.f32 %v873, %v932
    %v942 = vadd.f32 %v874, %v932
    %v943 = vadd.f32 %v875, %v932
    %v944 = vadd.f32 %v876, %v932
    %v945 = vadd.f32 %v877, %v932
    %v946 = vadd.f32 %v878, %v932
    %v947 = vadd.f32 %v879, %v932
    %v948 = vadd.f32 %v880, %v932
    %v949 = vadd.f32 %v881, %v932
    %v950 = vadd.f32 %v882, %v932
    %v951 = vadd.f32 %v883, %v932
    %v952 = vadd.f32 %v884, %v932
    %v953 = vadd.f32 %v885, %v932
    %v954 = vadd.f32 %v886, %v932
    %v955 = vadd.f32 %v887, %v932
    %v956 = vadd.f32 %v888, %v932
    %v957 = vadd.f32 %v889, %v932
    %v958 = vadd.f32 %v890, %v932
    %v959 = vadd.f32 %v891, %v932
    %v960 = vadd.f32 %v892, %v932
    %v961 = vadd.f32 %v893, %v932
    %v962 = vadd.f32 %v894, %v932
    %v963 = vadd.f32 %v895, %v932
    %v964 = vadd.f32 %v896, %v932
    %v965 = vadd.f32 %v897, %v932
    %v966 = vadd.f32 %v898, %v932
    %v967 = vadd.f32 %v899, %v932
    %v968 = vadd.f32 %v900, %v932
    %v969 = vadd.f32 %v901, %v932
    %v970 = vadd.f32 %v902, %v932
    %v971 = vadd.f32 %v903, %v932
    %v972 = vadd.f32 %v904, %v932
    %v973 = vadd.f32 %v905, %v932
    %v974 = vadd.f32 %v906, %v932
    %v975 = vadd.f32 %v907, %v932
    %v976 = vadd.f32 %v908, %v932
    %v977 = vadd.f32 %v909, %v932
    %v978 = vadd.f32 %v910, %v932
    %v979 = vadd.f32 %v911, %v932
    %v980 = vadd.f32 %v912, %v932
    %v981 = vadd.f32 %v913, %v932
    %v982 = vadd.f32 %v914, %v932
    %v983 = vadd.f32 %v915, %v932
    %v984 = vadd.f32 %v916, %v932
    %v985 = vadd.f32 %v917, %v932
    %v986 = vadd.f32 %v918, %v932
    %v987 = vadd.f32 %v919, %v932
    %v988 = vadd.f32 %v920, %v932
    %v989 = vadd.f32 %v921, %v932
    %v990 = vadd.f32 %v922, %v932
    %v991 = vadd.f32 %v923, %v932
    %v992 = vadd.f32 %v924, %v932
    %v993 = vadd.f32 %v925, %v932
    %v994 = vadd.f32 %v926, %v932
    %v995 = vadd.f32 %v927, %v932
    %v996 = vadd.f32 %v928, %v932
    %v997 = vadd.f32 %v88, %v933
    %v998 = vadd.f32 %v89, %v934
    %v999 = vadd.f32 %v90, %v935
    %v1000 = vadd.f32 %v91, %v936
    %v1001 = vadd.f32 %v92, %v937
    %v1002 = vadd.f32 %v93, %v938
    %v1003 = vadd.f32 %v94, %v939
    %v1004 = vadd.f32 %v95, %v940
    %v1005 = vadd.f32 %v96, %v941
    %v1006 = vadd.f32 %v97, %v942
    %v1007 = vadd.f32 %v98, %v943
    %v1008 = vadd.f32 %v99, %v944
    %v1009 = vadd.f32 %v100, %v945
    %v1010 = vadd.f32 %v101, %v946
    %v1011 = vadd.f32 %v102, %v947
    %v1012 = vadd.f32 %v103, %v948
    %v1013 = vadd.f32 %v104, %v949
    %v1014 = vadd.f32 %v105, %v950
    %v1015 = vadd.f32 %v106, %v951
    %v1016 = vadd.f32 %v107, %v952
    %v1017 = vadd.f32 %v108, %v953
    %v1018 = vadd.f32 %v109, %v954
    %v1019 = vadd.f32 %v110, %v955
    %v1020 = vadd.f32 %v111, %v956
    %v1021 = vadd.f32 %v112, %v957
    %v1022 = vadd.f32 %v113, %v958
    %v1023 = vadd.f32 %v114, %v959
    %v1024 = vadd.f32 %v115, %v960
    %v1025 = vadd.f32 %v116, %v961
    %v1026 = vadd.f32 %v117, %v962
    %v1027 = vadd.f32 %v118, %v963
    %v1028 = vadd.f32 %v119, %v964
    %v1029 = vadd.f32 %v120, %v965
    %v1030 = vadd.f32 %v121, %v966
    %v1031 = vadd.f32 %v122, %v967
    %v1032 = vadd.f32 %v123, %v968
    %v1033 = vadd.f32 %v124, %v969
    %v1034 = vadd.f32 %v125, %v970
    %v1035 = vadd.f32 %v126, %v971
    %v1036 = vadd.f32 %v127, %v972
    %v1037 = vadd.f32 %v128, %v973
    %v1038 = vadd.f32 %v129, %v974
    %v1039 = vadd.f32 %v130, %v975
    %v1040 = vadd.f32 %v131, %v976
    %v1041 = vadd.f32 %v132, %v977
    %v1042 = vadd.f32 %v133, %v978
    %v1043 = vadd.f32 %v134, %v979
    %v1044 = vadd.f32 %v135, %v980
    %v1045 = vadd.f32 %v136, %v981
    %v1046 = vadd.f32 %v137, %v982
    %v1047 = vadd.f32 %v138, %v983
    %v1048 = vadd.f32 %v139, %v984
    %v1049 = vadd.f32 %v140, %v985
    %v1050 = vadd.f32 %v141, %v986
    %v1051 = vadd.f32 %v142, %v987
    %v1052 = vadd.f32 %v143, %v988
    %v1053 = vadd.f32 %v144, %v989
    %v1054 = vadd.f32 %v145, %v990
    %v1055 = vadd.f32 %v146, %v991
    %v1056 = vadd.f32 %v147, %v992
    %v1057 = vadd.f32 %v148, %v993
    %v1058 = vadd.f32 %v149, %v994
    %v1059 = vadd.f32 %v150, %v995
    %v1060 = vadd.f32 %v151, %v996
    %1061 = vadd.xlane.f32.xlu0 %v997
    %v1062 = vpop.xlane.xlu0 %1061
    %1063 = vadd.xlane.f32.xlu0 %v998
    %v1064 = vpop.xlane.xlu0 %1063
    %1065 = vadd.xlane.f32.xlu0 %v999
    %v1066 = vpop.xlane.xlu0 %1065
    %1067 = vadd.xlane.f32.xlu0 %v1000
    %v1068 = vpop.xlane.xlu0 %1067
    %1069 = vadd.xlane.f32.xlu0 %v1001
    %v1070 = vpop.xlane.xlu0 %1069
    %1071 = vadd.xlane.f32.xlu0 %v1002
    %v1072 = vpop.xlane.xlu0 %1071
    %1073 = vadd.xlane.f32.xlu0 %v1003
    %v1074 = vpop.xlane.xlu0 %1073
    %1075 = vadd.xlane.f32.xlu0 %v1004
    %v1076 = vpop.xlane.xlu0 %1075
    %1077 = vadd.xlane.f32.xlu0 %v1005
    %v1078 = vpop.xlane.xlu0 %1077
    %1079 = vadd.xlane.f32.xlu0 %v1006
    %v1080 = vpop.xlane.xlu0 %1079
    %1081 = vadd.xlane.f32.xlu0 %v1007
    %v1082 = vpop.xlane.xlu0 %1081
    %1083 = vadd.xlane.f32.xlu0 %v1008
    %v1084 = vpop.xlane.xlu0 %1083
    %1085 = vadd.xlane.f32.xlu0 %v1009
    %v1086 = vpop.xlane.xlu0 %1085
    %1087 = vadd.xlane.f32.xlu0 %v1010
    %v1088 = vpop.xlane.xlu0 %1087
    %1089 = vadd.xlane.f32.xlu0 %v1011
    %v1090 = vpop.xlane.xlu0 %1089
    %1091 = vadd.xlane.f32.xlu0 %v1012
    %v1092 = vpop.xlane.xlu0 %1091
    %1093 = vadd.xlane.f32.xlu0 %v1013
    %v1094 = vpop.xlane.xlu0 %1093
    %1095 = vadd.xlane.f32.xlu0 %v1014
    %v1096 = vpop.xlane.xlu0 %1095
    %1097 = vadd.xlane.f32.xlu0 %v1015
    %v1098 = vpop.xlane.xlu0 %1097
    %1099 = vadd.xlane.f32.xlu0 %v1016
    %v1100 = vpop.xlane.xlu0 %1099
    %1101 = vadd.xlane.f32.xlu0 %v1017
    %v1102 = vpop.xlane.xlu0 %1101
    %1103 = vadd.xlane.f32.xlu0 %v1018
    %v1104 = vpop.xlane.xlu0 %1103
    %1105 = vadd.xlane.f32.xlu0 %v1019
    %v1106 = vpop.xlane.xlu0 %1105
    %1107 = vadd.xlane.f32.xlu0 %v1020
    %v1108 = vpop.xlane.xlu0 %1107
    %1109 = vadd.xlane.f32.xlu0 %v1021
    %v1110 = vpop.xlane.xlu0 %1109
    %1111 = vadd.xlane.f32.xlu0 %v1022
    %v1112 = vpop.xlane.xlu0 %1111
    %1113 = vadd.xlane.f32.xlu0 %v1023
    %v1114 = vpop.xlane.xlu0 %1113
    %1115 = vadd.xlane.f32.xlu0 %v1024
    %v1116 = vpop.xlane.xlu0 %1115
    %1117 = vadd.xlane.f32.xlu0 %v1025
    %v1118 = vpop.xlane.xlu0 %1117
    %1119 = vadd.xlane.f32.xlu0 %v1026
    %v1120 = vpop.xlane.xlu0 %1119
    %1121 = vadd.xlane.f32.xlu0 %v1027
    %v1122 = vpop.xlane.xlu0 %1121
    %1123 = vadd.xlane.f32.xlu0 %v1028
    %v1124 = vpop.xlane.xlu0 %1123
    %1125 = vadd.xlane.f32.xlu0 %v1029
    %v1126 = vpop.xlane.xlu0 %1125
    %1127 = vadd.xlane.f32.xlu0 %v1030
    %v1128 = vpop.xlane.xlu0 %1127
    %1129 = vadd.xlane.f32.xlu0 %v1031
    %v1130 = vpop.xlane.xlu0 %1129
    %1131 = vadd.xlane.f32.xlu0 %v1032
    %v1132 = vpop.xlane.xlu0 %1131
    %1133 = vadd.xlane.f32.xlu0 %v1033
    %v1134 = vpop.xlane.xlu0 %1133
    %1135 = vadd.xlane.f32.xlu0 %v1034
    %v1136 = vpop.xlane.xlu0 %1135
    %1137 = vadd.xlane.f32.xlu0 %v1035
    %v1138 = vpop.xlane.xlu0 %1137
    %1139 = vadd.xlane.f32.xlu0 %v1036
    %v1140 = vpop.xlane.xlu0 %1139
    %1141 = vadd.xlane.f32.xlu0 %v1037
    %v1142 = vpop.xlane.xlu0 %1141
    %1143 = vadd.xlane.f32.xlu0 %v1038
    %v1144 = vpop.xlane.xlu0 %1143
    %1145 = vadd.xlane.f32.xlu0 %v1039
    %v1146 = vpop.xlane.xlu0 %1145
    %1147 = vadd.xlane.f32.xlu0 %v1040
    %v1148 = vpop.xlane.xlu0 %1147
    %1149 = vadd.xlane.f32.xlu0 %v1041
    %v1150 = vpop.xlane.xlu0 %1149
    %1151 = vadd.xlane.f32.xlu0 %v1042
    %v1152 = vpop.xlane.xlu0 %1151
    %1153 = vadd.xlane.f32.xlu0 %v1043
    %v1154 = vpop.xlane.xlu0 %1153
    %1155 = vadd.xlane.f32.xlu0 %v1044
    %v1156 = vpop.xlane.xlu0 %1155
    %1157 = vadd.xlane.f32.xlu0 %v1045
    %v1158 = vpop.xlane.xlu0 %1157
    %1159 = vadd.xlane.f32.xlu0 %v1046
    %v1160 = vpop.xlane.xlu0 %1159
    %1161 = vadd.xlane.f32.xlu0 %v1047
    %v1162 = vpop.xlane.xlu0 %1161
    %1163 = vadd.xlane.f32.xlu0 %v1048
    %v1164 = vpop.xlane.xlu0 %1163
    %1165 = vadd.xlane.f32.xlu0 %v1049
    %v1166 = vpop.xlane.xlu0 %1165
    %1167 = vadd.xlane.f32.xlu0 %v1050
    %v1168 = vpop.xlane.xlu0 %1167
    %1169 = vadd.xlane.f32.xlu0 %v1051
    %v1170 = vpop.xlane.xlu0 %1169
    %1171 = vadd.xlane.f32.xlu0 %v1052
    %v1172 = vpop.xlane.xlu0 %1171
    %1173 = vadd.xlane.f32.xlu0 %v1053
    %v1174 = vpop.xlane.xlu0 %1173
    %1175 = vadd.xlane.f32.xlu0 %v1054
    %v1176 = vpop.xlane.xlu0 %1175
    %1177 = vadd.xlane.f32.xlu0 %v1055
    %v1178 = vpop.xlane.xlu0 %1177
    %1179 = vadd.xlane.f32.xlu0 %v1056
    %v1180 = vpop.xlane.xlu0 %1179
    %1181 = vadd.xlane.f32.xlu0 %v1057
    %v1182 = vpop.xlane.xlu0 %1181
    %1183 = vadd.xlane.f32.xlu0 %v1058
    %v1184 = vpop.xlane.xlu0 %1183
    %1185 = vadd.xlane.f32.xlu0 %v1059
    %v1186 = vpop.xlane.xlu0 %1185
    %1187 = vadd.xlane.f32.xlu0 %v1060
    %v1188 = vpop.xlane.xlu0 %1187
    %v1189 = vmul.f32 %v1062, %v284
    %v1190 = vmul.f32 %v1064, %v284
    %v1191 = vmul.f32 %v1066, %v284
    %v1192 = vmul.f32 %v1068, %v284
    %v1193 = vmul.f32 %v1070, %v284
    %v1194 = vmul.f32 %v1072, %v284
    %v1195 = vmul.f32 %v1074, %v284
    %v1196 = vmul.f32 %v1076, %v284
    %v1197 = vmul.f32 %v1078, %v284
    %v1198 = vmul.f32 %v1080, %v284
    %v1199 = vmul.f32 %v1082, %v284
    %v1200 = vmul.f32 %v1084, %v284
    %v1201 = vmul.f32 %v1086, %v284
    %v1202 = vmul.f32 %v1088, %v284
    %v1203 = vmul.f32 %v1090, %v284
    %v1204 = vmul.f32 %v1092, %v284
    %v1205 = vmul.f32 %v1094, %v284
    %v1206 = vmul.f32 %v1096, %v284
    %v1207 = vmul.f32 %v1098, %v284
    %v1208 = vmul.f32 %v1100, %v284
    %v1209 = vmul.f32 %v1102, %v284
    %v1210 = vmul.f32 %v1104, %v284
    %v1211 = vmul.f32 %v1106, %v284
    %v1212 = vmul.f32 %v1108, %v284
    %v1213 = vmul.f32 %v1110, %v284
    %v1214 = vmul.f32 %v1112, %v284
    %v1215 = vmul.f32 %v1114, %v284
    %v1216 = vmul.f32 %v1116, %v284
    %v1217 = vmul.f32 %v1118, %v284
    %v1218 = vmul.f32 %v1120, %v284
    %v1219 = vmul.f32 %v1122, %v284
    %v1220 = vmul.f32 %v1124, %v284
    %v1221 = vmul.f32 %v1126, %v284
    %v1222 = vmul.f32 %v1128, %v284
    %v1223 = vmul.f32 %v1130, %v284
    %v1224 = vmul.f32 %v1132, %v284
    %v1225 = vmul.f32 %v1134, %v284
    %v1226 = vmul.f32 %v1136, %v284
    %v1227 = vmul.f32 %v1138, %v284
    %v1228 = vmul.f32 %v1140, %v284
    %v1229 = vmul.f32 %v1142, %v284
    %v1230 = vmul.f32 %v1144, %v284
    %v1231 = vmul.f32 %v1146, %v284
    %v1232 = vmul.f32 %v1148, %v284
    %v1233 = vmul.f32 %v1150, %v284
    %v1234 = vmul.f32 %v1152, %v284
    %v1235 = vmul.f32 %v1154, %v284
    %v1236 = vmul.f32 %v1156, %v284
    %v1237 = vmul.f32 %v1158, %v284
    %v1238 = vmul.f32 %v1160, %v284
    %v1239 = vmul.f32 %v1162, %v284
    %v1240 = vmul.f32 %v1164, %v284
    %v1241 = vmul.f32 %v1166, %v284
    %v1242 = vmul.f32 %v1168, %v284
    %v1243 = vmul.f32 %v1170, %v284
    %v1244 = vmul.f32 %v1172, %v284
    %v1245 = vmul.f32 %v1174, %v284
    %v1246 = vmul.f32 %v1176, %v284
    %v1247 = vmul.f32 %v1178, %v284
    %v1248 = vmul.f32 %v1180, %v284
    %v1249 = vmul.f32 %v1182, %v284
    %v1250 = vmul.f32 %v1184, %v284
    %v1251 = vmul.f32 %v1186, %v284
    %v1252 = vmul.f32 %v1188, %v284
    %v1253 = vsub.f32 %v997, %v1189
    %v1254 = vsub.f32 %v998, %v1190
    %v1255 = vsub.f32 %v999, %v1191
    %v1256 = vsub.f32 %v1000, %v1192
    %v1257 = vsub.f32 %v1001, %v1193
    %v1258 = vsub.f32 %v1002, %v1194
    %v1259 = vsub.f32 %v1003, %v1195
    %v1260 = vsub.f32 %v1004, %v1196
    %v1261 = vsub.f32 %v1005, %v1197
    %v1262 = vsub.f32 %v1006, %v1198
    %v1263 = vsub.f32 %v1007, %v1199
    %v1264 = vsub.f32 %v1008, %v1200
    %v1265 = vsub.f32 %v1009, %v1201
    %v1266 = vsub.f32 %v1010, %v1202
    %v1267 = vsub.f32 %v1011, %v1203
    %v1268 = vsub.f32 %v1012, %v1204
    %v1269 = vsub.f32 %v1013, %v1205
    %v1270 = vsub.f32 %v1014, %v1206
    %v1271 = vsub.f32 %v1015, %v1207
    %v1272 = vsub.f32 %v1016, %v1208
    %v1273 = vsub.f32 %v1017, %v1209
    %v1274 = vsub.f32 %v1018, %v1210
    %v1275 = vsub.f32 %v1019, %v1211
    %v1276 = vsub.f32 %v1020, %v1212
    %v1277 = vsub.f32 %v1021, %v1213
    %v1278 = vsub.f32 %v1022, %v1214
    %v1279 = vsub.f32 %v1023, %v1215
    %v1280 = vsub.f32 %v1024, %v1216
    %v1281 = vsub.f32 %v1025, %v1217
    %v1282 = vsub.f32 %v1026, %v1218
    %v1283 = vsub.f32 %v1027, %v1219
    %v1284 = vsub.f32 %v1028, %v1220
    %v1285 = vsub.f32 %v1029, %v1221
    %v1286 = vsub.f32 %v1030, %v1222
    %v1287 = vsub.f32 %v1031, %v1223
    %v1288 = vsub.f32 %v1032, %v1224
    %v1289 = vsub.f32 %v1033, %v1225
    %v1290 = vsub.f32 %v1034, %v1226
    %v1291 = vsub.f32 %v1035, %v1227
    %v1292 = vsub.f32 %v1036, %v1228
    %v1293 = vsub.f32 %v1037, %v1229
    %v1294 = vsub.f32 %v1038, %v1230
    %v1295 = vsub.f32 %v1039, %v1231
    %v1296 = vsub.f32 %v1040, %v1232
    %v1297 = vsub.f32 %v1041, %v1233
    %v1298 = vsub.f32 %v1042, %v1234
    %v1299 = vsub.f32 %v1043, %v1235
    %v1300 = vsub.f32 %v1044, %v1236
    %v1301 = vsub.f32 %v1045, %v1237
    %v1302 = vsub.f32 %v1046, %v1238
    %v1303 = vsub.f32 %v1047, %v1239
    %v1304 = vsub.f32 %v1048, %v1240
    %v1305 = vsub.f32 %v1049, %v1241
    %v1306 = vsub.f32 %v1050, %v1242
    %v1307 = vsub.f32 %v1051, %v1243
    %v1308 = vsub.f32 %v1052, %v1244
    %v1309 = vsub.f32 %v1053, %v1245
    %v1310 = vsub.f32 %v1054, %v1246
    %v1311 = vsub.f32 %v1055, %v1247
    %v1312 = vsub.f32 %v1056, %v1248
    %v1313 = vsub.f32 %v1057, %v1249
    %v1314 = vsub.f32 %v1058, %v1250
    %v1315 = vsub.f32 %v1059, %v1251
    %v1316 = vsub.f32 %v1060, %v1252
    %v1317 = vmul.f32 %v1253, %v1253
    %v1318 = vmul.f32 %v1254, %v1254
    %v1319 = vmul.f32 %v1255, %v1255
    %v1320 = vmul.f32 %v1256, %v1256
    %v1321 = vmul.f32 %v1257, %v1257
    %v1322 = vmul.f32 %v1258, %v1258
    %v1323 = vmul.f32 %v1259, %v1259
    %v1324 = vmul.f32 %v1260, %v1260
    %v1325 = vmul.f32 %v1261, %v1261
    %v1326 = vmul.f32 %v1262, %v1262
    %v1327 = vmul.f32 %v1263, %v1263
    %v1328 = vmul.f32 %v1264, %v1264
    %v1329 = vmul.f32 %v1265, %v1265
    %v1330 = vmul.f32 %v1266, %v1266
    %v1331 = vmul.f32 %v1267, %v1267
    %v1332 = vmul.f32 %v1268, %v1268
    %v1333 = vmul.f32 %v1269, %v1269
    %v1334 = vmul.f32 %v1270, %v1270
    %v1335 = vmul.f32 %v1271, %v1271
    %v1336 = vmul.f32 %v1272, %v1272
    %v1337 = vmul.f32 %v1273, %v1273
    %v1338 = vmul.f32 %v1274, %v1274
    %v1339 = vmul.f32 %v1275, %v1275
    %v1340 = vmul.f32 %v1276, %v1276
    %v1341 = vmul.f32 %v1277, %v1277
    %v1342 = vmul.f32 %v1278, %v1278
    %v1343 = vmul.f32 %v1279, %v1279
    %v1344 = vmul.f32 %v1280, %v1280
    %v1345 = vmul.f32 %v1281, %v1281
    %v1346 = vmul.f32 %v1282, %v1282
    %v1347 = vmul.f32 %v1283, %v1283
    %v1348 = vmul.f32 %v1284, %v1284
    %v1349 = vmul.f32 %v1285, %v1285
    %v1350 = vmul.f32 %v1286, %v1286
    %v1351 = vmul.f32 %v1287, %v1287
    %v1352 = vmul.f32 %v1288, %v1288
    %v1353 = vmul.f32 %v1289, %v1289
    %v1354 = vmul.f32 %v1290, %v1290
    %v1355 = vmul.f32 %v1291, %v1291
    %v1356 = vmul.f32 %v1292, %v1292
    %v1357 = vmul.f32 %v1293, %v1293
    %v1358 = vmul.f32 %v1294, %v1294
    %v1359 = vmul.f32 %v1295, %v1295
    %v1360 = vmul.f32 %v1296, %v1296
    %v1361 = vmul.f32 %v1297, %v1297
    %v1362 = vmul.f32 %v1298, %v1298
    %v1363 = vmul.f32 %v1299, %v1299
    %v1364 = vmul.f32 %v1300, %v1300
    %v1365 = vmul.f32 %v1301, %v1301
    %v1366 = vmul.f32 %v1302, %v1302
    %v1367 = vmul.f32 %v1303, %v1303
    %v1368 = vmul.f32 %v1304, %v1304
    %v1369 = vmul.f32 %v1305, %v1305
    %v1370 = vmul.f32 %v1306, %v1306
    %v1371 = vmul.f32 %v1307, %v1307
    %v1372 = vmul.f32 %v1308, %v1308
    %v1373 = vmul.f32 %v1309, %v1309
    %v1374 = vmul.f32 %v1310, %v1310
    %v1375 = vmul.f32 %v1311, %v1311
    %v1376 = vmul.f32 %v1312, %v1312
    %v1377 = vmul.f32 %v1313, %v1313
    %v1378 = vmul.f32 %v1314, %v1314
    %v1379 = vmul.f32 %v1315, %v1315
    %v1380 = vmul.f32 %v1316, %v1316
    %1381 = vadd.xlane.f32.xlu0 %v1317
    %v1382 = vpop.xlane.xlu0 %1381
    %1383 = vadd.xlane.f32.xlu0 %v1318
    %v1384 = vpop.xlane.xlu0 %1383
    %1385 = vadd.xlane.f32.xlu0 %v1319
    %v1386 = vpop.xlane.xlu0 %1385
    %1387 = vadd.xlane.f32.xlu0 %v1320
    %v1388 = vpop.xlane.xlu0 %1387
    %1389 = vadd.xlane.f32.xlu0 %v1321
    %v1390 = vpop.xlane.xlu0 %1389
    %1391 = vadd.xlane.f32.xlu0 %v1322
    %v1392 = vpop.xlane.xlu0 %1391
    %1393 = vadd.xlane.f32.xlu0 %v1323
    %v1394 = vpop.xlane.xlu0 %1393
    %1395 = vadd.xlane.f32.xlu0 %v1324
    %v1396 = vpop.xlane.xlu0 %1395
    %1397 = vadd.xlane.f32.xlu0 %v1325
    %v1398 = vpop.xlane.xlu0 %1397
    %1399 = vadd.xlane.f32.xlu0 %v1326
    %v1400 = vpop.xlane.xlu0 %1399
    %1401 = vadd.xlane.f32.xlu0 %v1327
    %v1402 = vpop.xlane.xlu0 %1401
    %1403 = vadd.xlane.f32.xlu0 %v1328
    %v1404 = vpop.xlane.xlu0 %1403
    %1405 = vadd.xlane.f32.xlu0 %v1329
    %v1406 = vpop.xlane.xlu0 %1405
    %1407 = vadd.xlane.f32.xlu0 %v1330
    %v1408 = vpop.xlane.xlu0 %1407
    %1409 = vadd.xlane.f32.xlu0 %v1331
    %v1410 = vpop.xlane.xlu0 %1409
    %1411 = vadd.xlane.f32.xlu0 %v1332
    %v1412 = vpop.xlane.xlu0 %1411
    %1413 = vadd.xlane.f32.xlu0 %v1333
    %v1414 = vpop.xlane.xlu0 %1413
    %1415 = vadd.xlane.f32.xlu0 %v1334
    %v1416 = vpop.xlane.xlu0 %1415
    %1417 = vadd.xlane.f32.xlu0 %v1335
    %v1418 = vpop.xlane.xlu0 %1417
    %1419 = vadd.xlane.f32.xlu0 %v1336
    %v1420 = vpop.xlane.xlu0 %1419
    %1421 = vadd.xlane.f32.xlu0 %v1337
    %v1422 = vpop.xlane.xlu0 %1421
    %1423 = vadd.xlane.f32.xlu0 %v1338
    %v1424 = vpop.xlane.xlu0 %1423
    %1425 = vadd.xlane.f32.xlu0 %v1339
    %v1426 = vpop.xlane.xlu0 %1425
    %1427 = vadd.xlane.f32.xlu0 %v1340
    %v1428 = vpop.xlane.xlu0 %1427
    %1429 = vadd.xlane.f32.xlu0 %v1341
    %v1430 = vpop.xlane.xlu0 %1429
    %1431 = vadd.xlane.f32.xlu0 %v1342
    %v1432 = vpop.xlane.xlu0 %1431
    %1433 = vadd.xlane.f32.xlu0 %v1343
    %v1434 = vpop.xlane.xlu0 %1433
    %1435 = vadd.xlane.f32.xlu0 %v1344
    %v1436 = vpop.xlane.xlu0 %1435
    %1437 = vadd.xlane.f32.xlu0 %v1345
    %v1438 = vpop.xlane.xlu0 %1437
    %1439 = vadd.xlane.f32.xlu0 %v1346
    %v1440 = vpop.xlane.xlu0 %1439
    %1441 = vadd.xlane.f32.xlu0 %v1347
    %v1442 = vpop.xlane.xlu0 %1441
    %1443 = vadd.xlane.f32.xlu0 %v1348
    %v1444 = vpop.xlane.xlu0 %1443
    %1445 = vadd.xlane.f32.xlu0 %v1349
    %v1446 = vpop.xlane.xlu0 %1445
    %1447 = vadd.xlane.f32.xlu0 %v1350
    %v1448 = vpop.xlane.xlu0 %1447
    %1449 = vadd.xlane.f32.xlu0 %v1351
    %v1450 = vpop.xlane.xlu0 %1449
    %1451 = vadd.xlane.f32.xlu0 %v1352
    %v1452 = vpop.xlane.xlu0 %1451
    %1453 = vadd.xlane.f32.xlu0 %v1353
    %v1454 = vpop.xlane.xlu0 %1453
    %1455 = vadd.xlane.f32.xlu0 %v1354
    %v1456 = vpop.xlane.xlu0 %1455
    %1457 = vadd.xlane.f32.xlu0 %v1355
    %v1458 = vpop.xlane.xlu0 %1457
    %1459 = vadd.xlane.f32.xlu0 %v1356
    %v1460 = vpop.xlane.xlu0 %1459
    %1461 = vadd.xlane.f32.xlu0 %v1357
    %v1462 = vpop.xlane.xlu0 %1461
    %1463 = vadd.xlane.f32.xlu0 %v1358
    %v1464 = vpop.xlane.xlu0 %1463
    %1465 = vadd.xlane.f32.xlu0 %v1359
    %v1466 = vpop.xlane.xlu0 %1465
    %1467 = vadd.xlane.f32.xlu0 %v1360
    %v1468 = vpop.xlane.xlu0 %1467
    %1469 = vadd.xlane.f32.xlu0 %v1361
    %v1470 = vpop.xlane.xlu0 %1469
    %1471 = vadd.xlane.f32.xlu0 %v1362
    %v1472 = vpop.xlane.xlu0 %1471
    %1473 = vadd.xlane.f32.xlu0 %v1363
    %v1474 = vpop.xlane.xlu0 %1473
    %1475 = vadd.xlane.f32.xlu0 %v1364
    %v1476 = vpop.xlane.xlu0 %1475
    %1477 = vadd.xlane.f32.xlu0 %v1365
    %v1478 = vpop.xlane.xlu0 %1477
    %1479 = vadd.xlane.f32.xlu0 %v1366
    %v1480 = vpop.xlane.xlu0 %1479
    %1481 = vadd.xlane.f32.xlu0 %v1367
    %v1482 = vpop.xlane.xlu0 %1481
    %1483 = vadd.xlane.f32.xlu0 %v1368
    %v1484 = vpop.xlane.xlu0 %1483
    %1485 = vadd.xlane.f32.xlu0 %v1369
    %v1486 = vpop.xlane.xlu0 %1485
    %1487 = vadd.xlane.f32.xlu0 %v1370
    %v1488 = vpop.xlane.xlu0 %1487
    %1489 = vadd.xlane.f32.xlu0 %v1371
    %v1490 = vpop.xlane.xlu0 %1489
    %1491 = vadd.xlane.f32.xlu0 %v1372
    %v1492 = vpop.xlane.xlu0 %1491
    %1493 = vadd.xlane.f32.xlu0 %v1373
    %v1494 = vpop.xlane.xlu0 %1493
    %1495 = vadd.xlane.f32.xlu0 %v1374
    %v1496 = vpop.xlane.xlu0 %1495
    %1497 = vadd.xlane.f32.xlu0 %v1375
    %v1498 = vpop.xlane.xlu0 %1497
    %1499 = vadd.xlane.f32.xlu0 %v1376
    %v1500 = vpop.xlane.xlu0 %1499
    %1501 = vadd.xlane.f32.xlu0 %v1377
    %v1502 = vpop.xlane.xlu0 %1501
    %1503 = vadd.xlane.f32.xlu0 %v1378
    %v1504 = vpop.xlane.xlu0 %1503
    %1505 = vadd.xlane.f32.xlu0 %v1379
    %v1506 = vpop.xlane.xlu0 %1505
    %1507 = vadd.xlane.f32.xlu0 %v1380
    %v1508 = vpop.xlane.xlu0 %1507
    %v1509 = vmul.f32 %v1382, %v284
    %v1510 = vmul.f32 %v1384, %v284
    %v1511 = vmul.f32 %v1386, %v284
    %v1512 = vmul.f32 %v1388, %v284
    %v1513 = vmul.f32 %v1390, %v284
    %v1514 = vmul.f32 %v1392, %v284
    %v1515 = vmul.f32 %v1394, %v284
    %v1516 = vmul.f32 %v1396, %v284
    %v1517 = vmul.f32 %v1398, %v284
    %v1518 = vmul.f32 %v1400, %v284
    %v1519 = vmul.f32 %v1402, %v284
    %v1520 = vmul.f32 %v1404, %v284
    %v1521 = vmul.f32 %v1406, %v284
    %v1522 = vmul.f32 %v1408, %v284
    %v1523 = vmul.f32 %v1410, %v284
    %v1524 = vmul.f32 %v1412, %v284
    %v1525 = vmul.f32 %v1414, %v284
    %v1526 = vmul.f32 %v1416, %v284
    %v1527 = vmul.f32 %v1418, %v284
    %v1528 = vmul.f32 %v1420, %v284
    %v1529 = vmul.f32 %v1422, %v284
    %v1530 = vmul.f32 %v1424, %v284
    %v1531 = vmul.f32 %v1426, %v284
    %v1532 = vmul.f32 %v1428, %v284
    %v1533 = vmul.f32 %v1430, %v284
    %v1534 = vmul.f32 %v1432, %v284
    %v1535 = vmul.f32 %v1434, %v284
    %v1536 = vmul.f32 %v1436, %v284
    %v1537 = vmul.f32 %v1438, %v284
    %v1538 = vmul.f32 %v1440, %v284
    %v1539 = vmul.f32 %v1442, %v284
    %v1540 = vmul.f32 %v1444, %v284
    %v1541 = vmul.f32 %v1446, %v284
    %v1542 = vmul.f32 %v1448, %v284
    %v1543 = vmul.f32 %v1450, %v284
    %v1544 = vmul.f32 %v1452, %v284
    %v1545 = vmul.f32 %v1454, %v284
    %v1546 = vmul.f32 %v1456, %v284
    %v1547 = vmul.f32 %v1458, %v284
    %v1548 = vmul.f32 %v1460, %v284
    %v1549 = vmul.f32 %v1462, %v284
    %v1550 = vmul.f32 %v1464, %v284
    %v1551 = vmul.f32 %v1466, %v284
    %v1552 = vmul.f32 %v1468, %v284
    %v1553 = vmul.f32 %v1470, %v284
    %v1554 = vmul.f32 %v1472, %v284
    %v1555 = vmul.f32 %v1474, %v284
    %v1556 = vmul.f32 %v1476, %v284
    %v1557 = vmul.f32 %v1478, %v284
    %v1558 = vmul.f32 %v1480, %v284
    %v1559 = vmul.f32 %v1482, %v284
    %v1560 = vmul.f32 %v1484, %v284
    %v1561 = vmul.f32 %v1486, %v284
    %v1562 = vmul.f32 %v1488, %v284
    %v1563 = vmul.f32 %v1490, %v284
    %v1564 = vmul.f32 %v1492, %v284
    %v1565 = vmul.f32 %v1494, %v284
    %v1566 = vmul.f32 %v1496, %v284
    %v1567 = vmul.f32 %v1498, %v284
    %v1568 = vmul.f32 %v1500, %v284
    %v1569 = vmul.f32 %v1502, %v284
    %v1570 = vmul.f32 %v1504, %v284
    %v1571 = vmul.f32 %v1506, %v284
    %v1572 = vmul.f32 %v1508, %v284
    %v1573 = vadd.f32 %v1509, 1e-05
    %v1574 = vadd.f32 %v1510, 1e-05
    %v1575 = vadd.f32 %v1511, 1e-05
    %v1576 = vadd.f32 %v1512, 1e-05
    %v1577 = vadd.f32 %v1513, 1e-05
    %v1578 = vadd.f32 %v1514, 1e-05
    %v1579 = vadd.f32 %v1515, 1e-05
    %v1580 = vadd.f32 %v1516, 1e-05
    %v1581 = vadd.f32 %v1517, 1e-05
    %v1582 = vadd.f32 %v1518, 1e-05
    %v1583 = vadd.f32 %v1519, 1e-05
    %v1584 = vadd.f32 %v1520, 1e-05
    %v1585 = vadd.f32 %v1521, 1e-05
    %v1586 = vadd.f32 %v1522, 1e-05
    %v1587 = vadd.f32 %v1523, 1e-05
    %v1588 = vadd.f32 %v1524, 1e-05
    %v1589 = vadd.f32 %v1525, 1e-05
    %v1590 = vadd.f32 %v1526, 1e-05
    %v1591 = vadd.f32 %v1527, 1e-05
    %v1592 = vadd.f32 %v1528, 1e-05
    %v1593 = vadd.f32 %v1529, 1e-05
    %v1594 = vadd.f32 %v1530, 1e-05
    %v1595 = vadd.f32 %v1531, 1e-05
    %v1596 = vadd.f32 %v1532, 1e-05
    %v1597 = vadd.f32 %v1533, 1e-05
    %v1598 = vadd.f32 %v1534, 1e-05
    %v1599 = vadd.f32 %v1535, 1e-05
    %v1600 = vadd.f32 %v1536, 1e-05
    %v1601 = vadd.f32 %v1537, 1e-05
    %v1602 = vadd.f32 %v1538, 1e-05
    %v1603 = vadd.f32 %v1539, 1e-05
    %v1604 = vadd.f32 %v1540, 1e-05
    %v1605 = vadd.f32 %v1541, 1e-05
    %v1606 = vadd.f32 %v1542, 1e-05
    %v1607 = vadd.f32 %v1543, 1e-05
    %v1608 = vadd.f32 %v1544, 1e-05
    %v1609 = vadd.f32 %v1545, 1e-05
    %v1610 = vadd.f32 %v1546, 1e-05
    %v1611 = vadd.f32 %v1547, 1e-05
    %v1612 = vadd.f32 %v1548, 1e-05
    %v1613 = vadd.f32 %v1549, 1e-05
    %v1614 = vadd.f32 %v1550, 1e-05
    %v1615 = vadd.f32 %v1551, 1e-05
    %v1616 = vadd.f32 %v1552, 1e-05
    %v1617 = vadd.f32 %v1553, 1e-05
    %v1618 = vadd.f32 %v1554, 1e-05
    %v1619 = vadd.f32 %v1555, 1e-05
    %v1620 = vadd.f32 %v1556, 1e-05
    %v1621 = vadd.f32 %v1557, 1e-05
    %v1622 = vadd.f32 %v1558, 1e-05
    %v1623 = vadd.f32 %v1559, 1e-05
    %v1624 = vadd.f32 %v1560, 1e-05
    %v1625 = vadd.f32 %v1561, 1e-05
    %v1626 = vadd.f32 %v1562, 1e-05
    %v1627 = vadd.f32 %v1563, 1e-05
    %v1628 = vadd.f32 %v1564, 1e-05
    %v1629 = vadd.f32 %v1565, 1e-05
    %v1630 = vadd.f32 %v1566, 1e-05
    %v1631 = vadd.f32 %v1567, 1e-05
    %v1632 = vadd.f32 %v1568, 1e-05
    %v1633 = vadd.f32 %v1569, 1e-05
    %v1634 = vadd.f32 %v1570, 1e-05
    %v1635 = vadd.f32 %v1571, 1e-05
    %v1636 = vadd.f32 %v1572, 1e-05
    %v1637 = vrsqrt.pop %v1573
    %v1638 = vrsqrt.pop %v1574
    %v1639 = vrsqrt.pop %v1575
    %v1640 = vrsqrt.pop %v1576
    %v1641 = vrsqrt.pop %v1577
    %v1642 = vrsqrt.pop %v1578
    %v1643 = vrsqrt.pop %v1579
    %v1644 = vrsqrt.pop %v1580
    %v1645 = vrsqrt.pop %v1581
    %v1646 = vrsqrt.pop %v1582
    %v1647 = vrsqrt.pop %v1583
    %v1648 = vrsqrt.pop %v1584
    %v1649 = vrsqrt.pop %v1585
    %v1650 = vrsqrt.pop %v1586
    %v1651 = vrsqrt.pop %v1587
    %v1652 = vrsqrt.pop %v1588
    %v1653 = vrsqrt.pop %v1589
    %v1654 = vrsqrt.pop %v1590
    %v1655 = vrsqrt.pop %v1591
    %v1656 = vrsqrt.pop %v1592
    %v1657 = vrsqrt.pop %v1593
    %v1658 = vrsqrt.pop %v1594
    %v1659 = vrsqrt.pop %v1595
    %v1660 = vrsqrt.pop %v1596
    %v1661 = vrsqrt.pop %v1597
    %v1662 = vrsqrt.pop %v1598
    %v1663 = vrsqrt.pop %v1599
    %v1664 = vrsqrt.pop %v1600
    %v1665 = vrsqrt.pop %v1601
    %v1666 = vrsqrt.pop %v1602
    %v1667 = vrsqrt.pop %v1603
    %v1668 = vrsqrt.pop %v1604
    %v1669 = vrsqrt.pop %v1605
    %v1670 = vrsqrt.pop %v1606
    %v1671 = vrsqrt.pop %v1607
    %v1672 = vrsqrt.pop %v1608
    %v1673 = vrsqrt.pop %v1609
    %v1674 = vrsqrt.pop %v1610
    %v1675 = vrsqrt.pop %v1611
    %v1676 = vrsqrt.pop %v1612
    %v1677 = vrsqrt.pop %v1613
    %v1678 = vrsqrt.pop %v1614
    %v1679 = vrsqrt.pop %v1615
    %v1680 = vrsqrt.pop %v1616
    %v1681 = vrsqrt.pop %v1617
    %v1682 = vrsqrt.pop %v1618
    %v1683 = vrsqrt.pop %v1619
    %v1684 = vrsqrt.pop %v1620
    %v1685 = vrsqrt.pop %v1621
    %v1686 = vrsqrt.pop %v1622
    %v1687 = vrsqrt.pop %v1623
    %v1688 = vrsqrt.pop %v1624
    %v1689 = vrsqrt.pop %v1625
    %v1690 = vrsqrt.pop %v1626
    %v1691 = vrsqrt.pop %v1627
    %v1692 = vrsqrt.pop %v1628
    %v1693 = vrsqrt.pop %v1629
    %v1694 = vrsqrt.pop %v1630
    %v1695 = vrsqrt.pop %v1631
    %v1696 = vrsqrt.pop %v1632
    %v1697 = vrsqrt.pop %v1633
    %v1698 = vrsqrt.pop %v1634
    %v1699 = vrsqrt.pop %v1635
    %v1700 = vrsqrt.pop %v1636
    %v1701 = vmul.f32 %v1253, %v1637
    %v1702 = vmul.f32 %v1254, %v1638
    %v1703 = vmul.f32 %v1255, %v1639
    %v1704 = vmul.f32 %v1256, %v1640
    %v1705 = vmul.f32 %v1257, %v1641
    %v1706 = vmul.f32 %v1258, %v1642
    %v1707 = vmul.f32 %v1259, %v1643
    %v1708 = vmul.f32 %v1260, %v1644
    %v1709 = vmul.f32 %v1261, %v1645
    %v1710 = vmul.f32 %v1262, %v1646
    %v1711 = vmul.f32 %v1263, %v1647
    %v1712 = vmul.f32 %v1264, %v1648
    %v1713 = vmul.f32 %v1265, %v1649
    %v1714 = vmul.f32 %v1266, %v1650
    %v1715 = vmul.f32 %v1267, %v1651
    %v1716 = vmul.f32 %v1268, %v1652
    %v1717 = vmul.f32 %v1269, %v1653
    %v1718 = vmul.f32 %v1270, %v1654
    %v1719 = vmul.f32 %v1271, %v1655
    %v1720 = vmul.f32 %v1272, %v1656
    %v1721 = vmul.f32 %v1273, %v1657
    %v1722 = vmul.f32 %v1274, %v1658
    %v1723 = vmul.f32 %v1275, %v1659
    %v1724 = vmul.f32 %v1276, %v1660
    %v1725 = vmul.f32 %v1277, %v1661
    %v1726 = vmul.f32 %v1278, %v1662
    %v1727 = vmul.f32 %v1279, %v1663
    %v1728 = vmul.f32 %v1280, %v1664
    %v1729 = vmul.f32 %v1281, %v1665
    %v1730 = vmul.f32 %v1282, %v1666
    %v1731 = vmul.f32 %v1283, %v1667
    %v1732 = vmul.f32 %v1284, %v1668
    %v1733 = vmul.f32 %v1285, %v1669
    %v1734 = vmul.f32 %v1286, %v1670
    %v1735 = vmul.f32 %v1287, %v1671
    %v1736 = vmul.f32 %v1288, %v1672
    %v1737 = vmul.f32 %v1289, %v1673
    %v1738 = vmul.f32 %v1290, %v1674
    %v1739 = vmul.f32 %v1291, %v1675
    %v1740 = vmul.f32 %v1292, %v1676
    %v1741 = vmul.f32 %v1293, %v1677
    %v1742 = vmul.f32 %v1294, %v1678
    %v1743 = vmul.f32 %v1295, %v1679
    %v1744 = vmul.f32 %v1296, %v1680
    %v1745 = vmul.f32 %v1297, %v1681
    %v1746 = vmul.f32 %v1298, %v1682
    %v1747 = vmul.f32 %v1299, %v1683
    %v1748 = vmul.f32 %v1300, %v1684
    %v1749 = vmul.f32 %v1301, %v1685
    %v1750 = vmul.f32 %v1302, %v1686
    %v1751 = vmul.f32 %v1303, %v1687
    %v1752 = vmul.f32 %v1304, %v1688
    %v1753 = vmul.f32 %v1305, %v1689
    %v1754 = vmul.f32 %v1306, %v1690
    %v1755 = vmul.f32 %v1307, %v1691
    %v1756 = vmul.f32 %v1308, %v1692
    %v1757 = vmul.f32 %v1309, %v1693
    %v1758 = vmul.f32 %v1310, %v1694
    %v1759 = vmul.f32 %v1311, %v1695
    %v1760 = vmul.f32 %v1312, %v1696
    %v1761 = vmul.f32 %v1313, %v1697
    %v1762 = vmul.f32 %v1314, %v1698
    %v1763 = vmul.f32 %v1315, %v1699
    %v1764 = vmul.f32 %v1316, %v1700
    %v1765 = vlaneseq
    %v1766 = vshrl.u32 %v1765, 7
    %v1767 = vsub.s32 0, %v1766
    %v1768 = vrot.slane %v154, %v1767
    %v1769 = vmul.f32 %v1701, %v1768
    %v1770 = vmul.f32 %v1702, %v1768
    %v1771 = vmul.f32 %v1703, %v1768
    %v1772 = vmul.f32 %v1704, %v1768
    %v1773 = vmul.f32 %v1705, %v1768
    %v1774 = vmul.f32 %v1706, %v1768
    %v1775 = vmul.f32 %v1707, %v1768
    %v1776 = vmul.f32 %v1708, %v1768
    %v1777 = vmul.f32 %v1709, %v1768
    %v1778 = vmul.f32 %v1710, %v1768
    %v1779 = vmul.f32 %v1711, %v1768
    %v1780 = vmul.f32 %v1712, %v1768
    %v1781 = vmul.f32 %v1713, %v1768
    %v1782 = vmul.f32 %v1714, %v1768
    %v1783 = vmul.f32 %v1715, %v1768
    %v1784 = vmul.f32 %v1716, %v1768
    %v1785 = vmul.f32 %v1717, %v1768
    %v1786 = vmul.f32 %v1718, %v1768
    %v1787 = vmul.f32 %v1719, %v1768
    %v1788 = vmul.f32 %v1720, %v1768
    %v1789 = vmul.f32 %v1721, %v1768
    %v1790 = vmul.f32 %v1722, %v1768
    %v1791 = vmul.f32 %v1723, %v1768
    %v1792 = vmul.f32 %v1724, %v1768
    %v1793 = vmul.f32 %v1725, %v1768
    %v1794 = vmul.f32 %v1726, %v1768
    %v1795 = vmul.f32 %v1727, %v1768
    %v1796 = vmul.f32 %v1728, %v1768
    %v1797 = vmul.f32 %v1729, %v1768
    %v1798 = vmul.f32 %v1730, %v1768
    %v1799 = vmul.f32 %v1731, %v1768
    %v1800 = vmul.f32 %v1732, %v1768
    %v1801 = vmul.f32 %v1733, %v1768
    %v1802 = vmul.f32 %v1734, %v1768
    %v1803 = vmul.f32 %v1735, %v1768
    %v1804 = vmul.f32 %v1736, %v1768
    %v1805 = vmul.f32 %v1737, %v1768
    %v1806 = vmul.f32 %v1738, %v1768
    %v1807 = vmul.f32 %v1739, %v1768
    %v1808 = vmul.f32 %v1740, %v1768
    %v1809 = vmul.f32 %v1741, %v1768
    %v1810 = vmul.f32 %v1742, %v1768
    %v1811 = vmul.f32 %v1743, %v1768
    %v1812 = vmul.f32 %v1744, %v1768
    %v1813 = vmul.f32 %v1745, %v1768
    %v1814 = vmul.f32 %v1746, %v1768
    %v1815 = vmul.f32 %v1747, %v1768
    %v1816 = vmul.f32 %v1748, %v1768
    %v1817 = vmul.f32 %v1749, %v1768
    %v1818 = vmul.f32 %v1750, %v1768
    %v1819 = vmul.f32 %v1751, %v1768
    %v1820 = vmul.f32 %v1752, %v1768
    %v1821 = vmul.f32 %v1753, %v1768
    %v1822 = vmul.f32 %v1754, %v1768
    %v1823 = vmul.f32 %v1755, %v1768
    %v1824 = vmul.f32 %v1756, %v1768
    %v1825 = vmul.f32 %v1757, %v1768
    %v1826 = vmul.f32 %v1758, %v1768
    %v1827 = vmul.f32 %v1759, %v1768
    %v1828 = vmul.f32 %v1760, %v1768
    %v1829 = vmul.f32 %v1761, %v1768
    %v1830 = vmul.f32 %v1762, %v1768
    %v1831 = vmul.f32 %v1763, %v1768
    %v1832 = vmul.f32 %v1764, %v1768
    %v1833 = vlaneseq
    %v1834 = vshrl.u32 %v1833, 7
    %v1835 = vsub.s32 0, %v1834
    %v1836 = vrot.slane %v155, %v1835
    %v1837 = vadd.f32 %v1769, %v1836
    %v1838 = vadd.f32 %v1770, %v1836
    %v1839 = vadd.f32 %v1771, %v1836
    %v1840 = vadd.f32 %v1772, %v1836
    %v1841 = vadd.f32 %v1773, %v1836
    %v1842 = vadd.f32 %v1774, %v1836
    %v1843 = vadd.f32 %v1775, %v1836
    %v1844 = vadd.f32 %v1776, %v1836
    %v1845 = vadd.f32 %v1777, %v1836
    %v1846 = vadd.f32 %v1778, %v1836
    %v1847 = vadd.f32 %v1779, %v1836
    %v1848 = vadd.f32 %v1780, %v1836
    %v1849 = vadd.f32 %v1781, %v1836
    %v1850 = vadd.f32 %v1782, %v1836
    %v1851 = vadd.f32 %v1783, %v1836
    %v1852 = vadd.f32 %v1784, %v1836
    %v1853 = vadd.f32 %v1785, %v1836
    %v1854 = vadd.f32 %v1786, %v1836
    %v1855 = vadd.f32 %v1787, %v1836
    %v1856 = vadd.f32 %v1788, %v1836
    %v1857 = vadd.f32 %v1789, %v1836
    %v1858 = vadd.f32 %v1790, %v1836
    %v1859 = vadd.f32 %v1791, %v1836
    %v1860 = vadd.f32 %v1792, %v1836
    %v1861 = vadd.f32 %v1793, %v1836
    %v1862 = vadd.f32 %v1794, %v1836
    %v1863 = vadd.f32 %v1795, %v1836
    %v1864 = vadd.f32 %v1796, %v1836
    %v1865 = vadd.f32 %v1797, %v1836
    %v1866 = vadd.f32 %v1798, %v1836
    %v1867 = vadd.f32 %v1799, %v1836
    %v1868 = vadd.f32 %v1800, %v1836
    %v1869 = vadd.f32 %v1801, %v1836
    %v1870 = vadd.f32 %v1802, %v1836
    %v1871 = vadd.f32 %v1803, %v1836
    %v1872 = vadd.f32 %v1804, %v1836
    %v1873 = vadd.f32 %v1805, %v1836
    %v1874 = vadd.f32 %v1806, %v1836
    %v1875 = vadd.f32 %v1807, %v1836
    %v1876 = vadd.f32 %v1808, %v1836
    %v1877 = vadd.f32 %v1809, %v1836
    %v1878 = vadd.f32 %v1810, %v1836
    %v1879 = vadd.f32 %v1811, %v1836
    %v1880 = vadd.f32 %v1812, %v1836
    %v1881 = vadd.f32 %v1813, %v1836
    %v1882 = vadd.f32 %v1814, %v1836
    %v1883 = vadd.f32 %v1815, %v1836
    %v1884 = vadd.f32 %v1816, %v1836
    %v1885 = vadd.f32 %v1817, %v1836
    %v1886 = vadd.f32 %v1818, %v1836
    %v1887 = vadd.f32 %v1819, %v1836
    %v1888 = vadd.f32 %v1820, %v1836
    %v1889 = vadd.f32 %v1821, %v1836
    %v1890 = vadd.f32 %v1822, %v1836
    %v1891 = vadd.f32 %v1823, %v1836
    %v1892 = vadd.f32 %v1824, %v1836
    %v1893 = vadd.f32 %v1825, %v1836
    %v1894 = vadd.f32 %v1826, %v1836
    %v1895 = vadd.f32 %v1827, %v1836
    %v1896 = vadd.f32 %v1828, %v1836
    %v1897 = vadd.f32 %v1829, %v1836
    %v1898 = vadd.f32 %v1830, %v1836
    %v1899 = vadd.f32 %v1831, %v1836
    %v1900 = vadd.f32 %v1832, %v1836
    %v1901 = vpack.c.bf16 %v1838, %v1837
    %v1902 = vpack.c.bf16 %v1840, %v1839
    %v1903 = vpack.c.bf16 %v1842, %v1841
    %v1904 = vpack.c.bf16 %v1844, %v1843
    %v1905 = vpack.c.bf16 %v1846, %v1845
    %v1906 = vpack.c.bf16 %v1848, %v1847
    %v1907 = vpack.c.bf16 %v1850, %v1849
    %v1908 = vpack.c.bf16 %v1852, %v1851
    %v1909 = vpack.c.bf16 %v1854, %v1853
    %v1910 = vpack.c.bf16 %v1856, %v1855
    %v1911 = vpack.c.bf16 %v1858, %v1857
    %v1912 = vpack.c.bf16 %v1860, %v1859
    %v1913 = vpack.c.bf16 %v1862, %v1861
    %v1914 = vpack.c.bf16 %v1864, %v1863
    %v1915 = vpack.c.bf16 %v1866, %v1865
    %v1916 = vpack.c.bf16 %v1868, %v1867
    %v1917 = vpack.c.bf16 %v1870, %v1869
    %v1918 = vpack.c.bf16 %v1872, %v1871
    %v1919 = vpack.c.bf16 %v1874, %v1873
    %v1920 = vpack.c.bf16 %v1876, %v1875
    %v1921 = vpack.c.bf16 %v1878, %v1877
    %v1922 = vpack.c.bf16 %v1880, %v1879
    %v1923 = vpack.c.bf16 %v1882, %v1881
    %v1924 = vpack.c.bf16 %v1884, %v1883
    %v1925 = vpack.c.bf16 %v1886, %v1885
    %v1926 = vpack.c.bf16 %v1888, %v1887
    %v1927 = vpack.c.bf16 %v1890, %v1889
    %v1928 = vpack.c.bf16 %v1892, %v1891
    %v1929 = vpack.c.bf16 %v1894, %v1893
    %v1930 = vpack.c.bf16 %v1896, %v1895
    %v1931 = vpack.c.bf16 %v1898, %v1897
    %v1932 = vpack.c.bf16 %v1900, %v1899
    %s1933 = sld [smem:[#allocation11]]
    %s1934 = sld [smem:[#allocation11 + $0x1]]
    %v1935 = vld [vmem:[#allocation8] sm:$0xff]
    %v1936 = vld [vmem:[#allocation8 + $0x8] sm:$0xff]
    %v1937 = vld [vmem:[#allocation8 + $0x10] sm:$0xff]
    %v1938 = vld [vmem:[#allocation8 + $0x18] sm:$0xff]
    %v1939 = vld [vmem:[#allocation8 + $0x20] sm:$0xff]
    %v1940 = vld [vmem:[#allocation8 + $0x28] sm:$0xff]
    %v1941 = vld [vmem:[#allocation8 + $0x30] sm:$0xff]
    %v1942 = vld [vmem:[#allocation8 + $0x38] sm:$0xff]
    %v1943 = vld [vmem:[#allocation8 + $0x40] sm:$0xff]
    %v1944 = vld [vmem:[#allocation8 + $0x48] sm:$0xff]
    %v1945 = vld [vmem:[#allocation8 + $0x50] sm:$0xff]
    %v1946 = vld [vmem:[#allocation8 + $0x58] sm:$0xff]
    %v1947 = vld [vmem:[#allocation8 + $0x60] sm:$0xff]
    %v1948 = vld [vmem:[#allocation8 + $0x68] sm:$0xff]
    %v1949 = vld [vmem:[#allocation8 + $0x70] sm:$0xff]
    %v1950 = vld [vmem:[#allocation8 + $0x78] sm:$0xff]
    %v1951 = vld [vmem:[#allocation8 + $0x80] sm:$0xff]
    %v1952 = vld [vmem:[#allocation8 + $0x88] sm:$0xff]
    %v1953 = vld [vmem:[#allocation8 + $0x90] sm:$0xff]
    %v1954 = vld [vmem:[#allocation8 + $0x98] sm:$0xff]
    %v1955 = vld [vmem:[#allocation8 + $0xa0] sm:$0xff]
    %v1956 = vld [vmem:[#allocation8 + $0xa8] sm:$0xff]
    %v1957 = vld [vmem:[#allocation8 + $0xb0] sm:$0xff]
    %v1958 = vld [vmem:[#allocation8 + $0xb8] sm:$0xff]
    %v1959 = vld [vmem:[#allocation8 + $0xc0] sm:$0xff]
    %v1960 = vld [vmem:[#allocation8 + $0xc8] sm:$0xff]
    %v1961 = vld [vmem:[#allocation8 + $0xd0] sm:$0xff]
    %v1962 = vld [vmem:[#allocation8 + $0xd8] sm:$0xff]
    %v1963 = vld [vmem:[#allocation8 + $0xe0] sm:$0xff]
    %v1964 = vld [vmem:[#allocation8 + $0xe8] sm:$0xff]
    %v1965 = vld [vmem:[#allocation8 + $0xf0] sm:$0xff]
    %v1966 = vld [vmem:[#allocation8 + $0xf8] sm:$0xff]
    %v1999 = vunpack.c.l.b16 %v1935
    %v2000 = vunpack.c.h.b16 %v1935
    %v2001 = vunpack.c.l.b16 %v1936
    %v2002 = vunpack.c.h.b16 %v1936
    %v2003 = vunpack.c.l.b16 %v1937
    %v2004 = vunpack.c.h.b16 %v1937
    %v2005 = vunpack.c.l.b16 %v1938
    %v2006 = vunpack.c.h.b16 %v1938
    %v2007 = vunpack.c.l.b16 %v1939
    %v2008 = vunpack.c.h.b16 %v1939
    %v2009 = vunpack.c.l.b16 %v1940
    %v2010 = vunpack.c.h.b16 %v1940
    %v2011 = vunpack.c.l.b16 %v1941
    %v2012 = vunpack.c.h.b16 %v1941
    %v2013 = vunpack.c.l.b16 %v1942
    %v2014 = vunpack.c.h.b16 %v1942
    %v2015 = vunpack.c.l.b16 %v1943
    %v2016 = vunpack.c.h.b16 %v1943
    %v2017 = vunpack.c.l.b16 %v1944
    %v2018 = vunpack.c.h.b16 %v1944
    %v2019 = vunpack.c.l.b16 %v1945
    %v2020 = vunpack.c.h.b16 %v1945
    %v2021 = vunpack.c.l.b16 %v1946
    %v2022 = vunpack.c.h.b16 %v1946
    %v2023 = vunpack.c.l.b16 %v1947
    %v2024 = vunpack.c.h.b16 %v1947
    %v2025 = vunpack.c.l.b16 %v1948
    %v2026 = vunpack.c.h.b16 %v1948
    %v2027 = vunpack.c.l.b16 %v1949
    %v2028 = vunpack.c.h.b16 %v1949
    %v2029 = vunpack.c.l.b16 %v1950
    %v2030 = vunpack.c.h.b16 %v1950
    %v2031 = vunpack.c.l.b16 %v1951
    %v2032 = vunpack.c.h.b16 %v1951
    %v2033 = vunpack.c.l.b16 %v1952
    %v2034 = vunpack.c.h.b16 %v1952
    %v2035 = vunpack.c.l.b16 %v1953
    %v2036 = vunpack.c.h.b16 %v1953
    %v2037 = vunpack.c.l.b16 %v1954
    %v2038 = vunpack.c.h.b16 %v1954
    %v2039 = vunpack.c.l.b16 %v1955
    %v2040 = vunpack.c.h.b16 %v1955
    %v2041 = vunpack.c.l.b16 %v1956
    %v2042 = vunpack.c.h.b16 %v1956
    %v2043 = vunpack.c.l.b16 %v1957
    %v2044 = vunpack.c.h.b16 %v1957
    %v2045 = vunpack.c.l.b16 %v1958
    %v2046 = vunpack.c.h.b16 %v1958
    %v2047 = vunpack.c.l.b16 %v1959
    %v2048 = vunpack.c.h.b16 %v1959
    %v2049 = vunpack.c.l.b16 %v1960
    %v2050 = vunpack.c.h.b16 %v1960
    %v2051 = vunpack.c.l.b16 %v1961
    %v2052 = vunpack.c.h.b16 %v1961
    %v2053 = vunpack.c.l.b16 %v1962
    %v2054 = vunpack.c.h.b16 %v1962
    %v2055 = vunpack.c.l.b16 %v1963
    %v2056 = vunpack.c.h.b16 %v1963
    %v2057 = vunpack.c.l.b16 %v1964
    %v2058 = vunpack.c.h.b16 %v1964
    %v2059 = vunpack.c.l.b16 %v1965
    %v2060 = vunpack.c.h.b16 %v1965
    %v2061 = vunpack.c.l.b16 %v1966
    %v2062 = vunpack.c.h.b16 %v1966
    %v2063 = vpack.c.b16 %v2003, %v1999
    %v2064 = vpack.c.b16 %v2004, %v2000
    %v2065 = vpack.c.b16 %v2005, %v2001
    %v2066 = vpack.c.b16 %v2006, %v2002
    %v2067 = vpack.c.b16 %v2011, %v2007
    %v2068 = vpack.c.b16 %v2012, %v2008
    %v2069 = vpack.c.b16 %v2013, %v2009
    %v2070 = vpack.c.b16 %v2014, %v2010
    %v2071 = vpack.c.b16 %v2019, %v2015
    %v2072 = vpack.c.b16 %v2020, %v2016
    %v2073 = vpack.c.b16 %v2021, %v2017
    %v2074 = vpack.c.b16 %v2022, %v2018
    %v2075 = vpack.c.b16 %v2027, %v2023
    %v2076 = vpack.c.b16 %v2028, %v2024
    %v2077 = vpack.c.b16 %v2029, %v2025
    %v2078 = vpack.c.b16 %v2030, %v2026
    %v2079 = vpack.c.b16 %v2035, %v2031
    %v2080 = vpack.c.b16 %v2036, %v2032
    %v2081 = vpack.c.b16 %v2037, %v2033
    %v2082 = vpack.c.b16 %v2038, %v2034
    %v2083 = vpack.c.b16 %v2043, %v2039
    %v2084 = vpack.c.b16 %v2044, %v2040
    %v2085 = vpack.c.b16 %v2045, %v2041
    %v2086 = vpack.c.b16 %v2046, %v2042
    %v2087 = vpack.c.b16 %v2051, %v2047
    %v2088 = vpack.c.b16 %v2052, %v2048
    %v2089 = vpack.c.b16 %v2053, %v2049
    %v2090 = vpack.c.b16 %v2054, %v2050
    %v2091 = vpack.c.b16 %v2059, %v2055
    %v2092 = vpack.c.b16 %v2060, %v2056
    %v2093 = vpack.c.b16 %v2061, %v2057
    %v2094 = vpack.c.b16 %v2062, %v2058
    %2127 = vmatprep.subr.bf16.mxu0 %v2092
    %2128 = vmatpush1.bf16.msra.mxu0 %v2091
    %2129 = vmatprep.subr.bf16.mxu0 %v2088
    %2130 = vmatpush1.bf16.msra.mxu0 %v2087
    %2131 = vmatprep.subr.bf16.mxu0 %v2084
    %2132 = vmatpush1.bf16.msra.mxu0 %v2083
    %2133 = vmatprep.subr.bf16.mxu0 %v2080
    %2134 = vmatpush1.bf16.msra.mxu0 %v2079
    %2135 = vmatprep.subr.bf16.mxu0 %v2076
    %2136 = vmatpush1.bf16.msra.mxu0 %v2075
    %2137 = vmatprep.subr.bf16.mxu0 %v2072
    %2138 = vmatpush1.bf16.msra.mxu0 %v2071
    %2139 = vmatprep.subr.bf16.mxu0 %v2068
    %2140 = vmatpush1.bf16.msra.mxu0 %v2067
    %2141 = vmatprep.subr.bf16.mxu0 %v2064
    %2142 = vmatpush1.bf16.msra.mxu0 %v2063
    %2143 = vmatprep.subr.bf16.mxu0 0
    %2144 = vmatpush2.bf16.msra.mxu0 0
    %2145 = vmatprep.subr.bf16.mxu0 0
    %2146 = vmatpush2.bf16.msra.mxu0 0
    %2147 = vmatprep.subr.bf16.mxu0 0
    %2148 = vmatpush2.bf16.msra.mxu0 0
    %2149 = vmatprep.subr.bf16.mxu0 0
    %2150 = vmatpush2.bf16.msra.mxu0 0
    %2151 = vmatprep.subr.bf16.mxu0 0
    %2152 = vmatpush2.bf16.msra.mxu0 0
    %2153 = vmatprep.subr.bf16.mxu0 0
    %2154 = vmatpush2.bf16.msra.mxu0 0
    %2155 = vmatprep.subr.bf16.mxu0 0
    %2156 = vmatpush2.bf16.msra.mxu0 0
    %2157 = vmatprep.subr.bf16.mxu0 0
    %2158 = vmatpush2.bf16.msra.mxu0 0
    %2159 = vmatprep.mubr.bf16.mxu0 0
    %2160 = vmatmul.mubr.bf16.gmra.mxu0 %v1901
    %v2161 = vpop.f32.mrf.mxu0
    %v2162 = vadd.f32 0.0, %v2161
    %v2163 = vpop.f32.mrf.mxu0
    %v2164 = vadd.f32 0.0, %v2163
    %v2165 = vpop.f32.mrf.mxu0
    %v2166 = vadd.f32 0.0, %v2165
    %v2167 = vpop.f32.mrf.mxu0
    %v2168 = vadd.f32 0.0, %v2167
    %2169 = vmatprep.mubr.bf16.mxu0 0
    %2170 = vmatmul.mubr.bf16.gmra.mxu0 %v1902
    %v2171 = vpop.f32.mrf.mxu0
    %v2172 = vadd.f32 0.0, %v2171
    %v2173 = vpop.f32.mrf.mxu0
    %v2174 = vadd.f32 0.0, %v2173
    %v2175 = vpop.f32.mrf.mxu0
    %v2176 = vadd.f32 0.0, %v2175
    %v2177 = vpop.f32.mrf.mxu0
    %v2178 = vadd.f32 0.0, %v2177
    %2179 = vmatprep.mubr.bf16.mxu0 0
    %2180 = vmatmul.mubr.bf16.gmra.mxu0 %v1903
    %v2181 = vpop.f32.mrf.mxu0
    %v2182 = vadd.f32 0.0, %v2181
    %v2183 = vpop.f32.mrf.mxu0
    %v2184 = vadd.f32 0.0, %v2183
    %v2185 = vpop.f32.mrf.mxu0
    %v2186 = vadd.f32 0.0, %v2185
    %v2187 = vpop.f32.mrf.mxu0
    %v2188 = vadd.f32 0.0, %v2187
    %2189 = vmatprep.mubr.bf16.mxu0 0
    %2190 = vmatmul.mubr.bf16.gmra.mxu0 %v1904
    %v2191 = vpop.f32.mrf.mxu0
    %v2192 = vadd.f32 0.0, %v2191
    %v2193 = vpop.f32.mrf.mxu0
    %v2194 = vadd.f32 0.0, %v2193
    %v2195 = vpop.f32.mrf.mxu0
    %v2196 = vadd.f32 0.0, %v2195
    %v2197 = vpop.f32.mrf.mxu0
    %v2198 = vadd.f32 0.0, %v2197
    %2199 = vmatprep.mubr.bf16.mxu0 0
    %2200 = vmatmul.mubr.bf16.gmra.mxu0 %v1905
    %v2201 = vpop.f32.mrf.mxu0
    %v2202 = vadd.f32 0.0, %v2201
    %v2203 = vpop.f32.mrf.mxu0
    %v2204 = vadd.f32 0.0, %v2203
    %v2205 = vpop.f32.mrf.mxu0
    %v2206 = vadd.f32 0.0, %v2205
    %v2207 = vpop.f32.mrf.mxu0
    %v2208 = vadd.f32 0.0, %v2207
    %2209 = vmatprep.mubr.bf16.mxu0 0
    %2210 = vmatmul.mubr.bf16.gmra.mxu0 %v1906
    %v2211 = vpop.f32.mrf.mxu0
    %v2212 = vadd.f32 0.0, %v2211
    %v2213 = vpop.f32.mrf.mxu0
    %v2214 = vadd.f32 0.0, %v2213
    %v2215 = vpop.f32.mrf.mxu0
    %v2216 = vadd.f32 0.0, %v2215
    %v2217 = vpop.f32.mrf.mxu0
    %v2218 = vadd.f32 0.0, %v2217
    %2219 = vmatprep.mubr.bf16.mxu0 0
    %2220 = vmatmul.mubr.bf16.gmra.mxu0 %v1907
    %v2221 = vpop.f32.mrf.mxu0
    %v2222 = vadd.f32 0.0, %v2221
    %v2223 = vpop.f32.mrf.mxu0
    %v2224 = vadd.f32 0.0, %v2223
    %v2225 = vpop.f32.mrf.mxu0
    %v2226 = vadd.f32 0.0, %v2225
    %v2227 = vpop.f32.mrf.mxu0
    %v2228 = vadd.f32 0.0, %v2227
    %2229 = vmatprep.mubr.bf16.mxu0 0
    %2230 = vmatmul.mubr.bf16.gmra.mxu0 %v1908
    %v2231 = vpop.f32.mrf.mxu0
    %v2232 = vadd.f32 0.0, %v2231
    %v2233 = vpop.f32.mrf.mxu0
    %v2234 = vadd.f32 0.0, %v2233
    %v2235 = vpop.f32.mrf.mxu0
    %v2236 = vadd.f32 0.0, %v2235
    %v2237 = vpop.f32.mrf.mxu0
    %v2238 = vadd.f32 0.0, %v2237
    %2239 = vmatprep.mubr.bf16.mxu0 0
    %2240 = vmatmul.mubr.bf16.gmra.mxu0 %v1909
    %v2241 = vpop.f32.mrf.mxu0
    %v2242 = vadd.f32 0.0, %v2241
    %v2243 = vpop.f32.mrf.mxu0
    %v2244 = vadd.f32 0.0, %v2243
    %v2245 = vpop.f32.mrf.mxu0
    %v2246 = vadd.f32 0.0, %v2245
    %v2247 = vpop.f32.mrf.mxu0
    %v2248 = vadd.f32 0.0, %v2247
    %2249 = vmatprep.mubr.bf16.mxu0 0
    %2250 = vmatmul.mubr.bf16.gmra.mxu0 %v1910
    %v2251 = vpop.f32.mrf.mxu0
    %v2252 = vadd.f32 0.0, %v2251
    %v2253 = vpop.f32.mrf.mxu0
    %v2254 = vadd.f32 0.0, %v2253
    %v2255 = vpop.f32.mrf.mxu0
    %v2256 = vadd.f32 0.0, %v2255
    %v2257 = vpop.f32.mrf.mxu0
    %v2258 = vadd.f32 0.0, %v2257
    %2259 = vmatprep.mubr.bf16.mxu0 0
    %2260 = vmatmul.mubr.bf16.gmra.mxu0 %v1911
    %v2261 = vpop.f32.mrf.mxu0
    %v2262 = vadd.f32 0.0, %v2261
    %v2263 = vpop.f32.mrf.mxu0
    %v2264 = vadd.f32 0.0, %v2263
    %v2265 = vpop.f32.mrf.mxu0
    %v2266 = vadd.f32 0.0, %v2265
    %v2267 = vpop.f32.mrf.mxu0
    %v2268 = vadd.f32 0.0, %v2267
    %2269 = vmatprep.mubr.bf16.mxu0 0
    %2270 = vmatmul.mubr.bf16.gmra.mxu0 %v1912
    %v2271 = vpop.f32.mrf.mxu0
    %v2272 = vadd.f32 0.0, %v2271
    %v2273 = vpop.f32.mrf.mxu0
    %v2274 = vadd.f32 0.0, %v2273
    %v2275 = vpop.f32.mrf.mxu0
    %v2276 = vadd.f32 0.0, %v2275
    %v2277 = vpop.f32.mrf.mxu0
    %v2278 = vadd.f32 0.0, %v2277
    %2279 = vmatprep.mubr.bf16.mxu0 0
    %2280 = vmatmul.mubr.bf16.gmra.mxu0 %v1913
    %v2281 = vpop.f32.mrf.mxu0
    %v2282 = vadd.f32 0.0, %v2281
    %v2283 = vpop.f32.mrf.mxu0
    %v2284 = vadd.f32 0.0, %v2283
    %v2285 = vpop.f32.mrf.mxu0
    %v2286 = vadd.f32 0.0, %v2285
    %v2287 = vpop.f32.mrf.mxu0
    %v2288 = vadd.f32 0.0, %v2287
    %2289 = vmatprep.mubr.bf16.mxu0 0
    %2290 = vmatmul.mubr.bf16.gmra.mxu0 %v1914
    %v2291 = vpop.f32.mrf.mxu0
    %v2292 = vadd.f32 0.0, %v2291
    %v2293 = vpop.f32.mrf.mxu0
    %v2294 = vadd.f32 0.0, %v2293
    %v2295 = vpop.f32.mrf.mxu0
    %v2296 = vadd.f32 0.0, %v2295
    %v2297 = vpop.f32.mrf.mxu0
    %v2298 = vadd.f32 0.0, %v2297
    %2299 = vmatprep.mubr.bf16.mxu0 0
    %2300 = vmatmul.mubr.bf16.gmra.mxu0 %v1915
    %v2301 = vpop.f32.mrf.mxu0
    %v2302 = vadd.f32 0.0, %v2301
    %v2303 = vpop.f32.mrf.mxu0
    %v2304 = vadd.f32 0.0, %v2303
    %v2305 = vpop.f32.mrf.mxu0
    %v2306 = vadd.f32 0.0, %v2305
    %v2307 = vpop.f32.mrf.mxu0
    %v2308 = vadd.f32 0.0, %v2307
    %2309 = vmatprep.mubr.bf16.mxu0 0
    %2310 = vmatmul.mubr.bf16.gmra.mxu0 %v1916
    %v2311 = vpop.f32.mrf.mxu0
    %v2312 = vadd.f32 0.0, %v2311
    %v2313 = vpop.f32.mrf.mxu0
    %v2314 = vadd.f32 0.0, %v2313
    %v2315 = vpop.f32.mrf.mxu0
    %v2316 = vadd.f32 0.0, %v2315
    %v2317 = vpop.f32.mrf.mxu0
    %v2318 = vadd.f32 0.0, %v2317
    %2319 = vmatprep.mubr.bf16.mxu0 0
    %2320 = vmatmul.mubr.bf16.gmra.mxu0 %v1917
    %v2321 = vpop.f32.mrf.mxu0
    %v2322 = vadd.f32 0.0, %v2321
    %v2323 = vpop.f32.mrf.mxu0
    %v2324 = vadd.f32 0.0, %v2323
    %v2325 = vpop.f32.mrf.mxu0
    %v2326 = vadd.f32 0.0, %v2325
    %v2327 = vpop.f32.mrf.mxu0
    %v2328 = vadd.f32 0.0, %v2327
    %2329 = vmatprep.mubr.bf16.mxu0 0
    %2330 = vmatmul.mubr.bf16.gmra.mxu0 %v1918
    %v2331 = vpop.f32.mrf.mxu0
    %v2332 = vadd.f32 0.0, %v2331
    %v2333 = vpop.f32.mrf.mxu0
    %v2334 = vadd.f32 0.0, %v2333
    %v2335 = vpop.f32.mrf.mxu0
    %v2336 = vadd.f32 0.0, %v2335
    %v2337 = vpop.f32.mrf.mxu0
    %v2338 = vadd.f32 0.0, %v2337
    %2339 = vmatprep.mubr.bf16.mxu0 0
    %2340 = vmatmul.mubr.bf16.gmra.mxu0 %v1919
    %v2341 = vpop.f32.mrf.mxu0
    %v2342 = vadd.f32 0.0, %v2341
    %v2343 = vpop.f32.mrf.mxu0
    %v2344 = vadd.f32 0.0, %v2343
    %v2345 = vpop.f32.mrf.mxu0
    %v2346 = vadd.f32 0.0, %v2345
    %v2347 = vpop.f32.mrf.mxu0
    %v2348 = vadd.f32 0.0, %v2347
    %2349 = vmatprep.mubr.bf16.mxu0 0
    %2350 = vmatmul.mubr.bf16.gmra.mxu0 %v1920
    %v2351 = vpop.f32.mrf.mxu0
    %v2352 = vadd.f32 0.0, %v2351
    %v2353 = vpop.f32.mrf.mxu0
    %v2354 = vadd.f32 0.0, %v2353
    %v2355 = vpop.f32.mrf.mxu0
    %v2356 = vadd.f32 0.0, %v2355
    %v2357 = vpop.f32.mrf.mxu0
    %v2358 = vadd.f32 0.0, %v2357
    %2359 = vmatprep.mubr.bf16.mxu0 0
    %2360 = vmatmul.mubr.bf16.gmra.mxu0 %v1921
    %v2361 = vpop.f32.mrf.mxu0
    %v2362 = vadd.f32 0.0, %v2361
    %v2363 = vpop.f32.mrf.mxu0
    %v2364 = vadd.f32 0.0, %v2363
    %v2365 = vpop.f32.mrf.mxu0
    %v2366 = vadd.f32 0.0, %v2365
    %v2367 = vpop.f32.mrf.mxu0
    %v2368 = vadd.f32 0.0, %v2367
    %2369 = vmatprep.mubr.bf16.mxu0 0
    %2370 = vmatmul.mubr.bf16.gmra.mxu0 %v1922
    %v2371 = vpop.f32.mrf.mxu0
    %v2372 = vadd.f32 0.0, %v2371
    %v2373 = vpop.f32.mrf.mxu0
    %v2374 = vadd.f32 0.0, %v2373
    %v2375 = vpop.f32.mrf.mxu0
    %v2376 = vadd.f32 0.0, %v2375
    %v2377 = vpop.f32.mrf.mxu0
    %v2378 = vadd.f32 0.0, %v2377
    %2379 = vmatprep.mubr.bf16.mxu0 0
    %2380 = vmatmul.mubr.bf16.gmra.mxu0 %v1923
    %v2381 = vpop.f32.mrf.mxu0
    %v2382 = vadd.f32 0.0, %v2381
    %v2383 = vpop.f32.mrf.mxu0
    %v2384 = vadd.f32 0.0, %v2383
    %v2385 = vpop.f32.mrf.mxu0
    %v2386 = vadd.f32 0.0, %v2385
    %v2387 = vpop.f32.mrf.mxu0
    %v2388 = vadd.f32 0.0, %v2387
    %2389 = vmatprep.mubr.bf16.mxu0 0
    %2390 = vmatmul.mubr.bf16.gmra.mxu0 %v1924
    %v2391 = vpop.f32.mrf.mxu0
    %v2392 = vadd.f32 0.0, %v2391
    %v2393 = vpop.f32.mrf.mxu0
    %v2394 = vadd.f32 0.0, %v2393
    %v2395 = vpop.f32.mrf.mxu0
    %v2396 = vadd.f32 0.0, %v2395
    %v2397 = vpop.f32.mrf.mxu0
    %v2398 = vadd.f32 0.0, %v2397
    %2399 = vmatprep.mubr.bf16.mxu0 0
    %2400 = vmatmul.mubr.bf16.gmra.mxu0 %v1925
    %v2401 = vpop.f32.mrf.mxu0
    %v2402 = vadd.f32 0.0, %v2401
    %v2403 = vpop.f32.mrf.mxu0
    %v2404 = vadd.f32 0.0, %v2403
    %v2405 = vpop.f32.mrf.mxu0
    %v2406 = vadd.f32 0.0, %v2405
    %v2407 = vpop.f32.mrf.mxu0
    %v2408 = vadd.f32 0.0, %v2407
    %2409 = vmatprep.mubr.bf16.mxu0 0
    %2410 = vmatmul.mubr.bf16.gmra.mxu0 %v1926
    %v2411 = vpop.f32.mrf.mxu0
    %v2412 = vadd.f32 0.0, %v2411
    %v2413 = vpop.f32.mrf.mxu0
    %v2414 = vadd.f32 0.0, %v2413
    %v2415 = vpop.f32.mrf.mxu0
    %v2416 = vadd.f32 0.0, %v2415
    %v2417 = vpop.f32.mrf.mxu0
    %v2418 = vadd.f32 0.0, %v2417
    %2419 = vmatprep.mubr.bf16.mxu0 0
    %2420 = vmatmul.mubr.bf16.gmra.mxu0 %v1927
    %v2421 = vpop.f32.mrf.mxu0
    %v2422 = vadd.f32 0.0, %v2421
    %v2423 = vpop.f32.mrf.mxu0
    %v2424 = vadd.f32 0.0, %v2423
    %v2425 = vpop.f32.mrf.mxu0
    %v2426 = vadd.f32 0.0, %v2425
    %v2427 = vpop.f32.mrf.mxu0
    %v2428 = vadd.f32 0.0, %v2427
    %2429 = vmatprep.mubr.bf16.mxu0 0
    %2430 = vmatmul.mubr.bf16.gmra.mxu0 %v1928
    %v2431 = vpop.f32.mrf.mxu0
    %v2432 = vadd.f32 0.0, %v2431
    %v2433 = vpop.f32.mrf.mxu0
    %v2434 = vadd.f32 0.0, %v2433
    %v2435 = vpop.f32.mrf.mxu0
    %v2436 = vadd.f32 0.0, %v2435
    %v2437 = vpop.f32.mrf.mxu0
    %v2438 = vadd.f32 0.0, %v2437
    %2439 = vmatprep.mubr.bf16.mxu0 0
    %2440 = vmatmul.mubr.bf16.gmra.mxu0 %v1929
    %v2441 = vpop.f32.mrf.mxu0
    %v2442 = vadd.f32 0.0, %v2441
    %v2443 = vpop.f32.mrf.mxu0
    %v2444 = vadd.f32 0.0, %v2443
    %v2445 = vpop.f32.mrf.mxu0
    %v2446 = vadd.f32 0.0, %v2445
    %v2447 = vpop.f32.mrf.mxu0
    %v2448 = vadd.f32 0.0, %v2447
    %2449 = vmatprep.mubr.bf16.mxu0 0
    %2450 = vmatmul.mubr.bf16.gmra.mxu0 %v1930
    %v2451 = vpop.f32.mrf.mxu0
    %v2452 = vadd.f32 0.0, %v2451
    %v2453 = vpop.f32.mrf.mxu0
    %v2454 = vadd.f32 0.0, %v2453
    %v2455 = vpop.f32.mrf.mxu0
    %v2456 = vadd.f32 0.0, %v2455
    %v2457 = vpop.f32.mrf.mxu0
    %v2458 = vadd.f32 0.0, %v2457
    %2459 = vmatprep.mubr.bf16.mxu0 0
    %2460 = vmatmul.mubr.bf16.gmra.mxu0 %v1931
    %v2461 = vpop.f32.mrf.mxu0
    %v2462 = vadd.f32 0.0, %v2461
    %v2463 = vpop.f32.mrf.mxu0
    %v2464 = vadd.f32 0.0, %v2463
    %v2465 = vpop.f32.mrf.mxu0
    %v2466 = vadd.f32 0.0, %v2465
    %v2467 = vpop.f32.mrf.mxu0
    %v2468 = vadd.f32 0.0, %v2467
    %2469 = vmatprep.mubr.bf16.mxu0 0
    %2470 = vmatmul.mubr.bf16.gmra.mxu0 %v1932
    %v2471 = vpop.f32.mrf.mxu0
    %v2472 = vadd.f32 0.0, %v2471
    %v2473 = vpop.f32.mrf.mxu0
    %v2474 = vadd.f32 0.0, %v2473
    %v2475 = vpop.f32.mrf.mxu0
    %v2476 = vadd.f32 0.0, %v2475
    %v2477 = vpop.f32.mrf.mxu0
    %v2478 = vadd.f32 0.0, %v2477
    %2479 = vdwg.mxu0
    %2480 = vmatprep.subr.bf16.mxu0 %v2094
    %2481 = vmatpush1.bf16.msra.mxu0 %v2093
    %2482 = vmatprep.subr.bf16.mxu0 %v2090
    %2483 = vmatpush1.bf16.msra.mxu0 %v2089
    %2484 = vmatprep.subr.bf16.mxu0 %v2086
    %2485 = vmatpush1.bf16.msra.mxu0 %v2085
    %2486 = vmatprep.subr.bf16.mxu0 %v2082
    %2487 = vmatpush1.bf16.msra.mxu0 %v2081
    %2488 = vmatprep.subr.bf16.mxu0 %v2078
    %2489 = vmatpush1.bf16.msra.mxu0 %v2077
    %2490 = vmatprep.subr.bf16.mxu0 %v2074
    %2491 = vmatpush1.bf16.msra.mxu0 %v2073
    %2492 = vmatprep.subr.bf16.mxu0 %v2070
    %2493 = vmatpush1.bf16.msra.mxu0 %v2069
    %2494 = vmatprep.subr.bf16.mxu0 %v2066
    %2495 = vmatpush1.bf16.msra.mxu0 %v2065
    %2496 = vmatprep.subr.bf16.mxu0 0
    %2497 = vmatpush2.bf16.msra.mxu0 0
    %2498 = vmatprep.subr.bf16.mxu0 0
    %2499 = vmatpush2.bf16.msra.mxu0 0
    %2500 = vmatprep.subr.bf16.mxu0 0
    %2501 = vmatpush2.bf16.msra.mxu0 0
    %2502 = vmatprep.subr.bf16.mxu0 0
    %2503 = vmatpush2.bf16.msra.mxu0 0
    %2504 = vmatprep.subr.bf16.mxu0 0
    %2505 = vmatpush2.bf16.msra.mxu0 0
    %2506 = vmatprep.subr.bf16.mxu0 0
    %2507 = vmatpush2.bf16.msra.mxu0 0
    %2508 = vmatprep.subr.bf16.mxu0 0
    %2509 = vmatpush2.bf16.msra.mxu0 0
    %2510 = vmatprep.subr.bf16.mxu0 0
    %2511 = vmatpush2.bf16.msra.mxu0 0
    %2512 = vmatprep.mubr.bf16.mxu0 0
    %2513 = vmatmul.mubr.bf16.gmra.mxu0 %v1901
    %v2514 = vpop.f32.mrf.mxu0
    %v2515 = vadd.f32 0.0, %v2514
    %v2516 = vpop.f32.mrf.mxu0
    %v2517 = vadd.f32 0.0, %v2516
    %v2518 = vpop.f32.mrf.mxu0
    %v2519 = vadd.f32 0.0, %v2518
    %v2520 = vpop.f32.mrf.mxu0
    %v2521 = vadd.f32 0.0, %v2520
    %2522 = vmatprep.mubr.bf16.mxu0 0
    %2523 = vmatmul.mubr.bf16.gmra.mxu0 %v1902
    %v2524 = vpop.f32.mrf.mxu0
    %v2525 = vadd.f32 0.0, %v2524
    %v2526 = vpop.f32.mrf.mxu0
    %v2527 = vadd.f32 0.0, %v2526
    %v2528 = vpop.f32.mrf.mxu0
    %v2529 = vadd.f32 0.0, %v2528
    %v2530 = vpop.f32.mrf.mxu0
    %v2531 = vadd.f32 0.0, %v2530
    %2532 = vmatprep.mubr.bf16.mxu0 0
    %2533 = vmatmul.mubr.bf16.gmra.mxu0 %v1903
    %v2534 = vpop.f32.mrf.mxu0
    %v2535 = vadd.f32 0.0, %v2534
    %v2536 = vpop.f32.mrf.mxu0
    %v2537 = vadd.f32 0.0, %v2536
    %v2538 = vpop.f32.mrf.mxu0
    %v2539 = vadd.f32 0.0, %v2538
    %v2540 = vpop.f32.mrf.mxu0
    %v2541 = vadd.f32 0.0, %v2540
    %2542 = vmatprep.mubr.bf16.mxu0 0
    %2543 = vmatmul.mubr.bf16.gmra.mxu0 %v1904
    %v2544 = vpop.f32.mrf.mxu0
    %v2545 = vadd.f32 0.0, %v2544
    %v2546 = vpop.f32.mrf.mxu0
    %v2547 = vadd.f32 0.0, %v2546
    %v2548 = vpop.f32.mrf.mxu0
    %v2549 = vadd.f32 0.0, %v2548
    %v2550 = vpop.f32.mrf.mxu0
    %v2551 = vadd.f32 0.0, %v2550
    %2552 = vmatprep.mubr.bf16.mxu0 0
    %2553 = vmatmul.mubr.bf16.gmra.mxu0 %v1905
    %v2554 = vpop.f32.mrf.mxu0
    %v2555 = vadd.f32 0.0, %v2554
    %v2556 = vpop.f32.mrf.mxu0
    %v2557 = vadd.f32 0.0, %v2556
    %v2558 = vpop.f32.mrf.mxu0
    %v2559 = vadd.f32 0.0, %v2558
    %v2560 = vpop.f32.mrf.mxu0
    %v2561 = vadd.f32 0.0, %v2560
    %2562 = vmatprep.mubr.bf16.mxu0 0
    %2563 = vmatmul.mubr.bf16.gmra.mxu0 %v1906
    %v2564 = vpop.f32.mrf.mxu0
    %v2565 = vadd.f32 0.0, %v2564
    %v2566 = vpop.f32.mrf.mxu0
    %v2567 = vadd.f32 0.0, %v2566
    %v2568 = vpop.f32.mrf.mxu0
    %v2569 = vadd.f32 0.0, %v2568
    %v2570 = vpop.f32.mrf.mxu0
    %v2571 = vadd.f32 0.0, %v2570
    %2572 = vmatprep.mubr.bf16.mxu0 0
    %2573 = vmatmul.mubr.bf16.gmra.mxu0 %v1907
    %v2574 = vpop.f32.mrf.mxu0
    %v2575 = vadd.f32 0.0, %v2574
    %v2576 = vpop.f32.mrf.mxu0
    %v2577 = vadd.f32 0.0, %v2576
    %v2578 = vpop.f32.mrf.mxu0
    %v2579 = vadd.f32 0.0, %v2578
    %v2580 = vpop.f32.mrf.mxu0
    %v2581 = vadd.f32 0.0, %v2580
    %2582 = vmatprep.mubr.bf16.mxu0 0
    %2583 = vmatmul.mubr.bf16.gmra.mxu0 %v1908
    %v2584 = vpop.f32.mrf.mxu0
    %v2585 = vadd.f32 0.0, %v2584
    %v2586 = vpop.f32.mrf.mxu0
    %v2587 = vadd.f32 0.0, %v2586
    %v2588 = vpop.f32.mrf.mxu0
    %v2589 = vadd.f32 0.0, %v2588
    %v2590 = vpop.f32.mrf.mxu0
    %v2591 = vadd.f32 0.0, %v2590
    %2592 = vmatprep.mubr.bf16.mxu0 0
    %2593 = vmatmul.mubr.bf16.gmra.mxu0 %v1909
    %v2594 = vpop.f32.mrf.mxu0
    %v2595 = vadd.f32 0.0, %v2594
    %v2596 = vpop.f32.mrf.mxu0
    %v2597 = vadd.f32 0.0, %v2596
    %v2598 = vpop.f32.mrf.mxu0
    %v2599 = vadd.f32 0.0, %v2598
    %v2600 = vpop.f32.mrf.mxu0
    %v2601 = vadd.f32 0.0, %v2600
    %2602 = vmatprep.mubr.bf16.mxu0 0
    %2603 = vmatmul.mubr.bf16.gmra.mxu0 %v1910
    %v2604 = vpop.f32.mrf.mxu0
    %v2605 = vadd.f32 0.0, %v2604
    %v2606 = vpop.f32.mrf.mxu0
    %v2607 = vadd.f32 0.0, %v2606
    %v2608 = vpop.f32.mrf.mxu0
    %v2609 = vadd.f32 0.0, %v2608
    %v2610 = vpop.f32.mrf.mxu0
    %v2611 = vadd.f32 0.0, %v2610
    %2612 = vmatprep.mubr.bf16.mxu0 0
    %2613 = vmatmul.mubr.bf16.gmra.mxu0 %v1911
    %v2614 = vpop.f32.mrf.mxu0
    %v2615 = vadd.f32 0.0, %v2614
    %v2616 = vpop.f32.mrf.mxu0
    %v2617 = vadd.f32 0.0, %v2616
    %v2618 = vpop.f32.mrf.mxu0
    %v2619 = vadd.f32 0.0, %v2618
    %v2620 = vpop.f32.mrf.mxu0
    %v2621 = vadd.f32 0.0, %v2620
    %2622 = vmatprep.mubr.bf16.mxu0 0
    %2623 = vmatmul.mubr.bf16.gmra.mxu0 %v1912
    %v2624 = vpop.f32.mrf.mxu0
    %v2625 = vadd.f32 0.0, %v2624
    %v2626 = vpop.f32.mrf.mxu0
    %v2627 = vadd.f32 0.0, %v2626
    %v2628 = vpop.f32.mrf.mxu0
    %v2629 = vadd.f32 0.0, %v2628
    %v2630 = vpop.f32.mrf.mxu0
    %v2631 = vadd.f32 0.0, %v2630
    %2632 = vmatprep.mubr.bf16.mxu0 0
    %2633 = vmatmul.mubr.bf16.gmra.mxu0 %v1913
    %v2634 = vpop.f32.mrf.mxu0
    %v2635 = vadd.f32 0.0, %v2634
    %v2636 = vpop.f32.mrf.mxu0
    %v2637 = vadd.f32 0.0, %v2636
    %v2638 = vpop.f32.mrf.mxu0
    %v2639 = vadd.f32 0.0, %v2638
    %v2640 = vpop.f32.mrf.mxu0
    %v2641 = vadd.f32 0.0, %v2640
    %2642 = vmatprep.mubr.bf16.mxu0 0
    %2643 = vmatmul.mubr.bf16.gmra.mxu0 %v1914
    %v2644 = vpop.f32.mrf.mxu0
    %v2645 = vadd.f32 0.0, %v2644
    %v2646 = vpop.f32.mrf.mxu0
    %v2647 = vadd.f32 0.0, %v2646
    %v2648 = vpop.f32.mrf.mxu0
    %v2649 = vadd.f32 0.0, %v2648
    %v2650 = vpop.f32.mrf.mxu0
    %v2651 = vadd.f32 0.0, %v2650
    %2652 = vmatprep.mubr.bf16.mxu0 0
    %2653 = vmatmul.mubr.bf16.gmra.mxu0 %v1915
    %v2654 = vpop.f32.mrf.mxu0
    %v2655 = vadd.f32 0.0, %v2654
    %v2656 = vpop.f32.mrf.mxu0
    %v2657 = vadd.f32 0.0, %v2656
    %v2658 = vpop.f32.mrf.mxu0
    %v2659 = vadd.f32 0.0, %v2658
    %v2660 = vpop.f32.mrf.mxu0
    %v2661 = vadd.f32 0.0, %v2660
    %2662 = vmatprep.mubr.bf16.mxu0 0
    %2663 = vmatmul.mubr.bf16.gmra.mxu0 %v1916
    %v2664 = vpop.f32.mrf.mxu0
    %v2665 = vadd.f32 0.0, %v2664
    %v2666 = vpop.f32.mrf.mxu0
    %v2667 = vadd.f32 0.0, %v2666
    %v2668 = vpop.f32.mrf.mxu0
    %v2669 = vadd.f32 0.0, %v2668
    %v2670 = vpop.f32.mrf.mxu0
    %v2671 = vadd.f32 0.0, %v2670
    %2672 = vmatprep.mubr.bf16.mxu0 0
    %2673 = vmatmul.mubr.bf16.gmra.mxu0 %v1917
    %v2674 = vpop.f32.mrf.mxu0
    %v2675 = vadd.f32 0.0, %v2674
    %v2676 = vpop.f32.mrf.mxu0
    %v2677 = vadd.f32 0.0, %v2676
    %v2678 = vpop.f32.mrf.mxu0
    %v2679 = vadd.f32 0.0, %v2678
    %v2680 = vpop.f32.mrf.mxu0
    %v2681 = vadd.f32 0.0, %v2680
    %2682 = vmatprep.mubr.bf16.mxu0 0
    %2683 = vmatmul.mubr.bf16.gmra.mxu0 %v1918
    %v2684 = vpop.f32.mrf.mxu0
    %v2685 = vadd.f32 0.0, %v2684
    %v2686 = vpop.f32.mrf.mxu0
    %v2687 = vadd.f32 0.0, %v2686
    %v2688 = vpop.f32.mrf.mxu0
    %v2689 = vadd.f32 0.0, %v2688
    %v2690 = vpop.f32.mrf.mxu0
    %v2691 = vadd.f32 0.0, %v2690
    %2692 = vmatprep.mubr.bf16.mxu0 0
    %2693 = vmatmul.mubr.bf16.gmra.mxu0 %v1919
    %v2694 = vpop.f32.mrf.mxu0
    %v2695 = vadd.f32 0.0, %v2694
    %v2696 = vpop.f32.mrf.mxu0
    %v2697 = vadd.f32 0.0, %v2696
    %v2698 = vpop.f32.mrf.mxu0
    %v2699 = vadd.f32 0.0, %v2698
    %v2700 = vpop.f32.mrf.mxu0
    %v2701 = vadd.f32 0.0, %v2700
    %2702 = vmatprep.mubr.bf16.mxu0 0
    %2703 = vmatmul.mubr.bf16.gmra.mxu0 %v1920
    %v2704 = vpop.f32.mrf.mxu0
    %v2705 = vadd.f32 0.0, %v2704
    %v2706 = vpop.f32.mrf.mxu0
    %v2707 = vadd.f32 0.0, %v2706
    %v2708 = vpop.f32.mrf.mxu0
    %v2709 = vadd.f32 0.0, %v2708
    %v2710 = vpop.f32.mrf.mxu0
    %v2711 = vadd.f32 0.0, %v2710
    %2712 = vmatprep.mubr.bf16.mxu0 0
    %2713 = vmatmul.mubr.bf16.gmra.mxu0 %v1921
    %v2714 = vpop.f32.mrf.mxu0
    %v2715 = vadd.f32 0.0, %v2714
    %v2716 = vpop.f32.mrf.mxu0
    %v2717 = vadd.f32 0.0, %v2716
    %v2718 = vpop.f32.mrf.mxu0
    %v2719 = vadd.f32 0.0, %v2718
    %v2720 = vpop.f32.mrf.mxu0
    %v2721 = vadd.f32 0.0, %v2720
    %2722 = vmatprep.mubr.bf16.mxu0 0
    %2723 = vmatmul.mubr.bf16.gmra.mxu0 %v1922
    %v2724 = vpop.f32.mrf.mxu0
    %v2725 = vadd.f32 0.0, %v2724
    %v2726 = vpop.f32.mrf.mxu0
    %v2727 = vadd.f32 0.0, %v2726
    %v2728 = vpop.f32.mrf.mxu0
    %v2729 = vadd.f32 0.0, %v2728
    %v2730 = vpop.f32.mrf.mxu0
    %v2731 = vadd.f32 0.0, %v2730
    %2732 = vmatprep.mubr.bf16.mxu0 0
    %2733 = vmatmul.mubr.bf16.gmra.mxu0 %v1923
    %v2734 = vpop.f32.mrf.mxu0
    %v2735 = vadd.f32 0.0, %v2734
    %v2736 = vpop.f32.mrf.mxu0
    %v2737 = vadd.f32 0.0, %v2736
    %v2738 = vpop.f32.mrf.mxu0
    %v2739 = vadd.f32 0.0, %v2738
    %v2740 = vpop.f32.mrf.mxu0
    %v2741 = vadd.f32 0.0, %v2740
    %2742 = vmatprep.mubr.bf16.mxu0 0
    %2743 = vmatmul.mubr.bf16.gmra.mxu0 %v1924
    %v2744 = vpop.f32.mrf.mxu0
    %v2745 = vadd.f32 0.0, %v2744
    %v2746 = vpop.f32.mrf.mxu0
    %v2747 = vadd.f32 0.0, %v2746
    %v2748 = vpop.f32.mrf.mxu0
    %v2749 = vadd.f32 0.0, %v2748
    %v2750 = vpop.f32.mrf.mxu0
    %v2751 = vadd.f32 0.0, %v2750
    %2752 = vmatprep.mubr.bf16.mxu0 0
    %2753 = vmatmul.mubr.bf16.gmra.mxu0 %v1925
    %v2754 = vpop.f32.mrf.mxu0
    %v2755 = vadd.f32 0.0, %v2754
    %v2756 = vpop.f32.mrf.mxu0
    %v2757 = vadd.f32 0.0, %v2756
    %v2758 = vpop.f32.mrf.mxu0
    %v2759 = vadd.f32 0.0, %v2758
    %v2760 = vpop.f32.mrf.mxu0
    %v2761 = vadd.f32 0.0, %v2760
    %2762 = vmatprep.mubr.bf16.mxu0 0
    %2763 = vmatmul.mubr.bf16.gmra.mxu0 %v1926
    %v2764 = vpop.f32.mrf.mxu0
    %v2765 = vadd.f32 0.0, %v2764
    %v2766 = vpop.f32.mrf.mxu0
    %v2767 = vadd.f32 0.0, %v2766
    %v2768 = vpop.f32.mrf.mxu0
    %v2769 = vadd.f32 0.0, %v2768
    %v2770 = vpop.f32.mrf.mxu0
    %v2771 = vadd.f32 0.0, %v2770
    %2772 = vmatprep.mubr.bf16.mxu0 0
    %2773 = vmatmul.mubr.bf16.gmra.mxu0 %v1927
    %v2774 = vpop.f32.mrf.mxu0
    %v2775 = vadd.f32 0.0, %v2774
    %v2776 = vpop.f32.mrf.mxu0
    %v2777 = vadd.f32 0.0, %v2776
    %v2778 = vpop.f32.mrf.mxu0
    %v2779 = vadd.f32 0.0, %v2778
    %v2780 = vpop.f32.mrf.mxu0
    %v2781 = vadd.f32 0.0, %v2780
    %2782 = vmatprep.mubr.bf16.mxu0 0
    %2783 = vmatmul.mubr.bf16.gmra.mxu0 %v1928
    %v2784 = vpop.f32.mrf.mxu0
    %v2785 = vadd.f32 0.0, %v2784
    %v2786 = vpop.f32.mrf.mxu0
    %v2787 = vadd.f32 0.0, %v2786
    %v2788 = vpop.f32.mrf.mxu0
    %v2789 = vadd.f32 0.0, %v2788
    %v2790 = vpop.f32.mrf.mxu0
    %v2791 = vadd.f32 0.0, %v2790
    %2792 = vmatprep.mubr.bf16.mxu0 0
    %2793 = vmatmul.mubr.bf16.gmra.mxu0 %v1929
    %v2794 = vpop.f32.mrf.mxu0
    %v2795 = vadd.f32 0.0, %v2794
    %v2796 = vpop.f32.mrf.mxu0
    %v2797 = vadd.f32 0.0, %v2796
    %v2798 = vpop.f32.mrf.mxu0
    %v2799 = vadd.f32 0.0, %v2798
    %v2800 = vpop.f32.mrf.mxu0
    %v2801 = vadd.f32 0.0, %v2800
    %2802 = vmatprep.mubr.bf16.mxu0 0
    %2803 = vmatmul.mubr.bf16.gmra.mxu0 %v1930
    %v2804 = vpop.f32.mrf.mxu0
    %v2805 = vadd.f32 0.0, %v2804
    %v2806 = vpop.f32.mrf.mxu0
    %v2807 = vadd.f32 0.0, %v2806
    %v2808 = vpop.f32.mrf.mxu0
    %v2809 = vadd.f32 0.0, %v2808
    %v2810 = vpop.f32.mrf.mxu0
    %v2811 = vadd.f32 0.0, %v2810
    %2812 = vmatprep.mubr.bf16.mxu0 0
    %2813 = vmatmul.mubr.bf16.gmra.mxu0 %v1931
    %v2814 = vpop.f32.mrf.mxu0
    %v2815 = vadd.f32 0.0, %v2814
    %v2816 = vpop.f32.mrf.mxu0
    %v2817 = vadd.f32 0.0, %v2816
    %v2818 = vpop.f32.mrf.mxu0
    %v2819 = vadd.f32 0.0, %v2818
    %v2820 = vpop.f32.mrf.mxu0
    %v2821 = vadd.f32 0.0, %v2820
    %2822 = vmatprep.mubr.bf16.mxu0 0
    %2823 = vmatmul.mubr.bf16.gmra.mxu0 %v1932
    %v2824 = vpop.f32.mrf.mxu0
    %v2825 = vadd.f32 0.0, %v2824
    %v2826 = vpop.f32.mrf.mxu0
    %v2827 = vadd.f32 0.0, %v2826
    %v2828 = vpop.f32.mrf.mxu0
    %v2829 = vadd.f32 0.0, %v2828
    %v2830 = vpop.f32.mrf.mxu0
    %v2831 = vadd.f32 0.0, %v2830
    %2832 = vdwg.mxu0
    %v2833 = vpack.c.bf16 %v2166, %v2162
    %v2834 = vpack.c.bf16 %v2168, %v2164
    %v2835 = vpack.c.bf16 %v2519, %v2515
    %v2836 = vpack.c.bf16 %v2521, %v2517
    %v2837 = vpack.c.bf16 %v2176, %v2172
    %v2838 = vpack.c.bf16 %v2178, %v2174
    %v2839 = vpack.c.bf16 %v2529, %v2525
    %v2840 = vpack.c.bf16 %v2531, %v2527
    %v2841 = vpack.c.bf16 %v2186, %v2182
    %v2842 = vpack.c.bf16 %v2188, %v2184
    %v2843 = vpack.c.bf16 %v2539, %v2535
    %v2844 = vpack.c.bf16 %v2541, %v2537
    %v2845 = vpack.c.bf16 %v2196, %v2192
    %v2846 = vpack.c.bf16 %v2198, %v2194
    %v2847 = vpack.c.bf16 %v2549, %v2545
    %v2848 = vpack.c.bf16 %v2551, %v2547
    %v2849 = vpack.c.bf16 %v2206, %v2202
    %v2850 = vpack.c.bf16 %v2208, %v2204
    %v2851 = vpack.c.bf16 %v2559, %v2555
    %v2852 = vpack.c.bf16 %v2561, %v2557
    %v2853 = vpack.c.bf16 %v2216, %v2212
    %v2854 = vpack.c.bf16 %v2218, %v2214
    %v2855 = vpack.c.bf16 %v2569, %v2565
    %v2856 = vpack.c.bf16 %v2571, %v2567
    %v2857 = vpack.c.bf16 %v2226, %v2222
    %v2858 = vpack.c.bf16 %v2228, %v2224
    %v2859 = vpack.c.bf16 %v2579, %v2575
    %v2860 = vpack.c.bf16 %v2581, %v2577
    %v2861 = vpack.c.bf16 %v2236, %v2232
    %v2862 = vpack.c.bf16 %v2238, %v2234
    %v2863 = vpack.c.bf16 %v2589, %v2585
    %v2864 = vpack.c.bf16 %v2591, %v2587
    %v2865 = vpack.c.bf16 %v2246, %v2242
    %v2866 = vpack.c.bf16 %v2248, %v2244
    %v2867 = vpack.c.bf16 %v2599, %v2595
    %v2868 = vpack.c.bf16 %v2601, %v2597
    %v2869 = vpack.c.bf16 %v2256, %v2252
    %v2870 = vpack.c.bf16 %v2258, %v2254
    %v2871 = vpack.c.bf16 %v2609, %v2605
    %v2872 = vpack.c.bf16 %v2611, %v2607
    %v2873 = vpack.c.bf16 %v2266, %v2262
    %v2874 = vpack.c.bf16 %v2268, %v2264
    %v2875 = vpack.c.bf16 %v2619, %v2615
    %v2876 = vpack.c.bf16 %v2621, %v2617
    %v2877 = vpack.c.bf16 %v2276, %v2272
    %v2878 = vpack.c.bf16 %v2278, %v2274
    %v2879 = vpack.c.bf16 %v2629, %v2625
    %v2880 = vpack.c.bf16 %v2631, %v2627
    %v2881 = vpack.c.bf16 %v2286, %v2282
    %v2882 = vpack.c.bf16 %v2288, %v2284
    %v2883 = vpack.c.bf16 %v2639, %v2635
    %v2884 = vpack.c.bf16 %v2641, %v2637
    %v2885 = vpack.c.bf16 %v2296, %v2292
    %v2886 = vpack.c.bf16 %v2298, %v2294
    %v2887 = vpack.c.bf16 %v2649, %v2645
    %v2888 = vpack.c.bf16 %v2651, %v2647
    %v2889 = vpack.c.bf16 %v2306, %v2302
    %v2890 = vpack.c.bf16 %v2308, %v2304
    %v2891 = vpack.c.bf16 %v2659, %v2655
    %v2892 = vpack.c.bf16 %v2661, %v2657
    %v2893 = vpack.c.bf16 %v2316, %v2312
    %v2894 = vpack.c.bf16 %v2318, %v2314
    %v2895 = vpack.c.bf16 %v2669, %v2665
    %v2896 = vpack.c.bf16 %v2671, %v2667
    %v2897 = vpack.c.bf16 %v2326, %v2322
    %v2898 = vpack.c.bf16 %v2328, %v2324
    %v2899 = vpack.c.bf16 %v2679, %v2675
    %v2900 = vpack.c.bf16 %v2681, %v2677
    %v2901 = vpack.c.bf16 %v2336, %v2332
    %v2902 = vpack.c.bf16 %v2338, %v2334
    %v2903 = vpack.c.bf16 %v2689, %v2685
    %v2904 = vpack.c.bf16 %v2691, %v2687
    %v2905 = vpack.c.bf16 %v2346, %v2342
    %v2906 = vpack.c.bf16 %v2348, %v2344
    %v2907 = vpack.c.bf16 %v2699, %v2695
    %v2908 = vpack.c.bf16 %v2701, %v2697
    %v2909 = vpack.c.bf16 %v2356, %v2352
    %v2910 = vpack.c.bf16 %v2358, %v2354
    %v2911 = vpack.c.bf16 %v2709, %v2705
    %v2912 = vpack.c.bf16 %v2711, %v2707
    %v2913 = vpack.c.bf16 %v2366, %v2362
    %v2914 = vpack.c.bf16 %v2368, %v2364
    %v2915 = vpack.c.bf16 %v2719, %v2715
    %v2916 = vpack.c.bf16 %v2721, %v2717
    %v2917 = vpack.c.bf16 %v2376, %v2372
    %v2918 = vpack.c.bf16 %v2378, %v2374
    %v2919 = vpack.c.bf16 %v2729, %v2725
    %v2920 = vpack.c.bf16 %v2731, %v2727
    %v2921 = vpack.c.bf16 %v2386, %v2382
    %v2922 = vpack.c.bf16 %v2388, %v2384
    %v2923 = vpack.c.bf16 %v2739, %v2735
    %v2924 = vpack.c.bf16 %v2741, %v2737
    %v2925 = vpack.c.bf16 %v2396, %v2392
    %v2926 = vpack.c.bf16 %v2398, %v2394
    %v2927 = vpack.c.bf16 %v2749, %v2745
    %v2928 = vpack.c.bf16 %v2751, %v2747
    %v2929 = vpack.c.bf16 %v2406, %v2402
    %v2930 = vpack.c.bf16 %v2408, %v2404
    %v2931 = vpack.c.bf16 %v2759, %v2755
    %v2932 = vpack.c.bf16 %v2761, %v2757
    %v2933 = vpack.c.bf16 %v2416, %v2412
    %v2934 = vpack.c.bf16 %v2418, %v2414
    %v2935 = vpack.c.bf16 %v2769, %v2765
    %v2936 = vpack.c.bf16 %v2771, %v2767
    %v2937 = vpack.c.bf16 %v2426, %v2422
    %v2938 = vpack.c.bf16 %v2428, %v2424
    %v2939 = vpack.c.bf16 %v2779, %v2775
    %v2940 = vpack.c.bf16 %v2781, %v2777
    %v2941 = vpack.c.bf16 %v2436, %v2432
    %v2942 = vpack.c.bf16 %v2438, %v2434
    %v2943 = vpack.c.bf16 %v2789, %v2785
    %v2944 = vpack.c.bf16 %v2791, %v2787
    %v2945 = vpack.c.bf16 %v2446, %v2442
    %v2946 = vpack.c.bf16 %v2448, %v2444
    %v2947 = vpack.c.bf16 %v2799, %v2795
    %v2948 = vpack.c.bf16 %v2801, %v2797
    %v2949 = vpack.c.bf16 %v2456, %v2452
    %v2950 = vpack.c.bf16 %v2458, %v2454
    %v2951 = vpack.c.bf16 %v2809, %v2805
    %v2952 = vpack.c.bf16 %v2811, %v2807
    %v2953 = vpack.c.bf16 %v2466, %v2462
    %v2954 = vpack.c.bf16 %v2468, %v2464
    %v2955 = vpack.c.bf16 %v2819, %v2815
    %v2956 = vpack.c.bf16 %v2821, %v2817
    %v2957 = vpack.c.bf16 %v2476, %v2472
    %v2958 = vpack.c.bf16 %v2478, %v2474
    %v2959 = vpack.c.bf16 %v2829, %v2825
    %v2960 = vpack.c.bf16 %v2831, %v2827
    %v2961 = vmax.bf16 %v2833, 0
    %v2962 = vmax.bf16 %v2834, 0
    %v2963 = vmax.bf16 %v2835, 0
    %v2964 = vmax.bf16 %v2836, 0
    %v2965 = vmax.bf16 %v2837, 0
    %v2966 = vmax.bf16 %v2838, 0
    %v2967 = vmax.bf16 %v2839, 0
    %v2968 = vmax.bf16 %v2840, 0
    %v2969 = vmax.bf16 %v2841, 0
    %v2970 = vmax.bf16 %v2842, 0
    %v2971 = vmax.bf16 %v2843, 0
    %v2972 = vmax.bf16 %v2844, 0
    %v2973 = vmax.bf16 %v2845, 0
    %v2974 = vmax.bf16 %v2846, 0
    %v2975 = vmax.bf16 %v2847, 0
    %v2976 = vmax.bf16 %v2848, 0
    %v2977 = vmax.bf16 %v2849, 0
    %v2978 = vmax.bf16 %v2850, 0
    %v2979 = vmax.bf16 %v2851, 0
    %v2980 = vmax.bf16 %v2852, 0
    %v2981 = vmax.bf16 %v2853, 0
    %v2982 = vmax.bf16 %v2854, 0
    %v2983 = vmax.bf16 %v2855, 0
    %v2984 = vmax.bf16 %v2856, 0
    %v2985 = vmax.bf16 %v2857, 0
    %v2986 = vmax.bf16 %v2858, 0
    %v2987 = vmax.bf16 %v2859, 0
    %v2988 = vmax.bf16 %v2860, 0
    %v2989 = vmax.bf16 %v2861, 0
    %v2990 = vmax.bf16 %v2862, 0
    %v2991 = vmax.bf16 %v2863, 0
    %v2992 = vmax.bf16 %v2864, 0
    %v2993 = vmax.bf16 %v2865, 0
    %v2994 = vmax.bf16 %v2866, 0
    %v2995 = vmax.bf16 %v2867, 0
    %v2996 = vmax.bf16 %v2868, 0
    %v2997 = vmax.bf16 %v2869, 0
    %v2998 = vmax.bf16 %v2870, 0
    %v2999 = vmax.bf16 %v2871, 0
    %v3000 = vmax.bf16 %v2872, 0
    %v3001 = vmax.bf16 %v2873, 0
    %v3002 = vmax.bf16 %v2874, 0
    %v3003 = vmax.bf16 %v2875, 0
    %v3004 = vmax.bf16 %v2876, 0
    %v3005 = vmax.bf16 %v2877, 0
    %v3006 = vmax.bf16 %v2878, 0
    %v3007 = vmax.bf16 %v2879, 0
    %v3008 = vmax.bf16 %v2880, 0
    %v3009 = vmax.bf16 %v2881, 0
    %v3010 = vmax.bf16 %v2882, 0
    %v3011 = vmax.bf16 %v2883, 0
    %v3012 = vmax.bf16 %v2884, 0
    %v3013 = vmax.bf16 %v2885, 0
    %v3014 = vmax.bf16 %v2886, 0
    %v3015 = vmax.bf16 %v2887, 0
    %v3016 = vmax.bf16 %v2888, 0
    %v3017 = vmax.bf16 %v2889, 0
    %v3018 = vmax.bf16 %v2890, 0
    %v3019 = vmax.bf16 %v2891, 0
    %v3020 = vmax.bf16 %v2892, 0
    %v3021 = vmax.bf16 %v2893, 0
    %v3022 = vmax.bf16 %v2894, 0
    %v3023 = vmax.bf16 %v2895, 0
    %v3024 = vmax.bf16 %v2896, 0
    %v3025 = vmax.bf16 %v2897, 0
    %v3026 = vmax.bf16 %v2898, 0
    %v3027 = vmax.bf16 %v2899, 0
    %v3028 = vmax.bf16 %v2900, 0
    %v3029 = vmax.bf16 %v2901, 0
    %v3030 = vmax.bf16 %v2902, 0
    %v3031 = vmax.bf16 %v2903, 0
    %v3032 = vmax.bf16 %v2904, 0
    %v3033 = vmax.bf16 %v2905, 0
    %v3034 = vmax.bf16 %v2906, 0
    %v3035 = vmax.bf16 %v2907, 0
    %v3036 = vmax.bf16 %v2908, 0
    %v3037 = vmax.bf16 %v2909, 0
    %v3038 = vmax.bf16 %v2910, 0
    %v3039 = vmax.bf16 %v2911, 0
    %v3040 = vmax.bf16 %v2912, 0
    %v3041 = vmax.bf16 %v2913, 0
    %v3042 = vmax.bf16 %v2914, 0
    %v3043 = vmax.bf16 %v2915, 0
    %v3044 = vmax.bf16 %v2916, 0
    %v3045 = vmax.bf16 %v2917, 0
    %v3046 = vmax.bf16 %v2918, 0
    %v3047 = vmax.bf16 %v2919, 0
    %v3048 = vmax.bf16 %v2920, 0
    %v3049 = vmax.bf16 %v2921, 0
    %v3050 = vmax.bf16 %v2922, 0
    %v3051 = vmax.bf16 %v2923, 0
    %v3052 = vmax.bf16 %v2924, 0
    %v3053 = vmax.bf16 %v2925, 0
    %v3054 = vmax.bf16 %v2926, 0
    %v3055 = vmax.bf16 %v2927, 0
    %v3056 = vmax.bf16 %v2928, 0
    %v3057 = vmax.bf16 %v2929, 0
    %v3058 = vmax.bf16 %v2930, 0
    %v3059 = vmax.bf16 %v2931, 0
    %v3060 = vmax.bf16 %v2932, 0
    %v3061 = vmax.bf16 %v2933, 0
    %v3062 = vmax.bf16 %v2934, 0
    %v3063 = vmax.bf16 %v2935, 0
    %v3064 = vmax.bf16 %v2936, 0
    %v3065 = vmax.bf16 %v2937, 0
    %v3066 = vmax.bf16 %v2938, 0
    %v3067 = vmax.bf16 %v2939, 0
    %v3068 = vmax.bf16 %v2940, 0
    %v3069 = vmax.bf16 %v2941, 0
    %v3070 = vmax.bf16 %v2942, 0
    %v3071 = vmax.bf16 %v2943, 0
    %v3072 = vmax.bf16 %v2944, 0
    %v3073 = vmax.bf16 %v2945, 0
    %v3074 = vmax.bf16 %v2946, 0
    %v3075 = vmax.bf16 %v2947, 0
    %v3076 = vmax.bf16 %v2948, 0
    %v3077 = vmax.bf16 %v2949, 0
    %v3078 = vmax.bf16 %v2950, 0
    %v3079 = vmax.bf16 %v2951, 0
    %v3080 = vmax.bf16 %v2952, 0
    %v3081 = vmax.bf16 %v2953, 0
    %v3082 = vmax.bf16 %v2954, 0
    %v3083 = vmax.bf16 %v2955, 0
    %v3084 = vmax.bf16 %v2956, 0
    %v3085 = vmax.bf16 %v2957, 0
    %v3086 = vmax.bf16 %v2958, 0
    %v3087 = vmax.bf16 %v2959, 0
    %v3088 = vmax.bf16 %v2960, 0
    %p3090 = scmp.ne.f32.partialorder %s1933, %s1933
    %s3091 = sshrl.u32 %s1933, 16
    %s3092 = sand.u32 %s3091, 1
    %s3093 = sadd.s32 32767, %s3092
    %s3094 = sadd.s32 %s1933, %s3093
    %s3095 = sand.u32 %s3094, 4294901760
    %s3096 = scalar_select %p3090, 2143289344, %s3095
    %s3098 = sshrl.u32 %s3096, 16
    %v3099 = vmul.bf16 %v2961, %v2961
    %v3100 = vmul.bf16 %v2962, %v2962
    %v3101 = vmul.bf16 %v2963, %v2963
    %v3102 = vmul.bf16 %v2964, %v2964
    %v3103 = vmul.bf16 %v2965, %v2965
    %v3104 = vmul.bf16 %v2966, %v2966
    %v3105 = vmul.bf16 %v2967, %v2967
    %v3106 = vmul.bf16 %v2968, %v2968
    %v3107 = vmul.bf16 %v2969, %v2969
    %v3108 = vmul.bf16 %v2970, %v2970
    %v3109 = vmul.bf16 %v2971, %v2971
    %v3110 = vmul.bf16 %v2972, %v2972
    %v3111 = vmul.bf16 %v2973, %v2973
    %v3112 = vmul.bf16 %v2974, %v2974
    %v3113 = vmul.bf16 %v2975, %v2975
    %v3114 = vmul.bf16 %v2976, %v2976
    %v3115 = vmul.bf16 %v2977, %v2977
    %v3116 = vmul.bf16 %v2978, %v2978
    %v3117 = vmul.bf16 %v2979, %v2979
    %v3118 = vmul.bf16 %v2980, %v2980
    %v3119 = vmul.bf16 %v2981, %v2981
    %v3120 = vmul.bf16 %v2982, %v2982
    %v3121 = vmul.bf16 %v2983, %v2983
    %v3122 = vmul.bf16 %v2984, %v2984
    %v3123 = vmul.bf16 %v2985, %v2985
    %v3124 = vmul.bf16 %v2986, %v2986
    %v3125 = vmul.bf16 %v2987, %v2987
    %v3126 = vmul.bf16 %v2988, %v2988
    %v3127 = vmul.bf16 %v2989, %v2989
    %v3128 = vmul.bf16 %v2990, %v2990
    %v3129 = vmul.bf16 %v2991, %v2991
    %v3130 = vmul.bf16 %v2992, %v2992
    %v3131 = vmul.bf16 %v2993, %v2993
    %v3132 = vmul.bf16 %v2994, %v2994
    %v3133 = vmul.bf16 %v2995, %v2995
    %v3134 = vmul.bf16 %v2996, %v2996
    %v3135 = vmul.bf16 %v2997, %v2997
    %v3136 = vmul.bf16 %v2998, %v2998
    %v3137 = vmul.bf16 %v2999, %v2999
    %v3138 = vmul.bf16 %v3000, %v3000
    %v3139 = vmul.bf16 %v3001, %v3001
    %v3140 = vmul.bf16 %v3002, %v3002
    %v3141 = vmul.bf16 %v3003, %v3003
    %v3142 = vmul.bf16 %v3004, %v3004
    %v3143 = vmul.bf16 %v3005, %v3005
    %v3144 = vmul.bf16 %v3006, %v3006
    %v3145 = vmul.bf16 %v3007, %v3007
    %v3146 = vmul.bf16 %v3008, %v3008
    %v3147 = vmul.bf16 %v3009, %v3009
    %v3148 = vmul.bf16 %v3010, %v3010
    %v3149 = vmul.bf16 %v3011, %v3011
    %v3150 = vmul.bf16 %v3012, %v3012
    %v3151 = vmul.bf16 %v3013, %v3013
    %v3152 = vmul.bf16 %v3014, %v3014
    %v3153 = vmul.bf16 %v3015, %v3015
    %v3154 = vmul.bf16 %v3016, %v3016
    %v3155 = vmul.bf16 %v3017, %v3017
    %v3156 = vmul.bf16 %v3018, %v3018
    %v3157 = vmul.bf16 %v3019, %v3019
    %v3158 = vmul.bf16 %v3020, %v3020
    %v3159 = vmul.bf16 %v3021, %v3021
    %v3160 = vmul.bf16 %v3022, %v3022
    %v3161 = vmul.bf16 %v3023, %v3023
    %v3162 = vmul.bf16 %v3024, %v3024
    %v3163 = vmul.bf16 %v3025, %v3025
    %v3164 = vmul.bf16 %v3026, %v3026
    %v3165 = vmul.bf16 %v3027, %v3027
    %v3166 = vmul.bf16 %v3028, %v3028
    %v3167 = vmul.bf16 %v3029, %v3029
    %v3168 = vmul.bf16 %v3030, %v3030
    %v3169 = vmul.bf16 %v3031, %v3031
    %v3170 = vmul.bf16 %v3032, %v3032
    %v3171 = vmul.bf16 %v3033, %v3033
    %v3172 = vmul.bf16 %v3034, %v3034
    %v3173 = vmul.bf16 %v3035, %v3035
    %v3174 = vmul.bf16 %v3036, %v3036
    %v3175 = vmul.bf16 %v3037, %v3037
    %v3176 = vmul.bf16 %v3038, %v3038
    %v3177 = vmul.bf16 %v3039, %v3039
    %v3178 = vmul.bf16 %v3040, %v3040
    %v3179 = vmul.bf16 %v3041, %v3041
    %v3180 = vmul.bf16 %v3042, %v3042
    %v3181 = vmul.bf16 %v3043, %v3043
    %v3182 = vmul.bf16 %v3044, %v3044
    %v3183 = vmul.bf16 %v3045, %v3045
    %v3184 = vmul.bf16 %v3046, %v3046
    %v3185 = vmul.bf16 %v3047, %v3047
    %v3186 = vmul.bf16 %v3048, %v3048
    %v3187 = vmul.bf16 %v3049, %v3049
    %v3188 = vmul.bf16 %v3050, %v3050
    %v3189 = vmul.bf16 %v3051, %v3051
    %v3190 = vmul.bf16 %v3052, %v3052
    %v3191 = vmul.bf16 %v3053, %v3053
    %v3192 = vmul.bf16 %v3054, %v3054
    %v3193 = vmul.bf16 %v3055, %v3055
    %v3194 = vmul.bf16 %v3056, %v3056
    %v3195 = vmul.bf16 %v3057, %v3057
    %v3196 = vmul.bf16 %v3058, %v3058
    %v3197 = vmul.bf16 %v3059, %v3059
    %v3198 = vmul.bf16 %v3060, %v3060
    %v3199 = vmul.bf16 %v3061, %v3061
    %v3200 = vmul.bf16 %v3062, %v3062
    %v3201 = vmul.bf16 %v3063, %v3063
    %v3202 = vmul.bf16 %v3064, %v3064
    %v3203 = vmul.bf16 %v3065, %v3065
    %v3204 = vmul.bf16 %v3066, %v3066
    %v3205 = vmul.bf16 %v3067, %v3067
    %v3206 = vmul.bf16 %v3068, %v3068
    %v3207 = vmul.bf16 %v3069, %v3069
    %v3208 = vmul.bf16 %v3070, %v3070
    %v3209 = vmul.bf16 %v3071, %v3071
    %v3210 = vmul.bf16 %v3072, %v3072
    %v3211 = vmul.bf16 %v3073, %v3073
    %v3212 = vmul.bf16 %v3074, %v3074
    %v3213 = vmul.bf16 %v3075, %v3075
    %v3214 = vmul.bf16 %v3076, %v3076
    %v3215 = vmul.bf16 %v3077, %v3077
    %v3216 = vmul.bf16 %v3078, %v3078
    %v3217 = vmul.bf16 %v3079, %v3079
    %v3218 = vmul.bf16 %v3080, %v3080
    %v3219 = vmul.bf16 %v3081, %v3081
    %v3220 = vmul.bf16 %v3082, %v3082
    %v3221 = vmul.bf16 %v3083, %v3083
    %v3222 = vmul.bf16 %v3084, %v3084
    %v3223 = vmul.bf16 %v3085, %v3085
    %v3224 = vmul.bf16 %v3086, %v3086
    %v3225 = vmul.bf16 %v3087, %v3087
    %v3226 = vmul.bf16 %v3088, %v3088
    %s3227 = sshll.u32 %s3098, 16
    %s3228 = sor.u32 %s3098, %s3227
    %v3229 = vstv %s3228
    %v3231 = vmul.bf16 %v3229, %v3099
    %v3232 = vmul.bf16 %v3229, %v3100
    %v3233 = vmul.bf16 %v3229, %v3101
    %v3234 = vmul.bf16 %v3229, %v3102
    %v3235 = vmul.bf16 %v3229, %v3103
    %v3236 = vmul.bf16 %v3229, %v3104
    %v3237 = vmul.bf16 %v3229, %v3105
    %v3238 = vmul.bf16 %v3229, %v3106
    %v3239 = vmul.bf16 %v3229, %v3107
    %v3240 = vmul.bf16 %v3229, %v3108
    %v3241 = vmul.bf16 %v3229, %v3109
    %v3242 = vmul.bf16 %v3229, %v3110
    %v3243 = vmul.bf16 %v3229, %v3111
    %v3244 = vmul.bf16 %v3229, %v3112
    %v3245 = vmul.bf16 %v3229, %v3113
    %v3246 = vmul.bf16 %v3229, %v3114
    %v3247 = vmul.bf16 %v3229, %v3115
    %v3248 = vmul.bf16 %v3229, %v3116
    %v3249 = vmul.bf16 %v3229, %v3117
    %v3250 = vmul.bf16 %v3229, %v3118
    %v3251 = vmul.bf16 %v3229, %v3119
    %v3252 = vmul.bf16 %v3229, %v3120
    %v3253 = vmul.bf16 %v3229, %v3121
    %v3254 = vmul.bf16 %v3229, %v3122
    %v3255 = vmul.bf16 %v3229, %v3123
    %v3256 = vmul.bf16 %v3229, %v3124
    %v3257 = vmul.bf16 %v3229, %v3125
    %v3258 = vmul.bf16 %v3229, %v3126
    %v3259 = vmul.bf16 %v3229, %v3127
    %v3260 = vmul.bf16 %v3229, %v3128
    %v3261 = vmul.bf16 %v3229, %v3129
    %v3262 = vmul.bf16 %v3229, %v3130
    %v3263 = vmul.bf16 %v3229, %v3131
    %v3264 = vmul.bf16 %v3229, %v3132
    %v3265 = vmul.bf16 %v3229, %v3133
    %v3266 = vmul.bf16 %v3229, %v3134
    %v3267 = vmul.bf16 %v3229, %v3135
    %v3268 = vmul.bf16 %v3229, %v3136
    %v3269 = vmul.bf16 %v3229, %v3137
    %v3270 = vmul.bf16 %v3229, %v3138
    %v3271 = vmul.bf16 %v3229, %v3139
    %v3272 = vmul.bf16 %v3229, %v3140
    %v3273 = vmul.bf16 %v3229, %v3141
    %v3274 = vmul.bf16 %v3229, %v3142
    %v3275 = vmul.bf16 %v3229, %v3143
    %v3276 = vmul.bf16 %v3229, %v3144
    %v3277 = vmul.bf16 %v3229, %v3145
    %v3278 = vmul.bf16 %v3229, %v3146
    %v3279 = vmul.bf16 %v3229, %v3147
    %v3280 = vmul.bf16 %v3229, %v3148
    %v3281 = vmul.bf16 %v3229, %v3149
    %v3282 = vmul.bf16 %v3229, %v3150
    %v3283 = vmul.bf16 %v3229, %v3151
    %v3284 = vmul.bf16 %v3229, %v3152
    %v3285 = vmul.bf16 %v3229, %v3153
    %v3286 = vmul.bf16 %v3229, %v3154
    %v3287 = vmul.bf16 %v3229, %v3155
    %v3288 = vmul.bf16 %v3229, %v3156
    %v3289 = vmul.bf16 %v3229, %v3157
    %v3290 = vmul.bf16 %v3229, %v3158
    %v3291 = vmul.bf16 %v3229, %v3159
    %v3292 = vmul.bf16 %v3229, %v3160
    %v3293 = vmul.bf16 %v3229, %v3161
    %v3294 = vmul.bf16 %v3229, %v3162
    %v3295 = vmul.bf16 %v3229, %v3163
    %v3296 = vmul.bf16 %v3229, %v3164
    %v3297 = vmul.bf16 %v3229, %v3165
    %v3298 = vmul.bf16 %v3229, %v3166
    %v3299 = vmul.bf16 %v3229, %v3167
    %v3300 = vmul.bf16 %v3229, %v3168
    %v3301 = vmul.bf16 %v3229, %v3169
    %v3302 = vmul.bf16 %v3229, %v3170
    %v3303 = vmul.bf16 %v3229, %v3171
    %v3304 = vmul.bf16 %v3229, %v3172
    %v3305 = vmul.bf16 %v3229, %v3173
    %v3306 = vmul.bf16 %v3229, %v3174
    %v3307 = vmul.bf16 %v3229, %v3175
    %v3308 = vmul.bf16 %v3229, %v3176
    %v3309 = vmul.bf16 %v3229, %v3177
    %v3310 = vmul.bf16 %v3229, %v3178
    %v3311 = vmul.bf16 %v3229, %v3179
    %v3312 = vmul.bf16 %v3229, %v3180
    %v3313 = vmul.bf16 %v3229, %v3181
    %v3314 = vmul.bf16 %v3229, %v3182
    %v3315 = vmul.bf16 %v3229, %v3183
    %v3316 = vmul.bf16 %v3229, %v3184
    %v3317 = vmul.bf16 %v3229, %v3185
    %v3318 = vmul.bf16 %v3229, %v3186
    %v3319 = vmul.bf16 %v3229, %v3187
    %v3320 = vmul.bf16 %v3229, %v3188
    %v3321 = vmul.bf16 %v3229, %v3189
    %v3322 = vmul.bf16 %v3229, %v3190
    %v3323 = vmul.bf16 %v3229, %v3191
    %v3324 = vmul.bf16 %v3229, %v3192
    %v3325 = vmul.bf16 %v3229, %v3193
    %v3326 = vmul.bf16 %v3229, %v3194
    %v3327 = vmul.bf16 %v3229, %v3195
    %v3328 = vmul.bf16 %v3229, %v3196
    %v3329 = vmul.bf16 %v3229, %v3197
    %v3330 = vmul.bf16 %v3229, %v3198
    %v3331 = vmul.bf16 %v3229, %v3199
    %v3332 = vmul.bf16 %v3229, %v3200
    %v3333 = vmul.bf16 %v3229, %v3201
    %v3334 = vmul.bf16 %v3229, %v3202
    %v3335 = vmul.bf16 %v3229, %v3203
    %v3336 = vmul.bf16 %v3229, %v3204
    %v3337 = vmul.bf16 %v3229, %v3205
    %v3338 = vmul.bf16 %v3229, %v3206
    %v3339 = vmul.bf16 %v3229, %v3207
    %v3340 = vmul.bf16 %v3229, %v3208
    %v3341 = vmul.bf16 %v3229, %v3209
    %v3342 = vmul.bf16 %v3229, %v3210
    %v3343 = vmul.bf16 %v3229, %v3211
    %v3344 = vmul.bf16 %v3229, %v3212
    %v3345 = vmul.bf16 %v3229, %v3213
    %v3346 = vmul.bf16 %v3229, %v3214
    %v3347 = vmul.bf16 %v3229, %v3215
    %v3348 = vmul.bf16 %v3229, %v3216
    %v3349 = vmul.bf16 %v3229, %v3217
    %v3350 = vmul.bf16 %v3229, %v3218
    %v3351 = vmul.bf16 %v3229, %v3219
    %v3352 = vmul.bf16 %v3229, %v3220
    %v3353 = vmul.bf16 %v3229, %v3221
    %v3354 = vmul.bf16 %v3229, %v3222
    %v3355 = vmul.bf16 %v3229, %v3223
    %v3356 = vmul.bf16 %v3229, %v3224
    %v3357 = vmul.bf16 %v3229, %v3225
    %v3358 = vmul.bf16 %v3229, %v3226
    %p3360 = scmp.ne.f32.partialorder %s1934, %s1934
    %s3361 = sshrl.u32 %s1934, 16
    %s3362 = sand.u32 %s3361, 1
    %s3363 = sadd.s32 32767, %s3362
    %s3364 = sadd.s32 %s1934, %s3363
    %s3365 = sand.u32 %s3364, 4294901760
    %s3366 = scalar_select %p3360, 2143289344, %s3365
    %s3368 = sshrl.u32 %s3366, 16
    %s3369 = sshll.u32 %s3368, 16
    %s3370 = sor.u32 %s3368, %s3369
    %v3371 = vstv %s3370
    %v3373 = vadd.bf16 %v3231, %v3371
    %v3374 = vadd.bf16 %v3232, %v3371
    %v3375 = vadd.bf16 %v3233, %v3371
    %v3376 = vadd.bf16 %v3234, %v3371
    %v3377 = vadd.bf16 %v3235, %v3371
    %v3378 = vadd.bf16 %v3236, %v3371
    %v3379 = vadd.bf16 %v3237, %v3371
    %v3380 = vadd.bf16 %v3238, %v3371
    %v3381 = vadd.bf16 %v3239, %v3371
    %v3382 = vadd.bf16 %v3240, %v3371
    %v3383 = vadd.bf16 %v3241, %v3371
    %v3384 = vadd.bf16 %v3242, %v3371
    %v3385 = vadd.bf16 %v3243, %v3371
    %v3386 = vadd.bf16 %v3244, %v3371
    %v3387 = vadd.bf16 %v3245, %v3371
    %v3388 = vadd.bf16 %v3246, %v3371
    %v3389 = vadd.bf16 %v3247, %v3371
    %v3390 = vadd.bf16 %v3248, %v3371
    %v3391 = vadd.bf16 %v3249, %v3371
    %v3392 = vadd.bf16 %v3250, %v3371
    %v3393 = vadd.bf16 %v3251, %v3371
    %v3394 = vadd.bf16 %v3252, %v3371
    %v3395 = vadd.bf16 %v3253, %v3371
    %v3396 = vadd.bf16 %v3254, %v3371
    %v3397 = vadd.bf16 %v3255, %v3371
    %v3398 = vadd.bf16 %v3256, %v3371
    %v3399 = vadd.bf16 %v3257, %v3371
    %v3400 = vadd.bf16 %v3258, %v3371
    %v3401 = vadd.bf16 %v3259, %v3371
    %v3402 = vadd.bf16 %v3260, %v3371
    %v3403 = vadd.bf16 %v3261, %v3371
    %v3404 = vadd.bf16 %v3262, %v3371
    %v3405 = vadd.bf16 %v3263, %v3371
    %v3406 = vadd.bf16 %v3264, %v3371
    %v3407 = vadd.bf16 %v3265, %v3371
    %v3408 = vadd.bf16 %v3266, %v3371
    %v3409 = vadd.bf16 %v3267, %v3371
    %v3410 = vadd.bf16 %v3268, %v3371
    %v3411 = vadd.bf16 %v3269, %v3371
    %v3412 = vadd.bf16 %v3270, %v3371
    %v3413 = vadd.bf16 %v3271, %v3371
    %v3414 = vadd.bf16 %v3272, %v3371
    %v3415 = vadd.bf16 %v3273, %v3371
    %v3416 = vadd.bf16 %v3274, %v3371
    %v3417 = vadd.bf16 %v3275, %v3371
    %v3418 = vadd.bf16 %v3276, %v3371
    %v3419 = vadd.bf16 %v3277, %v3371
    %v3420 = vadd.bf16 %v3278, %v3371
    %v3421 = vadd.bf16 %v3279, %v3371
    %v3422 = vadd.bf16 %v3280, %v3371
    %v3423 = vadd.bf16 %v3281, %v3371
    %v3424 = vadd.bf16 %v3282, %v3371
    %v3425 = vadd.bf16 %v3283, %v3371
    %v3426 = vadd.bf16 %v3284, %v3371
    %v3427 = vadd.bf16 %v3285, %v3371
    %v3428 = vadd.bf16 %v3286, %v3371
    %v3429 = vadd.bf16 %v3287, %v3371
    %v3430 = vadd.bf16 %v3288, %v3371
    %v3431 = vadd.bf16 %v3289, %v3371
    %v3432 = vadd.bf16 %v3290, %v3371
    %v3433 = vadd.bf16 %v3291, %v3371
    %v3434 = vadd.bf16 %v3292, %v3371
    %v3435 = vadd.bf16 %v3293, %v3371
    %v3436 = vadd.bf16 %v3294, %v3371
    %v3437 = vadd.bf16 %v3295, %v3371
    %v3438 = vadd.bf16 %v3296, %v3371
    %v3439 = vadd.bf16 %v3297, %v3371
    %v3440 = vadd.bf16 %v3298, %v3371
    %v3441 = vadd.bf16 %v3299, %v3371
    %v3442 = vadd.bf16 %v3300, %v3371
    %v3443 = vadd.bf16 %v3301, %v3371
    %v3444 = vadd.bf16 %v3302, %v3371
    %v3445 = vadd.bf16 %v3303, %v3371
    %v3446 = vadd.bf16 %v3304, %v3371
    %v3447 = vadd.bf16 %v3305, %v3371
    %v3448 = vadd.bf16 %v3306, %v3371
    %v3449 = vadd.bf16 %v3307, %v3371
    %v3450 = vadd.bf16 %v3308, %v3371
    %v3451 = vadd.bf16 %v3309, %v3371
    %v3452 = vadd.bf16 %v3310, %v3371
    %v3453 = vadd.bf16 %v3311, %v3371
    %v3454 = vadd.bf16 %v3312, %v3371
    %v3455 = vadd.bf16 %v3313, %v3371
    %v3456 = vadd.bf16 %v3314, %v3371
    %v3457 = vadd.bf16 %v3315, %v3371
    %v3458 = vadd.bf16 %v3316, %v3371
    %v3459 = vadd.bf16 %v3317, %v3371
    %v3460 = vadd.bf16 %v3318, %v3371
    %v3461 = vadd.bf16 %v3319, %v3371
    %v3462 = vadd.bf16 %v3320, %v3371
    %v3463 = vadd.bf16 %v3321, %v3371
    %v3464 = vadd.bf16 %v3322, %v3371
    %v3465 = vadd.bf16 %v3323, %v3371
    %v3466 = vadd.bf16 %v3324, %v3371
    %v3467 = vadd.bf16 %v3325, %v3371
    %v3468 = vadd.bf16 %v3326, %v3371
    %v3469 = vadd.bf16 %v3327, %v3371
    %v3470 = vadd.bf16 %v3328, %v3371
    %v3471 = vadd.bf16 %v3329, %v3371
    %v3472 = vadd.bf16 %v3330, %v3371
    %v3473 = vadd.bf16 %v3331, %v3371
    %v3474 = vadd.bf16 %v3332, %v3371
    %v3475 = vadd.bf16 %v3333, %v3371
    %v3476 = vadd.bf16 %v3334, %v3371
    %v3477 = vadd.bf16 %v3335, %v3371
    %v3478 = vadd.bf16 %v3336, %v3371
    %v3479 = vadd.bf16 %v3337, %v3371
    %v3480 = vadd.bf16 %v3338, %v3371
    %v3481 = vadd.bf16 %v3339, %v3371
    %v3482 = vadd.bf16 %v3340, %v3371
    %v3483 = vadd.bf16 %v3341, %v3371
    %v3484 = vadd.bf16 %v3342, %v3371
    %v3485 = vadd.bf16 %v3343, %v3371
    %v3486 = vadd.bf16 %v3344, %v3371
    %v3487 = vadd.bf16 %v3345, %v3371
    %v3488 = vadd.bf16 %v3346, %v3371
    %v3489 = vadd.bf16 %v3347, %v3371
    %v3490 = vadd.bf16 %v3348, %v3371
    %v3491 = vadd.bf16 %v3349, %v3371
    %v3492 = vadd.bf16 %v3350, %v3371
    %v3493 = vadd.bf16 %v3351, %v3371
    %v3494 = vadd.bf16 %v3352, %v3371
    %v3495 = vadd.bf16 %v3353, %v3371
    %v3496 = vadd.bf16 %v3354, %v3371
    %v3497 = vadd.bf16 %v3355, %v3371
    %v3498 = vadd.bf16 %v3356, %v3371
    %v3499 = vadd.bf16 %v3357, %v3371
    %v3500 = vadd.bf16 %v3358, %v3371
    %v3501 = vld [vmem:[#allocation9] sm:$0xf]
    %v3502 = vld [vmem:[#allocation9 + $0x4] sm:$0xf]
    %v3503 = vld [vmem:[#allocation9 + $0x8] sm:$0xf]
    %v3504 = vld [vmem:[#allocation9 + $0xc] sm:$0xf]
    %v3505 = vld [vmem:[#allocation9 + $0x10] sm:$0xf]
    %v3506 = vld [vmem:[#allocation9 + $0x14] sm:$0xf]
    %v3507 = vld [vmem:[#allocation9 + $0x18] sm:$0xf]
    %v3508 = vld [vmem:[#allocation9 + $0x1c] sm:$0xf]
    %v3509 = vld [vmem:[#allocation9 + $0x20] sm:$0xf]
    %v3510 = vld [vmem:[#allocation9 + $0x24] sm:$0xf]
    %v3511 = vld [vmem:[#allocation9 + $0x28] sm:$0xf]
    %v3512 = vld [vmem:[#allocation9 + $0x2c] sm:$0xf]
    %v3513 = vld [vmem:[#allocation9 + $0x30] sm:$0xf]
    %v3514 = vld [vmem:[#allocation9 + $0x34] sm:$0xf]
    %v3515 = vld [vmem:[#allocation9 + $0x38] sm:$0xf]
    %v3516 = vld [vmem:[#allocation9 + $0x3c] sm:$0xf]
    %v3517 = vld [vmem:[#allocation9 + $0x40] sm:$0xf]
    %v3518 = vld [vmem:[#allocation9 + $0x44] sm:$0xf]
    %v3519 = vld [vmem:[#allocation9 + $0x48] sm:$0xf]
    %v3520 = vld [vmem:[#allocation9 + $0x4c] sm:$0xf]
    %v3521 = vld [vmem:[#allocation9 + $0x50] sm:$0xf]
    %v3522 = vld [vmem:[#allocation9 + $0x54] sm:$0xf]
    %v3523 = vld [vmem:[#allocation9 + $0x58] sm:$0xf]
    %v3524 = vld [vmem:[#allocation9 + $0x5c] sm:$0xf]
    %v3525 = vld [vmem:[#allocation9 + $0x60] sm:$0xf]
    %v3526 = vld [vmem:[#allocation9 + $0x64] sm:$0xf]
    %v3527 = vld [vmem:[#allocation9 + $0x68] sm:$0xf]
    %v3528 = vld [vmem:[#allocation9 + $0x6c] sm:$0xf]
    %v3529 = vld [vmem:[#allocation9 + $0x70] sm:$0xf]
    %v3530 = vld [vmem:[#allocation9 + $0x74] sm:$0xf]
    %v3531 = vld [vmem:[#allocation9 + $0x78] sm:$0xf]
    %v3532 = vld [vmem:[#allocation9 + $0x7c] sm:$0xf]
    %v3533 = vld [vmem:[#allocation9 + $0x80] sm:$0xf]
    %v3534 = vld [vmem:[#allocation9 + $0x84] sm:$0xf]
    %v3535 = vld [vmem:[#allocation9 + $0x88] sm:$0xf]
    %v3536 = vld [vmem:[#allocation9 + $0x8c] sm:$0xf]
    %v3537 = vld [vmem:[#allocation9 + $0x90] sm:$0xf]
    %v3538 = vld [vmem:[#allocation9 + $0x94] sm:$0xf]
    %v3539 = vld [vmem:[#allocation9 + $0x98] sm:$0xf]
    %v3540 = vld [vmem:[#allocation9 + $0x9c] sm:$0xf]
    %v3541 = vld [vmem:[#allocation9 + $0xa0] sm:$0xf]
    %v3542 = vld [vmem:[#allocation9 + $0xa4] sm:$0xf]
    %v3543 = vld [vmem:[#allocation9 + $0xa8] sm:$0xf]
    %v3544 = vld [vmem:[#allocation9 + $0xac] sm:$0xf]
    %v3545 = vld [vmem:[#allocation9 + $0xb0] sm:$0xf]
    %v3546 = vld [vmem:[#allocation9 + $0xb4] sm:$0xf]
    %v3547 = vld [vmem:[#allocation9 + $0xb8] sm:$0xf]
    %v3548 = vld [vmem:[#allocation9 + $0xbc] sm:$0xf]
    %v3549 = vld [vmem:[#allocation9 + $0xc0] sm:$0xf]
    %v3550 = vld [vmem:[#allocation9 + $0xc4] sm:$0xf]
    %v3551 = vld [vmem:[#allocation9 + $0xc8] sm:$0xf]
    %v3552 = vld [vmem:[#allocation9 + $0xcc] sm:$0xf]
    %v3553 = vld [vmem:[#allocation9 + $0xd0] sm:$0xf]
    %v3554 = vld [vmem:[#allocation9 + $0xd4] sm:$0xf]
    %v3555 = vld [vmem:[#allocation9 + $0xd8] sm:$0xf]
    %v3556 = vld [vmem:[#allocation9 + $0xdc] sm:$0xf]
    %v3557 = vld [vmem:[#allocation9 + $0xe0] sm:$0xf]
    %v3558 = vld [vmem:[#allocation9 + $0xe4] sm:$0xf]
    %v3559 = vld [vmem:[#allocation9 + $0xe8] sm:$0xf]
    %v3560 = vld [vmem:[#allocation9 + $0xec] sm:$0xf]
    %v3561 = vld [vmem:[#allocation9 + $0xf0] sm:$0xf]
    %v3562 = vld [vmem:[#allocation9 + $0xf4] sm:$0xf]
    %v3563 = vld [vmem:[#allocation9 + $0xf8] sm:$0xf]
    %v3564 = vld [vmem:[#allocation9 + $0xfc] sm:$0xf]
    %v3629 = vunpack.c.l.b16 %v3501
    %v3630 = vunpack.c.l.b16 %v3502
    %v3631 = vunpack.c.l.b16 %v3503
    %v3632 = vunpack.c.l.b16 %v3504
    %v3633 = vunpack.c.l.b16 %v3505
    %v3634 = vunpack.c.l.b16 %v3506
    %v3635 = vunpack.c.l.b16 %v3507
    %v3636 = vunpack.c.l.b16 %v3508
    %v3637 = vunpack.c.l.b16 %v3509
    %v3638 = vunpack.c.l.b16 %v3510
    %v3639 = vunpack.c.l.b16 %v3511
    %v3640 = vunpack.c.l.b16 %v3512
    %v3641 = vunpack.c.l.b16 %v3513
    %v3642 = vunpack.c.l.b16 %v3514
    %v3643 = vunpack.c.l.b16 %v3515
    %v3644 = vunpack.c.l.b16 %v3516
    %v3645 = vunpack.c.l.b16 %v3517
    %v3646 = vunpack.c.l.b16 %v3518
    %v3647 = vunpack.c.l.b16 %v3519
    %v3648 = vunpack.c.l.b16 %v3520
    %v3649 = vunpack.c.l.b16 %v3521
    %v3650 = vunpack.c.l.b16 %v3522
    %v3651 = vunpack.c.l.b16 %v3523
    %v3652 = vunpack.c.l.b16 %v3524
    %v3653 = vunpack.c.l.b16 %v3525
    %v3654 = vunpack.c.l.b16 %v3526
    %v3655 = vunpack.c.l.b16 %v3527
    %v3656 = vunpack.c.l.b16 %v3528
    %v3657 = vunpack.c.l.b16 %v3529
    %v3658 = vunpack.c.l.b16 %v3530
    %v3659 = vunpack.c.l.b16 %v3531
    %v3660 = vunpack.c.l.b16 %v3532
    %v3661 = vunpack.c.l.b16 %v3533
    %v3662 = vunpack.c.l.b16 %v3534
    %v3663 = vunpack.c.l.b16 %v3535
    %v3664 = vunpack.c.l.b16 %v3536
    %v3665 = vunpack.c.l.b16 %v3537
    %v3666 = vunpack.c.l.b16 %v3538
    %v3667 = vunpack.c.l.b16 %v3539
    %v3668 = vunpack.c.l.b16 %v3540
    %v3669 = vunpack.c.l.b16 %v3541
    %v3670 = vunpack.c.l.b16 %v3542
    %v3671 = vunpack.c.l.b16 %v3543
    %v3672 = vunpack.c.l.b16 %v3544
    %v3673 = vunpack.c.l.b16 %v3545
    %v3674 = vunpack.c.l.b16 %v3546
    %v3675 = vunpack.c.l.b16 %v3547
    %v3676 = vunpack.c.l.b16 %v3548
    %v3677 = vunpack.c.l.b16 %v3549
    %v3678 = vunpack.c.l.b16 %v3550
    %v3679 = vunpack.c.l.b16 %v3551
    %v3680 = vunpack.c.l.b16 %v3552
    %v3681 = vunpack.c.l.b16 %v3553
    %v3682 = vunpack.c.l.b16 %v3554
    %v3683 = vunpack.c.l.b16 %v3555
    %v3684 = vunpack.c.l.b16 %v3556
    %v3685 = vunpack.c.l.b16 %v3557
    %v3686 = vunpack.c.l.b16 %v3558
    %v3687 = vunpack.c.l.b16 %v3559
    %v3688 = vunpack.c.l.b16 %v3560
    %v3689 = vunpack.c.l.b16 %v3561
    %v3690 = vunpack.c.l.b16 %v3562
    %v3691 = vunpack.c.l.b16 %v3563
    %v3692 = vunpack.c.l.b16 %v3564
    %v3693 = vpack.c.b16 %v3630, %v3629
    %v3694 = vpack.c.b16 %v3632, %v3631
    %v3695 = vpack.c.b16 %v3634, %v3633
    %v3696 = vpack.c.b16 %v3636, %v3635
    %v3697 = vpack.c.b16 %v3638, %v3637
    %v3698 = vpack.c.b16 %v3640, %v3639
    %v3699 = vpack.c.b16 %v3642, %v3641
    %v3700 = vpack.c.b16 %v3644, %v3643
    %v3701 = vpack.c.b16 %v3646, %v3645
    %v3702 = vpack.c.b16 %v3648, %v3647
    %v3703 = vpack.c.b16 %v3650, %v3649
    %v3704 = vpack.c.b16 %v3652, %v3651
    %v3705 = vpack.c.b16 %v3654, %v3653
    %v3706 = vpack.c.b16 %v3656, %v3655
    %v3707 = vpack.c.b16 %v3658, %v3657
    %v3708 = vpack.c.b16 %v3660, %v3659
    %v3709 = vpack.c.b16 %v3662, %v3661
    %v3710 = vpack.c.b16 %v3664, %v3663
    %v3711 = vpack.c.b16 %v3666, %v3665
    %v3712 = vpack.c.b16 %v3668, %v3667
    %v3713 = vpack.c.b16 %v3670, %v3669
    %v3714 = vpack.c.b16 %v3672, %v3671
    %v3715 = vpack.c.b16 %v3674, %v3673
    %v3716 = vpack.c.b16 %v3676, %v3675
    %v3717 = vpack.c.b16 %v3678, %v3677
    %v3718 = vpack.c.b16 %v3680, %v3679
    %v3719 = vpack.c.b16 %v3682, %v3681
    %v3720 = vpack.c.b16 %v3684, %v3683
    %v3721 = vpack.c.b16 %v3686, %v3685
    %v3722 = vpack.c.b16 %v3688, %v3687
    %v3723 = vpack.c.b16 %v3690, %v3689
    %v3724 = vpack.c.b16 %v3692, %v3691
    %3757 = vmatprep.subr.bf16.mxu0 0
    %3758 = vmatpush1.bf16.msra.mxu0 %v3700
    %3759 = vmatprep.subr.bf16.mxu0 0
    %3760 = vmatpush1.bf16.msra.mxu0 %v3699
    %3761 = vmatprep.subr.bf16.mxu0 0
    %3762 = vmatpush1.bf16.msra.mxu0 %v3698
    %3763 = vmatprep.subr.bf16.mxu0 0
    %3764 = vmatpush1.bf16.msra.mxu0 %v3697
    %3765 = vmatprep.subr.bf16.mxu0 0
    %3766 = vmatpush1.bf16.msra.mxu0 %v3696
    %3767 = vmatprep.subr.bf16.mxu0 0
    %3768 = vmatpush1.bf16.msra.mxu0 %v3695
    %3769 = vmatprep.subr.bf16.mxu0 0
    %3770 = vmatpush1.bf16.msra.mxu0 %v3694
    %3771 = vmatprep.subr.bf16.mxu0 0
    %3772 = vmatpush1.bf16.msra.mxu0 %v3693
    %3773 = vmatprep.subr.bf16.mxu0 0
    %3774 = vmatpush2.bf16.msra.mxu0 %v3708
    %3775 = vmatprep.subr.bf16.mxu0 0
    %3776 = vmatpush2.bf16.msra.mxu0 %v3707
    %3777 = vmatprep.subr.bf16.mxu0 0
    %3778 = vmatpush2.bf16.msra.mxu0 %v3706
    %3779 = vmatprep.subr.bf16.mxu0 0
    %3780 = vmatpush2.bf16.msra.mxu0 %v3705
    %3781 = vmatprep.subr.bf16.mxu0 0
    %3782 = vmatpush2.bf16.msra.mxu0 %v3704
    %3783 = vmatprep.subr.bf16.mxu0 0
    %3784 = vmatpush2.bf16.msra.mxu0 %v3703
    %3785 = vmatprep.subr.bf16.mxu0 0
    %3786 = vmatpush2.bf16.msra.mxu0 %v3702
    %3787 = vmatprep.subr.bf16.mxu0 0
    %3788 = vmatpush2.bf16.msra.mxu0 %v3701
    %3789 = vmatprep.mubr.bf16.mxu0 %v3374
    %3790 = vmatmul.mubr.bf16.gmra.mxu0 %v3373
    %v3791 = vpop.f32.mrf.mxu0
    %v3792 = vadd.f32 0.0, %v3791
    %v3793 = vpop.f32.mrf.mxu0
    %v3794 = vpop.f32.mrf.mxu0
    %v3795 = vadd.f32 0.0, %v3794
    %v3796 = vpop.f32.mrf.mxu0
    %3797 = vmatprep.mubr.bf16.mxu0 %v3378
    %3798 = vmatmul.mubr.bf16.gmra.mxu0 %v3377
    %v3799 = vpop.f32.mrf.mxu0
    %v3800 = vadd.f32 0.0, %v3799
    %v3801 = vpop.f32.mrf.mxu0
    %v3802 = vpop.f32.mrf.mxu0
    %v3803 = vadd.f32 0.0, %v3802
    %v3804 = vpop.f32.mrf.mxu0
    %3805 = vmatprep.mubr.bf16.mxu0 %v3382
    %3806 = vmatmul.mubr.bf16.gmra.mxu0 %v3381
    %v3807 = vpop.f32.mrf.mxu0
    %v3808 = vadd.f32 0.0, %v3807
    %v3809 = vpop.f32.mrf.mxu0
    %v3810 = vpop.f32.mrf.mxu0
    %v3811 = vadd.f32 0.0, %v3810
    %v3812 = vpop.f32.mrf.mxu0
    %3813 = vmatprep.mubr.bf16.mxu0 %v3386
    %3814 = vmatmul.mubr.bf16.gmra.mxu0 %v3385
    %v3815 = vpop.f32.mrf.mxu0
    %v3816 = vadd.f32 0.0, %v3815
    %v3817 = vpop.f32.mrf.mxu0
    %v3818 = vpop.f32.mrf.mxu0
    %v3819 = vadd.f32 0.0, %v3818
    %v3820 = vpop.f32.mrf.mxu0
    %3821 = vmatprep.mubr.bf16.mxu0 %v3390
    %3822 = vmatmul.mubr.bf16.gmra.mxu0 %v3389
    %v3823 = vpop.f32.mrf.mxu0
    %v3824 = vadd.f32 0.0, %v3823
    %v3825 = vpop.f32.mrf.mxu0
    %v3826 = vpop.f32.mrf.mxu0
    %v3827 = vadd.f32 0.0, %v3826
    %v3828 = vpop.f32.mrf.mxu0
    %3829 = vmatprep.mubr.bf16.mxu0 %v3394
    %3830 = vmatmul.mubr.bf16.gmra.mxu0 %v3393
    %v3831 = vpop.f32.mrf.mxu0
    %v3832 = vadd.f32 0.0, %v3831
    %v3833 = vpop.f32.mrf.mxu0
    %v3834 = vpop.f32.mrf.mxu0
    %v3835 = vadd.f32 0.0, %v3834
    %v3836 = vpop.f32.mrf.mxu0
    %3837 = vmatprep.mubr.bf16.mxu0 %v3398
    %3838 = vmatmul.mubr.bf16.gmra.mxu0 %v3397
    %v3839 = vpop.f32.mrf.mxu0
    %v3840 = vadd.f32 0.0, %v3839
    %v3841 = vpop.f32.mrf.mxu0
    %v3842 = vpop.f32.mrf.mxu0
    %v3843 = vadd.f32 0.0, %v3842
    %v3844 = vpop.f32.mrf.mxu0
    %3845 = vmatprep.mubr.bf16.mxu0 %v3402
    %3846 = vmatmul.mubr.bf16.gmra.mxu0 %v3401
    %v3847 = vpop.f32.mrf.mxu0
    %v3848 = vadd.f32 0.0, %v3847
    %v3849 = vpop.f32.mrf.mxu0
    %v3850 = vpop.f32.mrf.mxu0
    %v3851 = vadd.f32 0.0, %v3850
    %v3852 = vpop.f32.mrf.mxu0
    %3853 = vmatprep.mubr.bf16.mxu0 %v3406
    %3854 = vmatmul.mubr.bf16.gmra.mxu0 %v3405
    %v3855 = vpop.f32.mrf.mxu0
    %v3856 = vadd.f32 0.0, %v3855
    %v3857 = vpop.f32.mrf.mxu0
    %v3858 = vpop.f32.mrf.mxu0
    %v3859 = vadd.f32 0.0, %v3858
    %v3860 = vpop.f32.mrf.mxu0
    %3861 = vmatprep.mubr.bf16.mxu0 %v3410
    %3862 = vmatmul.mubr.bf16.gmra.mxu0 %v3409
    %v3863 = vpop.f32.mrf.mxu0
    %v3864 = vadd.f32 0.0, %v3863
    %v3865 = vpop.f32.mrf.mxu0
    %v3866 = vpop.f32.mrf.mxu0
    %v3867 = vadd.f32 0.0, %v3866
    %v3868 = vpop.f32.mrf.mxu0
    %3869 = vmatprep.mubr.bf16.mxu0 %v3414
    %3870 = vmatmul.mubr.bf16.gmra.mxu0 %v3413
    %v3871 = vpop.f32.mrf.mxu0
    %v3872 = vadd.f32 0.0, %v3871
    %v3873 = vpop.f32.mrf.mxu0
    %v3874 = vpop.f32.mrf.mxu0
    %v3875 = vadd.f32 0.0, %v3874
    %v3876 = vpop.f32.mrf.mxu0
    %3877 = vmatprep.mubr.bf16.mxu0 %v3418
    %3878 = vmatmul.mubr.bf16.gmra.mxu0 %v3417
    %v3879 = vpop.f32.mrf.mxu0
    %v3880 = vadd.f32 0.0, %v3879
    %v3881 = vpop.f32.mrf.mxu0
    %v3882 = vpop.f32.mrf.mxu0
    %v3883 = vadd.f32 0.0, %v3882
    %v3884 = vpop.f32.mrf.mxu0
    %3885 = vmatprep.mubr.bf16.mxu0 %v3422
    %3886 = vmatmul.mubr.bf16.gmra.mxu0 %v3421
    %v3887 = vpop.f32.mrf.mxu0
    %v3888 = vadd.f32 0.0, %v3887
    %v3889 = vpop.f32.mrf.mxu0
    %v3890 = vpop.f32.mrf.mxu0
    %v3891 = vadd.f32 0.0, %v3890
    %v3892 = vpop.f32.mrf.mxu0
    %3893 = vmatprep.mubr.bf16.mxu0 %v3426
    %3894 = vmatmul.mubr.bf16.gmra.mxu0 %v3425
    %v3895 = vpop.f32.mrf.mxu0
    %v3896 = vadd.f32 0.0, %v3895
    %v3897 = vpop.f32.mrf.mxu0
    %v3898 = vpop.f32.mrf.mxu0
    %v3899 = vadd.f32 0.0, %v3898
    %v3900 = vpop.f32.mrf.mxu0
    %3901 = vmatprep.mubr.bf16.mxu0 %v3430
    %3902 = vmatmul.mubr.bf16.gmra.mxu0 %v3429
    %v3903 = vpop.f32.mrf.mxu0
    %v3904 = vadd.f32 0.0, %v3903
    %v3905 = vpop.f32.mrf.mxu0
    %v3906 = vpop.f32.mrf.mxu0
    %v3907 = vadd.f32 0.0, %v3906
    %v3908 = vpop.f32.mrf.mxu0
    %3909 = vmatprep.mubr.bf16.mxu0 %v3434
    %3910 = vmatmul.mubr.bf16.gmra.mxu0 %v3433
    %v3911 = vpop.f32.mrf.mxu0
    %v3912 = vadd.f32 0.0, %v3911
    %v3913 = vpop.f32.mrf.mxu0
    %v3914 = vpop.f32.mrf.mxu0
    %v3915 = vadd.f32 0.0, %v3914
    %v3916 = vpop.f32.mrf.mxu0
    %3917 = vmatprep.mubr.bf16.mxu0 %v3438
    %3918 = vmatmul.mubr.bf16.gmra.mxu0 %v3437
    %v3919 = vpop.f32.mrf.mxu0
    %v3920 = vadd.f32 0.0, %v3919
    %v3921 = vpop.f32.mrf.mxu0
    %v3922 = vpop.f32.mrf.mxu0
    %v3923 = vadd.f32 0.0, %v3922
    %v3924 = vpop.f32.mrf.mxu0
    %3925 = vmatprep.mubr.bf16.mxu0 %v3442
    %3926 = vmatmul.mubr.bf16.gmra.mxu0 %v3441
    %v3927 = vpop.f32.mrf.mxu0
    %v3928 = vadd.f32 0.0, %v3927
    %v3929 = vpop.f32.mrf.mxu0
    %v3930 = vpop.f32.mrf.mxu0
    %v3931 = vadd.f32 0.0, %v3930
    %v3932 = vpop.f32.mrf.mxu0
    %3933 = vmatprep.mubr.bf16.mxu0 %v3446
    %3934 = vmatmul.mubr.bf16.gmra.mxu0 %v3445
    %v3935 = vpop.f32.mrf.mxu0
    %v3936 = vadd.f32 0.0, %v3935
    %v3937 = vpop.f32.mrf.mxu0
    %v3938 = vpop.f32.mrf.mxu0
    %v3939 = vadd.f32 0.0, %v3938
    %v3940 = vpop.f32.mrf.mxu0
    %3941 = vmatprep.mubr.bf16.mxu0 %v3450
    %3942 = vmatmul.mubr.bf16.gmra.mxu0 %v3449
    %v3943 = vpop.f32.mrf.mxu0
    %v3944 = vadd.f32 0.0, %v3943
    %v3945 = vpop.f32.mrf.mxu0
    %v3946 = vpop.f32.mrf.mxu0
    %v3947 = vadd.f32 0.0, %v3946
    %v3948 = vpop.f32.mrf.mxu0
    %3949 = vmatprep.mubr.bf16.mxu0 %v3454
    %3950 = vmatmul.mubr.bf16.gmra.mxu0 %v3453
    %v3951 = vpop.f32.mrf.mxu0
    %v3952 = vadd.f32 0.0, %v3951
    %v3953 = vpop.f32.mrf.mxu0
    %v3954 = vpop.f32.mrf.mxu0
    %v3955 = vadd.f32 0.0, %v3954
    %v3956 = vpop.f32.mrf.mxu0
    %3957 = vmatprep.mubr.bf16.mxu0 %v3458
    %3958 = vmatmul.mubr.bf16.gmra.mxu0 %v3457
    %v3959 = vpop.f32.mrf.mxu0
    %v3960 = vadd.f32 0.0, %v3959
    %v3961 = vpop.f32.mrf.mxu0
    %v3962 = vpop.f32.mrf.mxu0
    %v3963 = vadd.f32 0.0, %v3962
    %v3964 = vpop.f32.mrf.mxu0
    %3965 = vmatprep.mubr.bf16.mxu0 %v3462
    %3966 = vmatmul.mubr.bf16.gmra.mxu0 %v3461
    %v3967 = vpop.f32.mrf.mxu0
    %v3968 = vadd.f32 0.0, %v3967
    %v3969 = vpop.f32.mrf.mxu0
    %v3970 = vpop.f32.mrf.mxu0
    %v3971 = vadd.f32 0.0, %v3970
    %v3972 = vpop.f32.mrf.mxu0
    %3973 = vmatprep.mubr.bf16.mxu0 %v3466
    %3974 = vmatmul.mubr.bf16.gmra.mxu0 %v3465
    %v3975 = vpop.f32.mrf.mxu0
    %v3976 = vadd.f32 0.0, %v3975
    %v3977 = vpop.f32.mrf.mxu0
    %v3978 = vpop.f32.mrf.mxu0
    %v3979 = vadd.f32 0.0, %v3978
    %v3980 = vpop.f32.mrf.mxu0
    %3981 = vmatprep.mubr.bf16.mxu0 %v3470
    %3982 = vmatmul.mubr.bf16.gmra.mxu0 %v3469
    %v3983 = vpop.f32.mrf.mxu0
    %v3984 = vadd.f32 0.0, %v3983
    %v3985 = vpop.f32.mrf.mxu0
    %v3986 = vpop.f32.mrf.mxu0
    %v3987 = vadd.f32 0.0, %v3986
    %v3988 = vpop.f32.mrf.mxu0
    %3989 = vmatprep.mubr.bf16.mxu0 %v3474
    %3990 = vmatmul.mubr.bf16.gmra.mxu0 %v3473
    %v3991 = vpop.f32.mrf.mxu0
    %v3992 = vadd.f32 0.0, %v3991
    %v3993 = vpop.f32.mrf.mxu0
    %v3994 = vpop.f32.mrf.mxu0
    %v3995 = vadd.f32 0.0, %v3994
    %v3996 = vpop.f32.mrf.mxu0
    %3997 = vmatprep.mubr.bf16.mxu0 %v3478
    %3998 = vmatmul.mubr.bf16.gmra.mxu0 %v3477
    %v3999 = vpop.f32.mrf.mxu0
    %v4000 = vadd.f32 0.0, %v3999
    %v4001 = vpop.f32.mrf.mxu0
    %v4002 = vpop.f32.mrf.mxu0
    %v4003 = vadd.f32 0.0, %v4002
    %v4004 = vpop.f32.mrf.mxu0
    %4005 = vmatprep.mubr.bf16.mxu0 %v3482
    %4006 = vmatmul.mubr.bf16.gmra.mxu0 %v3481
    %v4007 = vpop.f32.mrf.mxu0
    %v4008 = vadd.f32 0.0, %v4007
    %v4009 = vpop.f32.mrf.mxu0
    %v4010 = vpop.f32.mrf.mxu0
    %v4011 = vadd.f32 0.0, %v4010
    %v4012 = vpop.f32.mrf.mxu0
    %4013 = vmatprep.mubr.bf16.mxu0 %v3486
    %4014 = vmatmul.mubr.bf16.gmra.mxu0 %v3485
    %v4015 = vpop.f32.mrf.mxu0
    %v4016 = vadd.f32 0.0, %v4015
    %v4017 = vpop.f32.mrf.mxu0
    %v4018 = vpop.f32.mrf.mxu0
    %v4019 = vadd.f32 0.0, %v4018
    %v4020 = vpop.f32.mrf.mxu0
    %4021 = vmatprep.mubr.bf16.mxu0 %v3490
    %4022 = vmatmul.mubr.bf16.gmra.mxu0 %v3489
    %v4023 = vpop.f32.mrf.mxu0
    %v4024 = vadd.f32 0.0, %v4023
    %v4025 = vpop.f32.mrf.mxu0
    %v4026 = vpop.f32.mrf.mxu0
    %v4027 = vadd.f32 0.0, %v4026
    %v4028 = vpop.f32.mrf.mxu0
    %4029 = vmatprep.mubr.bf16.mxu0 %v3494
    %4030 = vmatmul.mubr.bf16.gmra.mxu0 %v3493
    %v4031 = vpop.f32.mrf.mxu0
    %v4032 = vadd.f32 0.0, %v4031
    %v4033 = vpop.f32.mrf.mxu0
    %v4034 = vpop.f32.mrf.mxu0
    %v4035 = vadd.f32 0.0, %v4034
    %v4036 = vpop.f32.mrf.mxu0
    %4037 = vmatprep.mubr.bf16.mxu0 %v3498
    %4038 = vmatmul.mubr.bf16.gmra.mxu0 %v3497
    %v4039 = vpop.f32.mrf.mxu0
    %v4040 = vadd.f32 0.0, %v4039
    %v4041 = vpop.f32.mrf.mxu0
    %v4042 = vpop.f32.mrf.mxu0
    %v4043 = vadd.f32 0.0, %v4042
    %v4044 = vpop.f32.mrf.mxu0
    %4045 = vdwg.mxu0
    %4046 = vmatprep.subr.bf16.mxu0 0
    %4047 = vmatpush1.bf16.msra.mxu0 %v3716
    %4048 = vmatprep.subr.bf16.mxu0 0
    %4049 = vmatpush1.bf16.msra.mxu0 %v3715
    %4050 = vmatprep.subr.bf16.mxu0 0
    %4051 = vmatpush1.bf16.msra.mxu0 %v3714
    %4052 = vmatprep.subr.bf16.mxu0 0
    %4053 = vmatpush1.bf16.msra.mxu0 %v3713
    %4054 = vmatprep.subr.bf16.mxu0 0
    %4055 = vmatpush1.bf16.msra.mxu0 %v3712
    %4056 = vmatprep.subr.bf16.mxu0 0
    %4057 = vmatpush1.bf16.msra.mxu0 %v3711
    %4058 = vmatprep.subr.bf16.mxu0 0
    %4059 = vmatpush1.bf16.msra.mxu0 %v3710
    %4060 = vmatprep.subr.bf16.mxu0 0
    %4061 = vmatpush1.bf16.msra.mxu0 %v3709
    %4062 = vmatprep.subr.bf16.mxu0 0
    %4063 = vmatpush2.bf16.msra.mxu0 %v3724
    %4064 = vmatprep.subr.bf16.mxu0 0
    %4065 = vmatpush2.bf16.msra.mxu0 %v3723
    %4066 = vmatprep.subr.bf16.mxu0 0
    %4067 = vmatpush2.bf16.msra.mxu0 %v3722
    %4068 = vmatprep.subr.bf16.mxu0 0
    %4069 = vmatpush2.bf16.msra.mxu0 %v3721
    %4070 = vmatprep.subr.bf16.mxu0 0
    %4071 = vmatpush2.bf16.msra.mxu0 %v3720
    %4072 = vmatprep.subr.bf16.mxu0 0
    %4073 = vmatpush2.bf16.msra.mxu0 %v3719
    %4074 = vmatprep.subr.bf16.mxu0 0
    %4075 = vmatpush2.bf16.msra.mxu0 %v3718
    %4076 = vmatprep.subr.bf16.mxu0 0
    %4077 = vmatpush2.bf16.msra.mxu0 %v3717
    %4078 = vmatprep.mubr.bf16.mxu0 %v3376
    %4079 = vmatmul.mubr.bf16.gmra.mxu0 %v3375
    %v4080 = vpop.f32.mrf.mxu0
    %v4081 = vadd.f32 %v3792, %v4080
    %v4082 = vpop.f32.mrf.mxu0
    %v4083 = vpop.f32.mrf.mxu0
    %v4084 = vadd.f32 %v3795, %v4083
    %v4085 = vpop.f32.mrf.mxu0
    %4086 = vmatprep.mubr.bf16.mxu0 %v3380
    %4087 = vmatmul.mubr.bf16.gmra.mxu0 %v3379
    %v4088 = vpop.f32.mrf.mxu0
    %v4089 = vadd.f32 %v3800, %v4088
    %v4090 = vpop.f32.mrf.mxu0
    %v4091 = vpop.f32.mrf.mxu0
    %v4092 = vadd.f32 %v3803, %v4091
    %v4093 = vpop.f32.mrf.mxu0
    %4094 = vmatprep.mubr.bf16.mxu0 %v3384
    %4095 = vmatmul.mubr.bf16.gmra.mxu0 %v3383
    %v4096 = vpop.f32.mrf.mxu0
    %v4097 = vadd.f32 %v3808, %v4096
    %v4098 = vpop.f32.mrf.mxu0
    %v4099 = vpop.f32.mrf.mxu0
    %v4100 = vadd.f32 %v3811, %v4099
    %v4101 = vpop.f32.mrf.mxu0
    %4102 = vmatprep.mubr.bf16.mxu0 %v3388
    %4103 = vmatmul.mubr.bf16.gmra.mxu0 %v3387
    %v4104 = vpop.f32.mrf.mxu0
    %v4105 = vadd.f32 %v3816, %v4104
    %v4106 = vpop.f32.mrf.mxu0
    %v4107 = vpop.f32.mrf.mxu0
    %v4108 = vadd.f32 %v3819, %v4107
    %v4109 = vpop.f32.mrf.mxu0
    %4110 = vmatprep.mubr.bf16.mxu0 %v3392
    %4111 = vmatmul.mubr.bf16.gmra.mxu0 %v3391
    %v4112 = vpop.f32.mrf.mxu0
    %v4113 = vadd.f32 %v3824, %v4112
    %v4114 = vpop.f32.mrf.mxu0
    %v4115 = vpop.f32.mrf.mxu0
    %v4116 = vadd.f32 %v3827, %v4115
    %v4117 = vpop.f32.mrf.mxu0
    %4118 = vmatprep.mubr.bf16.mxu0 %v3396
    %4119 = vmatmul.mubr.bf16.gmra.mxu0 %v3395
    %v4120 = vpop.f32.mrf.mxu0
    %v4121 = vadd.f32 %v3832, %v4120
    %v4122 = vpop.f32.mrf.mxu0
    %v4123 = vpop.f32.mrf.mxu0
    %v4124 = vadd.f32 %v3835, %v4123
    %v4125 = vpop.f32.mrf.mxu0
    %4126 = vmatprep.mubr.bf16.mxu0 %v3400
    %4127 = vmatmul.mubr.bf16.gmra.mxu0 %v3399
    %v4128 = vpop.f32.mrf.mxu0
    %v4129 = vadd.f32 %v3840, %v4128
    %v4130 = vpop.f32.mrf.mxu0
    %v4131 = vpop.f32.mrf.mxu0
    %v4132 = vadd.f32 %v3843, %v4131
    %v4133 = vpop.f32.mrf.mxu0
    %4134 = vmatprep.mubr.bf16.mxu0 %v3404
    %4135 = vmatmul.mubr.bf16.gmra.mxu0 %v3403
    %v4136 = vpop.f32.mrf.mxu0
    %v4137 = vadd.f32 %v3848, %v4136
    %v4138 = vpop.f32.mrf.mxu0
    %v4139 = vpop.f32.mrf.mxu0
    %v4140 = vadd.f32 %v3851, %v4139
    %v4141 = vpop.f32.mrf.mxu0
    %4142 = vmatprep.mubr.bf16.mxu0 %v3408
    %4143 = vmatmul.mubr.bf16.gmra.mxu0 %v3407
    %v4144 = vpop.f32.mrf.mxu0
    %v4145 = vadd.f32 %v3856, %v4144
    %v4146 = vpop.f32.mrf.mxu0
    %v4147 = vpop.f32.mrf.mxu0
    %v4148 = vadd.f32 %v3859, %v4147
    %v4149 = vpop.f32.mrf.mxu0
    %4150 = vmatprep.mubr.bf16.mxu0 %v3412
    %4151 = vmatmul.mubr.bf16.gmra.mxu0 %v3411
    %v4152 = vpop.f32.mrf.mxu0
    %v4153 = vadd.f32 %v3864, %v4152
    %v4154 = vpop.f32.mrf.mxu0
    %v4155 = vpop.f32.mrf.mxu0
    %v4156 = vadd.f32 %v3867, %v4155
    %v4157 = vpop.f32.mrf.mxu0
    %4158 = vmatprep.mubr.bf16.mxu0 %v3416
    %4159 = vmatmul.mubr.bf16.gmra.mxu0 %v3415
    %v4160 = vpop.f32.mrf.mxu0
    %v4161 = vadd.f32 %v3872, %v4160
    %v4162 = vpop.f32.mrf.mxu0
    %v4163 = vpop.f32.mrf.mxu0
    %v4164 = vadd.f32 %v3875, %v4163
    %v4165 = vpop.f32.mrf.mxu0
    %4166 = vmatprep.mubr.bf16.mxu0 %v3420
    %4167 = vmatmul.mubr.bf16.gmra.mxu0 %v3419
    %v4168 = vpop.f32.mrf.mxu0
    %v4169 = vadd.f32 %v3880, %v4168
    %v4170 = vpop.f32.mrf.mxu0
    %v4171 = vpop.f32.mrf.mxu0
    %v4172 = vadd.f32 %v3883, %v4171
    %v4173 = vpop.f32.mrf.mxu0
    %4174 = vmatprep.mubr.bf16.mxu0 %v3424
    %4175 = vmatmul.mubr.bf16.gmra.mxu0 %v3423
    %v4176 = vpop.f32.mrf.mxu0
    %v4177 = vadd.f32 %v3888, %v4176
    %v4178 = vpop.f32.mrf.mxu0
    %v4179 = vpop.f32.mrf.mxu0
    %v4180 = vadd.f32 %v3891, %v4179
    %v4181 = vpop.f32.mrf.mxu0
    %4182 = vmatprep.mubr.bf16.mxu0 %v3428
    %4183 = vmatmul.mubr.bf16.gmra.mxu0 %v3427
    %v4184 = vpop.f32.mrf.mxu0
    %v4185 = vadd.f32 %v3896, %v4184
    %v4186 = vpop.f32.mrf.mxu0
    %v4187 = vpop.f32.mrf.mxu0
    %v4188 = vadd.f32 %v3899, %v4187
    %v4189 = vpop.f32.mrf.mxu0
    %4190 = vmatprep.mubr.bf16.mxu0 %v3432
    %4191 = vmatmul.mubr.bf16.gmra.mxu0 %v3431
    %v4192 = vpop.f32.mrf.mxu0
    %v4193 = vadd.f32 %v3904, %v4192
    %v4194 = vpop.f32.mrf.mxu0
    %v4195 = vpop.f32.mrf.mxu0
    %v4196 = vadd.f32 %v3907, %v4195
    %v4197 = vpop.f32.mrf.mxu0
    %4198 = vmatprep.mubr.bf16.mxu0 %v3436
    %4199 = vmatmul.mubr.bf16.gmra.mxu0 %v3435
    %v4200 = vpop.f32.mrf.mxu0
    %v4201 = vadd.f32 %v3912, %v4200
    %v4202 = vpop.f32.mrf.mxu0
    %v4203 = vpop.f32.mrf.mxu0
    %v4204 = vadd.f32 %v3915, %v4203
    %v4205 = vpop.f32.mrf.mxu0
    %4206 = vmatprep.mubr.bf16.mxu0 %v3440
    %4207 = vmatmul.mubr.bf16.gmra.mxu0 %v3439
    %v4208 = vpop.f32.mrf.mxu0
    %v4209 = vadd.f32 %v3920, %v4208
    %v4210 = vpop.f32.mrf.mxu0
    %v4211 = vpop.f32.mrf.mxu0
    %v4212 = vadd.f32 %v3923, %v4211
    %v4213 = vpop.f32.mrf.mxu0
    %4214 = vmatprep.mubr.bf16.mxu0 %v3444
    %4215 = vmatmul.mubr.bf16.gmra.mxu0 %v3443
    %v4216 = vpop.f32.mrf.mxu0
    %v4217 = vadd.f32 %v3928, %v4216
    %v4218 = vpop.f32.mrf.mxu0
    %v4219 = vpop.f32.mrf.mxu0
    %v4220 = vadd.f32 %v3931, %v4219
    %v4221 = vpop.f32.mrf.mxu0
    %4222 = vmatprep.mubr.bf16.mxu0 %v3448
    %4223 = vmatmul.mubr.bf16.gmra.mxu0 %v3447
    %v4224 = vpop.f32.mrf.mxu0
    %v4225 = vadd.f32 %v3936, %v4224
    %v4226 = vpop.f32.mrf.mxu0
    %v4227 = vpop.f32.mrf.mxu0
    %v4228 = vadd.f32 %v3939, %v4227
    %v4229 = vpop.f32.mrf.mxu0
    %4230 = vmatprep.mubr.bf16.mxu0 %v3452
    %4231 = vmatmul.mubr.bf16.gmra.mxu0 %v3451
    %v4232 = vpop.f32.mrf.mxu0
    %v4233 = vadd.f32 %v3944, %v4232
    %v4234 = vpop.f32.mrf.mxu0
    %v4235 = vpop.f32.mrf.mxu0
    %v4236 = vadd.f32 %v3947, %v4235
    %v4237 = vpop.f32.mrf.mxu0
    %4238 = vmatprep.mubr.bf16.mxu0 %v3456
    %4239 = vmatmul.mubr.bf16.gmra.mxu0 %v3455
    %v4240 = vpop.f32.mrf.mxu0
    %v4241 = vadd.f32 %v3952, %v4240
    %v4242 = vpop.f32.mrf.mxu0
    %v4243 = vpop.f32.mrf.mxu0
    %v4244 = vadd.f32 %v3955, %v4243
    %v4245 = vpop.f32.mrf.mxu0
    %4246 = vmatprep.mubr.bf16.mxu0 %v3460
    %4247 = vmatmul.mubr.bf16.gmra.mxu0 %v3459
    %v4248 = vpop.f32.mrf.mxu0
    %v4249 = vadd.f32 %v3960, %v4248
    %v4250 = vpop.f32.mrf.mxu0
    %v4251 = vpop.f32.mrf.mxu0
    %v4252 = vadd.f32 %v3963, %v4251
    %v4253 = vpop.f32.mrf.mxu0
    %4254 = vmatprep.mubr.bf16.mxu0 %v3464
    %4255 = vmatmul.mubr.bf16.gmra.mxu0 %v3463
    %v4256 = vpop.f32.mrf.mxu0
    %v4257 = vadd.f32 %v3968, %v4256
    %v4258 = vpop.f32.mrf.mxu0
    %v4259 = vpop.f32.mrf.mxu0
    %v4260 = vadd.f32 %v3971, %v4259
    %v4261 = vpop.f32.mrf.mxu0
    %4262 = vmatprep.mubr.bf16.mxu0 %v3468
    %4263 = vmatmul.mubr.bf16.gmra.mxu0 %v3467
    %v4264 = vpop.f32.mrf.mxu0
    %v4265 = vadd.f32 %v3976, %v4264
    %v4266 = vpop.f32.mrf.mxu0
    %v4267 = vpop.f32.mrf.mxu0
    %v4268 = vadd.f32 %v3979, %v4267
    %v4269 = vpop.f32.mrf.mxu0
    %4270 = vmatprep.mubr.bf16.mxu0 %v3472
    %4271 = vmatmul.mubr.bf16.gmra.mxu0 %v3471
    %v4272 = vpop.f32.mrf.mxu0
    %v4273 = vadd.f32 %v3984, %v4272
    %v4274 = vpop.f32.mrf.mxu0
    %v4275 = vpop.f32.mrf.mxu0
    %v4276 = vadd.f32 %v3987, %v4275
    %v4277 = vpop.f32.mrf.mxu0
    %4278 = vmatprep.mubr.bf16.mxu0 %v3476
    %4279 = vmatmul.mubr.bf16.gmra.mxu0 %v3475
    %v4280 = vpop.f32.mrf.mxu0
    %v4281 = vadd.f32 %v3992, %v4280
    %v4282 = vpop.f32.mrf.mxu0
    %v4283 = vpop.f32.mrf.mxu0
    %v4284 = vadd.f32 %v3995, %v4283
    %v4285 = vpop.f32.mrf.mxu0
    %4286 = vmatprep.mubr.bf16.mxu0 %v3480
    %4287 = vmatmul.mubr.bf16.gmra.mxu0 %v3479
    %v4288 = vpop.f32.mrf.mxu0
    %v4289 = vadd.f32 %v4000, %v4288
    %v4290 = vpop.f32.mrf.mxu0
    %v4291 = vpop.f32.mrf.mxu0
    %v4292 = vadd.f32 %v4003, %v4291
    %v4293 = vpop.f32.mrf.mxu0
    %4294 = vmatprep.mubr.bf16.mxu0 %v3484
    %4295 = vmatmul.mubr.bf16.gmra.mxu0 %v3483
    %v4296 = vpop.f32.mrf.mxu0
    %v4297 = vadd.f32 %v4008, %v4296
    %v4298 = vpop.f32.mrf.mxu0
    %v4299 = vpop.f32.mrf.mxu0
    %v4300 = vadd.f32 %v4011, %v4299
    %v4301 = vpop.f32.mrf.mxu0
    %4302 = vmatprep.mubr.bf16.mxu0 %v3488
    %4303 = vmatmul.mubr.bf16.gmra.mxu0 %v3487
    %v4304 = vpop.f32.mrf.mxu0
    %v4305 = vadd.f32 %v4016, %v4304
    %v4306 = vpop.f32.mrf.mxu0
    %v4307 = vpop.f32.mrf.mxu0
    %v4308 = vadd.f32 %v4019, %v4307
    %v4309 = vpop.f32.mrf.mxu0
    %4310 = vmatprep.mubr.bf16.mxu0 %v3492
    %4311 = vmatmul.mubr.bf16.gmra.mxu0 %v3491
    %v4312 = vpop.f32.mrf.mxu0
    %v4313 = vadd.f32 %v4024, %v4312
    %v4314 = vpop.f32.mrf.mxu0
    %v4315 = vpop.f32.mrf.mxu0
    %v4316 = vadd.f32 %v4027, %v4315
    %v4317 = vpop.f32.mrf.mxu0
    %4318 = vmatprep.mubr.bf16.mxu0 %v3496
    %4319 = vmatmul.mubr.bf16.gmra.mxu0 %v3495
    %v4320 = vpop.f32.mrf.mxu0
    %v4321 = vadd.f32 %v4032, %v4320
    %v4322 = vpop.f32.mrf.mxu0
    %v4323 = vpop.f32.mrf.mxu0
    %v4324 = vadd.f32 %v4035, %v4323
    %v4325 = vpop.f32.mrf.mxu0
    %4326 = vmatprep.mubr.bf16.mxu0 %v3500
    %4327 = vmatmul.mubr.bf16.gmra.mxu0 %v3499
    %v4328 = vpop.f32.mrf.mxu0
    %v4329 = vadd.f32 %v4040, %v4328
    %v4330 = vpop.f32.mrf.mxu0
    %v4331 = vpop.f32.mrf.mxu0
    %v4332 = vadd.f32 %v4043, %v4331
    %v4333 = vpop.f32.mrf.mxu0
    %4334 = vdwg.mxu0
    %v4335 = vadd.f32 %v997, %v4081
    %v4336 = vadd.f32 %v998, %v4084
    %v4337 = vadd.f32 %v999, %v4089
    %v4338 = vadd.f32 %v1000, %v4092
    %v4339 = vadd.f32 %v1001, %v4097
    %v4340 = vadd.f32 %v1002, %v4100
    %v4341 = vadd.f32 %v1003, %v4105
    %v4342 = vadd.f32 %v1004, %v4108
    %v4343 = vadd.f32 %v1005, %v4113
    %v4344 = vadd.f32 %v1006, %v4116
    %v4345 = vadd.f32 %v1007, %v4121
    %v4346 = vadd.f32 %v1008, %v4124
    %v4347 = vadd.f32 %v1009, %v4129
    %v4348 = vadd.f32 %v1010, %v4132
    %v4349 = vadd.f32 %v1011, %v4137
    %v4350 = vadd.f32 %v1012, %v4140
    %v4351 = vadd.f32 %v1013, %v4145
    %v4352 = vadd.f32 %v1014, %v4148
    %v4353 = vadd.f32 %v1015, %v4153
    %v4354 = vadd.f32 %v1016, %v4156
    %v4355 = vadd.f32 %v1017, %v4161
    %v4356 = vadd.f32 %v1018, %v4164
    %v4357 = vadd.f32 %v1019, %v4169
    %v4358 = vadd.f32 %v1020, %v4172
    %v4359 = vadd.f32 %v1021, %v4177
    %v4360 = vadd.f32 %v1022, %v4180
    %v4361 = vadd.f32 %v1023, %v4185
    %v4362 = vadd.f32 %v1024, %v4188
    %v4363 = vadd.f32 %v1025, %v4193
    %v4364 = vadd.f32 %v1026, %v4196
    %v4365 = vadd.f32 %v1027, %v4201
    %v4366 = vadd.f32 %v1028, %v4204
    %v4367 = vadd.f32 %v1029, %v4209
    %v4368 = vadd.f32 %v1030, %v4212
    %v4369 = vadd.f32 %v1031, %v4217
    %v4370 = vadd.f32 %v1032, %v4220
    %v4371 = vadd.f32 %v1033, %v4225
    %v4372 = vadd.f32 %v1034, %v4228
    %v4373 = vadd.f32 %v1035, %v4233
    %v4374 = vadd.f32 %v1036, %v4236
    %v4375 = vadd.f32 %v1037, %v4241
    %v4376 = vadd.f32 %v1038, %v4244
    %v4377 = vadd.f32 %v1039, %v4249
    %v4378 = vadd.f32 %v1040, %v4252
    %v4379 = vadd.f32 %v1041, %v4257
    %v4380 = vadd.f32 %v1042, %v4260
    %v4381 = vadd.f32 %v1043, %v4265
    %v4382 = vadd.f32 %v1044, %v4268
    %v4383 = vadd.f32 %v1045, %v4273
    %v4384 = vadd.f32 %v1046, %v4276
    %v4385 = vadd.f32 %v1047, %v4281
    %v4386 = vadd.f32 %v1048, %v4284
    %v4387 = vadd.f32 %v1049, %v4289
    %v4388 = vadd.f32 %v1050, %v4292
    %v4389 = vadd.f32 %v1051, %v4297
    %v4390 = vadd.f32 %v1052, %v4300
    %v4391 = vadd.f32 %v1053, %v4305
    %v4392 = vadd.f32 %v1054, %v4308
    %v4393 = vadd.f32 %v1055, %v4313
    %v4394 = vadd.f32 %v1056, %v4316
    %v4395 = vadd.f32 %v1057, %v4321
    %v4396 = vadd.f32 %v1058, %v4324
    %v4397 = vadd.f32 %v1059, %v4329
    %v4398 = vadd.f32 %v1060, %v4332
    %4399 = vst [vmem:[#allocation12] sm:$0xff] %v4335
    %4400 = vst [vmem:[#allocation12 + $0x8] sm:$0xff] %v4336
    %4401 = vst [vmem:[#allocation12 + $0x10] sm:$0xff] %v4337
    %4402 = vst [vmem:[#allocation12 + $0x18] sm:$0xff] %v4338
    %4403 = vst [vmem:[#allocation12 + $0x20] sm:$0xff] %v4339
    %4404 = vst [vmem:[#allocation12 + $0x28] sm:$0xff] %v4340
    %4405 = vst [vmem:[#allocation12 + $0x30] sm:$0xff] %v4341
    %4406 = vst [vmem:[#allocation12 + $0x38] sm:$0xff] %v4342
    %4407 = vst [vmem:[#allocation12 + $0x40] sm:$0xff] %v4343
    %4408 = vst [vmem:[#allocation12 + $0x48] sm:$0xff] %v4344
    %4409 = vst [vmem:[#allocation12 + $0x50] sm:$0xff] %v4345
    %4410 = vst [vmem:[#allocation12 + $0x58] sm:$0xff] %v4346
    %4411 = vst [vmem:[#allocation12 + $0x60] sm:$0xff] %v4347
    %4412 = vst [vmem:[#allocation12 + $0x68] sm:$0xff] %v4348
    %4413 = vst [vmem:[#allocation12 + $0x70] sm:$0xff] %v4349
    %4414 = vst [vmem:[#allocation12 + $0x78] sm:$0xff] %v4350
    %4415 = vst [vmem:[#allocation12 + $0x80] sm:$0xff] %v4351
    %4416 = vst [vmem:[#allocation12 + $0x88] sm:$0xff] %v4352
    %4417 = vst [vmem:[#allocation12 + $0x90] sm:$0xff] %v4353
    %4418 = vst [vmem:[#allocation12 + $0x98] sm:$0xff] %v4354
    %4419 = vst [vmem:[#allocation12 + $0xa0] sm:$0xff] %v4355
    %4420 = vst [vmem:[#allocation12 + $0xa8] sm:$0xff] %v4356
    %4421 = vst [vmem:[#allocation12 + $0xb0] sm:$0xff] %v4357
    %4422 = vst [vmem:[#allocation12 + $0xb8] sm:$0xff] %v4358
    %4423 = vst [vmem:[#allocation12 + $0xc0] sm:$0xff] %v4359
    %4424 = vst [vmem:[#allocation12 + $0xc8] sm:$0xff] %v4360
    %4425 = vst [vmem:[#allocation12 + $0xd0] sm:$0xff] %v4361
    %4426 = vst [vmem:[#allocation12 + $0xd8] sm:$0xff] %v4362
    %4427 = vst [vmem:[#allocation12 + $0xe0] sm:$0xff] %v4363
    %4428 = vst [vmem:[#allocation12 + $0xe8] sm:$0xff] %v4364
    %4429 = vst [vmem:[#allocation12 + $0xf0] sm:$0xff] %v4365
    %4430 = vst [vmem:[#allocation12 + $0xf8] sm:$0xff] %v4366
    %4431 = vst [vmem:[#allocation12 + $0x100] sm:$0xff] %v4367
    %4432 = vst [vmem:[#allocation12 + $0x108] sm:$0xff] %v4368
    %4433 = vst [vmem:[#allocation12 + $0x110] sm:$0xff] %v4369
    %4434 = vst [vmem:[#allocation12 + $0x118] sm:$0xff] %v4370
    %4435 = vst [vmem:[#allocation12 + $0x120] sm:$0xff] %v4371
    %4436 = vst [vmem:[#allocation12 + $0x128] sm:$0xff] %v4372
    %4437 = vst [vmem:[#allocation12 + $0x130] sm:$0xff] %v4373
    %4438 = vst [vmem:[#allocation12 + $0x138] sm:$0xff] %v4374
    %4439 = vst [vmem:[#allocation12 + $0x140] sm:$0xff] %v4375
    %4440 = vst [vmem:[#allocation12 + $0x148] sm:$0xff] %v4376
    %4441 = vst [vmem:[#allocation12 + $0x150] sm:$0xff] %v4377
    %4442 = vst [vmem:[#allocation12 + $0x158] sm:$0xff] %v4378
    %4443 = vst [vmem:[#allocation12 + $0x160] sm:$0xff] %v4379
    %4444 = vst [vmem:[#allocation12 + $0x168] sm:$0xff] %v4380
    %4445 = vst [vmem:[#allocation12 + $0x170] sm:$0xff] %v4381
    %4446 = vst [vmem:[#allocation12 + $0x178] sm:$0xff] %v4382
    %4447 = vst [vmem:[#allocation12 + $0x180] sm:$0xff] %v4383
    %4448 = vst [vmem:[#allocation12 + $0x188] sm:$0xff] %v4384
    %4449 = vst [vmem:[#allocation12 + $0x190] sm:$0xff] %v4385
    %4450 = vst [vmem:[#allocation12 + $0x198] sm:$0xff] %v4386
    %4451 = vst [vmem:[#allocation12 + $0x1a0] sm:$0xff] %v4387
    %4452 = vst [vmem:[#allocation12 + $0x1a8] sm:$0xff] %v4388
    %4453 = vst [vmem:[#allocation12 + $0x1b0] sm:$0xff] %v4389
    %4454 = vst [vmem:[#allocation12 + $0x1b8] sm:$0xff] %v4390
    %4455 = vst [vmem:[#allocation12 + $0x1c0] sm:$0xff] %v4391
    %4456 = vst [vmem:[#allocation12 + $0x1c8] sm:$0xff] %v4392
    %4457 = vst [vmem:[#allocation12 + $0x1d0] sm:$0xff] %v4393
    %4458 = vst [vmem:[#allocation12 + $0x1d8] sm:$0xff] %v4394
    %4459 = vst [vmem:[#allocation12 + $0x1e0] sm:$0xff] %v4395
    %4460 = vst [vmem:[#allocation12 + $0x1e8] sm:$0xff] %v4396
    %4461 = vst [vmem:[#allocation12 + $0x1f0] sm:$0xff] %v4397
    %4462 = vst [vmem:[#allocation12 + $0x1f8] sm:$0xff] %v4398
    // Predicated region
    $region42: #{tpu_custom_call.1} parent=1 // pred_check
      _
    $region43: #{tpu_custom_call.1} parent=1 // pred_check_branch
      %4464 = sbr.rel (0) target = $region45
    $region44: #{tpu_custom_call.1} parent=1 // pred_region
      %s4466 = ssub.s32 8192, 8192
      %4467 = vsyncadd [#allocation4], %s4466
      %s4468 = sshll.u32 [#allocation12], 4
      %s4469 = int_to_ptr.vmem [resolvable:$true] %s4468
      %4474 = dma.vmem_to_hbm [thread:$0]  %s4469, 8192, %s5, [#allocation4], 128, 128, 8
    $region45: #{tpu_custom_call.1} parent=1 // pred_fallthru
      _
    // Predicated region
    $region46: #{tpu_custom_call.1} parent=1 // pred_check
      _
    $region47: #{tpu_custom_call.1} parent=1 // pred_check_branch
      %4476 = sbr.rel (0) target = $region49
    $region48: #{tpu_custom_call.1} parent=1 // pred_region
      %4477 = dma.done [#allocation4], 8192
    $region49: #{tpu_custom_call.1} parent=1 // pred_fallthru
      _
    %4478 = vsyncpa [#allocation3], 1
    %4479 = vsyncpa [#allocation7], 1
    %4480 = vsyncpa [#allocation10], 1
    %4481 = vsyncpa [#allocation4], 1
    %4482 = vsyncpa [#allocation5], 1

</llo_original>
